<compile_context>
chip_gen: v6e
topology: v6e:2x2x1
jax: 0.10.0
libtpu: 0.0.40
codegen_flags: <defaults>
</compile_context>

<pallas_src>
import math

import jax
import jax.numpy as jnp
import numpy as np
from jax.experimental import pallas as pl
from jax.experimental.pallas import tpu as pltpu


# ---------------------------------------------------------------------------
# Parameter initialization (USV factorized weights, BN stats)
# ---------------------------------------------------------------------------

def init_conv_usv(key, cin, cout, ksize):
    r = cin
    cols = cin * ksize * ksize
    k1, k2, k3 = jax.random.split(key, 3)
    return {
        'U': jax.random.normal(k1, (cout, r), jnp.float32) / math.sqrt(r),
        'S': jax.random.uniform(k2, (r,), jnp.float32, 0.5, 1.5),
        'V': jax.random.normal(k3, (r, cols), jnp.float32) / math.sqrt(cols),
        'ksize': ksize,
    }


def init_linear_usv(key, size_in, size_out):
    r = size_in
    k1, k2, k3, k4 = jax.random.split(key, 4)
    return {
        'U': jax.random.normal(k1, (size_out, r), jnp.float32) / math.sqrt(r),
        'S': jax.random.uniform(k2, (r,), jnp.float32, 0.5, 1.5),
        'V': jax.random.normal(k3, (r, size_in), jnp.float32) / math.sqrt(size_in),
        'bias': jax.random.normal(k4, (size_out,), jnp.float32) * 0.01,
    }


def init_bn(key, c):
    k1, k2, k3, k4 = jax.random.split(key, 4)
    return {
        'gamma': 1.0 + 0.1 * jax.random.normal(k1, (c,), jnp.float32),
        'beta': 0.1 * jax.random.normal(k2, (c,), jnp.float32),
        'mean': 0.1 * jax.random.normal(k3, (c,), jnp.float32),
        'var': jax.random.uniform(k4, (c,), jnp.float32, 0.5, 1.5),
    }


def init_resnet_small_usv(key, num_blocks=(1, 1, 1), num_classes=10):
    keys = jax.random.split(key, 4)
    params = {
        'conv1': init_conv_usv(keys[0], 3, 16, 3),
        'bn1': init_bn(keys[1], 16),
        'layers': [],
    }
    in_planes = 16
    planes_list = (16, 32, 64)
    strides_list = (1, 2, 2)
    lkeys = jax.random.split(keys[2], sum(num_blocks) * 4)
    ki = 0
    for planes, stride0, nb in zip(planes_list, strides_list, num_blocks):
        layer = []
        for s in [stride0] + [1] * (nb - 1):
            blk = {
                'conv1': init_conv_usv(lkeys[ki + 0], in_planes, planes, 3),
                'bn1': init_bn(lkeys[ki + 1], planes),
                'conv2': init_conv_usv(lkeys[ki + 2], planes, planes, 3),
                'bn2': init_bn(lkeys[ki + 3], planes),
                'stride': s,
                'in_planes': in_planes,
                'planes': planes,
            }
            ki += 4
            layer.append(blk)
            in_planes = planes
        params['layers'].append(layer)
    params['linear'] = init_linear_usv(keys[3], 64, num_classes)
    return params


# ---------------------------------------------------------------------------
# One-time weight preparation (hoisted out of the per-forward path)
# ---------------------------------------------------------------------------

def _usv_conv_weight(conv):
    """(U*S)@V reshaped to (Cout, Cin, k, k) -- matches torch .view()."""
    w = (conv['U'] * conv['S'][None, :]) @ conv['V']
    k = conv['ksize']
    cout = w.shape[0]
    cin = w.shape[1] // (k * k)
    return w.reshape(cout, cin, k, k)


def _usv_linear_weight(lin):
    return (lin['U'] * lin['S'][None, :]) @ lin['V']          # (out, in)


def _fold_bn(bn, eps=1e-5):
    g = np.asarray(bn['gamma'], np.float32)
    v = np.asarray(bn['var'], np.float32)
    m = np.asarray(bn['mean'], np.float32)
    b = np.asarray(bn['beta'], np.float32)
    scale = g / np.sqrt(v + eps)
    return scale, b - m * scale


def _band_matrix(w4, w_in, stride, xpad):
    """Fused dy-concatenated banded weight (3*xpad, Wo*Cout) for a 3x3 conv
    (padding=1).  With the activation laid out as X[row, w*Cin + c], the conv
    is:  out = concat_dy(slab_dy) @ B_fused  (the H padding / stride live in
    the slab selection, the W padding lives in the band)."""
    cout, cin, kh, kw = w4.shape
    wo = (w_in + 2 - kw) // stride + 1
    a = np.zeros((kw, w_in, wo), np.float32)                  # a[dx, wi, wo]
    for dx in range(kw):
        for o in range(wo):
            wi = stride * o + dx - 1
            if 0 <= wi < w_in:
                a[dx, wi, o] = 1.0
    band = np.einsum('xuw,oidx->duiwo', a, w4)                # (dy, wi, ci, wo, co)
    band = band.reshape(kh, w_in * cin, wo * cout)
    full = np.zeros((kh, xpad, wo * cout), np.float32)
    full[:, :w_in * cin, :] = band
    return full.reshape(kh * xpad, wo * cout), wo


def _shortcut_matrix(w_in, cin, cout):
    """Option-'A' shortcut W-subsample + channel zero-pad as one 0/1 selector:
    lane (2*wo)*cin + c  ->  lane wo*cout + cout//4 + c."""
    wo = w_in // 2
    s = np.zeros((w_in * cin, wo * cout), np.float32)
    cpad = cout // 4
    for o in range(wo):
        for c in range(cin):
            s[(2 * o) * cin + c, o * cout + cpad + c] = 1.0
    return s


def prepare_model(params, in_hw=(16, 16)):
    """Builds the packed bf16 weight matrix + f32 shift rows and the static
    plan consumed by the kernel."""
    h0, w0 = in_hw
    NCPAD = 256                       # lane-dense width shared by every matmul
    w_segs, s_rows = [], []
    plan = {'convs': [], 'blocks': [], 'in_hw': (int(h0), int(w0)),
            'stem_xpad': 128, 'ncpad': NCPAD}

    def add_w(mat):
        mat = np.asarray(mat, np.float32)
        assert mat.shape[0] % 16 == 0 and mat.shape[1] == NCPAD, mat.shape
        off = sum(m.shape[0] for m in w_segs)
        w_segs.append(mat)
        return off, mat.shape[0]

    def add_s(vec):
        row = np.zeros((1, NCPAD), np.float32)
        v = np.asarray(vec, np.float32).ravel()
        row[0, :v.shape[0]] = v
        s_rows.append(row)
        return len(s_rows) - 1

    def add_conv(conv, bn, hin, win, stride, xpad):
        scale, shift = _fold_bn(bn)
        w4 = np.asarray(_usv_conv_weight(conv)) * scale[:, None, None, None]
        cout = w4.shape[0]
        band, wo = _band_matrix(w4, win, stride, xpad)
        ho = (hin + 2 - 3) // stride + 1
        off, rows = add_w(band)
        si = add_s(np.tile(shift, wo))
        plan['convs'].append({'off': off, 'rows': rows, 'si': si, 'hin': hin,
                              'ho': ho, 'stride': stride, 'xin': xpad,
                              'nout': wo * cout})
        return len(plan['convs']) - 1, ho, wo, cout

    # Stem: conv1 + bn1 (ReLU applied in-kernel).  Input lanes padded 48->128.
    h, w = h0, w0
    plan['stem'], h, w, c = add_conv(params['conv1'], params['bn1'],
                                     h, w, 1, plan['stem_xpad'])

    for layer in params['layers']:
        for blk in layer:
            stride, cin = blk['stride'], c
            c1, h1, w1, p1 = add_conv(blk['conv1'], blk['bn1'], h, w, stride, w * cin)
            c2, h2, w2, cout = add_conv(blk['conv2'], blk['bn2'], h1, w1, 1, w1 * p1)
            if stride != 1 or cin != cout:
                off, rows = add_w(_shortcut_matrix(w, cin, cout))
                sc = {'off': off, 'rows': rows}
            else:
                sc = None
            plan['blocks'].append({'c1': c1, 'c2': c2, 'sc': sc})
            h, w, c = h2, w2, cout

    # Classifier: global average pool folded into the linear weight.
    lin = params['linear']
    wlin = np.asarray(_usv_linear_weight(lin))                # (classes, c)
    nclass = int(wlin.shape[0])
    m = np.zeros((w * c, NCPAD), np.float32)
    m[:, :nclass] = np.tile(wlin.T, (w, 1)) / float(h * w)
    off, rows = add_w(m)
    bi = add_s(np.asarray(lin['bias']))
    plan['lin'] = {'off': off, 'rows': rows, 'si': bi, 'h': h}
    plan['nclass'] = nclass

    wpack = jnp.asarray(np.concatenate(w_segs, axis=0), jnp.bfloat16)
    spack = jnp.asarray(np.concatenate(s_rows, axis=0), jnp.float32)
    plan['wpack_rows'] = int(wpack.shape[0])
    return (wpack, spack), plan


# ---------------------------------------------------------------------------
# The fused whole-network Pallas kernel (one grid step = bt images)
# ---------------------------------------------------------------------------

def _make_kernel(plan, bt):
    convs = plan['convs']
    blocks = plan['blocks']
    lin = plan['lin']
    ncpad = plan['ncpad']
    f32, bf16 = jnp.float32, jnp.bfloat16

    def kernel(x_ref, w_ref, s_ref, o_ref):

        def conv(a_bf, meta):
            """a_bf: (hin*bt, xin) bf16 slab (rows = h*bt + image) ->
               (ho*bt, 256) f32 (conv + folded BN affine)."""
            hin, ho, stride, xin = meta['hin'], meta['ho'], meta['stride'], meta['xin']
            zrows = jnp.zeros((bt, xin), bf16)
            ap = jnp.concatenate([zrows, a_bf, zrows], axis=0)   # halo rows in H
            if stride == 1:
                slabs = [ap[dy * bt:(dy + ho) * bt, :] for dy in range(3)]
            else:
                # Pair-group rows so the ::2 selection is an aligned sublane
                # slice (no strided loads, no selection matmul).
                assert hin + 2 == 2 * (ho + 1)
                ap3 = ap.reshape(ho + 1, 2 * bt, xin)
                slabs = [ap3[0:ho, 0:bt, :],          # rows dy=0: 0,2,4,...
                         ap3[0:ho, bt:2 * bt, :],     # rows dy=1: 1,3,5,...
                         ap3[1:ho + 1, 0:bt, :]]      # rows dy=2: 2,4,6,...
                slabs = [s.reshape(ho * bt, xin) for s in slabs]
            xk = jnp.concatenate(slabs, axis=-1)                 # (ho*bt, 3*xin)
            wmat = w_ref[meta['off']:meta['off'] + meta['rows'], :]
            y = jnp.dot(xk, wmat, preferred_element_type=f32)    # one MXU op/conv
            return y + s_ref[meta['si']:meta['si'] + 1, :]       # BN shift (f32)

        # Stem conv + BN + ReLU.
        act = jnp.maximum(conv(x_ref[0], convs[plan['stem']]), 0.0)

        # BasicBlocks with option-'A' shortcuts.
        for blk in blocks:
            c1, c2 = convs[blk['c1']], convs[blk['c2']]
            a_bf = act.astype(bf16)                 # cast once, reused below
            h1 = jnp.maximum(conv(a_bf, c1), 0.0)
            y = conv(h1.astype(bf16), c2)
            if blk['sc'] is None:
                res = act                           # identity residual (f32)
            else:
                hin, xin = c1['hin'], c1['xin']
                ho = hin // 2
                sub = a_bf.reshape(ho, 2 * bt, xin)[:, 0:bt, :]   # H ::2
                sub = sub.reshape(ho * bt, xin)
                smat = w_ref[blk['sc']['off']:blk['sc']['off'] + blk['sc']['rows'], :]
                res = jnp.dot(sub, smat, preferred_element_type=f32)
            act = jnp.maximum(y + res, 0.0)

        # Global average pool folded into the classifier matmul.
        hL = lin['h']
        mmat = w_ref[lin['off']:lin['off'] + lin['rows'], :]
        z = jnp.dot(act.astype(bf16), mmat, preferred_element_type=f32)  # (hL*bt, 256)
        z = jnp.sum(z.reshape(hL, bt, ncpad), axis=0)                    # (bt, 256)
        o_ref[0] = z + s_ref[lin['si']:lin['si'] + 1, :]

    return kernel


def build_forward(plan, bt=32):
    """bt = images per grid step.  32 saturates the v5e 128-row MXU at the
    deepest stage; use 64 on v6e/v7x for M >= 256."""
    assert bt % 16 == 0, "batch tile must be a multiple of 16 (bf16 sublane tile)"
    kernel = _make_kernel(plan, bt)
    h0, w0 = plan['in_hw']
    xpad = plan['stem_xpad']
    ncpad = plan['ncpad']
    nclass = plan['nclass']
    wrows = plan['wpack_rows']

    def forward(weights, x_nchw):
        wpack, spack = weights
        n, cin = x_nchw.shape[0], x_nchw.shape[1]
        nt = -(-n // bt)
        n_pad = nt * bt
        # NCHW -> (tile, H*bt, 128) lane-dense bf16 slabs (tiny XLA prep).
        x = jnp.transpose(x_nchw, (0, 2, 3, 1)).reshape(n, h0, w0 * cin)
        x = jnp.pad(x, ((0, n_pad - n), (0, 0), (0, xpad - w0 * cin)))
        x = x.reshape(nt, bt, h0, xpad).transpose(0, 2, 1, 3)
        x = x.reshape(nt, h0 * bt, xpad).astype(jnp.bfloat16)

        out = pl.pallas_call(
            kernel,
            out_shape=jax.ShapeDtypeStruct((nt, bt, ncpad), jnp.float32),
            grid=(nt,),
            in_specs=[
                pl.BlockSpec((1, h0 * bt, xpad), lambda i: (i, 0, 0)),
                pl.BlockSpec((wrows, ncpad), lambda i: (0, 0)),   # constant weights
                pl.BlockSpec(spack.shape, lambda i: (0, 0)),      # constant shifts
            ],
            out_specs=pl.BlockSpec((1, bt, ncpad), lambda i: (i, 0, 0)),
            compiler_params=pltpu.CompilerParams(
                dimension_semantics=("parallel",)),   # v7x: tiles across TCs
        )(x, wpack, spack)
        return out[:, :, :nclass].reshape(n_pad, nclass)[:n]

    return forward


# ---------------------------------------------------------------------------
# Pure-JAX f32 reference (eval-mode BN) for a tolerance check
# ---------------------------------------------------------------------------

def ref_forward(params, x, eps=1e-5):
    def conv(x, cp, stride):
        w4 = _usv_conv_weight(cp)
        return jax.lax.conv_general_dilated(
            x, w4, (stride, stride), ((1, 1), (1, 1)),
            dimension_numbers=('NCHW', 'OIHW', 'NCHW'))

    def bn(x, b):
        s = b['gamma'] * jax.lax.rsqrt(b['var'] + eps)
        return ((x - b['mean'][None, :, None, None]) * s[None, :, None, None]
                + b['beta'][None, :, None, None])

    out = jax.nn.relu(bn(conv(x, params['conv1'], 1), params['bn1']))
    for layer in params['layers']:
        for blk in layer:
            h = jax.nn.relu(bn(conv(out, blk['conv1'], blk['stride']), blk['bn1']))
            y = bn(conv(h, blk['conv2'], 1), blk['bn2'])
            if blk['stride'] != 1 or blk['in_planes'] != blk['planes']:
                sc = out[:, :, ::2, ::2]
                cpad = blk['planes'] // 4
                back = blk['planes'] - blk['in_planes'] - cpad
                sc = jnp.pad(sc, ((0, 0), (cpad, back), (0, 0), (0, 0)))
            else:
                sc = out
            out = jax.nn.relu(y + sc)
    pooled = jnp.mean(out, axis=(2, 3))
    lin = params['linear']
    return pooled @ _usv_linear_weight(lin).T + lin['bias']


# ---------------------------------------------------------------------------

if __name__ == "__main__":
    key = jax.random.PRNGKey(0)
    pkey, xkey = jax.random.split(key)
    params = init_resnet_small_usv(pkey, num_blocks=(1, 1, 1), num_classes=10)
    x = jax.random.normal(xkey, (2, 3, 16, 16), jnp.float32)     # NCHW input

    # Effective weights (USV product, BN folding, fused band / selection /
    # pooled-linear matrices) are built once here, outside the forward path.
    weights, plan = prepare_model(params, in_hw=(16, 16))

    fwd = jax.jit(build_forward(plan, bt=32))
    logits = fwd(weights, x)
    jax.block_until_ready(logits)

    assert logits.shape == (2, 10), logits.shape
    assert bool(jnp.all(jnp.isfinite(logits)))

    # Tolerance check against a float32 XLA reference (bf16 MXU operands
    # => expect ~1e-2 relative deviation, not bit equality).
    ref = ref_forward(params, x)
    err = float(jnp.max(jnp.abs(logits - ref)) / (jnp.max(jnp.abs(ref)) + 1e-6))
    assert err < 0.1, f"relative-to-max error too large: {err}"

    print("KERNEL_OK")
</pallas_src>

<mosaic_0001>
module attributes {stable_mosaic.version = 11 : i64} {
  func.func @kernel(%arg0: i32, %arg1: memref<1x512x128xbf16, #tpu.memory_space<vmem>>, %arg2: memref<5760x256xbf16, #tpu.memory_space<vmem>>, %arg3: memref<8x256xf32, #tpu.memory_space<vmem>>, %arg4: memref<1x32x256xf32, #tpu.memory_space<vmem>>) attributes {dimension_semantics = [#tpu.dimension_semantics<parallel>], iteration_bounds = array<i64: 1>, scalar_prefetch = 0 : i64, scratch_operands = 0 : i64, tpu.core_type = #tpu.core_type<tc>, window_params = [{transform_indices = @transform_0, window_bounds = array<i64: 1, 512, 128>}, {pipeline_mode = #tpu.pipeline_mode<synchronous>, transform_indices = @transform_1, window_bounds = array<i64: 5760, 256>}, {pipeline_mode = #tpu.pipeline_mode<synchronous>, transform_indices = @transform_2, window_bounds = array<i64: 8, 256>}, {transform_indices = @transform_3, window_bounds = array<i64: 1, 32, 256>}]} {
    %c0 = arith.constant 0 : index
    %c0_0 = arith.constant 0 : index
    %c0_1 = arith.constant 0 : index
    %0 = vector.load %arg1[%c0, %c0_0, %c0_1] : memref<1x512x128xbf16, #tpu.memory_space<vmem>>, vector<1x512x128xbf16>
    %1 = vector.shape_cast %0 : vector<1x512x128xbf16> to vector<512x128xbf16>
    %cst = arith.constant 0.000000e+00 : bf16
    %2 = vector.broadcast %cst : bf16 to vector<32x128xbf16>
    %3 = tpu.concatenate %2, %1, %2 in 0 : vector<32x128xbf16>, vector<512x128xbf16>, vector<32x128xbf16> -> vector<576x128xbf16>
    %4 = vector.extract_strided_slice %3 {offsets = [0, 0], sizes = [512, 128], strides = [1, 1]} : vector<576x128xbf16> to vector<512x128xbf16>
    %5 = vector.extract_strided_slice %3 {offsets = [32, 0], sizes = [512, 128], strides = [1, 1]} : vector<576x128xbf16> to vector<512x128xbf16>
    %6 = vector.extract_strided_slice %3 {offsets = [64, 0], sizes = [512, 128], strides = [1, 1]} : vector<576x128xbf16> to vector<512x128xbf16>
    %7 = tpu.concatenate %4, %5, %6 in 1 : vector<512x128xbf16>, vector<512x128xbf16>, vector<512x128xbf16> -> vector<512x384xbf16>
    %c0_2 = arith.constant 0 : index
    %c0_3 = arith.constant 0 : index
    %8 = vector.load %arg2[%c0_2, %c0_3] : memref<5760x256xbf16, #tpu.memory_space<vmem>>, vector<384x256xbf16>
    %cst_4 = arith.constant dense<0.000000e+00> : vector<512x256xf32>
    %9 = tpu.matmul %7, %8, %cst_4 {dimension_numbers = #tpu.dot_dimension_numbers<[1], [0], [0], [1], [0, 0, 1, 1], [], []>} : vector<512x384xbf16>, vector<384x256xbf16>, vector<512x256xf32> -> vector<512x256xf32>
    %c0_5 = arith.constant 0 : index
    %c0_6 = arith.constant 0 : index
    %10 = vector.load %arg3[%c0_5, %c0_6] : memref<8x256xf32, #tpu.memory_space<vmem>>, vector<1x256xf32>
    %11 = vector.broadcast %10 : vector<1x256xf32> to vector<512x256xf32>
    %12 = arith.addf %9, %11 : vector<512x256xf32>
    %cst_7 = arith.constant 0.000000e+00 : f32
    %13 = vector.broadcast %cst_7 : f32 to vector<512x256xf32>
    %14 = arith.maximumf %12, %13 : vector<512x256xf32>
    %15 = arith.truncf %14 : vector<512x256xf32> to vector<512x256xbf16>
    %cst_8 = arith.constant 0.000000e+00 : bf16
    %16 = vector.broadcast %cst_8 : bf16 to vector<32x256xbf16>
    %17 = tpu.concatenate %16, %15, %16 in 0 : vector<32x256xbf16>, vector<512x256xbf16>, vector<32x256xbf16> -> vector<576x256xbf16>
    %18 = vector.extract_strided_slice %17 {offsets = [0, 0], sizes = [512, 256], strides = [1, 1]} : vector<576x256xbf16> to vector<512x256xbf16>
    %19 = vector.extract_strided_slice %17 {offsets = [32, 0], sizes = [512, 256], strides = [1, 1]} : vector<576x256xbf16> to vector<512x256xbf16>
    %20 = vector.extract_strided_slice %17 {offsets = [64, 0], sizes = [512, 256], strides = [1, 1]} : vector<576x256xbf16> to vector<512x256xbf16>
    %21 = tpu.concatenate %18, %19, %20 in 1 : vector<512x256xbf16>, vector<512x256xbf16>, vector<512x256xbf16> -> vector<512x768xbf16>
    %c384 = arith.constant 384 : index
    %c0_9 = arith.constant 0 : index
    %22 = vector.load %arg2[%c384, %c0_9] : memref<5760x256xbf16, #tpu.memory_space<vmem>>, vector<768x256xbf16>
    %cst_10 = arith.constant dense<0.000000e+00> : vector<512x256xf32>
    %23 = tpu.matmul %21, %22, %cst_10 {dimension_numbers = #tpu.dot_dimension_numbers<[1], [0], [0], [1], [0, 0, 1, 1], [], []>} : vector<512x768xbf16>, vector<768x256xbf16>, vector<512x256xf32> -> vector<512x256xf32>
    %c1 = arith.constant 1 : index
    %c0_11 = arith.constant 0 : index
    %24 = vector.load %arg3[%c1, %c0_11] : memref<8x256xf32, #tpu.memory_space<vmem>>, vector<1x256xf32>
    %25 = vector.broadcast %24 : vector<1x256xf32> to vector<512x256xf32>
    %26 = arith.addf %23, %25 : vector<512x256xf32>
    %cst_12 = arith.constant 0.000000e+00 : f32
    %27 = vector.broadcast %cst_12 : f32 to vector<512x256xf32>
    %28 = arith.maximumf %26, %27 : vector<512x256xf32>
    %29 = arith.truncf %28 : vector<512x256xf32> to vector<512x256xbf16>
    %cst_13 = arith.constant 0.000000e+00 : bf16
    %30 = vector.broadcast %cst_13 : bf16 to vector<32x256xbf16>
    %31 = tpu.concatenate %30, %29, %30 in 0 : vector<32x256xbf16>, vector<512x256xbf16>, vector<32x256xbf16> -> vector<576x256xbf16>
    %32 = vector.extract_strided_slice %31 {offsets = [0, 0], sizes = [512, 256], strides = [1, 1]} : vector<576x256xbf16> to vector<512x256xbf16>
    %33 = vector.extract_strided_slice %31 {offsets = [32, 0], sizes = [512, 256], strides = [1, 1]} : vector<576x256xbf16> to vector<512x256xbf16>
    %34 = vector.extract_strided_slice %31 {offsets = [64, 0], sizes = [512, 256], strides = [1, 1]} : vector<576x256xbf16> to vector<512x256xbf16>
    %35 = tpu.concatenate %32, %33, %34 in 1 : vector<512x256xbf16>, vector<512x256xbf16>, vector<512x256xbf16> -> vector<512x768xbf16>
    %c1152 = arith.constant 1152 : index
    %c0_14 = arith.constant 0 : index
    %36 = vector.load %arg2[%c1152, %c0_14] : memref<5760x256xbf16, #tpu.memory_space<vmem>>, vector<768x256xbf16>
    %cst_15 = arith.constant dense<0.000000e+00> : vector<512x256xf32>
    %37 = tpu.matmul %35, %36, %cst_15 {dimension_numbers = #tpu.dot_dimension_numbers<[1], [0], [0], [1], [0, 0, 1, 1], [], []>} : vector<512x768xbf16>, vector<768x256xbf16>, vector<512x256xf32> -> vector<512x256xf32>
    %c2 = arith.constant 2 : index
    %c0_16 = arith.constant 0 : index
    %38 = vector.load %arg3[%c2, %c0_16] : memref<8x256xf32, #tpu.memory_space<vmem>>, vector<1x256xf32>
    %39 = vector.broadcast %38 : vector<1x256xf32> to vector<512x256xf32>
    %40 = arith.addf %37, %39 : vector<512x256xf32>
    %41 = arith.addf %40, %14 : vector<512x256xf32>
    %cst_17 = arith.constant 0.000000e+00 : f32
    %42 = vector.broadcast %cst_17 : f32 to vector<512x256xf32>
    %43 = arith.maximumf %41, %42 : vector<512x256xf32>
    %44 = arith.truncf %43 : vector<512x256xf32> to vector<512x256xbf16>
    %cst_18 = arith.constant 0.000000e+00 : bf16
    %45 = vector.broadcast %cst_18 : bf16 to vector<32x256xbf16>
    %46 = tpu.concatenate %45, %44, %45 in 0 : vector<32x256xbf16>, vector<512x256xbf16>, vector<32x256xbf16> -> vector<576x256xbf16>
    %47 = vector.shape_cast %46 : vector<576x256xbf16> to vector<9x64x256xbf16>
    %48 = vector.extract_strided_slice %47 {offsets = [0, 0, 0], sizes = [8, 32, 256], strides = [1, 1, 1]} : vector<9x64x256xbf16> to vector<8x32x256xbf16>
    %49 = vector.extract_strided_slice %47 {offsets = [0, 32, 0], sizes = [8, 32, 256], strides = [1, 1, 1]} : vector<9x64x256xbf16> to vector<8x32x256xbf16>
    %50 = vector.extract_strided_slice %47 {offsets = [1, 0, 0], sizes = [8, 32, 256], strides = [1, 1, 1]} : vector<9x64x256xbf16> to vector<8x32x256xbf16>
    %51 = vector.shape_cast %48 : vector<8x32x256xbf16> to vector<256x256xbf16>
    %52 = vector.shape_cast %49 : vector<8x32x256xbf16> to vector<256x256xbf16>
    %53 = vector.shape_cast %50 : vector<8x32x256xbf16> to vector<256x256xbf16>
    %54 = tpu.concatenate %51, %52, %53 in 1 : vector<256x256xbf16>, vector<256x256xbf16>, vector<256x256xbf16> -> vector<256x768xbf16>
    %c1920 = arith.constant 1920 : index
    %c0_19 = arith.constant 0 : index
    %55 = vector.load %arg2[%c1920, %c0_19] : memref<5760x256xbf16, #tpu.memory_space<vmem>>, vector<768x256xbf16>
    %cst_20 = arith.constant dense<0.000000e+00> : vector<256x256xf32>
    %56 = tpu.matmul %54, %55, %cst_20 {dimension_numbers = #tpu.dot_dimension_numbers<[1], [0], [0], [1], [0, 0, 1, 1], [], []>} : vector<256x768xbf16>, vector<768x256xbf16>, vector<256x256xf32> -> vector<256x256xf32>
    %c3 = arith.constant 3 : index
    %c0_21 = arith.constant 0 : index
    %57 = vector.load %arg3[%c3, %c0_21] : memref<8x256xf32, #tpu.memory_space<vmem>>, vector<1x256xf32>
    %58 = vector.broadcast %57 : vector<1x256xf32> to vector<256x256xf32>
    %59 = arith.addf %56, %58 : vector<256x256xf32>
    %cst_22 = arith.constant 0.000000e+00 : f32
    %60 = vector.broadcast %cst_22 : f32 to vector<256x256xf32>
    %61 = arith.maximumf %59, %60 : vector<256x256xf32>
    %62 = arith.truncf %61 : vector<256x256xf32> to vector<256x256xbf16>
    %cst_23 = arith.constant 0.000000e+00 : bf16
    %63 = vector.broadcast %cst_23 : bf16 to vector<32x256xbf16>
    %64 = tpu.concatenate %63, %62, %63 in 0 : vector<32x256xbf16>, vector<256x256xbf16>, vector<32x256xbf16> -> vector<320x256xbf16>
    %65 = vector.extract_strided_slice %64 {offsets = [0, 0], sizes = [256, 256], strides = [1, 1]} : vector<320x256xbf16> to vector<256x256xbf16>
    %66 = vector.extract_strided_slice %64 {offsets = [32, 0], sizes = [256, 256], strides = [1, 1]} : vector<320x256xbf16> to vector<256x256xbf16>
    %67 = vector.extract_strided_slice %64 {offsets = [64, 0], sizes = [256, 256], strides = [1, 1]} : vector<320x256xbf16> to vector<256x256xbf16>
    %68 = tpu.concatenate %65, %66, %67 in 1 : vector<256x256xbf16>, vector<256x256xbf16>, vector<256x256xbf16> -> vector<256x768xbf16>
    %c2688 = arith.constant 2688 : index
    %c0_24 = arith.constant 0 : index
    %69 = vector.load %arg2[%c2688, %c0_24] : memref<5760x256xbf16, #tpu.memory_space<vmem>>, vector<768x256xbf16>
    %cst_25 = arith.constant dense<0.000000e+00> : vector<256x256xf32>
    %70 = tpu.matmul %68, %69, %cst_25 {dimension_numbers = #tpu.dot_dimension_numbers<[1], [0], [0], [1], [0, 0, 1, 1], [], []>} : vector<256x768xbf16>, vector<768x256xbf16>, vector<256x256xf32> -> vector<256x256xf32>
    %c4 = arith.constant 4 : index
    %c0_26 = arith.constant 0 : index
    %71 = vector.load %arg3[%c4, %c0_26] : memref<8x256xf32, #tpu.memory_space<vmem>>, vector<1x256xf32>
    %72 = vector.broadcast %71 : vector<1x256xf32> to vector<256x256xf32>
    %73 = arith.addf %70, %72 : vector<256x256xf32>
    %74 = vector.shape_cast %44 : vector<512x256xbf16> to vector<8x64x256xbf16>
    %75 = vector.extract_strided_slice %74 {offsets = [0, 0, 0], sizes = [8, 32, 256], strides = [1, 1, 1]} : vector<8x64x256xbf16> to vector<8x32x256xbf16>
    %76 = vector.shape_cast %75 : vector<8x32x256xbf16> to vector<256x256xbf16>
    %c3456 = arith.constant 3456 : index
    %c0_27 = arith.constant 0 : index
    %77 = vector.load %arg2[%c3456, %c0_27] : memref<5760x256xbf16, #tpu.memory_space<vmem>>, vector<256x256xbf16>
    %cst_28 = arith.constant dense<0.000000e+00> : vector<256x256xf32>
    %78 = tpu.matmul %76, %77, %cst_28 {dimension_numbers = #tpu.dot_dimension_numbers<[1], [0], [0], [1], [0, 0, 1, 1], [], []>} : vector<256x256xbf16>, vector<256x256xbf16>, vector<256x256xf32> -> vector<256x256xf32>
    %79 = arith.addf %73, %78 : vector<256x256xf32>
    %cst_29 = arith.constant 0.000000e+00 : f32
    %80 = vector.broadcast %cst_29 : f32 to vector<256x256xf32>
    %81 = arith.maximumf %79, %80 : vector<256x256xf32>
    %82 = arith.truncf %81 : vector<256x256xf32> to vector<256x256xbf16>
    %cst_30 = arith.constant 0.000000e+00 : bf16
    %83 = vector.broadcast %cst_30 : bf16 to vector<32x256xbf16>
    %84 = tpu.concatenate %83, %82, %83 in 0 : vector<32x256xbf16>, vector<256x256xbf16>, vector<32x256xbf16> -> vector<320x256xbf16>
    %85 = vector.shape_cast %84 : vector<320x256xbf16> to vector<5x64x256xbf16>
    %86 = vector.extract_strided_slice %85 {offsets = [0, 0, 0], sizes = [4, 32, 256], strides = [1, 1, 1]} : vector<5x64x256xbf16> to vector<4x32x256xbf16>
    %87 = vector.extract_strided_slice %85 {offsets = [0, 32, 0], sizes = [4, 32, 256], strides = [1, 1, 1]} : vector<5x64x256xbf16> to vector<4x32x256xbf16>
    %88 = vector.extract_strided_slice %85 {offsets = [1, 0, 0], sizes = [4, 32, 256], strides = [1, 1, 1]} : vector<5x64x256xbf16> to vector<4x32x256xbf16>
    %89 = vector.shape_cast %86 : vector<4x32x256xbf16> to vector<128x256xbf16>
    %90 = vector.shape_cast %87 : vector<4x32x256xbf16> to vector<128x256xbf16>
    %91 = vector.shape_cast %88 : vector<4x32x256xbf16> to vector<128x256xbf16>
    %92 = tpu.concatenate %89, %90, %91 in 1 : vector<128x256xbf16>, vector<128x256xbf16>, vector<128x256xbf16> -> vector<128x768xbf16>
    %c3712 = arith.constant 3712 : index
    %c0_31 = arith.constant 0 : index
    %93 = vector.load %arg2[%c3712, %c0_31] : memref<5760x256xbf16, #tpu.memory_space<vmem>>, vector<768x256xbf16>
    %cst_32 = arith.constant dense<0.000000e+00> : vector<128x256xf32>
    %94 = tpu.matmul %92, %93, %cst_32 {dimension_numbers = #tpu.dot_dimension_numbers<[1], [0], [0], [1], [0, 0, 1, 1], [], []>} : vector<128x768xbf16>, vector<768x256xbf16>, vector<128x256xf32> -> vector<128x256xf32>
    %c5 = arith.constant 5 : index
    %c0_33 = arith.constant 0 : index
    %95 = vector.load %arg3[%c5, %c0_33] : memref<8x256xf32, #tpu.memory_space<vmem>>, vector<1x256xf32>
    %96 = vector.broadcast %95 : vector<1x256xf32> to vector<128x256xf32>
    %97 = arith.addf %94, %96 : vector<128x256xf32>
    %cst_34 = arith.constant 0.000000e+00 : f32
    %98 = vector.broadcast %cst_34 : f32 to vector<128x256xf32>
    %99 = arith.maximumf %97, %98 : vector<128x256xf32>
    %100 = arith.truncf %99 : vector<128x256xf32> to vector<128x256xbf16>
    %cst_35 = arith.constant 0.000000e+00 : bf16
    %101 = vector.broadcast %cst_35 : bf16 to vector<32x256xbf16>
    %102 = tpu.concatenate %101, %100, %101 in 0 : vector<32x256xbf16>, vector<128x256xbf16>, vector<32x256xbf16> -> vector<192x256xbf16>
    %103 = vector.extract_strided_slice %102 {offsets = [0, 0], sizes = [128, 256], strides = [1, 1]} : vector<192x256xbf16> to vector<128x256xbf16>
    %104 = vector.extract_strided_slice %102 {offsets = [32, 0], sizes = [128, 256], strides = [1, 1]} : vector<192x256xbf16> to vector<128x256xbf16>
    %105 = vector.extract_strided_slice %102 {offsets = [64, 0], sizes = [128, 256], strides = [1, 1]} : vector<192x256xbf16> to vector<128x256xbf16>
    %106 = tpu.concatenate %103, %104, %105 in 1 : vector<128x256xbf16>, vector<128x256xbf16>, vector<128x256xbf16> -> vector<128x768xbf16>
    %c4480 = arith.constant 4480 : index
    %c0_36 = arith.constant 0 : index
    %107 = vector.load %arg2[%c4480, %c0_36] : memref<5760x256xbf16, #tpu.memory_space<vmem>>, vector<768x256xbf16>
    %cst_37 = arith.constant dense<0.000000e+00> : vector<128x256xf32>
    %108 = tpu.matmul %106, %107, %cst_37 {dimension_numbers = #tpu.dot_dimension_numbers<[1], [0], [0], [1], [0, 0, 1, 1], [], []>} : vector<128x768xbf16>, vector<768x256xbf16>, vector<128x256xf32> -> vector<128x256xf32>
    %c6 = arith.constant 6 : index
    %c0_38 = arith.constant 0 : index
    %109 = vector.load %arg3[%c6, %c0_38] : memref<8x256xf32, #tpu.memory_space<vmem>>, vector<1x256xf32>
    %110 = vector.broadcast %109 : vector<1x256xf32> to vector<128x256xf32>
    %111 = arith.addf %108, %110 : vector<128x256xf32>
    %112 = vector.shape_cast %82 : vector<256x256xbf16> to vector<4x64x256xbf16>
    %113 = vector.extract_strided_slice %112 {offsets = [0, 0, 0], sizes = [4, 32, 256], strides = [1, 1, 1]} : vector<4x64x256xbf16> to vector<4x32x256xbf16>
    %114 = vector.shape_cast %113 : vector<4x32x256xbf16> to vector<128x256xbf16>
    %c5248 = arith.constant 5248 : index
    %c0_39 = arith.constant 0 : index
    %115 = vector.load %arg2[%c5248, %c0_39] : memref<5760x256xbf16, #tpu.memory_space<vmem>>, vector<256x256xbf16>
    %cst_40 = arith.constant dense<0.000000e+00> : vector<128x256xf32>
    %116 = tpu.matmul %114, %115, %cst_40 {dimension_numbers = #tpu.dot_dimension_numbers<[1], [0], [0], [1], [0, 0, 1, 1], [], []>} : vector<128x256xbf16>, vector<256x256xbf16>, vector<128x256xf32> -> vector<128x256xf32>
    %117 = arith.addf %111, %116 : vector<128x256xf32>
    %cst_41 = arith.constant 0.000000e+00 : f32
    %118 = vector.broadcast %cst_41 : f32 to vector<128x256xf32>
    %119 = arith.maximumf %117, %118 : vector<128x256xf32>
    %c5504 = arith.constant 5504 : index
    %c0_42 = arith.constant 0 : index
    %120 = vector.load %arg2[%c5504, %c0_42] : memref<5760x256xbf16, #tpu.memory_space<vmem>>, vector<256x256xbf16>
    %121 = arith.truncf %119 : vector<128x256xf32> to vector<128x256xbf16>
    %cst_43 = arith.constant dense<0.000000e+00> : vector<128x256xf32>
    %122 = tpu.matmul %121, %120, %cst_43 {dimension_numbers = #tpu.dot_dimension_numbers<[1], [0], [0], [1], [0, 0, 1, 1], [], []>} : vector<128x256xbf16>, vector<256x256xbf16>, vector<128x256xf32> -> vector<128x256xf32>
    %123 = vector.shape_cast %122 : vector<128x256xf32> to vector<4x32x256xf32>
    %cst_44 = arith.constant dense<0.000000e+00> : vector<32x256xf32>
    %124 = vector.multi_reduction <add>, %123, %cst_44 [0] : vector<4x32x256xf32> to vector<32x256xf32>
    %c7 = arith.constant 7 : index
    %c0_45 = arith.constant 0 : index
    %125 = vector.load %arg3[%c7, %c0_45] : memref<8x256xf32, #tpu.memory_space<vmem>>, vector<1x256xf32>
    %126 = vector.broadcast %125 : vector<1x256xf32> to vector<32x256xf32>
    %127 = arith.addf %124, %126 : vector<32x256xf32>
    %c0_46 = arith.constant 0 : index
    %c0_47 = arith.constant 0 : index
    %c0_48 = arith.constant 0 : index
    %128 = vector.load %arg4[%c0_46, %c0_47, %c0_48] : memref<1x32x256xf32, #tpu.memory_space<vmem>>, vector<1x32x256xf32>
    %129 = vector.shape_cast %128 : vector<1x32x256xf32> to vector<32x256xf32>
    %130 = vector.shape_cast %127 : vector<32x256xf32> to vector<1x32x256xf32>
    tpu.vector_store %arg4[%c0_46, %c0_47, %c0_48], %130 {strides = array<i32>} : memref<1x32x256xf32, #tpu.memory_space<vmem>>, vector<1x32x256xf32>,
    return
  }
  func.func @transform_0(%arg0: i32) -> (i32, i32, i32) {
    %c0_i32 = arith.constant 0 : i32
    %c0_i32_0 = arith.constant 0 : i32
    %c0_i32_1 = arith.constant 0 : i32
    return %arg0, %c0_i32, %c0_i32_0 : i32, i32, i32
  }
  func.func @transform_1(%arg0: i32) -> (i32, i32) {
    %c0_i32 = arith.constant 0 : i32
    %c0_i32_0 = arith.constant 0 : i32
    %c0_i32_1 = arith.constant 0 : i32
    return %c0_i32, %c0_i32_0 : i32, i32
  }
  func.func @transform_2(%arg0: i32) -> (i32, i32) {
    %c0_i32 = arith.constant 0 : i32
    %c0_i32_0 = arith.constant 0 : i32
    %c0_i32_1 = arith.constant 0 : i32
    return %c0_i32, %c0_i32_0 : i32, i32
  }
  func.func @transform_3(%arg0: i32) -> (i32, i32, i32) {
    %c0_i32 = arith.constant 0 : i32
    %c0_i32_0 = arith.constant 0 : i32
    %c0_i32_1 = arith.constant 0 : i32
    return %arg0, %c0_i32, %c0_i32_0 : i32, i32, i32
  }
}

</mosaic_0001>

<llo_original>
// kernel: forward.1
$region0: #{forward.1}
  #allocation0 [shape = 'u32[]', space=smem, size = 0x4, offset = 0x4, fixed_abs, tag = 'smem constant byte address 0x4 - core index']
  #allocation1 [shape = 'u32[144,128]{1,0:T(1,128)}', space=vmem, size = 0x12000, scoped, tag = 'internal scratch']
  %s0 = inlined_call_operand.vmem [shape: bf16[1,512,128], index: 0, kind: input, shape index: {}]
  %s1 = inlined_call_operand.hbm [shape: bf16[5760,256], index: 1, kind: input, shape index: {}]
  %s2 = inlined_call_operand.hbm [shape: f32[8,256], index: 2, kind: input, shape index: {}]
  %s3 = inlined_call_operand.vmem [shape: f32[1,32,256], index: 3, kind: output, shape index: {}]
  %s4 = sld [smem:[#allocation0]]
  $region30: #{forward.1} parent=0
    _
  %s6 = ssub.s32 1, %s4
  %s7 = scalar_select 0, %s6, %s4
  $region1: #{forward.1} parent=0
    #allocation2 [shape = 'u8[2949120]{0}', space=vmem, size = 0x2d0000, scoped, tag = 'input window, operand 1, single buffered']
    #allocation3 [shape = 's32[1]{0}', space=sflag, size = 0x4, scoped, tag = 'scoped memory for forward.1']
    #allocation4 [shape = 'u8[8192]{0}', space=vmem, size = 0x2000, scoped, tag = 'input window, operand 2, single buffered']
    #allocation5 [shape = 's32[1]{0}', space=sflag, size = 0x4, scoped, tag = 'scoped memory for forward.1']
    %8 = vsyncpa [#allocation3], 0
    %9 = vsyncpa [#allocation5], 0
    // Predicated region
    $region2: #{forward.1} parent=1 // pred_check
      _
    $region3: #{forward.1} parent=1 // pred_check_branch
      %11 = sbr.rel (0) target = $region5
    $region4: #{forward.1} parent=1 // pred_region
      _
    $region5: #{forward.1} parent=1 // pred_fallthru
      _
    // Predicated region
    $region6: #{forward.1} parent=1 // pred_check
      _
    $region7: #{forward.1} parent=1 // pred_check_branch
      %13 = sbr.rel (0) target = $region9
    $region8: #{forward.1} parent=1 // pred_region
      %s15 = ssub.s32 92160, 92160
      %16 = vsyncadd [#allocation3], %s15
      %s17 = sshll.u32 [#allocation2], 4
      %s18 = int_to_ptr.vmem [resolvable:$true] %s17
      %23 = dma.hbm_to_vmem [thread:$0]  %s1, 92160, %s18, [#allocation3], 128, 128, 8
    $region9: #{forward.1} parent=1 // pred_fallthru
      _
    // Predicated region
    $region10: #{forward.1} parent=1 // pred_check
      _
    $region11: #{forward.1} parent=1 // pred_check_branch
      %25 = sbr.rel (0) target = $region13
    $region12: #{forward.1} parent=1 // pred_region
      %s27 = ssub.s32 256, 256
      %28 = vsyncadd [#allocation5], %s27
      %s30 = sshll.u32 [#allocation4], 4
      %s31 = int_to_ptr.vmem [resolvable:$true] %s30
      %33 = dma.hbm_to_vmem [thread:$0]  %s2, 256, %s31, [#allocation5]
    $region13: #{forward.1} parent=1 // pred_fallthru
      _
    // Predicated region
    $region14: #{forward.1} parent=1 // pred_check
      _
    $region15: #{forward.1} parent=1 // pred_check_branch
      %35 = sbr.rel (0) target = $region17
    $region16: #{forward.1} parent=1 // pred_region
      %36 = dma.done [#allocation3], 92160
    $region17: #{forward.1} parent=1 // pred_fallthru
      _
    // Predicated region
    $region18: #{forward.1} parent=1 // pred_check
      _
    $region19: #{forward.1} parent=1 // pred_check_branch
      %38 = sbr.rel (0) target = $region21
    $region20: #{forward.1} parent=1 // pred_region
      %39 = dma.done [#allocation5], 256
    $region21: #{forward.1} parent=1 // pred_fallthru
      _
    %v41 = vld [vmem:[%s0] sm:$0xf]
    %v42 = vld [vmem:[%s0 + $0x4] sm:$0xf]
    %v43 = vld [vmem:[%s0 + $0x8] sm:$0xf]
    %v44 = vld [vmem:[%s0 + $0xc] sm:$0xf]
    %v45 = vld [vmem:[%s0 + $0x10] sm:$0xf]
    %v46 = vld [vmem:[%s0 + $0x14] sm:$0xf]
    %v47 = vld [vmem:[%s0 + $0x18] sm:$0xf]
    %v48 = vld [vmem:[%s0 + $0x1c] sm:$0xf]
    %v49 = vld [vmem:[%s0 + $0x20] sm:$0xf]
    %v50 = vld [vmem:[%s0 + $0x24] sm:$0xf]
    %v51 = vld [vmem:[%s0 + $0x28] sm:$0xf]
    %v52 = vld [vmem:[%s0 + $0x2c] sm:$0xf]
    %v53 = vld [vmem:[%s0 + $0x30] sm:$0xf]
    %v54 = vld [vmem:[%s0 + $0x34] sm:$0xf]
    %v55 = vld [vmem:[%s0 + $0x38] sm:$0xf]
    %v56 = vld [vmem:[%s0 + $0x3c] sm:$0xf]
    %v57 = vld [vmem:[%s0 + $0x40] sm:$0xf]
    %v58 = vld [vmem:[%s0 + $0x44] sm:$0xf]
    %v59 = vld [vmem:[%s0 + $0x48] sm:$0xf]
    %v60 = vld [vmem:[%s0 + $0x4c] sm:$0xf]
    %v61 = vld [vmem:[%s0 + $0x50] sm:$0xf]
    %v62 = vld [vmem:[%s0 + $0x54] sm:$0xf]
    %v63 = vld [vmem:[%s0 + $0x58] sm:$0xf]
    %v64 = vld [vmem:[%s0 + $0x5c] sm:$0xf]
    %v65 = vld [vmem:[%s0 + $0x60] sm:$0xf]
    %v66 = vld [vmem:[%s0 + $0x64] sm:$0xf]
    %v67 = vld [vmem:[%s0 + $0x68] sm:$0xf]
    %v68 = vld [vmem:[%s0 + $0x6c] sm:$0xf]
    %v69 = vld [vmem:[%s0 + $0x70] sm:$0xf]
    %v70 = vld [vmem:[%s0 + $0x74] sm:$0xf]
    %v71 = vld [vmem:[%s0 + $0x78] sm:$0xf]
    %v72 = vld [vmem:[%s0 + $0x7c] sm:$0xf]
    %v73 = vld [vmem:[%s0 + $0x80] sm:$0xf]
    %v74 = vld [vmem:[%s0 + $0x84] sm:$0xf]
    %v75 = vld [vmem:[%s0 + $0x88] sm:$0xf]
    %v76 = vld [vmem:[%s0 + $0x8c] sm:$0xf]
    %v77 = vld [vmem:[%s0 + $0x90] sm:$0xf]
    %v78 = vld [vmem:[%s0 + $0x94] sm:$0xf]
    %v79 = vld [vmem:[%s0 + $0x98] sm:$0xf]
    %v80 = vld [vmem:[%s0 + $0x9c] sm:$0xf]
    %v81 = vld [vmem:[%s0 + $0xa0] sm:$0xf]
    %v82 = vld [vmem:[%s0 + $0xa4] sm:$0xf]
    %v83 = vld [vmem:[%s0 + $0xa8] sm:$0xf]
    %v84 = vld [vmem:[%s0 + $0xac] sm:$0xf]
    %v85 = vld [vmem:[%s0 + $0xb0] sm:$0xf]
    %v86 = vld [vmem:[%s0 + $0xb4] sm:$0xf]
    %v87 = vld [vmem:[%s0 + $0xb8] sm:$0xf]
    %v88 = vld [vmem:[%s0 + $0xbc] sm:$0xf]
    %v89 = vld [vmem:[%s0 + $0xc0] sm:$0xf]
    %v90 = vld [vmem:[%s0 + $0xc4] sm:$0xf]
    %v91 = vld [vmem:[%s0 + $0xc8] sm:$0xf]
    %v92 = vld [vmem:[%s0 + $0xcc] sm:$0xf]
    %v93 = vld [vmem:[%s0 + $0xd0] sm:$0xf]
    %v94 = vld [vmem:[%s0 + $0xd4] sm:$0xf]
    %v95 = vld [vmem:[%s0 + $0xd8] sm:$0xf]
    %v96 = vld [vmem:[%s0 + $0xdc] sm:$0xf]
    %v97 = vld [vmem:[%s0 + $0xe0] sm:$0xf]
    %v98 = vld [vmem:[%s0 + $0xe4] sm:$0xf]
    %v99 = vld [vmem:[%s0 + $0xe8] sm:$0xf]
    %v100 = vld [vmem:[%s0 + $0xec] sm:$0xf]
    %v101 = vld [vmem:[%s0 + $0xf0] sm:$0xf]
    %v102 = vld [vmem:[%s0 + $0xf4] sm:$0xf]
    %v103 = vld [vmem:[%s0 + $0xf8] sm:$0xf]
    %v104 = vld [vmem:[%s0 + $0xfc] sm:$0xf]
    %v169 = vunpack.c.l.b16 %v41
    %v170 = vunpack.c.l.b16 %v42
    %v171 = vunpack.c.l.b16 %v43
    %v172 = vunpack.c.l.b16 %v44
    %v173 = vunpack.c.l.b16 %v45
    %v174 = vunpack.c.l.b16 %v46
    %v175 = vunpack.c.l.b16 %v47
    %v176 = vunpack.c.l.b16 %v48
    %v177 = vunpack.c.l.b16 %v49
    %v178 = vunpack.c.l.b16 %v50
    %v179 = vunpack.c.l.b16 %v51
    %v180 = vunpack.c.l.b16 %v52
    %v181 = vunpack.c.l.b16 %v53
    %v182 = vunpack.c.l.b16 %v54
    %v183 = vunpack.c.l.b16 %v55
    %v184 = vunpack.c.l.b16 %v56
    %v185 = vunpack.c.l.b16 %v57
    %v186 = vunpack.c.l.b16 %v58
    %v187 = vunpack.c.l.b16 %v59
    %v188 = vunpack.c.l.b16 %v60
    %v189 = vunpack.c.l.b16 %v61
    %v190 = vunpack.c.l.b16 %v62
    %v191 = vunpack.c.l.b16 %v63
    %v192 = vunpack.c.l.b16 %v64
    %v193 = vunpack.c.l.b16 %v65
    %v194 = vunpack.c.l.b16 %v66
    %v195 = vunpack.c.l.b16 %v67
    %v196 = vunpack.c.l.b16 %v68
    %v197 = vunpack.c.l.b16 %v69
    %v198 = vunpack.c.l.b16 %v70
    %v199 = vunpack.c.l.b16 %v71
    %v200 = vunpack.c.l.b16 %v72
    %v201 = vunpack.c.l.b16 %v73
    %v202 = vunpack.c.l.b16 %v74
    %v203 = vunpack.c.l.b16 %v75
    %v204 = vunpack.c.l.b16 %v76
    %v205 = vunpack.c.l.b16 %v77
    %v206 = vunpack.c.l.b16 %v78
    %v207 = vunpack.c.l.b16 %v79
    %v208 = vunpack.c.l.b16 %v80
    %v209 = vunpack.c.l.b16 %v81
    %v210 = vunpack.c.l.b16 %v82
    %v211 = vunpack.c.l.b16 %v83
    %v212 = vunpack.c.l.b16 %v84
    %v213 = vunpack.c.l.b16 %v85
    %v214 = vunpack.c.l.b16 %v86
    %v215 = vunpack.c.l.b16 %v87
    %v216 = vunpack.c.l.b16 %v88
    %v217 = vunpack.c.l.b16 %v89
    %v218 = vunpack.c.l.b16 %v90
    %v219 = vunpack.c.l.b16 %v91
    %v220 = vunpack.c.l.b16 %v92
    %v221 = vunpack.c.l.b16 %v93
    %v222 = vunpack.c.l.b16 %v94
    %v223 = vunpack.c.l.b16 %v95
    %v224 = vunpack.c.l.b16 %v96
    %v225 = vunpack.c.l.b16 %v97
    %v226 = vunpack.c.l.b16 %v98
    %v227 = vunpack.c.l.b16 %v99
    %v228 = vunpack.c.l.b16 %v100
    %v229 = vunpack.c.l.b16 %v101
    %v230 = vunpack.c.l.b16 %v102
    %v231 = vunpack.c.l.b16 %v103
    %v232 = vunpack.c.l.b16 %v104
    %v233 = vpack.c.b16 %v170, %v169
    %v234 = vpack.c.b16 %v172, %v171
    %v235 = vpack.c.b16 %v174, %v173
    %v236 = vpack.c.b16 %v176, %v175
    %v237 = vpack.c.b16 %v178, %v177
    %v238 = vpack.c.b16 %v180, %v179
    %v239 = vpack.c.b16 %v182, %v181
    %v240 = vpack.c.b16 %v184, %v183
    %v241 = vpack.c.b16 %v186, %v185
    %v242 = vpack.c.b16 %v188, %v187
    %v243 = vpack.c.b16 %v190, %v189
    %v244 = vpack.c.b16 %v192, %v191
    %v245 = vpack.c.b16 %v194, %v193
    %v246 = vpack.c.b16 %v196, %v195
    %v247 = vpack.c.b16 %v198, %v197
    %v248 = vpack.c.b16 %v200, %v199
    %v249 = vpack.c.b16 %v202, %v201
    %v250 = vpack.c.b16 %v204, %v203
    %v251 = vpack.c.b16 %v206, %v205
    %v252 = vpack.c.b16 %v208, %v207
    %v253 = vpack.c.b16 %v210, %v209
    %v254 = vpack.c.b16 %v212, %v211
    %v255 = vpack.c.b16 %v214, %v213
    %v256 = vpack.c.b16 %v216, %v215
    %v257 = vpack.c.b16 %v218, %v217
    %v258 = vpack.c.b16 %v220, %v219
    %v259 = vpack.c.b16 %v222, %v221
    %v260 = vpack.c.b16 %v224, %v223
    %v261 = vpack.c.b16 %v226, %v225
    %v262 = vpack.c.b16 %v228, %v227
    %v263 = vpack.c.b16 %v230, %v229
    %v264 = vpack.c.b16 %v232, %v231
    %v297 = vld [vmem:[#allocation2] sm:$0xff]
    %v298 = vld [vmem:[#allocation2 + $0x8] sm:$0xff]
    %v299 = vld [vmem:[#allocation2 + $0x10] sm:$0xff]
    %v300 = vld [vmem:[#allocation2 + $0x18] sm:$0xff]
    %v301 = vld [vmem:[#allocation2 + $0x20] sm:$0xff]
    %v302 = vld [vmem:[#allocation2 + $0x28] sm:$0xff]
    %v303 = vld [vmem:[#allocation2 + $0x30] sm:$0xff]
    %v304 = vld [vmem:[#allocation2 + $0x38] sm:$0xff]
    %v305 = vld [vmem:[#allocation2 + $0x40] sm:$0xff]
    %v306 = vld [vmem:[#allocation2 + $0x48] sm:$0xff]
    %v307 = vld [vmem:[#allocation2 + $0x50] sm:$0xff]
    %v308 = vld [vmem:[#allocation2 + $0x58] sm:$0xff]
    %v309 = vld [vmem:[#allocation2 + $0x60] sm:$0xff]
    %v310 = vld [vmem:[#allocation2 + $0x68] sm:$0xff]
    %v311 = vld [vmem:[#allocation2 + $0x70] sm:$0xff]
    %v312 = vld [vmem:[#allocation2 + $0x78] sm:$0xff]
    %v313 = vld [vmem:[#allocation2 + $0x80] sm:$0xff]
    %v314 = vld [vmem:[#allocation2 + $0x88] sm:$0xff]
    %v315 = vld [vmem:[#allocation2 + $0x90] sm:$0xff]
    %v316 = vld [vmem:[#allocation2 + $0x98] sm:$0xff]
    %v317 = vld [vmem:[#allocation2 + $0xa0] sm:$0xff]
    %v318 = vld [vmem:[#allocation2 + $0xa8] sm:$0xff]
    %v319 = vld [vmem:[#allocation2 + $0xb0] sm:$0xff]
    %v320 = vld [vmem:[#allocation2 + $0xb8] sm:$0xff]
    %v321 = vld [vmem:[#allocation2 + $0xc0] sm:$0xff]
    %v322 = vld [vmem:[#allocation2 + $0xc8] sm:$0xff]
    %v323 = vld [vmem:[#allocation2 + $0xd0] sm:$0xff]
    %v324 = vld [vmem:[#allocation2 + $0xd8] sm:$0xff]
    %v325 = vld [vmem:[#allocation2 + $0xe0] sm:$0xff]
    %v326 = vld [vmem:[#allocation2 + $0xe8] sm:$0xff]
    %v327 = vld [vmem:[#allocation2 + $0xf0] sm:$0xff]
    %v328 = vld [vmem:[#allocation2 + $0xf8] sm:$0xff]
    %v329 = vld [vmem:[#allocation2 + $0x100] sm:$0xff]
    %v330 = vld [vmem:[#allocation2 + $0x108] sm:$0xff]
    %v331 = vld [vmem:[#allocation2 + $0x110] sm:$0xff]
    %v332 = vld [vmem:[#allocation2 + $0x118] sm:$0xff]
    %v333 = vld [vmem:[#allocation2 + $0x120] sm:$0xff]
    %v334 = vld [vmem:[#allocation2 + $0x128] sm:$0xff]
    %v335 = vld [vmem:[#allocation2 + $0x130] sm:$0xff]
    %v336 = vld [vmem:[#allocation2 + $0x138] sm:$0xff]
    %v337 = vld [vmem:[#allocation2 + $0x140] sm:$0xff]
    %v338 = vld [vmem:[#allocation2 + $0x148] sm:$0xff]
    %v339 = vld [vmem:[#allocation2 + $0x150] sm:$0xff]
    %v340 = vld [vmem:[#allocation2 + $0x158] sm:$0xff]
    %v341 = vld [vmem:[#allocation2 + $0x160] sm:$0xff]
    %v342 = vld [vmem:[#allocation2 + $0x168] sm:$0xff]
    %v343 = vld [vmem:[#allocation2 + $0x170] sm:$0xff]
    %v344 = vld [vmem:[#allocation2 + $0x178] sm:$0xff]
    %v345 = vld [vmem:[#allocation4] ss:$8 sm:$0x3]
    %v347 = vlaneseq
    %v348 = vshrl.u32 %v347, 7
    %v349 = vsub.s32 0, %v348
    %v350 = vrot.slane %v345, %v349
    %v351 = vlaneseq
    %v352 = vshrl.u32 %v351, 7
    %v353 = vsub.s32 1, %v352
    %v354 = vrot.slane %v345, %v353
    %v405 = vunpack.c.l.b16 %v297
    %v406 = vunpack.c.h.b16 %v297
    %v407 = vunpack.c.l.b16 %v298
    %v408 = vunpack.c.h.b16 %v298
    %v409 = vunpack.c.l.b16 %v299
    %v410 = vunpack.c.h.b16 %v299
    %v411 = vunpack.c.l.b16 %v300
    %v412 = vunpack.c.h.b16 %v300
    %v413 = vunpack.c.l.b16 %v301
    %v414 = vunpack.c.h.b16 %v301
    %v415 = vunpack.c.l.b16 %v302
    %v416 = vunpack.c.h.b16 %v302
    %v417 = vunpack.c.l.b16 %v303
    %v418 = vunpack.c.h.b16 %v303
    %v419 = vunpack.c.l.b16 %v304
    %v420 = vunpack.c.h.b16 %v304
    %v421 = vunpack.c.l.b16 %v305
    %v422 = vunpack.c.h.b16 %v305
    %v423 = vunpack.c.l.b16 %v306
    %v424 = vunpack.c.h.b16 %v306
    %v425 = vunpack.c.l.b16 %v307
    %v426 = vunpack.c.h.b16 %v307
    %v427 = vunpack.c.l.b16 %v308
    %v428 = vunpack.c.h.b16 %v308
    %v429 = vunpack.c.l.b16 %v309
    %v430 = vunpack.c.h.b16 %v309
    %v431 = vunpack.c.l.b16 %v310
    %v432 = vunpack.c.h.b16 %v310
    %v433 = vunpack.c.l.b16 %v311
    %v434 = vunpack.c.h.b16 %v311
    %v435 = vunpack.c.l.b16 %v312
    %v436 = vunpack.c.h.b16 %v312
    %v437 = vunpack.c.l.b16 %v313
    %v438 = vunpack.c.h.b16 %v313
    %v439 = vunpack.c.l.b16 %v314
    %v440 = vunpack.c.h.b16 %v314
    %v441 = vunpack.c.l.b16 %v315
    %v442 = vunpack.c.h.b16 %v315
    %v443 = vunpack.c.l.b16 %v316
    %v444 = vunpack.c.h.b16 %v316
    %v445 = vunpack.c.l.b16 %v317
    %v446 = vunpack.c.h.b16 %v317
    %v447 = vunpack.c.l.b16 %v318
    %v448 = vunpack.c.h.b16 %v318
    %v449 = vunpack.c.l.b16 %v319
    %v450 = vunpack.c.h.b16 %v319
    %v451 = vunpack.c.l.b16 %v320
    %v452 = vunpack.c.h.b16 %v320
    %v453 = vunpack.c.l.b16 %v321
    %v454 = vunpack.c.h.b16 %v321
    %v455 = vunpack.c.l.b16 %v322
    %v456 = vunpack.c.h.b16 %v322
    %v457 = vunpack.c.l.b16 %v323
    %v458 = vunpack.c.h.b16 %v323
    %v459 = vunpack.c.l.b16 %v324
    %v460 = vunpack.c.h.b16 %v324
    %v461 = vunpack.c.l.b16 %v325
    %v462 = vunpack.c.h.b16 %v325
    %v463 = vunpack.c.l.b16 %v326
    %v464 = vunpack.c.h.b16 %v326
    %v465 = vunpack.c.l.b16 %v327
    %v466 = vunpack.c.h.b16 %v327
    %v467 = vunpack.c.l.b16 %v328
    %v468 = vunpack.c.h.b16 %v328
    %v469 = vunpack.c.l.b16 %v329
    %v470 = vunpack.c.h.b16 %v329
    %v471 = vunpack.c.l.b16 %v330
    %v472 = vunpack.c.h.b16 %v330
    %v473 = vunpack.c.l.b16 %v331
    %v474 = vunpack.c.h.b16 %v331
    %v475 = vunpack.c.l.b16 %v332
    %v476 = vunpack.c.h.b16 %v332
    %v477 = vunpack.c.l.b16 %v333
    %v478 = vunpack.c.h.b16 %v333
    %v479 = vunpack.c.l.b16 %v334
    %v480 = vunpack.c.h.b16 %v334
    %v481 = vunpack.c.l.b16 %v335
    %v482 = vunpack.c.h.b16 %v335
    %v483 = vunpack.c.l.b16 %v336
    %v484 = vunpack.c.h.b16 %v336
    %v485 = vunpack.c.l.b16 %v337
    %v486 = vunpack.c.h.b16 %v337
    %v487 = vunpack.c.l.b16 %v338
    %v488 = vunpack.c.h.b16 %v338
    %v489 = vunpack.c.l.b16 %v339
    %v490 = vunpack.c.h.b16 %v339
    %v491 = vunpack.c.l.b16 %v340
    %v492 = vunpack.c.h.b16 %v340
    %v493 = vunpack.c.l.b16 %v341
    %v494 = vunpack.c.h.b16 %v341
    %v495 = vunpack.c.l.b16 %v342
    %v496 = vunpack.c.h.b16 %v342
    %v497 = vunpack.c.l.b16 %v343
    %v498 = vunpack.c.h.b16 %v343
    %v499 = vunpack.c.l.b16 %v344
    %v500 = vunpack.c.h.b16 %v344
    %v501 = vpack.c.b16 %v407, %v405
    %v502 = vpack.c.b16 %v408, %v406
    %v503 = vpack.c.b16 %v411, %v409
    %v504 = vpack.c.b16 %v412, %v410
    %v505 = vpack.c.b16 %v415, %v413
    %v506 = vpack.c.b16 %v416, %v414
    %v507 = vpack.c.b16 %v419, %v417
    %v508 = vpack.c.b16 %v420, %v418
    %v509 = vpack.c.b16 %v423, %v421
    %v510 = vpack.c.b16 %v424, %v422
    %v511 = vpack.c.b16 %v427, %v425
    %v512 = vpack.c.b16 %v428, %v426
    %v513 = vpack.c.b16 %v431, %v429
    %v514 = vpack.c.b16 %v432, %v430
    %v515 = vpack.c.b16 %v435, %v433
    %v516 = vpack.c.b16 %v436, %v434
    %v517 = vpack.c.b16 %v439, %v437
    %v518 = vpack.c.b16 %v440, %v438
    %v519 = vpack.c.b16 %v443, %v441
    %v520 = vpack.c.b16 %v444, %v442
    %v521 = vpack.c.b16 %v447, %v445
    %v522 = vpack.c.b16 %v448, %v446
    %v523 = vpack.c.b16 %v451, %v449
    %v524 = vpack.c.b16 %v452, %v450
    %v525 = vpack.c.b16 %v455, %v453
    %v526 = vpack.c.b16 %v456, %v454
    %v527 = vpack.c.b16 %v459, %v457
    %v528 = vpack.c.b16 %v460, %v458
    %v529 = vpack.c.b16 %v463, %v461
    %v530 = vpack.c.b16 %v464, %v462
    %v531 = vpack.c.b16 %v467, %v465
    %v532 = vpack.c.b16 %v468, %v466
    %v533 = vpack.c.b16 %v471, %v469
    %v534 = vpack.c.b16 %v472, %v470
    %v535 = vpack.c.b16 %v475, %v473
    %v536 = vpack.c.b16 %v476, %v474
    %v537 = vpack.c.b16 %v479, %v477
    %v538 = vpack.c.b16 %v480, %v478
    %v539 = vpack.c.b16 %v483, %v481
    %v540 = vpack.c.b16 %v484, %v482
    %v541 = vpack.c.b16 %v487, %v485
    %v542 = vpack.c.b16 %v488, %v486
    %v543 = vpack.c.b16 %v491, %v489
    %v544 = vpack.c.b16 %v492, %v490
    %v545 = vpack.c.b16 %v495, %v493
    %v546 = vpack.c.b16 %v496, %v494
    %v547 = vpack.c.b16 %v499, %v497
    %v548 = vpack.c.b16 %v500, %v498
    %597 = vmatprep.subr.bf16.mxu0 %v516
    %598 = vmatpush1.bf16.msra.mxu0 %v515
    %599 = vmatprep.subr.bf16.mxu0 %v514
    %600 = vmatpush1.bf16.msra.mxu0 %v513
    %601 = vmatprep.subr.bf16.mxu0 %v512
    %602 = vmatpush1.bf16.msra.mxu0 %v511
    %603 = vmatprep.subr.bf16.mxu0 %v510
    %604 = vmatpush1.bf16.msra.mxu0 %v509
    %605 = vmatprep.subr.bf16.mxu0 %v508
    %606 = vmatpush1.bf16.msra.mxu0 %v507
    %607 = vmatprep.subr.bf16.mxu0 %v506
    %608 = vmatpush1.bf16.msra.mxu0 %v505
    %609 = vmatprep.subr.bf16.mxu0 %v504
    %610 = vmatpush1.bf16.msra.mxu0 %v503
    %611 = vmatprep.subr.bf16.mxu0 %v502
    %612 = vmatpush1.bf16.msra.mxu0 %v501
    %613 = vmatprep.subr.bf16.mxu0 %v532
    %614 = vmatpush2.bf16.msra.mxu0 %v531
    %615 = vmatprep.subr.bf16.mxu0 %v530
    %616 = vmatpush2.bf16.msra.mxu0 %v529
    %617 = vmatprep.subr.bf16.mxu0 %v528
    %618 = vmatpush2.bf16.msra.mxu0 %v527
    %619 = vmatprep.subr.bf16.mxu0 %v526
    %620 = vmatpush2.bf16.msra.mxu0 %v525
    %621 = vmatprep.subr.bf16.mxu0 %v524
    %622 = vmatpush2.bf16.msra.mxu0 %v523
    %623 = vmatprep.subr.bf16.mxu0 %v522
    %624 = vmatpush2.bf16.msra.mxu0 %v521
    %625 = vmatprep.subr.bf16.mxu0 %v520
    %626 = vmatpush2.bf16.msra.mxu0 %v519
    %627 = vmatprep.subr.bf16.mxu0 %v518
    %628 = vmatpush2.bf16.msra.mxu0 %v517
    %629 = vmatprep.mubr.bf16.mxu0 %v233
    %630 = vmatmul.mubr.bf16.gmra.mxu0 0
    %v631 = vpop.f32.mrf.mxu0
    %v632 = vadd.f32 %v350, %v631
    %v633 = vpop.f32.mrf.mxu0
    %v634 = vadd.f32 %v354, %v633
    %v635 = vpop.f32.mrf.mxu0
    %v636 = vadd.f32 %v350, %v635
    %v637 = vpop.f32.mrf.mxu0
    %v638 = vadd.f32 %v354, %v637
    %639 = vmatprep.mubr.bf16.mxu0 %v234
    %640 = vmatmul.mubr.bf16.gmra.mxu0 0
    %v641 = vpop.f32.mrf.mxu0
    %v642 = vadd.f32 %v350, %v641
    %v643 = vpop.f32.mrf.mxu0
    %v644 = vadd.f32 %v354, %v643
    %v645 = vpop.f32.mrf.mxu0
    %v646 = vadd.f32 %v350, %v645
    %v647 = vpop.f32.mrf.mxu0
    %v648 = vadd.f32 %v354, %v647
    %649 = vmatprep.mubr.bf16.mxu0 %v235
    %650 = vmatmul.mubr.bf16.gmra.mxu0 %v233
    %v651 = vpop.f32.mrf.mxu0
    %v652 = vadd.f32 %v350, %v651
    %v653 = vpop.f32.mrf.mxu0
    %v654 = vadd.f32 %v354, %v653
    %v655 = vpop.f32.mrf.mxu0
    %v656 = vadd.f32 %v350, %v655
    %v657 = vpop.f32.mrf.mxu0
    %v658 = vadd.f32 %v354, %v657
    %659 = vmatprep.mubr.bf16.mxu0 %v236
    %660 = vmatmul.mubr.bf16.gmra.mxu0 %v234
    %v661 = vpop.f32.mrf.mxu0
    %v662 = vadd.f32 %v350, %v661
    %v663 = vpop.f32.mrf.mxu0
    %v664 = vadd.f32 %v354, %v663
    %v665 = vpop.f32.mrf.mxu0
    %v666 = vadd.f32 %v350, %v665
    %v667 = vpop.f32.mrf.mxu0
    %v668 = vadd.f32 %v354, %v667
    %669 = vmatprep.mubr.bf16.mxu0 %v237
    %670 = vmatmul.mubr.bf16.gmra.mxu0 %v235
    %v671 = vpop.f32.mrf.mxu0
    %v672 = vadd.f32 %v350, %v671
    %v673 = vpop.f32.mrf.mxu0
    %v674 = vadd.f32 %v354, %v673
    %v675 = vpop.f32.mrf.mxu0
    %v676 = vadd.f32 %v350, %v675
    %v677 = vpop.f32.mrf.mxu0
    %v678 = vadd.f32 %v354, %v677
    %679 = vmatprep.mubr.bf16.mxu0 %v238
    %680 = vmatmul.mubr.bf16.gmra.mxu0 %v236
    %v681 = vpop.f32.mrf.mxu0
    %v682 = vadd.f32 %v350, %v681
    %v683 = vpop.f32.mrf.mxu0
    %v684 = vadd.f32 %v354, %v683
    %v685 = vpop.f32.mrf.mxu0
    %v686 = vadd.f32 %v350, %v685
    %v687 = vpop.f32.mrf.mxu0
    %v688 = vadd.f32 %v354, %v687
    %689 = vmatprep.mubr.bf16.mxu0 %v239
    %690 = vmatmul.mubr.bf16.gmra.mxu0 %v237
    %v691 = vpop.f32.mrf.mxu0
    %v692 = vadd.f32 %v350, %v691
    %v693 = vpop.f32.mrf.mxu0
    %v694 = vadd.f32 %v354, %v693
    %v695 = vpop.f32.mrf.mxu0
    %v696 = vadd.f32 %v350, %v695
    %v697 = vpop.f32.mrf.mxu0
    %v698 = vadd.f32 %v354, %v697
    %699 = vmatprep.mubr.bf16.mxu0 %v240
    %700 = vmatmul.mubr.bf16.gmra.mxu0 %v238
    %v701 = vpop.f32.mrf.mxu0
    %v702 = vadd.f32 %v350, %v701
    %v703 = vpop.f32.mrf.mxu0
    %v704 = vadd.f32 %v354, %v703
    %v705 = vpop.f32.mrf.mxu0
    %v706 = vadd.f32 %v350, %v705
    %v707 = vpop.f32.mrf.mxu0
    %v708 = vadd.f32 %v354, %v707
    %709 = vmatprep.mubr.bf16.mxu0 %v241
    %710 = vmatmul.mubr.bf16.gmra.mxu0 %v239
    %v711 = vpop.f32.mrf.mxu0
    %v712 = vadd.f32 %v350, %v711
    %v713 = vpop.f32.mrf.mxu0
    %v714 = vadd.f32 %v354, %v713
    %v715 = vpop.f32.mrf.mxu0
    %v716 = vadd.f32 %v350, %v715
    %v717 = vpop.f32.mrf.mxu0
    %v718 = vadd.f32 %v354, %v717
    %719 = vmatprep.mubr.bf16.mxu0 %v242
    %720 = vmatmul.mubr.bf16.gmra.mxu0 %v240
    %v721 = vpop.f32.mrf.mxu0
    %v722 = vadd.f32 %v350, %v721
    %v723 = vpop.f32.mrf.mxu0
    %v724 = vadd.f32 %v354, %v723
    %v725 = vpop.f32.mrf.mxu0
    %v726 = vadd.f32 %v350, %v725
    %v727 = vpop.f32.mrf.mxu0
    %v728 = vadd.f32 %v354, %v727
    %729 = vmatprep.mubr.bf16.mxu0 %v243
    %730 = vmatmul.mubr.bf16.gmra.mxu0 %v241
    %v731 = vpop.f32.mrf.mxu0
    %v732 = vadd.f32 %v350, %v731
    %v733 = vpop.f32.mrf.mxu0
    %v734 = vadd.f32 %v354, %v733
    %v735 = vpop.f32.mrf.mxu0
    %v736 = vadd.f32 %v350, %v735
    %v737 = vpop.f32.mrf.mxu0
    %v738 = vadd.f32 %v354, %v737
    %739 = vmatprep.mubr.bf16.mxu0 %v244
    %740 = vmatmul.mubr.bf16.gmra.mxu0 %v242
    %v741 = vpop.f32.mrf.mxu0
    %v742 = vadd.f32 %v350, %v741
    %v743 = vpop.f32.mrf.mxu0
    %v744 = vadd.f32 %v354, %v743
    %v745 = vpop.f32.mrf.mxu0
    %v746 = vadd.f32 %v350, %v745
    %v747 = vpop.f32.mrf.mxu0
    %v748 = vadd.f32 %v354, %v747
    %749 = vmatprep.mubr.bf16.mxu0 %v245
    %750 = vmatmul.mubr.bf16.gmra.mxu0 %v243
    %v751 = vpop.f32.mrf.mxu0
    %v752 = vadd.f32 %v350, %v751
    %v753 = vpop.f32.mrf.mxu0
    %v754 = vadd.f32 %v354, %v753
    %v755 = vpop.f32.mrf.mxu0
    %v756 = vadd.f32 %v350, %v755
    %v757 = vpop.f32.mrf.mxu0
    %v758 = vadd.f32 %v354, %v757
    %759 = vmatprep.mubr.bf16.mxu0 %v246
    %760 = vmatmul.mubr.bf16.gmra.mxu0 %v244
    %v761 = vpop.f32.mrf.mxu0
    %v762 = vadd.f32 %v350, %v761
    %v763 = vpop.f32.mrf.mxu0
    %v764 = vadd.f32 %v354, %v763
    %v765 = vpop.f32.mrf.mxu0
    %v766 = vadd.f32 %v350, %v765
    %v767 = vpop.f32.mrf.mxu0
    %v768 = vadd.f32 %v354, %v767
    %769 = vmatprep.mubr.bf16.mxu0 %v247
    %770 = vmatmul.mubr.bf16.gmra.mxu0 %v245
    %v771 = vpop.f32.mrf.mxu0
    %v772 = vadd.f32 %v350, %v771
    %v773 = vpop.f32.mrf.mxu0
    %v774 = vadd.f32 %v354, %v773
    %v775 = vpop.f32.mrf.mxu0
    %v776 = vadd.f32 %v350, %v775
    %v777 = vpop.f32.mrf.mxu0
    %v778 = vadd.f32 %v354, %v777
    %779 = vmatprep.mubr.bf16.mxu0 %v248
    %780 = vmatmul.mubr.bf16.gmra.mxu0 %v246
    %v781 = vpop.f32.mrf.mxu0
    %v782 = vadd.f32 %v350, %v781
    %v783 = vpop.f32.mrf.mxu0
    %v784 = vadd.f32 %v354, %v783
    %v785 = vpop.f32.mrf.mxu0
    %v786 = vadd.f32 %v350, %v785
    %v787 = vpop.f32.mrf.mxu0
    %v788 = vadd.f32 %v354, %v787
    %789 = vmatprep.mubr.bf16.mxu0 %v249
    %790 = vmatmul.mubr.bf16.gmra.mxu0 %v247
    %v791 = vpop.f32.mrf.mxu0
    %v792 = vadd.f32 %v350, %v791
    %v793 = vpop.f32.mrf.mxu0
    %v794 = vadd.f32 %v354, %v793
    %v795 = vpop.f32.mrf.mxu0
    %v796 = vadd.f32 %v350, %v795
    %v797 = vpop.f32.mrf.mxu0
    %v798 = vadd.f32 %v354, %v797
    %799 = vmatprep.mubr.bf16.mxu0 %v250
    %800 = vmatmul.mubr.bf16.gmra.mxu0 %v248
    %v801 = vpop.f32.mrf.mxu0
    %v802 = vadd.f32 %v350, %v801
    %v803 = vpop.f32.mrf.mxu0
    %v804 = vadd.f32 %v354, %v803
    %v805 = vpop.f32.mrf.mxu0
    %v806 = vadd.f32 %v350, %v805
    %v807 = vpop.f32.mrf.mxu0
    %v808 = vadd.f32 %v354, %v807
    %809 = vmatprep.mubr.bf16.mxu0 %v251
    %810 = vmatmul.mubr.bf16.gmra.mxu0 %v249
    %v811 = vpop.f32.mrf.mxu0
    %v812 = vadd.f32 %v350, %v811
    %v813 = vpop.f32.mrf.mxu0
    %v814 = vadd.f32 %v354, %v813
    %v815 = vpop.f32.mrf.mxu0
    %v816 = vadd.f32 %v350, %v815
    %v817 = vpop.f32.mrf.mxu0
    %v818 = vadd.f32 %v354, %v817
    %819 = vmatprep.mubr.bf16.mxu0 %v252
    %820 = vmatmul.mubr.bf16.gmra.mxu0 %v250
    %v821 = vpop.f32.mrf.mxu0
    %v822 = vadd.f32 %v350, %v821
    %v823 = vpop.f32.mrf.mxu0
    %v824 = vadd.f32 %v354, %v823
    %v825 = vpop.f32.mrf.mxu0
    %v826 = vadd.f32 %v350, %v825
    %v827 = vpop.f32.mrf.mxu0
    %v828 = vadd.f32 %v354, %v827
    %829 = vmatprep.mubr.bf16.mxu0 %v253
    %830 = vmatmul.mubr.bf16.gmra.mxu0 %v251
    %v831 = vpop.f32.mrf.mxu0
    %v832 = vadd.f32 %v350, %v831
    %v833 = vpop.f32.mrf.mxu0
    %v834 = vadd.f32 %v354, %v833
    %v835 = vpop.f32.mrf.mxu0
    %v836 = vadd.f32 %v350, %v835
    %v837 = vpop.f32.mrf.mxu0
    %v838 = vadd.f32 %v354, %v837
    %839 = vmatprep.mubr.bf16.mxu0 %v254
    %840 = vmatmul.mubr.bf16.gmra.mxu0 %v252
    %v841 = vpop.f32.mrf.mxu0
    %v842 = vadd.f32 %v350, %v841
    %v843 = vpop.f32.mrf.mxu0
    %v844 = vadd.f32 %v354, %v843
    %v845 = vpop.f32.mrf.mxu0
    %v846 = vadd.f32 %v350, %v845
    %v847 = vpop.f32.mrf.mxu0
    %v848 = vadd.f32 %v354, %v847
    %849 = vmatprep.mubr.bf16.mxu0 %v255
    %850 = vmatmul.mubr.bf16.gmra.mxu0 %v253
    %v851 = vpop.f32.mrf.mxu0
    %v852 = vadd.f32 %v350, %v851
    %v853 = vpop.f32.mrf.mxu0
    %v854 = vadd.f32 %v354, %v853
    %v855 = vpop.f32.mrf.mxu0
    %v856 = vadd.f32 %v350, %v855
    %v857 = vpop.f32.mrf.mxu0
    %v858 = vadd.f32 %v354, %v857
    %859 = vmatprep.mubr.bf16.mxu0 %v256
    %860 = vmatmul.mubr.bf16.gmra.mxu0 %v254
    %v861 = vpop.f32.mrf.mxu0
    %v862 = vadd.f32 %v350, %v861
    %v863 = vpop.f32.mrf.mxu0
    %v864 = vadd.f32 %v354, %v863
    %v865 = vpop.f32.mrf.mxu0
    %v866 = vadd.f32 %v350, %v865
    %v867 = vpop.f32.mrf.mxu0
    %v868 = vadd.f32 %v354, %v867
    %869 = vmatprep.mubr.bf16.mxu0 %v257
    %870 = vmatmul.mubr.bf16.gmra.mxu0 %v255
    %v871 = vpop.f32.mrf.mxu0
    %v872 = vadd.f32 %v350, %v871
    %v873 = vpop.f32.mrf.mxu0
    %v874 = vadd.f32 %v354, %v873
    %v875 = vpop.f32.mrf.mxu0
    %v876 = vadd.f32 %v350, %v875
    %v877 = vpop.f32.mrf.mxu0
    %v878 = vadd.f32 %v354, %v877
    %879 = vmatprep.mubr.bf16.mxu0 %v258
    %880 = vmatmul.mubr.bf16.gmra.mxu0 %v256
    %v881 = vpop.f32.mrf.mxu0
    %v882 = vadd.f32 %v350, %v881
    %v883 = vpop.f32.mrf.mxu0
    %v884 = vadd.f32 %v354, %v883
    %v885 = vpop.f32.mrf.mxu0
    %v886 = vadd.f32 %v350, %v885
    %v887 = vpop.f32.mrf.mxu0
    %v888 = vadd.f32 %v354, %v887
    %889 = vmatprep.mubr.bf16.mxu0 %v259
    %890 = vmatmul.mubr.bf16.gmra.mxu0 %v257
    %v891 = vpop.f32.mrf.mxu0
    %v892 = vadd.f32 %v350, %v891
    %v893 = vpop.f32.mrf.mxu0
    %v894 = vadd.f32 %v354, %v893
    %v895 = vpop.f32.mrf.mxu0
    %v896 = vadd.f32 %v350, %v895
    %v897 = vpop.f32.mrf.mxu0
    %v898 = vadd.f32 %v354, %v897
    %899 = vmatprep.mubr.bf16.mxu0 %v260
    %900 = vmatmul.mubr.bf16.gmra.mxu0 %v258
    %v901 = vpop.f32.mrf.mxu0
    %v902 = vadd.f32 %v350, %v901
    %v903 = vpop.f32.mrf.mxu0
    %v904 = vadd.f32 %v354, %v903
    %v905 = vpop.f32.mrf.mxu0
    %v906 = vadd.f32 %v350, %v905
    %v907 = vpop.f32.mrf.mxu0
    %v908 = vadd.f32 %v354, %v907
    %909 = vmatprep.mubr.bf16.mxu0 %v261
    %910 = vmatmul.mubr.bf16.gmra.mxu0 %v259
    %v911 = vpop.f32.mrf.mxu0
    %v912 = vadd.f32 %v350, %v911
    %v913 = vpop.f32.mrf.mxu0
    %v914 = vadd.f32 %v354, %v913
    %v915 = vpop.f32.mrf.mxu0
    %v916 = vadd.f32 %v350, %v915
    %v917 = vpop.f32.mrf.mxu0
    %v918 = vadd.f32 %v354, %v917
    %919 = vmatprep.mubr.bf16.mxu0 %v262
    %920 = vmatmul.mubr.bf16.gmra.mxu0 %v260
    %v921 = vpop.f32.mrf.mxu0
    %v922 = vadd.f32 %v350, %v921
    %v923 = vpop.f32.mrf.mxu0
    %v924 = vadd.f32 %v354, %v923
    %v925 = vpop.f32.mrf.mxu0
    %v926 = vadd.f32 %v350, %v925
    %v927 = vpop.f32.mrf.mxu0
    %v928 = vadd.f32 %v354, %v927
    %929 = vmatprep.mubr.bf16.mxu0 %v263
    %930 = vmatmul.mubr.bf16.gmra.mxu0 %v261
    %v931 = vpop.f32.mrf.mxu0
    %v932 = vadd.f32 %v350, %v931
    %v933 = vpop.f32.mrf.mxu0
    %v934 = vadd.f32 %v354, %v933
    %v935 = vpop.f32.mrf.mxu0
    %v936 = vadd.f32 %v350, %v935
    %v937 = vpop.f32.mrf.mxu0
    %v938 = vadd.f32 %v354, %v937
    %939 = vmatprep.mubr.bf16.mxu0 %v264
    %940 = vmatmul.mubr.bf16.gmra.mxu0 %v262
    %v941 = vpop.f32.mrf.mxu0
    %v942 = vadd.f32 %v350, %v941
    %v943 = vpop.f32.mrf.mxu0
    %v944 = vadd.f32 %v354, %v943
    %v945 = vpop.f32.mrf.mxu0
    %v946 = vadd.f32 %v350, %v945
    %v947 = vpop.f32.mrf.mxu0
    %v948 = vadd.f32 %v354, %v947
    %949 = vdwg.mxu0
    %950 = vmatprep.subr.bf16.mxu0 %v548
    %951 = vmatpush1.bf16.msra.mxu0 %v547
    %952 = vmatprep.subr.bf16.mxu0 %v546
    %953 = vmatpush1.bf16.msra.mxu0 %v545
    %954 = vmatprep.subr.bf16.mxu0 %v544
    %955 = vmatpush1.bf16.msra.mxu0 %v543
    %956 = vmatprep.subr.bf16.mxu0 %v542
    %957 = vmatpush1.bf16.msra.mxu0 %v541
    %958 = vmatprep.subr.bf16.mxu0 %v540
    %959 = vmatpush1.bf16.msra.mxu0 %v539
    %960 = vmatprep.subr.bf16.mxu0 %v538
    %961 = vmatpush1.bf16.msra.mxu0 %v537
    %962 = vmatprep.subr.bf16.mxu0 %v536
    %963 = vmatpush1.bf16.msra.mxu0 %v535
    %964 = vmatprep.subr.bf16.mxu0 %v534
    %965 = vmatpush1.bf16.msra.mxu0 %v533
    %966 = vmatprep.subr.bf16.mxu0 0
    %967 = vmatpush2.bf16.msra.mxu0 0
    %968 = vmatprep.subr.bf16.mxu0 0
    %969 = vmatpush2.bf16.msra.mxu0 0
    %970 = vmatprep.subr.bf16.mxu0 0
    %971 = vmatpush2.bf16.msra.mxu0 0
    %972 = vmatprep.subr.bf16.mxu0 0
    %973 = vmatpush2.bf16.msra.mxu0 0
    %974 = vmatprep.subr.bf16.mxu0 0
    %975 = vmatpush2.bf16.msra.mxu0 0
    %976 = vmatprep.subr.bf16.mxu0 0
    %977 = vmatpush2.bf16.msra.mxu0 0
    %978 = vmatprep.subr.bf16.mxu0 0
    %979 = vmatpush2.bf16.msra.mxu0 0
    %980 = vmatprep.subr.bf16.mxu0 0
    %981 = vmatpush2.bf16.msra.mxu0 0
    %982 = vmatprep.mubr.bf16.mxu0 0
    %983 = vmatmul.mubr.bf16.gmra.mxu0 %v235
    %v984 = vpop.f32.mrf.mxu0
    %v985 = vadd.f32 %v632, %v984
    %v986 = vpop.f32.mrf.mxu0
    %v987 = vadd.f32 %v634, %v986
    %v988 = vpop.f32.mrf.mxu0
    %v989 = vadd.f32 %v636, %v988
    %v990 = vpop.f32.mrf.mxu0
    %v991 = vadd.f32 %v638, %v990
    %992 = vmatprep.mubr.bf16.mxu0 0
    %993 = vmatmul.mubr.bf16.gmra.mxu0 %v236
    %v994 = vpop.f32.mrf.mxu0
    %v995 = vadd.f32 %v642, %v994
    %v996 = vpop.f32.mrf.mxu0
    %v997 = vadd.f32 %v644, %v996
    %v998 = vpop.f32.mrf.mxu0
    %v999 = vadd.f32 %v646, %v998
    %v1000 = vpop.f32.mrf.mxu0
    %v1001 = vadd.f32 %v648, %v1000
    %1002 = vmatprep.mubr.bf16.mxu0 0
    %1003 = vmatmul.mubr.bf16.gmra.mxu0 %v237
    %v1004 = vpop.f32.mrf.mxu0
    %v1005 = vadd.f32 %v652, %v1004
    %v1006 = vpop.f32.mrf.mxu0
    %v1007 = vadd.f32 %v654, %v1006
    %v1008 = vpop.f32.mrf.mxu0
    %v1009 = vadd.f32 %v656, %v1008
    %v1010 = vpop.f32.mrf.mxu0
    %v1011 = vadd.f32 %v658, %v1010
    %1012 = vmatprep.mubr.bf16.mxu0 0
    %1013 = vmatmul.mubr.bf16.gmra.mxu0 %v238
    %v1014 = vpop.f32.mrf.mxu0
    %v1015 = vadd.f32 %v662, %v1014
    %v1016 = vpop.f32.mrf.mxu0
    %v1017 = vadd.f32 %v664, %v1016
    %v1018 = vpop.f32.mrf.mxu0
    %v1019 = vadd.f32 %v666, %v1018
    %v1020 = vpop.f32.mrf.mxu0
    %v1021 = vadd.f32 %v668, %v1020
    %1022 = vmatprep.mubr.bf16.mxu0 0
    %1023 = vmatmul.mubr.bf16.gmra.mxu0 %v239
    %v1024 = vpop.f32.mrf.mxu0
    %v1025 = vadd.f32 %v672, %v1024
    %v1026 = vpop.f32.mrf.mxu0
    %v1027 = vadd.f32 %v674, %v1026
    %v1028 = vpop.f32.mrf.mxu0
    %v1029 = vadd.f32 %v676, %v1028
    %v1030 = vpop.f32.mrf.mxu0
    %v1031 = vadd.f32 %v678, %v1030
    %1032 = vmatprep.mubr.bf16.mxu0 0
    %1033 = vmatmul.mubr.bf16.gmra.mxu0 %v240
    %v1034 = vpop.f32.mrf.mxu0
    %v1035 = vadd.f32 %v682, %v1034
    %v1036 = vpop.f32.mrf.mxu0
    %v1037 = vadd.f32 %v684, %v1036
    %v1038 = vpop.f32.mrf.mxu0
    %v1039 = vadd.f32 %v686, %v1038
    %v1040 = vpop.f32.mrf.mxu0
    %v1041 = vadd.f32 %v688, %v1040
    %1042 = vmatprep.mubr.bf16.mxu0 0
    %1043 = vmatmul.mubr.bf16.gmra.mxu0 %v241
    %v1044 = vpop.f32.mrf.mxu0
    %v1045 = vadd.f32 %v692, %v1044
    %v1046 = vpop.f32.mrf.mxu0
    %v1047 = vadd.f32 %v694, %v1046
    %v1048 = vpop.f32.mrf.mxu0
    %v1049 = vadd.f32 %v696, %v1048
    %v1050 = vpop.f32.mrf.mxu0
    %v1051 = vadd.f32 %v698, %v1050
    %1052 = vmatprep.mubr.bf16.mxu0 0
    %1053 = vmatmul.mubr.bf16.gmra.mxu0 %v242
    %v1054 = vpop.f32.mrf.mxu0
    %v1055 = vadd.f32 %v702, %v1054
    %v1056 = vpop.f32.mrf.mxu0
    %v1057 = vadd.f32 %v704, %v1056
    %v1058 = vpop.f32.mrf.mxu0
    %v1059 = vadd.f32 %v706, %v1058
    %v1060 = vpop.f32.mrf.mxu0
    %v1061 = vadd.f32 %v708, %v1060
    %1062 = vmatprep.mubr.bf16.mxu0 0
    %1063 = vmatmul.mubr.bf16.gmra.mxu0 %v243
    %v1064 = vpop.f32.mrf.mxu0
    %v1065 = vadd.f32 %v712, %v1064
    %v1066 = vpop.f32.mrf.mxu0
    %v1067 = vadd.f32 %v714, %v1066
    %v1068 = vpop.f32.mrf.mxu0
    %v1069 = vadd.f32 %v716, %v1068
    %v1070 = vpop.f32.mrf.mxu0
    %v1071 = vadd.f32 %v718, %v1070
    %1072 = vmatprep.mubr.bf16.mxu0 0
    %1073 = vmatmul.mubr.bf16.gmra.mxu0 %v244
    %v1074 = vpop.f32.mrf.mxu0
    %v1075 = vadd.f32 %v722, %v1074
    %v1076 = vpop.f32.mrf.mxu0
    %v1077 = vadd.f32 %v724, %v1076
    %v1078 = vpop.f32.mrf.mxu0
    %v1079 = vadd.f32 %v726, %v1078
    %v1080 = vpop.f32.mrf.mxu0
    %v1081 = vadd.f32 %v728, %v1080
    %1082 = vmatprep.mubr.bf16.mxu0 0
    %1083 = vmatmul.mubr.bf16.gmra.mxu0 %v245
    %v1084 = vpop.f32.mrf.mxu0
    %v1085 = vadd.f32 %v732, %v1084
    %v1086 = vpop.f32.mrf.mxu0
    %v1087 = vadd.f32 %v734, %v1086
    %v1088 = vpop.f32.mrf.mxu0
    %v1089 = vadd.f32 %v736, %v1088
    %v1090 = vpop.f32.mrf.mxu0
    %v1091 = vadd.f32 %v738, %v1090
    %1092 = vmatprep.mubr.bf16.mxu0 0
    %1093 = vmatmul.mubr.bf16.gmra.mxu0 %v246
    %v1094 = vpop.f32.mrf.mxu0
    %v1095 = vadd.f32 %v742, %v1094
    %v1096 = vpop.f32.mrf.mxu0
    %v1097 = vadd.f32 %v744, %v1096
    %v1098 = vpop.f32.mrf.mxu0
    %v1099 = vadd.f32 %v746, %v1098
    %v1100 = vpop.f32.mrf.mxu0
    %v1101 = vadd.f32 %v748, %v1100
    %1102 = vmatprep.mubr.bf16.mxu0 0
    %1103 = vmatmul.mubr.bf16.gmra.mxu0 %v247
    %v1104 = vpop.f32.mrf.mxu0
    %v1105 = vadd.f32 %v752, %v1104
    %v1106 = vpop.f32.mrf.mxu0
    %v1107 = vadd.f32 %v754, %v1106
    %v1108 = vpop.f32.mrf.mxu0
    %v1109 = vadd.f32 %v756, %v1108
    %v1110 = vpop.f32.mrf.mxu0
    %v1111 = vadd.f32 %v758, %v1110
    %1112 = vmatprep.mubr.bf16.mxu0 0
    %1113 = vmatmul.mubr.bf16.gmra.mxu0 %v248
    %v1114 = vpop.f32.mrf.mxu0
    %v1115 = vadd.f32 %v762, %v1114
    %v1116 = vpop.f32.mrf.mxu0
    %v1117 = vadd.f32 %v764, %v1116
    %v1118 = vpop.f32.mrf.mxu0
    %v1119 = vadd.f32 %v766, %v1118
    %v1120 = vpop.f32.mrf.mxu0
    %v1121 = vadd.f32 %v768, %v1120
    %1122 = vmatprep.mubr.bf16.mxu0 0
    %1123 = vmatmul.mubr.bf16.gmra.mxu0 %v249
    %v1124 = vpop.f32.mrf.mxu0
    %v1125 = vadd.f32 %v772, %v1124
    %v1126 = vpop.f32.mrf.mxu0
    %v1127 = vadd.f32 %v774, %v1126
    %v1128 = vpop.f32.mrf.mxu0
    %v1129 = vadd.f32 %v776, %v1128
    %v1130 = vpop.f32.mrf.mxu0
    %v1131 = vadd.f32 %v778, %v1130
    %1132 = vmatprep.mubr.bf16.mxu0 0
    %1133 = vmatmul.mubr.bf16.gmra.mxu0 %v250
    %v1134 = vpop.f32.mrf.mxu0
    %v1135 = vadd.f32 %v782, %v1134
    %v1136 = vpop.f32.mrf.mxu0
    %v1137 = vadd.f32 %v784, %v1136
    %v1138 = vpop.f32.mrf.mxu0
    %v1139 = vadd.f32 %v786, %v1138
    %v1140 = vpop.f32.mrf.mxu0
    %v1141 = vadd.f32 %v788, %v1140
    %1142 = vmatprep.mubr.bf16.mxu0 0
    %1143 = vmatmul.mubr.bf16.gmra.mxu0 %v251
    %v1144 = vpop.f32.mrf.mxu0
    %v1145 = vadd.f32 %v792, %v1144
    %v1146 = vpop.f32.mrf.mxu0
    %v1147 = vadd.f32 %v794, %v1146
    %v1148 = vpop.f32.mrf.mxu0
    %v1149 = vadd.f32 %v796, %v1148
    %v1150 = vpop.f32.mrf.mxu0
    %v1151 = vadd.f32 %v798, %v1150
    %1152 = vmatprep.mubr.bf16.mxu0 0
    %1153 = vmatmul.mubr.bf16.gmra.mxu0 %v252
    %v1154 = vpop.f32.mrf.mxu0
    %v1155 = vadd.f32 %v802, %v1154
    %v1156 = vpop.f32.mrf.mxu0
    %v1157 = vadd.f32 %v804, %v1156
    %v1158 = vpop.f32.mrf.mxu0
    %v1159 = vadd.f32 %v806, %v1158
    %v1160 = vpop.f32.mrf.mxu0
    %v1161 = vadd.f32 %v808, %v1160
    %1162 = vmatprep.mubr.bf16.mxu0 0
    %1163 = vmatmul.mubr.bf16.gmra.mxu0 %v253
    %v1164 = vpop.f32.mrf.mxu0
    %v1165 = vadd.f32 %v812, %v1164
    %v1166 = vpop.f32.mrf.mxu0
    %v1167 = vadd.f32 %v814, %v1166
    %v1168 = vpop.f32.mrf.mxu0
    %v1169 = vadd.f32 %v816, %v1168
    %v1170 = vpop.f32.mrf.mxu0
    %v1171 = vadd.f32 %v818, %v1170
    %1172 = vmatprep.mubr.bf16.mxu0 0
    %1173 = vmatmul.mubr.bf16.gmra.mxu0 %v254
    %v1174 = vpop.f32.mrf.mxu0
    %v1175 = vadd.f32 %v822, %v1174
    %v1176 = vpop.f32.mrf.mxu0
    %v1177 = vadd.f32 %v824, %v1176
    %v1178 = vpop.f32.mrf.mxu0
    %v1179 = vadd.f32 %v826, %v1178
    %v1180 = vpop.f32.mrf.mxu0
    %v1181 = vadd.f32 %v828, %v1180
    %1182 = vmatprep.mubr.bf16.mxu0 0
    %1183 = vmatmul.mubr.bf16.gmra.mxu0 %v255
    %v1184 = vpop.f32.mrf.mxu0
    %v1185 = vadd.f32 %v832, %v1184
    %v1186 = vpop.f32.mrf.mxu0
    %v1187 = vadd.f32 %v834, %v1186
    %v1188 = vpop.f32.mrf.mxu0
    %v1189 = vadd.f32 %v836, %v1188
    %v1190 = vpop.f32.mrf.mxu0
    %v1191 = vadd.f32 %v838, %v1190
    %1192 = vmatprep.mubr.bf16.mxu0 0
    %1193 = vmatmul.mubr.bf16.gmra.mxu0 %v256
    %v1194 = vpop.f32.mrf.mxu0
    %v1195 = vadd.f32 %v842, %v1194
    %v1196 = vpop.f32.mrf.mxu0
    %v1197 = vadd.f32 %v844, %v1196
    %v1198 = vpop.f32.mrf.mxu0
    %v1199 = vadd.f32 %v846, %v1198
    %v1200 = vpop.f32.mrf.mxu0
    %v1201 = vadd.f32 %v848, %v1200
    %1202 = vmatprep.mubr.bf16.mxu0 0
    %1203 = vmatmul.mubr.bf16.gmra.mxu0 %v257
    %v1204 = vpop.f32.mrf.mxu0
    %v1205 = vadd.f32 %v852, %v1204
    %v1206 = vpop.f32.mrf.mxu0
    %v1207 = vadd.f32 %v854, %v1206
    %v1208 = vpop.f32.mrf.mxu0
    %v1209 = vadd.f32 %v856, %v1208
    %v1210 = vpop.f32.mrf.mxu0
    %v1211 = vadd.f32 %v858, %v1210
    %1212 = vmatprep.mubr.bf16.mxu0 0
    %1213 = vmatmul.mubr.bf16.gmra.mxu0 %v258
    %v1214 = vpop.f32.mrf.mxu0
    %v1215 = vadd.f32 %v862, %v1214
    %v1216 = vpop.f32.mrf.mxu0
    %v1217 = vadd.f32 %v864, %v1216
    %v1218 = vpop.f32.mrf.mxu0
    %v1219 = vadd.f32 %v866, %v1218
    %v1220 = vpop.f32.mrf.mxu0
    %v1221 = vadd.f32 %v868, %v1220
    %1222 = vmatprep.mubr.bf16.mxu0 0
    %1223 = vmatmul.mubr.bf16.gmra.mxu0 %v259
    %v1224 = vpop.f32.mrf.mxu0
    %v1225 = vadd.f32 %v872, %v1224
    %v1226 = vpop.f32.mrf.mxu0
    %v1227 = vadd.f32 %v874, %v1226
    %v1228 = vpop.f32.mrf.mxu0
    %v1229 = vadd.f32 %v876, %v1228
    %v1230 = vpop.f32.mrf.mxu0
    %v1231 = vadd.f32 %v878, %v1230
    %1232 = vmatprep.mubr.bf16.mxu0 0
    %1233 = vmatmul.mubr.bf16.gmra.mxu0 %v260
    %v1234 = vpop.f32.mrf.mxu0
    %v1235 = vadd.f32 %v882, %v1234
    %v1236 = vpop.f32.mrf.mxu0
    %v1237 = vadd.f32 %v884, %v1236
    %v1238 = vpop.f32.mrf.mxu0
    %v1239 = vadd.f32 %v886, %v1238
    %v1240 = vpop.f32.mrf.mxu0
    %v1241 = vadd.f32 %v888, %v1240
    %1242 = vmatprep.mubr.bf16.mxu0 0
    %1243 = vmatmul.mubr.bf16.gmra.mxu0 %v261
    %v1244 = vpop.f32.mrf.mxu0
    %v1245 = vadd.f32 %v892, %v1244
    %v1246 = vpop.f32.mrf.mxu0
    %v1247 = vadd.f32 %v894, %v1246
    %v1248 = vpop.f32.mrf.mxu0
    %v1249 = vadd.f32 %v896, %v1248
    %v1250 = vpop.f32.mrf.mxu0
    %v1251 = vadd.f32 %v898, %v1250
    %1252 = vmatprep.mubr.bf16.mxu0 0
    %1253 = vmatmul.mubr.bf16.gmra.mxu0 %v262
    %v1254 = vpop.f32.mrf.mxu0
    %v1255 = vadd.f32 %v902, %v1254
    %v1256 = vpop.f32.mrf.mxu0
    %v1257 = vadd.f32 %v904, %v1256
    %v1258 = vpop.f32.mrf.mxu0
    %v1259 = vadd.f32 %v906, %v1258
    %v1260 = vpop.f32.mrf.mxu0
    %v1261 = vadd.f32 %v908, %v1260
    %1262 = vmatprep.mubr.bf16.mxu0 0
    %1263 = vmatmul.mubr.bf16.gmra.mxu0 %v263
    %v1264 = vpop.f32.mrf.mxu0
    %v1265 = vadd.f32 %v912, %v1264
    %v1266 = vpop.f32.mrf.mxu0
    %v1267 = vadd.f32 %v914, %v1266
    %v1268 = vpop.f32.mrf.mxu0
    %v1269 = vadd.f32 %v916, %v1268
    %v1270 = vpop.f32.mrf.mxu0
    %v1271 = vadd.f32 %v918, %v1270
    %1272 = vmatprep.mubr.bf16.mxu0 0
    %1273 = vmatmul.mubr.bf16.gmra.mxu0 %v264
    %v1274 = vpop.f32.mrf.mxu0
    %v1275 = vadd.f32 %v922, %v1274
    %v1276 = vpop.f32.mrf.mxu0
    %v1277 = vadd.f32 %v924, %v1276
    %v1278 = vpop.f32.mrf.mxu0
    %v1279 = vadd.f32 %v926, %v1278
    %v1280 = vpop.f32.mrf.mxu0
    %v1281 = vadd.f32 %v928, %v1280
    %1282 = vmatprep.mubr.bf16.mxu0 0
    %1283 = vmatmul.mubr.bf16.gmra.mxu0 0
    %v1284 = vpop.f32.mrf.mxu0
    %v1285 = vadd.f32 %v932, %v1284
    %v1286 = vpop.f32.mrf.mxu0
    %v1287 = vadd.f32 %v934, %v1286
    %v1288 = vpop.f32.mrf.mxu0
    %v1289 = vadd.f32 %v936, %v1288
    %v1290 = vpop.f32.mrf.mxu0
    %v1291 = vadd.f32 %v938, %v1290
    %1292 = vmatprep.mubr.bf16.mxu0 0
    %1293 = vmatmul.mubr.bf16.gmra.mxu0 0
    %v1294 = vpop.f32.mrf.mxu0
    %v1295 = vadd.f32 %v942, %v1294
    %v1296 = vpop.f32.mrf.mxu0
    %v1297 = vadd.f32 %v944, %v1296
    %v1298 = vpop.f32.mrf.mxu0
    %v1299 = vadd.f32 %v946, %v1298
    %v1300 = vpop.f32.mrf.mxu0
    %v1301 = vadd.f32 %v948, %v1300
    %1302 = vdwg.mxu0
    %v1303 = vmax.f32 %v985, 0.0
    %v1304 = vmax.f32 %v987, 0.0
    %v1305 = vmax.f32 %v989, 0.0
    %v1306 = vmax.f32 %v991, 0.0
    %v1307 = vmax.f32 %v995, 0.0
    %v1308 = vmax.f32 %v997, 0.0
    %v1309 = vmax.f32 %v999, 0.0
    %v1310 = vmax.f32 %v1001, 0.0
    %v1311 = vmax.f32 %v1005, 0.0
    %v1312 = vmax.f32 %v1007, 0.0
    %v1313 = vmax.f32 %v1009, 0.0
    %v1314 = vmax.f32 %v1011, 0.0
    %v1315 = vmax.f32 %v1015, 0.0
    %v1316 = vmax.f32 %v1017, 0.0
    %v1317 = vmax.f32 %v1019, 0.0
    %v1318 = vmax.f32 %v1021, 0.0
    %v1319 = vmax.f32 %v1025, 0.0
    %v1320 = vmax.f32 %v1027, 0.0
    %v1321 = vmax.f32 %v1029, 0.0
    %v1322 = vmax.f32 %v1031, 0.0
    %v1323 = vmax.f32 %v1035, 0.0
    %v1324 = vmax.f32 %v1037, 0.0
    %v1325 = vmax.f32 %v1039, 0.0
    %v1326 = vmax.f32 %v1041, 0.0
    %v1327 = vmax.f32 %v1045, 0.0
    %v1328 = vmax.f32 %v1047, 0.0
    %v1329 = vmax.f32 %v1049, 0.0
    %v1330 = vmax.f32 %v1051, 0.0
    %v1331 = vmax.f32 %v1055, 0.0
    %v1332 = vmax.f32 %v1057, 0.0
    %v1333 = vmax.f32 %v1059, 0.0
    %v1334 = vmax.f32 %v1061, 0.0
    %v1335 = vmax.f32 %v1065, 0.0
    %v1336 = vmax.f32 %v1067, 0.0
    %v1337 = vmax.f32 %v1069, 0.0
    %v1338 = vmax.f32 %v1071, 0.0
    %v1339 = vmax.f32 %v1075, 0.0
    %v1340 = vmax.f32 %v1077, 0.0
    %v1341 = vmax.f32 %v1079, 0.0
    %v1342 = vmax.f32 %v1081, 0.0
    %v1343 = vmax.f32 %v1085, 0.0
    %v1344 = vmax.f32 %v1087, 0.0
    %v1345 = vmax.f32 %v1089, 0.0
    %v1346 = vmax.f32 %v1091, 0.0
    %v1347 = vmax.f32 %v1095, 0.0
    %v1348 = vmax.f32 %v1097, 0.0
    %v1349 = vmax.f32 %v1099, 0.0
    %v1350 = vmax.f32 %v1101, 0.0
    %v1351 = vmax.f32 %v1105, 0.0
    %v1352 = vmax.f32 %v1107, 0.0
    %v1353 = vmax.f32 %v1109, 0.0
    %v1354 = vmax.f32 %v1111, 0.0
    %v1355 = vmax.f32 %v1115, 0.0
    %v1356 = vmax.f32 %v1117, 0.0
    %v1357 = vmax.f32 %v1119, 0.0
    %v1358 = vmax.f32 %v1121, 0.0
    %v1359 = vmax.f32 %v1125, 0.0
    %v1360 = vmax.f32 %v1127, 0.0
    %v1361 = vmax.f32 %v1129, 0.0
    %v1362 = vmax.f32 %v1131, 0.0
    %v1363 = vmax.f32 %v1135, 0.0
    %v1364 = vmax.f32 %v1137, 0.0
    %v1365 = vmax.f32 %v1139, 0.0
    %v1366 = vmax.f32 %v1141, 0.0
    %v1367 = vmax.f32 %v1145, 0.0
    %v1368 = vmax.f32 %v1147, 0.0
    %v1369 = vmax.f32 %v1149, 0.0
    %v1370 = vmax.f32 %v1151, 0.0
    %v1371 = vmax.f32 %v1155, 0.0
    %v1372 = vmax.f32 %v1157, 0.0
    %v1373 = vmax.f32 %v1159, 0.0
    %v1374 = vmax.f32 %v1161, 0.0
    %v1375 = vmax.f32 %v1165, 0.0
    %v1376 = vmax.f32 %v1167, 0.0
    %v1377 = vmax.f32 %v1169, 0.0
    %v1378 = vmax.f32 %v1171, 0.0
    %v1379 = vmax.f32 %v1175, 0.0
    %v1380 = vmax.f32 %v1177, 0.0
    %v1381 = vmax.f32 %v1179, 0.0
    %v1382 = vmax.f32 %v1181, 0.0
    %v1383 = vmax.f32 %v1185, 0.0
    %v1384 = vmax.f32 %v1187, 0.0
    %v1385 = vmax.f32 %v1189, 0.0
    %v1386 = vmax.f32 %v1191, 0.0
    %v1387 = vmax.f32 %v1195, 0.0
    %v1388 = vmax.f32 %v1197, 0.0
    %v1389 = vmax.f32 %v1199, 0.0
    %v1390 = vmax.f32 %v1201, 0.0
    %v1391 = vmax.f32 %v1205, 0.0
    %v1392 = vmax.f32 %v1207, 0.0
    %v1393 = vmax.f32 %v1209, 0.0
    %v1394 = vmax.f32 %v1211, 0.0
    %v1395 = vmax.f32 %v1215, 0.0
    %v1396 = vmax.f32 %v1217, 0.0
    %v1397 = vmax.f32 %v1219, 0.0
    %v1398 = vmax.f32 %v1221, 0.0
    %v1399 = vmax.f32 %v1225, 0.0
    %v1400 = vmax.f32 %v1227, 0.0
    %v1401 = vmax.f32 %v1229, 0.0
    %v1402 = vmax.f32 %v1231, 0.0
    %v1403 = vmax.f32 %v1235, 0.0
    %v1404 = vmax.f32 %v1237, 0.0
    %v1405 = vmax.f32 %v1239, 0.0
    %v1406 = vmax.f32 %v1241, 0.0
    %v1407 = vmax.f32 %v1245, 0.0
    %v1408 = vmax.f32 %v1247, 0.0
    %v1409 = vmax.f32 %v1249, 0.0
    %v1410 = vmax.f32 %v1251, 0.0
    %v1411 = vmax.f32 %v1255, 0.0
    %v1412 = vmax.f32 %v1257, 0.0
    %v1413 = vmax.f32 %v1259, 0.0
    %v1414 = vmax.f32 %v1261, 0.0
    %v1415 = vmax.f32 %v1265, 0.0
    %v1416 = vmax.f32 %v1267, 0.0
    %v1417 = vmax.f32 %v1269, 0.0
    %v1418 = vmax.f32 %v1271, 0.0
    %v1419 = vmax.f32 %v1275, 0.0
    %v1420 = vmax.f32 %v1277, 0.0
    %v1421 = vmax.f32 %v1279, 0.0
    %v1422 = vmax.f32 %v1281, 0.0
    %v1423 = vmax.f32 %v1285, 0.0
    %v1424 = vmax.f32 %v1287, 0.0
    %v1425 = vmax.f32 %v1289, 0.0
    %v1426 = vmax.f32 %v1291, 0.0
    %v1427 = vmax.f32 %v1295, 0.0
    %v1428 = vmax.f32 %v1297, 0.0
    %v1429 = vmax.f32 %v1299, 0.0
    %v1430 = vmax.f32 %v1301, 0.0
    %v1431 = vpack.c.bf16 %v1305, %v1303
    %v1432 = vpack.c.bf16 %v1306, %v1304
    %v1433 = vpack.c.bf16 %v1309, %v1307
    %v1434 = vpack.c.bf16 %v1310, %v1308
    %v1435 = vpack.c.bf16 %v1313, %v1311
    %v1436 = vpack.c.bf16 %v1314, %v1312
    %v1437 = vpack.c.bf16 %v1317, %v1315
    %v1438 = vpack.c.bf16 %v1318, %v1316
    %v1439 = vpack.c.bf16 %v1321, %v1319
    %v1440 = vpack.c.bf16 %v1322, %v1320
    %v1441 = vpack.c.bf16 %v1325, %v1323
    %v1442 = vpack.c.bf16 %v1326, %v1324
    %v1443 = vpack.c.bf16 %v1329, %v1327
    %v1444 = vpack.c.bf16 %v1330, %v1328
    %v1445 = vpack.c.bf16 %v1333, %v1331
    %v1446 = vpack.c.bf16 %v1334, %v1332
    %v1447 = vpack.c.bf16 %v1337, %v1335
    %v1448 = vpack.c.bf16 %v1338, %v1336
    %v1449 = vpack.c.bf16 %v1341, %v1339
    %v1450 = vpack.c.bf16 %v1342, %v1340
    %v1451 = vpack.c.bf16 %v1345, %v1343
    %v1452 = vpack.c.bf16 %v1346, %v1344
    %v1453 = vpack.c.bf16 %v1349, %v1347
    %v1454 = vpack.c.bf16 %v1350, %v1348
    %v1455 = vpack.c.bf16 %v1353, %v1351
    %v1456 = vpack.c.bf16 %v1354, %v1352
    %v1457 = vpack.c.bf16 %v1357, %v1355
    %v1458 = vpack.c.bf16 %v1358, %v1356
    %v1459 = vpack.c.bf16 %v1361, %v1359
    %v1460 = vpack.c.bf16 %v1362, %v1360
    %v1461 = vpack.c.bf16 %v1365, %v1363
    %v1462 = vpack.c.bf16 %v1366, %v1364
    %v1463 = vpack.c.bf16 %v1369, %v1367
    %v1464 = vpack.c.bf16 %v1370, %v1368
    %v1465 = vpack.c.bf16 %v1373, %v1371
    %v1466 = vpack.c.bf16 %v1374, %v1372
    %v1467 = vpack.c.bf16 %v1377, %v1375
    %v1468 = vpack.c.bf16 %v1378, %v1376
    %v1469 = vpack.c.bf16 %v1381, %v1379
    %v1470 = vpack.c.bf16 %v1382, %v1380
    %v1471 = vpack.c.bf16 %v1385, %v1383
    %v1472 = vpack.c.bf16 %v1386, %v1384
    %v1473 = vpack.c.bf16 %v1389, %v1387
    %v1474 = vpack.c.bf16 %v1390, %v1388
    %v1475 = vpack.c.bf16 %v1393, %v1391
    %v1476 = vpack.c.bf16 %v1394, %v1392
    %v1477 = vpack.c.bf16 %v1397, %v1395
    %v1478 = vpack.c.bf16 %v1398, %v1396
    %v1479 = vpack.c.bf16 %v1401, %v1399
    %v1480 = vpack.c.bf16 %v1402, %v1400
    %v1481 = vpack.c.bf16 %v1405, %v1403
    %v1482 = vpack.c.bf16 %v1406, %v1404
    %v1483 = vpack.c.bf16 %v1409, %v1407
    %v1484 = vpack.c.bf16 %v1410, %v1408
    %v1485 = vpack.c.bf16 %v1413, %v1411
    %v1486 = vpack.c.bf16 %v1414, %v1412
    %v1487 = vpack.c.bf16 %v1417, %v1415
    %v1488 = vpack.c.bf16 %v1418, %v1416
    %v1489 = vpack.c.bf16 %v1421, %v1419
    %v1490 = vpack.c.bf16 %v1422, %v1420
    %v1491 = vpack.c.bf16 %v1425, %v1423
    %v1492 = vpack.c.bf16 %v1426, %v1424
    %v1493 = vpack.c.bf16 %v1429, %v1427
    %v1494 = vpack.c.bf16 %v1430, %v1428
    %v1495 = vld [vmem:[#allocation2 + $0x180] sm:$0xff]
    %v1496 = vld [vmem:[#allocation2 + $0x188] sm:$0xff]
    %v1497 = vld [vmem:[#allocation2 + $0x190] sm:$0xff]
    %v1498 = vld [vmem:[#allocation2 + $0x198] sm:$0xff]
    %v1499 = vld [vmem:[#allocation2 + $0x1a0] sm:$0xff]
    %v1500 = vld [vmem:[#allocation2 + $0x1a8] sm:$0xff]
    %v1501 = vld [vmem:[#allocation2 + $0x1b0] sm:$0xff]
    %v1502 = vld [vmem:[#allocation2 + $0x1b8] sm:$0xff]
    %v1503 = vld [vmem:[#allocation2 + $0x1c0] sm:$0xff]
    %v1504 = vld [vmem:[#allocation2 + $0x1c8] sm:$0xff]
    %v1505 = vld [vmem:[#allocation2 + $0x1d0] sm:$0xff]
    %v1506 = vld [vmem:[#allocation2 + $0x1d8] sm:$0xff]
    %v1507 = vld [vmem:[#allocation2 + $0x1e0] sm:$0xff]
    %v1508 = vld [vmem:[#allocation2 + $0x1e8] sm:$0xff]
    %v1509 = vld [vmem:[#allocation2 + $0x1f0] sm:$0xff]
    %v1510 = vld [vmem:[#allocation2 + $0x1f8] sm:$0xff]
    %v1511 = vld [vmem:[#allocation2 + $0x200] sm:$0xff]
    %v1512 = vld [vmem:[#allocation2 + $0x208] sm:$0xff]
    %v1513 = vld [vmem:[#allocation2 + $0x210] sm:$0xff]
    %v1514 = vld [vmem:[#allocation2 + $0x218] sm:$0xff]
    %v1515 = vld [vmem:[#allocation2 + $0x220] sm:$0xff]
    %v1516 = vld [vmem:[#allocation2 + $0x228] sm:$0xff]
    %v1517 = vld [vmem:[#allocation2 + $0x230] sm:$0xff]
    %v1518 = vld [vmem:[#allocation2 + $0x238] sm:$0xff]
    %v1519 = vld [vmem:[#allocation2 + $0x240] sm:$0xff]
    %v1520 = vld [vmem:[#allocation2 + $0x248] sm:$0xff]
    %v1521 = vld [vmem:[#allocation2 + $0x250] sm:$0xff]
    %v1522 = vld [vmem:[#allocation2 + $0x258] sm:$0xff]
    %v1523 = vld [vmem:[#allocation2 + $0x260] sm:$0xff]
    %v1524 = vld [vmem:[#allocation2 + $0x268] sm:$0xff]
    %v1525 = vld [vmem:[#allocation2 + $0x270] sm:$0xff]
    %v1526 = vld [vmem:[#allocation2 + $0x278] sm:$0xff]
    %v1527 = vld [vmem:[#allocation2 + $0x280] sm:$0xff]
    %v1528 = vld [vmem:[#allocation2 + $0x288] sm:$0xff]
    %v1529 = vld [vmem:[#allocation2 + $0x290] sm:$0xff]
    %v1530 = vld [vmem:[#allocation2 + $0x298] sm:$0xff]
    %v1531 = vld [vmem:[#allocation2 + $0x2a0] sm:$0xff]
    %v1532 = vld [vmem:[#allocation2 + $0x2a8] sm:$0xff]
    %v1533 = vld [vmem:[#allocation2 + $0x2b0] sm:$0xff]
    %v1534 = vld [vmem:[#allocation2 + $0x2b8] sm:$0xff]
    %v1535 = vld [vmem:[#allocation2 + $0x2c0] sm:$0xff]
    %v1536 = vld [vmem:[#allocation2 + $0x2c8] sm:$0xff]
    %v1537 = vld [vmem:[#allocation2 + $0x2d0] sm:$0xff]
    %v1538 = vld [vmem:[#allocation2 + $0x2d8] sm:$0xff]
    %v1539 = vld [vmem:[#allocation2 + $0x2e0] sm:$0xff]
    %v1540 = vld [vmem:[#allocation2 + $0x2e8] sm:$0xff]
    %v1541 = vld [vmem:[#allocation2 + $0x2f0] sm:$0xff]
    %v1542 = vld [vmem:[#allocation2 + $0x2f8] sm:$0xff]
    %v1543 = vld [vmem:[#allocation2 + $0x300] sm:$0xff]
    %v1544 = vld [vmem:[#allocation2 + $0x308] sm:$0xff]
    %v1545 = vld [vmem:[#allocation2 + $0x310] sm:$0xff]
    %v1546 = vld [vmem:[#allocation2 + $0x318] sm:$0xff]
    %v1547 = vld [vmem:[#allocation2 + $0x320] sm:$0xff]
    %v1548 = vld [vmem:[#allocation2 + $0x328] sm:$0xff]
    %v1549 = vld [vmem:[#allocation2 + $0x330] sm:$0xff]
    %v1550 = vld [vmem:[#allocation2 + $0x338] sm:$0xff]
    %v1551 = vld [vmem:[#allocation2 + $0x340] sm:$0xff]
    %v1552 = vld [vmem:[#allocation2 + $0x348] sm:$0xff]
    %v1553 = vld [vmem:[#allocation2 + $0x350] sm:$0xff]
    %v1554 = vld [vmem:[#allocation2 + $0x358] sm:$0xff]
    %v1555 = vld [vmem:[#allocation2 + $0x360] sm:$0xff]
    %v1556 = vld [vmem:[#allocation2 + $0x368] sm:$0xff]
    %v1557 = vld [vmem:[#allocation2 + $0x370] sm:$0xff]
    %v1558 = vld [vmem:[#allocation2 + $0x378] sm:$0xff]
    %v1559 = vld [vmem:[#allocation2 + $0x380] sm:$0xff]
    %v1560 = vld [vmem:[#allocation2 + $0x388] sm:$0xff]
    %v1561 = vld [vmem:[#allocation2 + $0x390] sm:$0xff]
    %v1562 = vld [vmem:[#allocation2 + $0x398] sm:$0xff]
    %v1563 = vld [vmem:[#allocation2 + $0x3a0] sm:$0xff]
    %v1564 = vld [vmem:[#allocation2 + $0x3a8] sm:$0xff]
    %v1565 = vld [vmem:[#allocation2 + $0x3b0] sm:$0xff]
    %v1566 = vld [vmem:[#allocation2 + $0x3b8] sm:$0xff]
    %v1567 = vld [vmem:[#allocation2 + $0x3c0] sm:$0xff]
    %v1568 = vld [vmem:[#allocation2 + $0x3c8] sm:$0xff]
    %v1569 = vld [vmem:[#allocation2 + $0x3d0] sm:$0xff]
    %v1570 = vld [vmem:[#allocation2 + $0x3d8] sm:$0xff]
    %v1571 = vld [vmem:[#allocation2 + $0x3e0] sm:$0xff]
    %v1572 = vld [vmem:[#allocation2 + $0x3e8] sm:$0xff]
    %v1573 = vld [vmem:[#allocation2 + $0x3f0] sm:$0xff]
    %v1574 = vld [vmem:[#allocation2 + $0x3f8] sm:$0xff]
    %v1575 = vld [vmem:[#allocation2 + $0x400] sm:$0xff]
    %v1576 = vld [vmem:[#allocation2 + $0x408] sm:$0xff]
    %v1577 = vld [vmem:[#allocation2 + $0x410] sm:$0xff]
    %v1578 = vld [vmem:[#allocation2 + $0x418] sm:$0xff]
    %v1579 = vld [vmem:[#allocation2 + $0x420] sm:$0xff]
    %v1580 = vld [vmem:[#allocation2 + $0x428] sm:$0xff]
    %v1581 = vld [vmem:[#allocation2 + $0x430] sm:$0xff]
    %v1582 = vld [vmem:[#allocation2 + $0x438] sm:$0xff]
    %v1583 = vld [vmem:[#allocation2 + $0x440] sm:$0xff]
    %v1584 = vld [vmem:[#allocation2 + $0x448] sm:$0xff]
    %v1585 = vld [vmem:[#allocation2 + $0x450] sm:$0xff]
    %v1586 = vld [vmem:[#allocation2 + $0x458] sm:$0xff]
    %v1587 = vld [vmem:[#allocation2 + $0x460] sm:$0xff]
    %v1588 = vld [vmem:[#allocation2 + $0x468] sm:$0xff]
    %v1589 = vld [vmem:[#allocation2 + $0x470] sm:$0xff]
    %v1590 = vld [vmem:[#allocation2 + $0x478] sm:$0xff]
    %s1591 = scalar_lea.vmem [#allocation4], 1
    %v1592 = vld [vmem:[%s1591] ss:$8 sm:$0x3]
    %v1594 = vlaneseq
    %v1595 = vshrl.u32 %v1594, 7
    %v1596 = vsub.s32 0, %v1595
    %v1597 = vrot.slane %v1592, %v1596
    %v1598 = vlaneseq
    %v1599 = vshrl.u32 %v1598, 7
    %v1600 = vsub.s32 1, %v1599
    %v1601 = vrot.slane %v1592, %v1600
    %v1700 = vunpack.c.l.b16 %v1495
    %v1701 = vunpack.c.h.b16 %v1495
    %v1702 = vunpack.c.l.b16 %v1496
    %v1703 = vunpack.c.h.b16 %v1496
    %v1704 = vunpack.c.l.b16 %v1497
    %v1705 = vunpack.c.h.b16 %v1497
    %v1706 = vunpack.c.l.b16 %v1498
    %v1707 = vunpack.c.h.b16 %v1498
    %v1708 = vunpack.c.l.b16 %v1499
    %v1709 = vunpack.c.h.b16 %v1499
    %v1710 = vunpack.c.l.b16 %v1500
    %v1711 = vunpack.c.h.b16 %v1500
    %v1712 = vunpack.c.l.b16 %v1501
    %v1713 = vunpack.c.h.b16 %v1501
    %v1714 = vunpack.c.l.b16 %v1502
    %v1715 = vunpack.c.h.b16 %v1502
    %v1716 = vunpack.c.l.b16 %v1503
    %v1717 = vunpack.c.h.b16 %v1503
    %v1718 = vunpack.c.l.b16 %v1504
    %v1719 = vunpack.c.h.b16 %v1504
    %v1720 = vunpack.c.l.b16 %v1505
    %v1721 = vunpack.c.h.b16 %v1505
    %v1722 = vunpack.c.l.b16 %v1506
    %v1723 = vunpack.c.h.b16 %v1506
    %v1724 = vunpack.c.l.b16 %v1507
    %v1725 = vunpack.c.h.b16 %v1507
    %v1726 = vunpack.c.l.b16 %v1508
    %v1727 = vunpack.c.h.b16 %v1508
    %v1728 = vunpack.c.l.b16 %v1509
    %v1729 = vunpack.c.h.b16 %v1509
    %v1730 = vunpack.c.l.b16 %v1510
    %v1731 = vunpack.c.h.b16 %v1510
    %v1732 = vunpack.c.l.b16 %v1511
    %v1733 = vunpack.c.h.b16 %v1511
    %v1734 = vunpack.c.l.b16 %v1512
    %v1735 = vunpack.c.h.b16 %v1512
    %v1736 = vunpack.c.l.b16 %v1513
    %v1737 = vunpack.c.h.b16 %v1513
    %v1738 = vunpack.c.l.b16 %v1514
    %v1739 = vunpack.c.h.b16 %v1514
    %v1740 = vunpack.c.l.b16 %v1515
    %v1741 = vunpack.c.h.b16 %v1515
    %v1742 = vunpack.c.l.b16 %v1516
    %v1743 = vunpack.c.h.b16 %v1516
    %v1744 = vunpack.c.l.b16 %v1517
    %v1745 = vunpack.c.h.b16 %v1517
    %v1746 = vunpack.c.l.b16 %v1518
    %v1747 = vunpack.c.h.b16 %v1518
    %v1748 = vunpack.c.l.b16 %v1519
    %v1749 = vunpack.c.h.b16 %v1519
    %v1750 = vunpack.c.l.b16 %v1520
    %v1751 = vunpack.c.h.b16 %v1520
    %v1752 = vunpack.c.l.b16 %v1521
    %v1753 = vunpack.c.h.b16 %v1521
    %v1754 = vunpack.c.l.b16 %v1522
    %v1755 = vunpack.c.h.b16 %v1522
    %v1756 = vunpack.c.l.b16 %v1523
    %v1757 = vunpack.c.h.b16 %v1523
    %v1758 = vunpack.c.l.b16 %v1524
    %v1759 = vunpack.c.h.b16 %v1524
    %v1760 = vunpack.c.l.b16 %v1525
    %v1761 = vunpack.c.h.b16 %v1525
    %v1762 = vunpack.c.l.b16 %v1526
    %v1763 = vunpack.c.h.b16 %v1526
    %v1764 = vunpack.c.l.b16 %v1527
    %v1765 = vunpack.c.h.b16 %v1527
    %v1766 = vunpack.c.l.b16 %v1528
    %v1767 = vunpack.c.h.b16 %v1528
    %v1768 = vunpack.c.l.b16 %v1529
    %v1769 = vunpack.c.h.b16 %v1529
    %v1770 = vunpack.c.l.b16 %v1530
    %v1771 = vunpack.c.h.b16 %v1530
    %v1772 = vunpack.c.l.b16 %v1531
    %v1773 = vunpack.c.h.b16 %v1531
    %v1774 = vunpack.c.l.b16 %v1532
    %v1775 = vunpack.c.h.b16 %v1532
    %v1776 = vunpack.c.l.b16 %v1533
    %v1777 = vunpack.c.h.b16 %v1533
    %v1778 = vunpack.c.l.b16 %v1534
    %v1779 = vunpack.c.h.b16 %v1534
    %v1780 = vunpack.c.l.b16 %v1535
    %v1781 = vunpack.c.h.b16 %v1535
    %v1782 = vunpack.c.l.b16 %v1536
    %v1783 = vunpack.c.h.b16 %v1536
    %v1784 = vunpack.c.l.b16 %v1537
    %v1785 = vunpack.c.h.b16 %v1537
    %v1786 = vunpack.c.l.b16 %v1538
    %v1787 = vunpack.c.h.b16 %v1538
    %v1788 = vunpack.c.l.b16 %v1539
    %v1789 = vunpack.c.h.b16 %v1539
    %v1790 = vunpack.c.l.b16 %v1540
    %v1791 = vunpack.c.h.b16 %v1540
    %v1792 = vunpack.c.l.b16 %v1541
    %v1793 = vunpack.c.h.b16 %v1541
    %v1794 = vunpack.c.l.b16 %v1542
    %v1795 = vunpack.c.h.b16 %v1542
    %v1796 = vunpack.c.l.b16 %v1543
    %v1797 = vunpack.c.h.b16 %v1543
    %v1798 = vunpack.c.l.b16 %v1544
    %v1799 = vunpack.c.h.b16 %v1544
    %v1800 = vunpack.c.l.b16 %v1545
    %v1801 = vunpack.c.h.b16 %v1545
    %v1802 = vunpack.c.l.b16 %v1546
    %v1803 = vunpack.c.h.b16 %v1546
    %v1804 = vunpack.c.l.b16 %v1547
    %v1805 = vunpack.c.h.b16 %v1547
    %v1806 = vunpack.c.l.b16 %v1548
    %v1807 = vunpack.c.h.b16 %v1548
    %v1808 = vunpack.c.l.b16 %v1549
    %v1809 = vunpack.c.h.b16 %v1549
    %v1810 = vunpack.c.l.b16 %v1550
    %v1811 = vunpack.c.h.b16 %v1550
    %v1812 = vunpack.c.l.b16 %v1551
    %v1813 = vunpack.c.h.b16 %v1551
    %v1814 = vunpack.c.l.b16 %v1552
    %v1815 = vunpack.c.h.b16 %v1552
    %v1816 = vunpack.c.l.b16 %v1553
    %v1817 = vunpack.c.h.b16 %v1553
    %v1818 = vunpack.c.l.b16 %v1554
    %v1819 = vunpack.c.h.b16 %v1554
    %v1820 = vunpack.c.l.b16 %v1555
    %v1821 = vunpack.c.h.b16 %v1555
    %v1822 = vunpack.c.l.b16 %v1556
    %v1823 = vunpack.c.h.b16 %v1556
    %v1824 = vunpack.c.l.b16 %v1557
    %v1825 = vunpack.c.h.b16 %v1557
    %v1826 = vunpack.c.l.b16 %v1558
    %v1827 = vunpack.c.h.b16 %v1558
    %v1828 = vunpack.c.l.b16 %v1559
    %v1829 = vunpack.c.h.b16 %v1559
    %v1830 = vunpack.c.l.b16 %v1560
    %v1831 = vunpack.c.h.b16 %v1560
    %v1832 = vunpack.c.l.b16 %v1561
    %v1833 = vunpack.c.h.b16 %v1561
    %v1834 = vunpack.c.l.b16 %v1562
    %v1835 = vunpack.c.h.b16 %v1562
    %v1836 = vunpack.c.l.b16 %v1563
    %v1837 = vunpack.c.h.b16 %v1563
    %v1838 = vunpack.c.l.b16 %v1564
    %v1839 = vunpack.c.h.b16 %v1564
    %v1840 = vunpack.c.l.b16 %v1565
    %v1841 = vunpack.c.h.b16 %v1565
    %v1842 = vunpack.c.l.b16 %v1566
    %v1843 = vunpack.c.h.b16 %v1566
    %v1844 = vunpack.c.l.b16 %v1567
    %v1845 = vunpack.c.h.b16 %v1567
    %v1846 = vunpack.c.l.b16 %v1568
    %v1847 = vunpack.c.h.b16 %v1568
    %v1848 = vunpack.c.l.b16 %v1569
    %v1849 = vunpack.c.h.b16 %v1569
    %v1850 = vunpack.c.l.b16 %v1570
    %v1851 = vunpack.c.h.b16 %v1570
    %v1852 = vunpack.c.l.b16 %v1571
    %v1853 = vunpack.c.h.b16 %v1571
    %v1854 = vunpack.c.l.b16 %v1572
    %v1855 = vunpack.c.h.b16 %v1572
    %v1856 = vunpack.c.l.b16 %v1573
    %v1857 = vunpack.c.h.b16 %v1573
    %v1858 = vunpack.c.l.b16 %v1574
    %v1859 = vunpack.c.h.b16 %v1574
    %v1860 = vunpack.c.l.b16 %v1575
    %v1861 = vunpack.c.h.b16 %v1575
    %v1862 = vunpack.c.l.b16 %v1576
    %v1863 = vunpack.c.h.b16 %v1576
    %v1864 = vunpack.c.l.b16 %v1577
    %v1865 = vunpack.c.h.b16 %v1577
    %v1866 = vunpack.c.l.b16 %v1578
    %v1867 = vunpack.c.h.b16 %v1578
    %v1868 = vunpack.c.l.b16 %v1579
    %v1869 = vunpack.c.h.b16 %v1579
    %v1870 = vunpack.c.l.b16 %v1580
    %v1871 = vunpack.c.h.b16 %v1580
    %v1872 = vunpack.c.l.b16 %v1581
    %v1873 = vunpack.c.h.b16 %v1581
    %v1874 = vunpack.c.l.b16 %v1582
    %v1875 = vunpack.c.h.b16 %v1582
    %v1876 = vunpack.c.l.b16 %v1583
    %v1877 = vunpack.c.h.b16 %v1583
    %v1878 = vunpack.c.l.b16 %v1584
    %v1879 = vunpack.c.h.b16 %v1584
    %v1880 = vunpack.c.l.b16 %v1585
    %v1881 = vunpack.c.h.b16 %v1585
    %v1882 = vunpack.c.l.b16 %v1586
    %v1883 = vunpack.c.h.b16 %v1586
    %v1884 = vunpack.c.l.b16 %v1587
    %v1885 = vunpack.c.h.b16 %v1587
    %v1886 = vunpack.c.l.b16 %v1588
    %v1887 = vunpack.c.h.b16 %v1588
    %v1888 = vunpack.c.l.b16 %v1589
    %v1889 = vunpack.c.h.b16 %v1589
    %v1890 = vunpack.c.l.b16 %v1590
    %v1891 = vunpack.c.h.b16 %v1590
    %v1892 = vpack.c.b16 %v1702, %v1700
    %v1893 = vpack.c.b16 %v1703, %v1701
    %v1894 = vpack.c.b16 %v1706, %v1704
    %v1895 = vpack.c.b16 %v1707, %v1705
    %v1896 = vpack.c.b16 %v1710, %v1708
    %v1897 = vpack.c.b16 %v1711, %v1709
    %v1898 = vpack.c.b16 %v1714, %v1712
    %v1899 = vpack.c.b16 %v1715, %v1713
    %v1900 = vpack.c.b16 %v1718, %v1716
    %v1901 = vpack.c.b16 %v1719, %v1717
    %v1902 = vpack.c.b16 %v1722, %v1720
    %v1903 = vpack.c.b16 %v1723, %v1721
    %v1904 = vpack.c.b16 %v1726, %v1724
    %v1905 = vpack.c.b16 %v1727, %v1725
    %v1906 = vpack.c.b16 %v1730, %v1728
    %v1907 = vpack.c.b16 %v1731, %v1729
    %v1908 = vpack.c.b16 %v1734, %v1732
    %v1909 = vpack.c.b16 %v1735, %v1733
    %v1910 = vpack.c.b16 %v1738, %v1736
    %v1911 = vpack.c.b16 %v1739, %v1737
    %v1912 = vpack.c.b16 %v1742, %v1740
    %v1913 = vpack.c.b16 %v1743, %v1741
    %v1914 = vpack.c.b16 %v1746, %v1744
    %v1915 = vpack.c.b16 %v1747, %v1745
    %v1916 = vpack.c.b16 %v1750, %v1748
    %v1917 = vpack.c.b16 %v1751, %v1749
    %v1918 = vpack.c.b16 %v1754, %v1752
    %v1919 = vpack.c.b16 %v1755, %v1753
    %v1920 = vpack.c.b16 %v1758, %v1756
    %v1921 = vpack.c.b16 %v1759, %v1757
    %v1922 = vpack.c.b16 %v1762, %v1760
    %v1923 = vpack.c.b16 %v1763, %v1761
    %v1924 = vpack.c.b16 %v1766, %v1764
    %v1925 = vpack.c.b16 %v1767, %v1765
    %v1926 = vpack.c.b16 %v1770, %v1768
    %v1927 = vpack.c.b16 %v1771, %v1769
    %v1928 = vpack.c.b16 %v1774, %v1772
    %v1929 = vpack.c.b16 %v1775, %v1773
    %v1930 = vpack.c.b16 %v1778, %v1776
    %v1931 = vpack.c.b16 %v1779, %v1777
    %v1932 = vpack.c.b16 %v1782, %v1780
    %v1933 = vpack.c.b16 %v1783, %v1781
    %v1934 = vpack.c.b16 %v1786, %v1784
    %v1935 = vpack.c.b16 %v1787, %v1785
    %v1936 = vpack.c.b16 %v1790, %v1788
    %v1937 = vpack.c.b16 %v1791, %v1789
    %v1938 = vpack.c.b16 %v1794, %v1792
    %v1939 = vpack.c.b16 %v1795, %v1793
    %v1940 = vpack.c.b16 %v1798, %v1796
    %v1941 = vpack.c.b16 %v1799, %v1797
    %v1942 = vpack.c.b16 %v1802, %v1800
    %v1943 = vpack.c.b16 %v1803, %v1801
    %v1944 = vpack.c.b16 %v1806, %v1804
    %v1945 = vpack.c.b16 %v1807, %v1805
    %v1946 = vpack.c.b16 %v1810, %v1808
    %v1947 = vpack.c.b16 %v1811, %v1809
    %v1948 = vpack.c.b16 %v1814, %v1812
    %v1949 = vpack.c.b16 %v1815, %v1813
    %v1950 = vpack.c.b16 %v1818, %v1816
    %v1951 = vpack.c.b16 %v1819, %v1817
    %v1952 = vpack.c.b16 %v1822, %v1820
    %v1953 = vpack.c.b16 %v1823, %v1821
    %v1954 = vpack.c.b16 %v1826, %v1824
    %v1955 = vpack.c.b16 %v1827, %v1825
    %v1956 = vpack.c.b16 %v1830, %v1828
    %v1957 = vpack.c.b16 %v1831, %v1829
    %v1958 = vpack.c.b16 %v1834, %v1832
    %v1959 = vpack.c.b16 %v1835, %v1833
    %v1960 = vpack.c.b16 %v1838, %v1836
    %v1961 = vpack.c.b16 %v1839, %v1837
    %v1962 = vpack.c.b16 %v1842, %v1840
    %v1963 = vpack.c.b16 %v1843, %v1841
    %v1964 = vpack.c.b16 %v1846, %v1844
    %v1965 = vpack.c.b16 %v1847, %v1845
    %v1966 = vpack.c.b16 %v1850, %v1848
    %v1967 = vpack.c.b16 %v1851, %v1849
    %v1968 = vpack.c.b16 %v1854, %v1852
    %v1969 = vpack.c.b16 %v1855, %v1853
    %v1970 = vpack.c.b16 %v1858, %v1856
    %v1971 = vpack.c.b16 %v1859, %v1857
    %v1972 = vpack.c.b16 %v1862, %v1860
    %v1973 = vpack.c.b16 %v1863, %v1861
    %v1974 = vpack.c.b16 %v1866, %v1864
    %v1975 = vpack.c.b16 %v1867, %v1865
    %v1976 = vpack.c.b16 %v1870, %v1868
    %v1977 = vpack.c.b16 %v1871, %v1869
    %v1978 = vpack.c.b16 %v1874, %v1872
    %v1979 = vpack.c.b16 %v1875, %v1873
    %v1980 = vpack.c.b16 %v1878, %v1876
    %v1981 = vpack.c.b16 %v1879, %v1877
    %v1982 = vpack.c.b16 %v1882, %v1880
    %v1983 = vpack.c.b16 %v1883, %v1881
    %v1984 = vpack.c.b16 %v1886, %v1884
    %v1985 = vpack.c.b16 %v1887, %v1885
    %v1986 = vpack.c.b16 %v1890, %v1888
    %v1987 = vpack.c.b16 %v1891, %v1889
    %2084 = vmatprep.subr.bf16.mxu0 %v1907
    %2085 = vmatpush1.bf16.msra.mxu0 %v1906
    %2086 = vmatprep.subr.bf16.mxu0 %v1905
    %2087 = vmatpush1.bf16.msra.mxu0 %v1904
    %2088 = vmatprep.subr.bf16.mxu0 %v1903
    %2089 = vmatpush1.bf16.msra.mxu0 %v1902
    %2090 = vmatprep.subr.bf16.mxu0 %v1901
    %2091 = vmatpush1.bf16.msra.mxu0 %v1900
    %2092 = vmatprep.subr.bf16.mxu0 %v1899
    %2093 = vmatpush1.bf16.msra.mxu0 %v1898
    %2094 = vmatprep.subr.bf16.mxu0 %v1897
    %2095 = vmatpush1.bf16.msra.mxu0 %v1896
    %2096 = vmatprep.subr.bf16.mxu0 %v1895
    %2097 = vmatpush1.bf16.msra.mxu0 %v1894
    %2098 = vmatprep.subr.bf16.mxu0 %v1893
    %2099 = vmatpush1.bf16.msra.mxu0 %v1892
    %2100 = vmatprep.subr.bf16.mxu0 %v1923
    %2101 = vmatpush2.bf16.msra.mxu0 %v1922
    %2102 = vmatprep.subr.bf16.mxu0 %v1921
    %2103 = vmatpush2.bf16.msra.mxu0 %v1920
    %2104 = vmatprep.subr.bf16.mxu0 %v1919
    %2105 = vmatpush2.bf16.msra.mxu0 %v1918
    %2106 = vmatprep.subr.bf16.mxu0 %v1917
    %2107 = vmatpush2.bf16.msra.mxu0 %v1916
    %2108 = vmatprep.subr.bf16.mxu0 %v1915
    %2109 = vmatpush2.bf16.msra.mxu0 %v1914
    %2110 = vmatprep.subr.bf16.mxu0 %v1913
    %2111 = vmatpush2.bf16.msra.mxu0 %v1912
    %2112 = vmatprep.subr.bf16.mxu0 %v1911
    %2113 = vmatpush2.bf16.msra.mxu0 %v1910
    %2114 = vmatprep.subr.bf16.mxu0 %v1909
    %2115 = vmatpush2.bf16.msra.mxu0 %v1908
    %2116 = vmatprep.mubr.bf16.mxu0 0
    %2117 = vmatmul.mubr.bf16.gmra.mxu0 0
    %v2118 = vpop.f32.mrf.mxu0
    %v2119 = vadd.f32 %v1597, %v2118
    %v2120 = vpop.f32.mrf.mxu0
    %v2121 = vadd.f32 %v1601, %v2120
    %v2122 = vpop.f32.mrf.mxu0
    %v2123 = vadd.f32 %v1597, %v2122
    %v2124 = vpop.f32.mrf.mxu0
    %v2125 = vadd.f32 %v1601, %v2124
    %2126 = vmatprep.mubr.bf16.mxu0 0
    %2127 = vmatmul.mubr.bf16.gmra.mxu0 0
    %v2128 = vpop.f32.mrf.mxu0
    %v2129 = vadd.f32 %v1597, %v2128
    %v2130 = vpop.f32.mrf.mxu0
    %v2131 = vadd.f32 %v1601, %v2130
    %v2132 = vpop.f32.mrf.mxu0
    %v2133 = vadd.f32 %v1597, %v2132
    %v2134 = vpop.f32.mrf.mxu0
    %v2135 = vadd.f32 %v1601, %v2134
    %2136 = vmatprep.mubr.bf16.mxu0 %v1432
    %2137 = vmatmul.mubr.bf16.gmra.mxu0 %v1431
    %v2138 = vpop.f32.mrf.mxu0
    %v2139 = vadd.f32 %v1597, %v2138
    %v2140 = vpop.f32.mrf.mxu0
    %v2141 = vadd.f32 %v1601, %v2140
    %v2142 = vpop.f32.mrf.mxu0
    %v2143 = vadd.f32 %v1597, %v2142
    %v2144 = vpop.f32.mrf.mxu0
    %v2145 = vadd.f32 %v1601, %v2144
    %2146 = vmatprep.mubr.bf16.mxu0 %v1434
    %2147 = vmatmul.mubr.bf16.gmra.mxu0 %v1433
    %v2148 = vpop.f32.mrf.mxu0
    %v2149 = vadd.f32 %v1597, %v2148
    %v2150 = vpop.f32.mrf.mxu0
    %v2151 = vadd.f32 %v1601, %v2150
    %v2152 = vpop.f32.mrf.mxu0
    %v2153 = vadd.f32 %v1597, %v2152
    %v2154 = vpop.f32.mrf.mxu0
    %v2155 = vadd.f32 %v1601, %v2154
    %2156 = vmatprep.mubr.bf16.mxu0 %v1436
    %2157 = vmatmul.mubr.bf16.gmra.mxu0 %v1435
    %v2158 = vpop.f32.mrf.mxu0
    %v2159 = vadd.f32 %v1597, %v2158
    %v2160 = vpop.f32.mrf.mxu0
    %v2161 = vadd.f32 %v1601, %v2160
    %v2162 = vpop.f32.mrf.mxu0
    %v2163 = vadd.f32 %v1597, %v2162
    %v2164 = vpop.f32.mrf.mxu0
    %v2165 = vadd.f32 %v1601, %v2164
    %2166 = vmatprep.mubr.bf16.mxu0 %v1438
    %2167 = vmatmul.mubr.bf16.gmra.mxu0 %v1437
    %v2168 = vpop.f32.mrf.mxu0
    %v2169 = vadd.f32 %v1597, %v2168
    %v2170 = vpop.f32.mrf.mxu0
    %v2171 = vadd.f32 %v1601, %v2170
    %v2172 = vpop.f32.mrf.mxu0
    %v2173 = vadd.f32 %v1597, %v2172
    %v2174 = vpop.f32.mrf.mxu0
    %v2175 = vadd.f32 %v1601, %v2174
    %2176 = vmatprep.mubr.bf16.mxu0 %v1440
    %2177 = vmatmul.mubr.bf16.gmra.mxu0 %v1439
    %v2178 = vpop.f32.mrf.mxu0
    %v2179 = vadd.f32 %v1597, %v2178
    %v2180 = vpop.f32.mrf.mxu0
    %v2181 = vadd.f32 %v1601, %v2180
    %v2182 = vpop.f32.mrf.mxu0
    %v2183 = vadd.f32 %v1597, %v2182
    %v2184 = vpop.f32.mrf.mxu0
    %v2185 = vadd.f32 %v1601, %v2184
    %2186 = vmatprep.mubr.bf16.mxu0 %v1442
    %2187 = vmatmul.mubr.bf16.gmra.mxu0 %v1441
    %v2188 = vpop.f32.mrf.mxu0
    %v2189 = vadd.f32 %v1597, %v2188
    %v2190 = vpop.f32.mrf.mxu0
    %v2191 = vadd.f32 %v1601, %v2190
    %v2192 = vpop.f32.mrf.mxu0
    %v2193 = vadd.f32 %v1597, %v2192
    %v2194 = vpop.f32.mrf.mxu0
    %v2195 = vadd.f32 %v1601, %v2194
    %2196 = vmatprep.mubr.bf16.mxu0 %v1444
    %2197 = vmatmul.mubr.bf16.gmra.mxu0 %v1443
    %v2198 = vpop.f32.mrf.mxu0
    %v2199 = vadd.f32 %v1597, %v2198
    %v2200 = vpop.f32.mrf.mxu0
    %v2201 = vadd.f32 %v1601, %v2200
    %v2202 = vpop.f32.mrf.mxu0
    %v2203 = vadd.f32 %v1597, %v2202
    %v2204 = vpop.f32.mrf.mxu0
    %v2205 = vadd.f32 %v1601, %v2204
    %2206 = vmatprep.mubr.bf16.mxu0 %v1446
    %2207 = vmatmul.mubr.bf16.gmra.mxu0 %v1445
    %v2208 = vpop.f32.mrf.mxu0
    %v2209 = vadd.f32 %v1597, %v2208
    %v2210 = vpop.f32.mrf.mxu0
    %v2211 = vadd.f32 %v1601, %v2210
    %v2212 = vpop.f32.mrf.mxu0
    %v2213 = vadd.f32 %v1597, %v2212
    %v2214 = vpop.f32.mrf.mxu0
    %v2215 = vadd.f32 %v1601, %v2214
    %2216 = vmatprep.mubr.bf16.mxu0 %v1448
    %2217 = vmatmul.mubr.bf16.gmra.mxu0 %v1447
    %v2218 = vpop.f32.mrf.mxu0
    %v2219 = vadd.f32 %v1597, %v2218
    %v2220 = vpop.f32.mrf.mxu0
    %v2221 = vadd.f32 %v1601, %v2220
    %v2222 = vpop.f32.mrf.mxu0
    %v2223 = vadd.f32 %v1597, %v2222
    %v2224 = vpop.f32.mrf.mxu0
    %v2225 = vadd.f32 %v1601, %v2224
    %2226 = vmatprep.mubr.bf16.mxu0 %v1450
    %2227 = vmatmul.mubr.bf16.gmra.mxu0 %v1449
    %v2228 = vpop.f32.mrf.mxu0
    %v2229 = vadd.f32 %v1597, %v2228
    %v2230 = vpop.f32.mrf.mxu0
    %v2231 = vadd.f32 %v1601, %v2230
    %v2232 = vpop.f32.mrf.mxu0
    %v2233 = vadd.f32 %v1597, %v2232
    %v2234 = vpop.f32.mrf.mxu0
    %v2235 = vadd.f32 %v1601, %v2234
    %2236 = vmatprep.mubr.bf16.mxu0 %v1452
    %2237 = vmatmul.mubr.bf16.gmra.mxu0 %v1451
    %v2238 = vpop.f32.mrf.mxu0
    %v2239 = vadd.f32 %v1597, %v2238
    %v2240 = vpop.f32.mrf.mxu0
    %v2241 = vadd.f32 %v1601, %v2240
    %v2242 = vpop.f32.mrf.mxu0
    %v2243 = vadd.f32 %v1597, %v2242
    %v2244 = vpop.f32.mrf.mxu0
    %v2245 = vadd.f32 %v1601, %v2244
    %2246 = vmatprep.mubr.bf16.mxu0 %v1454
    %2247 = vmatmul.mubr.bf16.gmra.mxu0 %v1453
    %v2248 = vpop.f32.mrf.mxu0
    %v2249 = vadd.f32 %v1597, %v2248
    %v2250 = vpop.f32.mrf.mxu0
    %v2251 = vadd.f32 %v1601, %v2250
    %v2252 = vpop.f32.mrf.mxu0
    %v2253 = vadd.f32 %v1597, %v2252
    %v2254 = vpop.f32.mrf.mxu0
    %v2255 = vadd.f32 %v1601, %v2254
    %2256 = vmatprep.mubr.bf16.mxu0 %v1456
    %2257 = vmatmul.mubr.bf16.gmra.mxu0 %v1455
    %v2258 = vpop.f32.mrf.mxu0
    %v2259 = vadd.f32 %v1597, %v2258
    %v2260 = vpop.f32.mrf.mxu0
    %v2261 = vadd.f32 %v1601, %v2260
    %v2262 = vpop.f32.mrf.mxu0
    %v2263 = vadd.f32 %v1597, %v2262
    %v2264 = vpop.f32.mrf.mxu0
    %v2265 = vadd.f32 %v1601, %v2264
    %2266 = vmatprep.mubr.bf16.mxu0 %v1458
    %2267 = vmatmul.mubr.bf16.gmra.mxu0 %v1457
    %v2268 = vpop.f32.mrf.mxu0
    %v2269 = vadd.f32 %v1597, %v2268
    %v2270 = vpop.f32.mrf.mxu0
    %v2271 = vadd.f32 %v1601, %v2270
    %v2272 = vpop.f32.mrf.mxu0
    %v2273 = vadd.f32 %v1597, %v2272
    %v2274 = vpop.f32.mrf.mxu0
    %v2275 = vadd.f32 %v1601, %v2274
    %2276 = vmatprep.mubr.bf16.mxu0 %v1460
    %2277 = vmatmul.mubr.bf16.gmra.mxu0 %v1459
    %v2278 = vpop.f32.mrf.mxu0
    %v2279 = vadd.f32 %v1597, %v2278
    %v2280 = vpop.f32.mrf.mxu0
    %v2281 = vadd.f32 %v1601, %v2280
    %v2282 = vpop.f32.mrf.mxu0
    %v2283 = vadd.f32 %v1597, %v2282
    %v2284 = vpop.f32.mrf.mxu0
    %v2285 = vadd.f32 %v1601, %v2284
    %2286 = vmatprep.mubr.bf16.mxu0 %v1462
    %2287 = vmatmul.mubr.bf16.gmra.mxu0 %v1461
    %v2288 = vpop.f32.mrf.mxu0
    %v2289 = vadd.f32 %v1597, %v2288
    %v2290 = vpop.f32.mrf.mxu0
    %v2291 = vadd.f32 %v1601, %v2290
    %v2292 = vpop.f32.mrf.mxu0
    %v2293 = vadd.f32 %v1597, %v2292
    %v2294 = vpop.f32.mrf.mxu0
    %v2295 = vadd.f32 %v1601, %v2294
    %2296 = vmatprep.mubr.bf16.mxu0 %v1464
    %2297 = vmatmul.mubr.bf16.gmra.mxu0 %v1463
    %v2298 = vpop.f32.mrf.mxu0
    %v2299 = vadd.f32 %v1597, %v2298
    %v2300 = vpop.f32.mrf.mxu0
    %v2301 = vadd.f32 %v1601, %v2300
    %v2302 = vpop.f32.mrf.mxu0
    %v2303 = vadd.f32 %v1597, %v2302
    %v2304 = vpop.f32.mrf.mxu0
    %v2305 = vadd.f32 %v1601, %v2304
    %2306 = vmatprep.mubr.bf16.mxu0 %v1466
    %2307 = vmatmul.mubr.bf16.gmra.mxu0 %v1465
    %v2308 = vpop.f32.mrf.mxu0
    %v2309 = vadd.f32 %v1597, %v2308
    %v2310 = vpop.f32.mrf.mxu0
    %v2311 = vadd.f32 %v1601, %v2310
    %v2312 = vpop.f32.mrf.mxu0
    %v2313 = vadd.f32 %v1597, %v2312
    %v2314 = vpop.f32.mrf.mxu0
    %v2315 = vadd.f32 %v1601, %v2314
    %2316 = vmatprep.mubr.bf16.mxu0 %v1468
    %2317 = vmatmul.mubr.bf16.gmra.mxu0 %v1467
    %v2318 = vpop.f32.mrf.mxu0
    %v2319 = vadd.f32 %v1597, %v2318
    %v2320 = vpop.f32.mrf.mxu0
    %v2321 = vadd.f32 %v1601, %v2320
    %v2322 = vpop.f32.mrf.mxu0
    %v2323 = vadd.f32 %v1597, %v2322
    %v2324 = vpop.f32.mrf.mxu0
    %v2325 = vadd.f32 %v1601, %v2324
    %2326 = vmatprep.mubr.bf16.mxu0 %v1470
    %2327 = vmatmul.mubr.bf16.gmra.mxu0 %v1469
    %v2328 = vpop.f32.mrf.mxu0
    %v2329 = vadd.f32 %v1597, %v2328
    %v2330 = vpop.f32.mrf.mxu0
    %v2331 = vadd.f32 %v1601, %v2330
    %v2332 = vpop.f32.mrf.mxu0
    %v2333 = vadd.f32 %v1597, %v2332
    %v2334 = vpop.f32.mrf.mxu0
    %v2335 = vadd.f32 %v1601, %v2334
    %2336 = vmatprep.mubr.bf16.mxu0 %v1472
    %2337 = vmatmul.mubr.bf16.gmra.mxu0 %v1471
    %v2338 = vpop.f32.mrf.mxu0
    %v2339 = vadd.f32 %v1597, %v2338
    %v2340 = vpop.f32.mrf.mxu0
    %v2341 = vadd.f32 %v1601, %v2340
    %v2342 = vpop.f32.mrf.mxu0
    %v2343 = vadd.f32 %v1597, %v2342
    %v2344 = vpop.f32.mrf.mxu0
    %v2345 = vadd.f32 %v1601, %v2344
    %2346 = vmatprep.mubr.bf16.mxu0 %v1474
    %2347 = vmatmul.mubr.bf16.gmra.mxu0 %v1473
    %v2348 = vpop.f32.mrf.mxu0
    %v2349 = vadd.f32 %v1597, %v2348
    %v2350 = vpop.f32.mrf.mxu0
    %v2351 = vadd.f32 %v1601, %v2350
    %v2352 = vpop.f32.mrf.mxu0
    %v2353 = vadd.f32 %v1597, %v2352
    %v2354 = vpop.f32.mrf.mxu0
    %v2355 = vadd.f32 %v1601, %v2354
    %2356 = vmatprep.mubr.bf16.mxu0 %v1476
    %2357 = vmatmul.mubr.bf16.gmra.mxu0 %v1475
    %v2358 = vpop.f32.mrf.mxu0
    %v2359 = vadd.f32 %v1597, %v2358
    %v2360 = vpop.f32.mrf.mxu0
    %v2361 = vadd.f32 %v1601, %v2360
    %v2362 = vpop.f32.mrf.mxu0
    %v2363 = vadd.f32 %v1597, %v2362
    %v2364 = vpop.f32.mrf.mxu0
    %v2365 = vadd.f32 %v1601, %v2364
    %2366 = vmatprep.mubr.bf16.mxu0 %v1478
    %2367 = vmatmul.mubr.bf16.gmra.mxu0 %v1477
    %v2368 = vpop.f32.mrf.mxu0
    %v2369 = vadd.f32 %v1597, %v2368
    %v2370 = vpop.f32.mrf.mxu0
    %v2371 = vadd.f32 %v1601, %v2370
    %v2372 = vpop.f32.mrf.mxu0
    %v2373 = vadd.f32 %v1597, %v2372
    %v2374 = vpop.f32.mrf.mxu0
    %v2375 = vadd.f32 %v1601, %v2374
    %2376 = vmatprep.mubr.bf16.mxu0 %v1480
    %2377 = vmatmul.mubr.bf16.gmra.mxu0 %v1479
    %v2378 = vpop.f32.mrf.mxu0
    %v2379 = vadd.f32 %v1597, %v2378
    %v2380 = vpop.f32.mrf.mxu0
    %v2381 = vadd.f32 %v1601, %v2380
    %v2382 = vpop.f32.mrf.mxu0
    %v2383 = vadd.f32 %v1597, %v2382
    %v2384 = vpop.f32.mrf.mxu0
    %v2385 = vadd.f32 %v1601, %v2384
    %2386 = vmatprep.mubr.bf16.mxu0 %v1482
    %2387 = vmatmul.mubr.bf16.gmra.mxu0 %v1481
    %v2388 = vpop.f32.mrf.mxu0
    %v2389 = vadd.f32 %v1597, %v2388
    %v2390 = vpop.f32.mrf.mxu0
    %v2391 = vadd.f32 %v1601, %v2390
    %v2392 = vpop.f32.mrf.mxu0
    %v2393 = vadd.f32 %v1597, %v2392
    %v2394 = vpop.f32.mrf.mxu0
    %v2395 = vadd.f32 %v1601, %v2394
    %2396 = vmatprep.mubr.bf16.mxu0 %v1484
    %2397 = vmatmul.mubr.bf16.gmra.mxu0 %v1483
    %v2398 = vpop.f32.mrf.mxu0
    %v2399 = vadd.f32 %v1597, %v2398
    %v2400 = vpop.f32.mrf.mxu0
    %v2401 = vadd.f32 %v1601, %v2400
    %v2402 = vpop.f32.mrf.mxu0
    %v2403 = vadd.f32 %v1597, %v2402
    %v2404 = vpop.f32.mrf.mxu0
    %v2405 = vadd.f32 %v1601, %v2404
    %2406 = vmatprep.mubr.bf16.mxu0 %v1486
    %2407 = vmatmul.mubr.bf16.gmra.mxu0 %v1485
    %v2408 = vpop.f32.mrf.mxu0
    %v2409 = vadd.f32 %v1597, %v2408
    %v2410 = vpop.f32.mrf.mxu0
    %v2411 = vadd.f32 %v1601, %v2410
    %v2412 = vpop.f32.mrf.mxu0
    %v2413 = vadd.f32 %v1597, %v2412
    %v2414 = vpop.f32.mrf.mxu0
    %v2415 = vadd.f32 %v1601, %v2414
    %2416 = vmatprep.mubr.bf16.mxu0 %v1488
    %2417 = vmatmul.mubr.bf16.gmra.mxu0 %v1487
    %v2418 = vpop.f32.mrf.mxu0
    %v2419 = vadd.f32 %v1597, %v2418
    %v2420 = vpop.f32.mrf.mxu0
    %v2421 = vadd.f32 %v1601, %v2420
    %v2422 = vpop.f32.mrf.mxu0
    %v2423 = vadd.f32 %v1597, %v2422
    %v2424 = vpop.f32.mrf.mxu0
    %v2425 = vadd.f32 %v1601, %v2424
    %2426 = vmatprep.mubr.bf16.mxu0 %v1490
    %2427 = vmatmul.mubr.bf16.gmra.mxu0 %v1489
    %v2428 = vpop.f32.mrf.mxu0
    %v2429 = vadd.f32 %v1597, %v2428
    %v2430 = vpop.f32.mrf.mxu0
    %v2431 = vadd.f32 %v1601, %v2430
    %v2432 = vpop.f32.mrf.mxu0
    %v2433 = vadd.f32 %v1597, %v2432
    %v2434 = vpop.f32.mrf.mxu0
    %v2435 = vadd.f32 %v1601, %v2434
    %2436 = vdwg.mxu0
    %2437 = vmatprep.subr.bf16.mxu0 %v1939
    %2438 = vmatpush1.bf16.msra.mxu0 %v1938
    %2439 = vmatprep.subr.bf16.mxu0 %v1937
    %2440 = vmatpush1.bf16.msra.mxu0 %v1936
    %2441 = vmatprep.subr.bf16.mxu0 %v1935
    %2442 = vmatpush1.bf16.msra.mxu0 %v1934
    %2443 = vmatprep.subr.bf16.mxu0 %v1933
    %2444 = vmatpush1.bf16.msra.mxu0 %v1932
    %2445 = vmatprep.subr.bf16.mxu0 %v1931
    %2446 = vmatpush1.bf16.msra.mxu0 %v1930
    %2447 = vmatprep.subr.bf16.mxu0 %v1929
    %2448 = vmatpush1.bf16.msra.mxu0 %v1928
    %2449 = vmatprep.subr.bf16.mxu0 %v1927
    %2450 = vmatpush1.bf16.msra.mxu0 %v1926
    %2451 = vmatprep.subr.bf16.mxu0 %v1925
    %2452 = vmatpush1.bf16.msra.mxu0 %v1924
    %2453 = vmatprep.subr.bf16.mxu0 %v1955
    %2454 = vmatpush2.bf16.msra.mxu0 %v1954
    %2455 = vmatprep.subr.bf16.mxu0 %v1953
    %2456 = vmatpush2.bf16.msra.mxu0 %v1952
    %2457 = vmatprep.subr.bf16.mxu0 %v1951
    %2458 = vmatpush2.bf16.msra.mxu0 %v1950
    %2459 = vmatprep.subr.bf16.mxu0 %v1949
    %2460 = vmatpush2.bf16.msra.mxu0 %v1948
    %2461 = vmatprep.subr.bf16.mxu0 %v1947
    %2462 = vmatpush2.bf16.msra.mxu0 %v1946
    %2463 = vmatprep.subr.bf16.mxu0 %v1945
    %2464 = vmatpush2.bf16.msra.mxu0 %v1944
    %2465 = vmatprep.subr.bf16.mxu0 %v1943
    %2466 = vmatpush2.bf16.msra.mxu0 %v1942
    %2467 = vmatprep.subr.bf16.mxu0 %v1941
    %2468 = vmatpush2.bf16.msra.mxu0 %v1940
    %2469 = vmatprep.mubr.bf16.mxu0 %v1432
    %2470 = vmatmul.mubr.bf16.gmra.mxu0 %v1431
    %v2471 = vpop.f32.mrf.mxu0
    %v2472 = vadd.f32 %v2119, %v2471
    %v2473 = vpop.f32.mrf.mxu0
    %v2474 = vadd.f32 %v2121, %v2473
    %v2475 = vpop.f32.mrf.mxu0
    %v2476 = vadd.f32 %v2123, %v2475
    %v2477 = vpop.f32.mrf.mxu0
    %v2478 = vadd.f32 %v2125, %v2477
    %2479 = vmatprep.mubr.bf16.mxu0 %v1434
    %2480 = vmatmul.mubr.bf16.gmra.mxu0 %v1433
    %v2481 = vpop.f32.mrf.mxu0
    %v2482 = vadd.f32 %v2129, %v2481
    %v2483 = vpop.f32.mrf.mxu0
    %v2484 = vadd.f32 %v2131, %v2483
    %v2485 = vpop.f32.mrf.mxu0
    %v2486 = vadd.f32 %v2133, %v2485
    %v2487 = vpop.f32.mrf.mxu0
    %v2488 = vadd.f32 %v2135, %v2487
    %2489 = vmatprep.mubr.bf16.mxu0 %v1436
    %2490 = vmatmul.mubr.bf16.gmra.mxu0 %v1435
    %v2491 = vpop.f32.mrf.mxu0
    %v2492 = vadd.f32 %v2139, %v2491
    %v2493 = vpop.f32.mrf.mxu0
    %v2494 = vadd.f32 %v2141, %v2493
    %v2495 = vpop.f32.mrf.mxu0
    %v2496 = vadd.f32 %v2143, %v2495
    %v2497 = vpop.f32.mrf.mxu0
    %v2498 = vadd.f32 %v2145, %v2497
    %2499 = vmatprep.mubr.bf16.mxu0 %v1438
    %2500 = vmatmul.mubr.bf16.gmra.mxu0 %v1437
    %v2501 = vpop.f32.mrf.mxu0
    %v2502 = vadd.f32 %v2149, %v2501
    %v2503 = vpop.f32.mrf.mxu0
    %v2504 = vadd.f32 %v2151, %v2503
    %v2505 = vpop.f32.mrf.mxu0
    %v2506 = vadd.f32 %v2153, %v2505
    %v2507 = vpop.f32.mrf.mxu0
    %v2508 = vadd.f32 %v2155, %v2507
    %2509 = vmatprep.mubr.bf16.mxu0 %v1440
    %2510 = vmatmul.mubr.bf16.gmra.mxu0 %v1439
    %v2511 = vpop.f32.mrf.mxu0
    %v2512 = vadd.f32 %v2159, %v2511
    %v2513 = vpop.f32.mrf.mxu0
    %v2514 = vadd.f32 %v2161, %v2513
    %v2515 = vpop.f32.mrf.mxu0
    %v2516 = vadd.f32 %v2163, %v2515
    %v2517 = vpop.f32.mrf.mxu0
    %v2518 = vadd.f32 %v2165, %v2517
    %2519 = vmatprep.mubr.bf16.mxu0 %v1442
    %2520 = vmatmul.mubr.bf16.gmra.mxu0 %v1441
    %v2521 = vpop.f32.mrf.mxu0
    %v2522 = vadd.f32 %v2169, %v2521
    %v2523 = vpop.f32.mrf.mxu0
    %v2524 = vadd.f32 %v2171, %v2523
    %v2525 = vpop.f32.mrf.mxu0
    %v2526 = vadd.f32 %v2173, %v2525
    %v2527 = vpop.f32.mrf.mxu0
    %v2528 = vadd.f32 %v2175, %v2527
    %2529 = vmatprep.mubr.bf16.mxu0 %v1444
    %2530 = vmatmul.mubr.bf16.gmra.mxu0 %v1443
    %v2531 = vpop.f32.mrf.mxu0
    %v2532 = vadd.f32 %v2179, %v2531
    %v2533 = vpop.f32.mrf.mxu0
    %v2534 = vadd.f32 %v2181, %v2533
    %v2535 = vpop.f32.mrf.mxu0
    %v2536 = vadd.f32 %v2183, %v2535
    %v2537 = vpop.f32.mrf.mxu0
    %v2538 = vadd.f32 %v2185, %v2537
    %2539 = vmatprep.mubr.bf16.mxu0 %v1446
    %2540 = vmatmul.mubr.bf16.gmra.mxu0 %v1445
    %v2541 = vpop.f32.mrf.mxu0
    %v2542 = vadd.f32 %v2189, %v2541
    %v2543 = vpop.f32.mrf.mxu0
    %v2544 = vadd.f32 %v2191, %v2543
    %v2545 = vpop.f32.mrf.mxu0
    %v2546 = vadd.f32 %v2193, %v2545
    %v2547 = vpop.f32.mrf.mxu0
    %v2548 = vadd.f32 %v2195, %v2547
    %2549 = vmatprep.mubr.bf16.mxu0 %v1448
    %2550 = vmatmul.mubr.bf16.gmra.mxu0 %v1447
    %v2551 = vpop.f32.mrf.mxu0
    %v2552 = vadd.f32 %v2199, %v2551
    %v2553 = vpop.f32.mrf.mxu0
    %v2554 = vadd.f32 %v2201, %v2553
    %v2555 = vpop.f32.mrf.mxu0
    %v2556 = vadd.f32 %v2203, %v2555
    %v2557 = vpop.f32.mrf.mxu0
    %v2558 = vadd.f32 %v2205, %v2557
    %2559 = vmatprep.mubr.bf16.mxu0 %v1450
    %2560 = vmatmul.mubr.bf16.gmra.mxu0 %v1449
    %v2561 = vpop.f32.mrf.mxu0
    %v2562 = vadd.f32 %v2209, %v2561
    %v2563 = vpop.f32.mrf.mxu0
    %v2564 = vadd.f32 %v2211, %v2563
    %v2565 = vpop.f32.mrf.mxu0
    %v2566 = vadd.f32 %v2213, %v2565
    %v2567 = vpop.f32.mrf.mxu0
    %v2568 = vadd.f32 %v2215, %v2567
    %2569 = vmatprep.mubr.bf16.mxu0 %v1452
    %2570 = vmatmul.mubr.bf16.gmra.mxu0 %v1451
    %v2571 = vpop.f32.mrf.mxu0
    %v2572 = vadd.f32 %v2219, %v2571
    %v2573 = vpop.f32.mrf.mxu0
    %v2574 = vadd.f32 %v2221, %v2573
    %v2575 = vpop.f32.mrf.mxu0
    %v2576 = vadd.f32 %v2223, %v2575
    %v2577 = vpop.f32.mrf.mxu0
    %v2578 = vadd.f32 %v2225, %v2577
    %2579 = vmatprep.mubr.bf16.mxu0 %v1454
    %2580 = vmatmul.mubr.bf16.gmra.mxu0 %v1453
    %v2581 = vpop.f32.mrf.mxu0
    %v2582 = vadd.f32 %v2229, %v2581
    %v2583 = vpop.f32.mrf.mxu0
    %v2584 = vadd.f32 %v2231, %v2583
    %v2585 = vpop.f32.mrf.mxu0
    %v2586 = vadd.f32 %v2233, %v2585
    %v2587 = vpop.f32.mrf.mxu0
    %v2588 = vadd.f32 %v2235, %v2587
    %2589 = vmatprep.mubr.bf16.mxu0 %v1456
    %2590 = vmatmul.mubr.bf16.gmra.mxu0 %v1455
    %v2591 = vpop.f32.mrf.mxu0
    %v2592 = vadd.f32 %v2239, %v2591
    %v2593 = vpop.f32.mrf.mxu0
    %v2594 = vadd.f32 %v2241, %v2593
    %v2595 = vpop.f32.mrf.mxu0
    %v2596 = vadd.f32 %v2243, %v2595
    %v2597 = vpop.f32.mrf.mxu0
    %v2598 = vadd.f32 %v2245, %v2597
    %2599 = vmatprep.mubr.bf16.mxu0 %v1458
    %2600 = vmatmul.mubr.bf16.gmra.mxu0 %v1457
    %v2601 = vpop.f32.mrf.mxu0
    %v2602 = vadd.f32 %v2249, %v2601
    %v2603 = vpop.f32.mrf.mxu0
    %v2604 = vadd.f32 %v2251, %v2603
    %v2605 = vpop.f32.mrf.mxu0
    %v2606 = vadd.f32 %v2253, %v2605
    %v2607 = vpop.f32.mrf.mxu0
    %v2608 = vadd.f32 %v2255, %v2607
    %2609 = vmatprep.mubr.bf16.mxu0 %v1460
    %2610 = vmatmul.mubr.bf16.gmra.mxu0 %v1459
    %v2611 = vpop.f32.mrf.mxu0
    %v2612 = vadd.f32 %v2259, %v2611
    %v2613 = vpop.f32.mrf.mxu0
    %v2614 = vadd.f32 %v2261, %v2613
    %v2615 = vpop.f32.mrf.mxu0
    %v2616 = vadd.f32 %v2263, %v2615
    %v2617 = vpop.f32.mrf.mxu0
    %v2618 = vadd.f32 %v2265, %v2617
    %2619 = vmatprep.mubr.bf16.mxu0 %v1462
    %2620 = vmatmul.mubr.bf16.gmra.mxu0 %v1461
    %v2621 = vpop.f32.mrf.mxu0
    %v2622 = vadd.f32 %v2269, %v2621
    %v2623 = vpop.f32.mrf.mxu0
    %v2624 = vadd.f32 %v2271, %v2623
    %v2625 = vpop.f32.mrf.mxu0
    %v2626 = vadd.f32 %v2273, %v2625
    %v2627 = vpop.f32.mrf.mxu0
    %v2628 = vadd.f32 %v2275, %v2627
    %2629 = vmatprep.mubr.bf16.mxu0 %v1464
    %2630 = vmatmul.mubr.bf16.gmra.mxu0 %v1463
    %v2631 = vpop.f32.mrf.mxu0
    %v2632 = vadd.f32 %v2279, %v2631
    %v2633 = vpop.f32.mrf.mxu0
    %v2634 = vadd.f32 %v2281, %v2633
    %v2635 = vpop.f32.mrf.mxu0
    %v2636 = vadd.f32 %v2283, %v2635
    %v2637 = vpop.f32.mrf.mxu0
    %v2638 = vadd.f32 %v2285, %v2637
    %2639 = vmatprep.mubr.bf16.mxu0 %v1466
    %2640 = vmatmul.mubr.bf16.gmra.mxu0 %v1465
    %v2641 = vpop.f32.mrf.mxu0
    %v2642 = vadd.f32 %v2289, %v2641
    %v2643 = vpop.f32.mrf.mxu0
    %v2644 = vadd.f32 %v2291, %v2643
    %v2645 = vpop.f32.mrf.mxu0
    %v2646 = vadd.f32 %v2293, %v2645
    %v2647 = vpop.f32.mrf.mxu0
    %v2648 = vadd.f32 %v2295, %v2647
    %2649 = vmatprep.mubr.bf16.mxu0 %v1468
    %2650 = vmatmul.mubr.bf16.gmra.mxu0 %v1467
    %v2651 = vpop.f32.mrf.mxu0
    %v2652 = vadd.f32 %v2299, %v2651
    %v2653 = vpop.f32.mrf.mxu0
    %v2654 = vadd.f32 %v2301, %v2653
    %v2655 = vpop.f32.mrf.mxu0
    %v2656 = vadd.f32 %v2303, %v2655
    %v2657 = vpop.f32.mrf.mxu0
    %v2658 = vadd.f32 %v2305, %v2657
    %2659 = vmatprep.mubr.bf16.mxu0 %v1470
    %2660 = vmatmul.mubr.bf16.gmra.mxu0 %v1469
    %v2661 = vpop.f32.mrf.mxu0
    %v2662 = vadd.f32 %v2309, %v2661
    %v2663 = vpop.f32.mrf.mxu0
    %v2664 = vadd.f32 %v2311, %v2663
    %v2665 = vpop.f32.mrf.mxu0
    %v2666 = vadd.f32 %v2313, %v2665
    %v2667 = vpop.f32.mrf.mxu0
    %v2668 = vadd.f32 %v2315, %v2667
    %2669 = vmatprep.mubr.bf16.mxu0 %v1472
    %2670 = vmatmul.mubr.bf16.gmra.mxu0 %v1471
    %v2671 = vpop.f32.mrf.mxu0
    %v2672 = vadd.f32 %v2319, %v2671
    %v2673 = vpop.f32.mrf.mxu0
    %v2674 = vadd.f32 %v2321, %v2673
    %v2675 = vpop.f32.mrf.mxu0
    %v2676 = vadd.f32 %v2323, %v2675
    %v2677 = vpop.f32.mrf.mxu0
    %v2678 = vadd.f32 %v2325, %v2677
    %2679 = vmatprep.mubr.bf16.mxu0 %v1474
    %2680 = vmatmul.mubr.bf16.gmra.mxu0 %v1473
    %v2681 = vpop.f32.mrf.mxu0
    %v2682 = vadd.f32 %v2329, %v2681
    %v2683 = vpop.f32.mrf.mxu0
    %v2684 = vadd.f32 %v2331, %v2683
    %v2685 = vpop.f32.mrf.mxu0
    %v2686 = vadd.f32 %v2333, %v2685
    %v2687 = vpop.f32.mrf.mxu0
    %v2688 = vadd.f32 %v2335, %v2687
    %2689 = vmatprep.mubr.bf16.mxu0 %v1476
    %2690 = vmatmul.mubr.bf16.gmra.mxu0 %v1475
    %v2691 = vpop.f32.mrf.mxu0
    %v2692 = vadd.f32 %v2339, %v2691
    %v2693 = vpop.f32.mrf.mxu0
    %v2694 = vadd.f32 %v2341, %v2693
    %v2695 = vpop.f32.mrf.mxu0
    %v2696 = vadd.f32 %v2343, %v2695
    %v2697 = vpop.f32.mrf.mxu0
    %v2698 = vadd.f32 %v2345, %v2697
    %2699 = vmatprep.mubr.bf16.mxu0 %v1478
    %2700 = vmatmul.mubr.bf16.gmra.mxu0 %v1477
    %v2701 = vpop.f32.mrf.mxu0
    %v2702 = vadd.f32 %v2349, %v2701
    %v2703 = vpop.f32.mrf.mxu0
    %v2704 = vadd.f32 %v2351, %v2703
    %v2705 = vpop.f32.mrf.mxu0
    %v2706 = vadd.f32 %v2353, %v2705
    %v2707 = vpop.f32.mrf.mxu0
    %v2708 = vadd.f32 %v2355, %v2707
    %2709 = vmatprep.mubr.bf16.mxu0 %v1480
    %2710 = vmatmul.mubr.bf16.gmra.mxu0 %v1479
    %v2711 = vpop.f32.mrf.mxu0
    %v2712 = vadd.f32 %v2359, %v2711
    %v2713 = vpop.f32.mrf.mxu0
    %v2714 = vadd.f32 %v2361, %v2713
    %v2715 = vpop.f32.mrf.mxu0
    %v2716 = vadd.f32 %v2363, %v2715
    %v2717 = vpop.f32.mrf.mxu0
    %v2718 = vadd.f32 %v2365, %v2717
    %2719 = vmatprep.mubr.bf16.mxu0 %v1482
    %2720 = vmatmul.mubr.bf16.gmra.mxu0 %v1481
    %v2721 = vpop.f32.mrf.mxu0
    %v2722 = vadd.f32 %v2369, %v2721
    %v2723 = vpop.f32.mrf.mxu0
    %v2724 = vadd.f32 %v2371, %v2723
    %v2725 = vpop.f32.mrf.mxu0
    %v2726 = vadd.f32 %v2373, %v2725
    %v2727 = vpop.f32.mrf.mxu0
    %v2728 = vadd.f32 %v2375, %v2727
    %2729 = vmatprep.mubr.bf16.mxu0 %v1484
    %2730 = vmatmul.mubr.bf16.gmra.mxu0 %v1483
    %v2731 = vpop.f32.mrf.mxu0
    %v2732 = vadd.f32 %v2379, %v2731
    %v2733 = vpop.f32.mrf.mxu0
    %v2734 = vadd.f32 %v2381, %v2733
    %v2735 = vpop.f32.mrf.mxu0
    %v2736 = vadd.f32 %v2383, %v2735
    %v2737 = vpop.f32.mrf.mxu0
    %v2738 = vadd.f32 %v2385, %v2737
    %2739 = vmatprep.mubr.bf16.mxu0 %v1486
    %2740 = vmatmul.mubr.bf16.gmra.mxu0 %v1485
    %v2741 = vpop.f32.mrf.mxu0
    %v2742 = vadd.f32 %v2389, %v2741
    %v2743 = vpop.f32.mrf.mxu0
    %v2744 = vadd.f32 %v2391, %v2743
    %v2745 = vpop.f32.mrf.mxu0
    %v2746 = vadd.f32 %v2393, %v2745
    %v2747 = vpop.f32.mrf.mxu0
    %v2748 = vadd.f32 %v2395, %v2747
    %2749 = vmatprep.mubr.bf16.mxu0 %v1488
    %2750 = vmatmul.mubr.bf16.gmra.mxu0 %v1487
    %v2751 = vpop.f32.mrf.mxu0
    %v2752 = vadd.f32 %v2399, %v2751
    %v2753 = vpop.f32.mrf.mxu0
    %v2754 = vadd.f32 %v2401, %v2753
    %v2755 = vpop.f32.mrf.mxu0
    %v2756 = vadd.f32 %v2403, %v2755
    %v2757 = vpop.f32.mrf.mxu0
    %v2758 = vadd.f32 %v2405, %v2757
    %2759 = vmatprep.mubr.bf16.mxu0 %v1490
    %2760 = vmatmul.mubr.bf16.gmra.mxu0 %v1489
    %v2761 = vpop.f32.mrf.mxu0
    %v2762 = vadd.f32 %v2409, %v2761
    %v2763 = vpop.f32.mrf.mxu0
    %v2764 = vadd.f32 %v2411, %v2763
    %v2765 = vpop.f32.mrf.mxu0
    %v2766 = vadd.f32 %v2413, %v2765
    %v2767 = vpop.f32.mrf.mxu0
    %v2768 = vadd.f32 %v2415, %v2767
    %2769 = vmatprep.mubr.bf16.mxu0 %v1492
    %2770 = vmatmul.mubr.bf16.gmra.mxu0 %v1491
    %v2771 = vpop.f32.mrf.mxu0
    %v2772 = vadd.f32 %v2419, %v2771
    %v2773 = vpop.f32.mrf.mxu0
    %v2774 = vadd.f32 %v2421, %v2773
    %v2775 = vpop.f32.mrf.mxu0
    %v2776 = vadd.f32 %v2423, %v2775
    %v2777 = vpop.f32.mrf.mxu0
    %v2778 = vadd.f32 %v2425, %v2777
    %2779 = vmatprep.mubr.bf16.mxu0 %v1494
    %2780 = vmatmul.mubr.bf16.gmra.mxu0 %v1493
    %v2781 = vpop.f32.mrf.mxu0
    %v2782 = vadd.f32 %v2429, %v2781
    %v2783 = vpop.f32.mrf.mxu0
    %v2784 = vadd.f32 %v2431, %v2783
    %v2785 = vpop.f32.mrf.mxu0
    %v2786 = vadd.f32 %v2433, %v2785
    %v2787 = vpop.f32.mrf.mxu0
    %v2788 = vadd.f32 %v2435, %v2787
    %2789 = vdwg.mxu0
    %2790 = vmatprep.subr.bf16.mxu0 %v1971
    %2791 = vmatpush1.bf16.msra.mxu0 %v1970
    %2792 = vmatprep.subr.bf16.mxu0 %v1969
    %2793 = vmatpush1.bf16.msra.mxu0 %v1968
    %2794 = vmatprep.subr.bf16.mxu0 %v1967
    %2795 = vmatpush1.bf16.msra.mxu0 %v1966
    %2796 = vmatprep.subr.bf16.mxu0 %v1965
    %2797 = vmatpush1.bf16.msra.mxu0 %v1964
    %2798 = vmatprep.subr.bf16.mxu0 %v1963
    %2799 = vmatpush1.bf16.msra.mxu0 %v1962
    %2800 = vmatprep.subr.bf16.mxu0 %v1961
    %2801 = vmatpush1.bf16.msra.mxu0 %v1960
    %2802 = vmatprep.subr.bf16.mxu0 %v1959
    %2803 = vmatpush1.bf16.msra.mxu0 %v1958
    %2804 = vmatprep.subr.bf16.mxu0 %v1957
    %2805 = vmatpush1.bf16.msra.mxu0 %v1956
    %2806 = vmatprep.subr.bf16.mxu0 %v1987
    %2807 = vmatpush2.bf16.msra.mxu0 %v1986
    %2808 = vmatprep.subr.bf16.mxu0 %v1985
    %2809 = vmatpush2.bf16.msra.mxu0 %v1984
    %2810 = vmatprep.subr.bf16.mxu0 %v1983
    %2811 = vmatpush2.bf16.msra.mxu0 %v1982
    %2812 = vmatprep.subr.bf16.mxu0 %v1981
    %2813 = vmatpush2.bf16.msra.mxu0 %v1980
    %2814 = vmatprep.subr.bf16.mxu0 %v1979
    %2815 = vmatpush2.bf16.msra.mxu0 %v1978
    %2816 = vmatprep.subr.bf16.mxu0 %v1977
    %2817 = vmatpush2.bf16.msra.mxu0 %v1976
    %2818 = vmatprep.subr.bf16.mxu0 %v1975
    %2819 = vmatpush2.bf16.msra.mxu0 %v1974
    %2820 = vmatprep.subr.bf16.mxu0 %v1973
    %2821 = vmatpush2.bf16.msra.mxu0 %v1972
    %2822 = vmatprep.mubr.bf16.mxu0 %v1436
    %2823 = vmatmul.mubr.bf16.gmra.mxu0 %v1435
    %v2824 = vpop.f32.mrf.mxu0
    %v2825 = vadd.f32 %v2472, %v2824
    %v2826 = vpop.f32.mrf.mxu0
    %v2827 = vadd.f32 %v2474, %v2826
    %v2828 = vpop.f32.mrf.mxu0
    %v2829 = vadd.f32 %v2476, %v2828
    %v2830 = vpop.f32.mrf.mxu0
    %v2831 = vadd.f32 %v2478, %v2830
    %2832 = vmatprep.mubr.bf16.mxu0 %v1438
    %2833 = vmatmul.mubr.bf16.gmra.mxu0 %v1437
    %v2834 = vpop.f32.mrf.mxu0
    %v2835 = vadd.f32 %v2482, %v2834
    %v2836 = vpop.f32.mrf.mxu0
    %v2837 = vadd.f32 %v2484, %v2836
    %v2838 = vpop.f32.mrf.mxu0
    %v2839 = vadd.f32 %v2486, %v2838
    %v2840 = vpop.f32.mrf.mxu0
    %v2841 = vadd.f32 %v2488, %v2840
    %2842 = vmatprep.mubr.bf16.mxu0 %v1440
    %2843 = vmatmul.mubr.bf16.gmra.mxu0 %v1439
    %v2844 = vpop.f32.mrf.mxu0
    %v2845 = vadd.f32 %v2492, %v2844
    %v2846 = vpop.f32.mrf.mxu0
    %v2847 = vadd.f32 %v2494, %v2846
    %v2848 = vpop.f32.mrf.mxu0
    %v2849 = vadd.f32 %v2496, %v2848
    %v2850 = vpop.f32.mrf.mxu0
    %v2851 = vadd.f32 %v2498, %v2850
    %2852 = vmatprep.mubr.bf16.mxu0 %v1442
    %2853 = vmatmul.mubr.bf16.gmra.mxu0 %v1441
    %v2854 = vpop.f32.mrf.mxu0
    %v2855 = vadd.f32 %v2502, %v2854
    %v2856 = vpop.f32.mrf.mxu0
    %v2857 = vadd.f32 %v2504, %v2856
    %v2858 = vpop.f32.mrf.mxu0
    %v2859 = vadd.f32 %v2506, %v2858
    %v2860 = vpop.f32.mrf.mxu0
    %v2861 = vadd.f32 %v2508, %v2860
    %2862 = vmatprep.mubr.bf16.mxu0 %v1444
    %2863 = vmatmul.mubr.bf16.gmra.mxu0 %v1443
    %v2864 = vpop.f32.mrf.mxu0
    %v2865 = vadd.f32 %v2512, %v2864
    %v2866 = vpop.f32.mrf.mxu0
    %v2867 = vadd.f32 %v2514, %v2866
    %v2868 = vpop.f32.mrf.mxu0
    %v2869 = vadd.f32 %v2516, %v2868
    %v2870 = vpop.f32.mrf.mxu0
    %v2871 = vadd.f32 %v2518, %v2870
    %2872 = vmatprep.mubr.bf16.mxu0 %v1446
    %2873 = vmatmul.mubr.bf16.gmra.mxu0 %v1445
    %v2874 = vpop.f32.mrf.mxu0
    %v2875 = vadd.f32 %v2522, %v2874
    %v2876 = vpop.f32.mrf.mxu0
    %v2877 = vadd.f32 %v2524, %v2876
    %v2878 = vpop.f32.mrf.mxu0
    %v2879 = vadd.f32 %v2526, %v2878
    %v2880 = vpop.f32.mrf.mxu0
    %v2881 = vadd.f32 %v2528, %v2880
    %2882 = vmatprep.mubr.bf16.mxu0 %v1448
    %2883 = vmatmul.mubr.bf16.gmra.mxu0 %v1447
    %v2884 = vpop.f32.mrf.mxu0
    %v2885 = vadd.f32 %v2532, %v2884
    %v2886 = vpop.f32.mrf.mxu0
    %v2887 = vadd.f32 %v2534, %v2886
    %v2888 = vpop.f32.mrf.mxu0
    %v2889 = vadd.f32 %v2536, %v2888
    %v2890 = vpop.f32.mrf.mxu0
    %v2891 = vadd.f32 %v2538, %v2890
    %2892 = vmatprep.mubr.bf16.mxu0 %v1450
    %2893 = vmatmul.mubr.bf16.gmra.mxu0 %v1449
    %v2894 = vpop.f32.mrf.mxu0
    %v2895 = vadd.f32 %v2542, %v2894
    %v2896 = vpop.f32.mrf.mxu0
    %v2897 = vadd.f32 %v2544, %v2896
    %v2898 = vpop.f32.mrf.mxu0
    %v2899 = vadd.f32 %v2546, %v2898
    %v2900 = vpop.f32.mrf.mxu0
    %v2901 = vadd.f32 %v2548, %v2900
    %2902 = vmatprep.mubr.bf16.mxu0 %v1452
    %2903 = vmatmul.mubr.bf16.gmra.mxu0 %v1451
    %v2904 = vpop.f32.mrf.mxu0
    %v2905 = vadd.f32 %v2552, %v2904
    %v2906 = vpop.f32.mrf.mxu0
    %v2907 = vadd.f32 %v2554, %v2906
    %v2908 = vpop.f32.mrf.mxu0
    %v2909 = vadd.f32 %v2556, %v2908
    %v2910 = vpop.f32.mrf.mxu0
    %v2911 = vadd.f32 %v2558, %v2910
    %2912 = vmatprep.mubr.bf16.mxu0 %v1454
    %2913 = vmatmul.mubr.bf16.gmra.mxu0 %v1453
    %v2914 = vpop.f32.mrf.mxu0
    %v2915 = vadd.f32 %v2562, %v2914
    %v2916 = vpop.f32.mrf.mxu0
    %v2917 = vadd.f32 %v2564, %v2916
    %v2918 = vpop.f32.mrf.mxu0
    %v2919 = vadd.f32 %v2566, %v2918
    %v2920 = vpop.f32.mrf.mxu0
    %v2921 = vadd.f32 %v2568, %v2920
    %2922 = vmatprep.mubr.bf16.mxu0 %v1456
    %2923 = vmatmul.mubr.bf16.gmra.mxu0 %v1455
    %v2924 = vpop.f32.mrf.mxu0
    %v2925 = vadd.f32 %v2572, %v2924
    %v2926 = vpop.f32.mrf.mxu0
    %v2927 = vadd.f32 %v2574, %v2926
    %v2928 = vpop.f32.mrf.mxu0
    %v2929 = vadd.f32 %v2576, %v2928
    %v2930 = vpop.f32.mrf.mxu0
    %v2931 = vadd.f32 %v2578, %v2930
    %2932 = vmatprep.mubr.bf16.mxu0 %v1458
    %2933 = vmatmul.mubr.bf16.gmra.mxu0 %v1457
    %v2934 = vpop.f32.mrf.mxu0
    %v2935 = vadd.f32 %v2582, %v2934
    %v2936 = vpop.f32.mrf.mxu0
    %v2937 = vadd.f32 %v2584, %v2936
    %v2938 = vpop.f32.mrf.mxu0
    %v2939 = vadd.f32 %v2586, %v2938
    %v2940 = vpop.f32.mrf.mxu0
    %v2941 = vadd.f32 %v2588, %v2940
    %2942 = vmatprep.mubr.bf16.mxu0 %v1460
    %2943 = vmatmul.mubr.bf16.gmra.mxu0 %v1459
    %v2944 = vpop.f32.mrf.mxu0
    %v2945 = vadd.f32 %v2592, %v2944
    %v2946 = vpop.f32.mrf.mxu0
    %v2947 = vadd.f32 %v2594, %v2946
    %v2948 = vpop.f32.mrf.mxu0
    %v2949 = vadd.f32 %v2596, %v2948
    %v2950 = vpop.f32.mrf.mxu0
    %v2951 = vadd.f32 %v2598, %v2950
    %2952 = vmatprep.mubr.bf16.mxu0 %v1462
    %2953 = vmatmul.mubr.bf16.gmra.mxu0 %v1461
    %v2954 = vpop.f32.mrf.mxu0
    %v2955 = vadd.f32 %v2602, %v2954
    %v2956 = vpop.f32.mrf.mxu0
    %v2957 = vadd.f32 %v2604, %v2956
    %v2958 = vpop.f32.mrf.mxu0
    %v2959 = vadd.f32 %v2606, %v2958
    %v2960 = vpop.f32.mrf.mxu0
    %v2961 = vadd.f32 %v2608, %v2960
    %2962 = vmatprep.mubr.bf16.mxu0 %v1464
    %2963 = vmatmul.mubr.bf16.gmra.mxu0 %v1463
    %v2964 = vpop.f32.mrf.mxu0
    %v2965 = vadd.f32 %v2612, %v2964
    %v2966 = vpop.f32.mrf.mxu0
    %v2967 = vadd.f32 %v2614, %v2966
    %v2968 = vpop.f32.mrf.mxu0
    %v2969 = vadd.f32 %v2616, %v2968
    %v2970 = vpop.f32.mrf.mxu0
    %v2971 = vadd.f32 %v2618, %v2970
    %2972 = vmatprep.mubr.bf16.mxu0 %v1466
    %2973 = vmatmul.mubr.bf16.gmra.mxu0 %v1465
    %v2974 = vpop.f32.mrf.mxu0
    %v2975 = vadd.f32 %v2622, %v2974
    %v2976 = vpop.f32.mrf.mxu0
    %v2977 = vadd.f32 %v2624, %v2976
    %v2978 = vpop.f32.mrf.mxu0
    %v2979 = vadd.f32 %v2626, %v2978
    %v2980 = vpop.f32.mrf.mxu0
    %v2981 = vadd.f32 %v2628, %v2980
    %2982 = vmatprep.mubr.bf16.mxu0 %v1468
    %2983 = vmatmul.mubr.bf16.gmra.mxu0 %v1467
    %v2984 = vpop.f32.mrf.mxu0
    %v2985 = vadd.f32 %v2632, %v2984
    %v2986 = vpop.f32.mrf.mxu0
    %v2987 = vadd.f32 %v2634, %v2986
    %v2988 = vpop.f32.mrf.mxu0
    %v2989 = vadd.f32 %v2636, %v2988
    %v2990 = vpop.f32.mrf.mxu0
    %v2991 = vadd.f32 %v2638, %v2990
    %2992 = vmatprep.mubr.bf16.mxu0 %v1470
    %2993 = vmatmul.mubr.bf16.gmra.mxu0 %v1469
    %v2994 = vpop.f32.mrf.mxu0
    %v2995 = vadd.f32 %v2642, %v2994
    %v2996 = vpop.f32.mrf.mxu0
    %v2997 = vadd.f32 %v2644, %v2996
    %v2998 = vpop.f32.mrf.mxu0
    %v2999 = vadd.f32 %v2646, %v2998
    %v3000 = vpop.f32.mrf.mxu0
    %v3001 = vadd.f32 %v2648, %v3000
    %3002 = vmatprep.mubr.bf16.mxu0 %v1472
    %3003 = vmatmul.mubr.bf16.gmra.mxu0 %v1471
    %v3004 = vpop.f32.mrf.mxu0
    %v3005 = vadd.f32 %v2652, %v3004
    %v3006 = vpop.f32.mrf.mxu0
    %v3007 = vadd.f32 %v2654, %v3006
    %v3008 = vpop.f32.mrf.mxu0
    %v3009 = vadd.f32 %v2656, %v3008
    %v3010 = vpop.f32.mrf.mxu0
    %v3011 = vadd.f32 %v2658, %v3010
    %3012 = vmatprep.mubr.bf16.mxu0 %v1474
    %3013 = vmatmul.mubr.bf16.gmra.mxu0 %v1473
    %v3014 = vpop.f32.mrf.mxu0
    %v3015 = vadd.f32 %v2662, %v3014
    %v3016 = vpop.f32.mrf.mxu0
    %v3017 = vadd.f32 %v2664, %v3016
    %v3018 = vpop.f32.mrf.mxu0
    %v3019 = vadd.f32 %v2666, %v3018
    %v3020 = vpop.f32.mrf.mxu0
    %v3021 = vadd.f32 %v2668, %v3020
    %3022 = vmatprep.mubr.bf16.mxu0 %v1476
    %3023 = vmatmul.mubr.bf16.gmra.mxu0 %v1475
    %v3024 = vpop.f32.mrf.mxu0
    %v3025 = vadd.f32 %v2672, %v3024
    %v3026 = vpop.f32.mrf.mxu0
    %v3027 = vadd.f32 %v2674, %v3026
    %v3028 = vpop.f32.mrf.mxu0
    %v3029 = vadd.f32 %v2676, %v3028
    %v3030 = vpop.f32.mrf.mxu0
    %v3031 = vadd.f32 %v2678, %v3030
    %3032 = vmatprep.mubr.bf16.mxu0 %v1478
    %3033 = vmatmul.mubr.bf16.gmra.mxu0 %v1477
    %v3034 = vpop.f32.mrf.mxu0
    %v3035 = vadd.f32 %v2682, %v3034
    %v3036 = vpop.f32.mrf.mxu0
    %v3037 = vadd.f32 %v2684, %v3036
    %v3038 = vpop.f32.mrf.mxu0
    %v3039 = vadd.f32 %v2686, %v3038
    %v3040 = vpop.f32.mrf.mxu0
    %v3041 = vadd.f32 %v2688, %v3040
    %3042 = vmatprep.mubr.bf16.mxu0 %v1480
    %3043 = vmatmul.mubr.bf16.gmra.mxu0 %v1479
    %v3044 = vpop.f32.mrf.mxu0
    %v3045 = vadd.f32 %v2692, %v3044
    %v3046 = vpop.f32.mrf.mxu0
    %v3047 = vadd.f32 %v2694, %v3046
    %v3048 = vpop.f32.mrf.mxu0
    %v3049 = vadd.f32 %v2696, %v3048
    %v3050 = vpop.f32.mrf.mxu0
    %v3051 = vadd.f32 %v2698, %v3050
    %3052 = vmatprep.mubr.bf16.mxu0 %v1482
    %3053 = vmatmul.mubr.bf16.gmra.mxu0 %v1481
    %v3054 = vpop.f32.mrf.mxu0
    %v3055 = vadd.f32 %v2702, %v3054
    %v3056 = vpop.f32.mrf.mxu0
    %v3057 = vadd.f32 %v2704, %v3056
    %v3058 = vpop.f32.mrf.mxu0
    %v3059 = vadd.f32 %v2706, %v3058
    %v3060 = vpop.f32.mrf.mxu0
    %v3061 = vadd.f32 %v2708, %v3060
    %3062 = vmatprep.mubr.bf16.mxu0 %v1484
    %3063 = vmatmul.mubr.bf16.gmra.mxu0 %v1483
    %v3064 = vpop.f32.mrf.mxu0
    %v3065 = vadd.f32 %v2712, %v3064
    %v3066 = vpop.f32.mrf.mxu0
    %v3067 = vadd.f32 %v2714, %v3066
    %v3068 = vpop.f32.mrf.mxu0
    %v3069 = vadd.f32 %v2716, %v3068
    %v3070 = vpop.f32.mrf.mxu0
    %v3071 = vadd.f32 %v2718, %v3070
    %3072 = vmatprep.mubr.bf16.mxu0 %v1486
    %3073 = vmatmul.mubr.bf16.gmra.mxu0 %v1485
    %v3074 = vpop.f32.mrf.mxu0
    %v3075 = vadd.f32 %v2722, %v3074
    %v3076 = vpop.f32.mrf.mxu0
    %v3077 = vadd.f32 %v2724, %v3076
    %v3078 = vpop.f32.mrf.mxu0
    %v3079 = vadd.f32 %v2726, %v3078
    %v3080 = vpop.f32.mrf.mxu0
    %v3081 = vadd.f32 %v2728, %v3080
    %3082 = vmatprep.mubr.bf16.mxu0 %v1488
    %3083 = vmatmul.mubr.bf16.gmra.mxu0 %v1487
    %v3084 = vpop.f32.mrf.mxu0
    %v3085 = vadd.f32 %v2732, %v3084
    %v3086 = vpop.f32.mrf.mxu0
    %v3087 = vadd.f32 %v2734, %v3086
    %v3088 = vpop.f32.mrf.mxu0
    %v3089 = vadd.f32 %v2736, %v3088
    %v3090 = vpop.f32.mrf.mxu0
    %v3091 = vadd.f32 %v2738, %v3090
    %3092 = vmatprep.mubr.bf16.mxu0 %v1490
    %3093 = vmatmul.mubr.bf16.gmra.mxu0 %v1489
    %v3094 = vpop.f32.mrf.mxu0
    %v3095 = vadd.f32 %v2742, %v3094
    %v3096 = vpop.f32.mrf.mxu0
    %v3097 = vadd.f32 %v2744, %v3096
    %v3098 = vpop.f32.mrf.mxu0
    %v3099 = vadd.f32 %v2746, %v3098
    %v3100 = vpop.f32.mrf.mxu0
    %v3101 = vadd.f32 %v2748, %v3100
    %3102 = vmatprep.mubr.bf16.mxu0 %v1492
    %3103 = vmatmul.mubr.bf16.gmra.mxu0 %v1491
    %v3104 = vpop.f32.mrf.mxu0
    %v3105 = vadd.f32 %v2752, %v3104
    %v3106 = vpop.f32.mrf.mxu0
    %v3107 = vadd.f32 %v2754, %v3106
    %v3108 = vpop.f32.mrf.mxu0
    %v3109 = vadd.f32 %v2756, %v3108
    %v3110 = vpop.f32.mrf.mxu0
    %v3111 = vadd.f32 %v2758, %v3110
    %3112 = vmatprep.mubr.bf16.mxu0 %v1494
    %3113 = vmatmul.mubr.bf16.gmra.mxu0 %v1493
    %v3114 = vpop.f32.mrf.mxu0
    %v3115 = vadd.f32 %v2762, %v3114
    %v3116 = vpop.f32.mrf.mxu0
    %v3117 = vadd.f32 %v2764, %v3116
    %v3118 = vpop.f32.mrf.mxu0
    %v3119 = vadd.f32 %v2766, %v3118
    %v3120 = vpop.f32.mrf.mxu0
    %v3121 = vadd.f32 %v2768, %v3120
    %3122 = vmatprep.mubr.bf16.mxu0 0
    %3123 = vmatmul.mubr.bf16.gmra.mxu0 0
    %v3124 = vpop.f32.mrf.mxu0
    %v3125 = vadd.f32 %v2772, %v3124
    %v3126 = vpop.f32.mrf.mxu0
    %v3127 = vadd.f32 %v2774, %v3126
    %v3128 = vpop.f32.mrf.mxu0
    %v3129 = vadd.f32 %v2776, %v3128
    %v3130 = vpop.f32.mrf.mxu0
    %v3131 = vadd.f32 %v2778, %v3130
    %3132 = vmatprep.mubr.bf16.mxu0 0
    %3133 = vmatmul.mubr.bf16.gmra.mxu0 0
    %v3134 = vpop.f32.mrf.mxu0
    %v3135 = vadd.f32 %v2782, %v3134
    %v3136 = vpop.f32.mrf.mxu0
    %v3137 = vadd.f32 %v2784, %v3136
    %v3138 = vpop.f32.mrf.mxu0
    %v3139 = vadd.f32 %v2786, %v3138
    %v3140 = vpop.f32.mrf.mxu0
    %v3141 = vadd.f32 %v2788, %v3140
    %3142 = vdwg.mxu0
    %v3143 = vmax.f32 %v2825, 0.0
    %v3144 = vmax.f32 %v2827, 0.0
    %v3145 = vmax.f32 %v2829, 0.0
    %v3146 = vmax.f32 %v2831, 0.0
    %v3147 = vmax.f32 %v2835, 0.0
    %v3148 = vmax.f32 %v2837, 0.0
    %v3149 = vmax.f32 %v2839, 0.0
    %v3150 = vmax.f32 %v2841, 0.0
    %v3151 = vmax.f32 %v2845, 0.0
    %v3152 = vmax.f32 %v2847, 0.0
    %v3153 = vmax.f32 %v2849, 0.0
    %v3154 = vmax.f32 %v2851, 0.0
    %v3155 = vmax.f32 %v2855, 0.0
    %v3156 = vmax.f32 %v2857, 0.0
    %v3157 = vmax.f32 %v2859, 0.0
    %v3158 = vmax.f32 %v2861, 0.0
    %v3159 = vmax.f32 %v2865, 0.0
    %v3160 = vmax.f32 %v2867, 0.0
    %v3161 = vmax.f32 %v2869, 0.0
    %v3162 = vmax.f32 %v2871, 0.0
    %v3163 = vmax.f32 %v2875, 0.0
    %v3164 = vmax.f32 %v2877, 0.0
    %v3165 = vmax.f32 %v2879, 0.0
    %v3166 = vmax.f32 %v2881, 0.0
    %v3167 = vmax.f32 %v2885, 0.0
    %v3168 = vmax.f32 %v2887, 0.0
    %v3169 = vmax.f32 %v2889, 0.0
    %v3170 = vmax.f32 %v2891, 0.0
    %v3171 = vmax.f32 %v2895, 0.0
    %v3172 = vmax.f32 %v2897, 0.0
    %v3173 = vmax.f32 %v2899, 0.0
    %v3174 = vmax.f32 %v2901, 0.0
    %v3175 = vmax.f32 %v2905, 0.0
    %v3176 = vmax.f32 %v2907, 0.0
    %v3177 = vmax.f32 %v2909, 0.0
    %v3178 = vmax.f32 %v2911, 0.0
    %v3179 = vmax.f32 %v2915, 0.0
    %v3180 = vmax.f32 %v2917, 0.0
    %v3181 = vmax.f32 %v2919, 0.0
    %v3182 = vmax.f32 %v2921, 0.0
    %v3183 = vmax.f32 %v2925, 0.0
    %v3184 = vmax.f32 %v2927, 0.0
    %v3185 = vmax.f32 %v2929, 0.0
    %v3186 = vmax.f32 %v2931, 0.0
    %v3187 = vmax.f32 %v2935, 0.0
    %v3188 = vmax.f32 %v2937, 0.0
    %v3189 = vmax.f32 %v2939, 0.0
    %v3190 = vmax.f32 %v2941, 0.0
    %v3191 = vmax.f32 %v2945, 0.0
    %v3192 = vmax.f32 %v2947, 0.0
    %v3193 = vmax.f32 %v2949, 0.0
    %v3194 = vmax.f32 %v2951, 0.0
    %v3195 = vmax.f32 %v2955, 0.0
    %v3196 = vmax.f32 %v2957, 0.0
    %v3197 = vmax.f32 %v2959, 0.0
    %v3198 = vmax.f32 %v2961, 0.0
    %v3199 = vmax.f32 %v2965, 0.0
    %v3200 = vmax.f32 %v2967, 0.0
    %v3201 = vmax.f32 %v2969, 0.0
    %v3202 = vmax.f32 %v2971, 0.0
    %v3203 = vmax.f32 %v2975, 0.0
    %v3204 = vmax.f32 %v2977, 0.0
    %v3205 = vmax.f32 %v2979, 0.0
    %v3206 = vmax.f32 %v2981, 0.0
    %v3207 = vmax.f32 %v2985, 0.0
    %v3208 = vmax.f32 %v2987, 0.0
    %v3209 = vmax.f32 %v2989, 0.0
    %v3210 = vmax.f32 %v2991, 0.0
    %v3211 = vmax.f32 %v2995, 0.0
    %v3212 = vmax.f32 %v2997, 0.0
    %v3213 = vmax.f32 %v2999, 0.0
    %v3214 = vmax.f32 %v3001, 0.0
    %v3215 = vmax.f32 %v3005, 0.0
    %v3216 = vmax.f32 %v3007, 0.0
    %v3217 = vmax.f32 %v3009, 0.0
    %v3218 = vmax.f32 %v3011, 0.0
    %v3219 = vmax.f32 %v3015, 0.0
    %v3220 = vmax.f32 %v3017, 0.0
    %v3221 = vmax.f32 %v3019, 0.0
    %v3222 = vmax.f32 %v3021, 0.0
    %v3223 = vmax.f32 %v3025, 0.0
    %v3224 = vmax.f32 %v3027, 0.0
    %v3225 = vmax.f32 %v3029, 0.0
    %v3226 = vmax.f32 %v3031, 0.0
    %v3227 = vmax.f32 %v3035, 0.0
    %v3228 = vmax.f32 %v3037, 0.0
    %v3229 = vmax.f32 %v3039, 0.0
    %v3230 = vmax.f32 %v3041, 0.0
    %v3231 = vmax.f32 %v3045, 0.0
    %v3232 = vmax.f32 %v3047, 0.0
    %v3233 = vmax.f32 %v3049, 0.0
    %v3234 = vmax.f32 %v3051, 0.0
    %v3235 = vmax.f32 %v3055, 0.0
    %v3236 = vmax.f32 %v3057, 0.0
    %v3237 = vmax.f32 %v3059, 0.0
    %v3238 = vmax.f32 %v3061, 0.0
    %v3239 = vmax.f32 %v3065, 0.0
    %v3240 = vmax.f32 %v3067, 0.0
    %v3241 = vmax.f32 %v3069, 0.0
    %v3242 = vmax.f32 %v3071, 0.0
    %v3243 = vmax.f32 %v3075, 0.0
    %v3244 = vmax.f32 %v3077, 0.0
    %v3245 = vmax.f32 %v3079, 0.0
    %v3246 = vmax.f32 %v3081, 0.0
    %v3247 = vmax.f32 %v3085, 0.0
    %v3248 = vmax.f32 %v3087, 0.0
    %v3249 = vmax.f32 %v3089, 0.0
    %v3250 = vmax.f32 %v3091, 0.0
    %v3251 = vmax.f32 %v3095, 0.0
    %v3252 = vmax.f32 %v3097, 0.0
    %v3253 = vmax.f32 %v3099, 0.0
    %v3254 = vmax.f32 %v3101, 0.0
    %v3255 = vmax.f32 %v3105, 0.0
    %v3256 = vmax.f32 %v3107, 0.0
    %v3257 = vmax.f32 %v3109, 0.0
    %v3258 = vmax.f32 %v3111, 0.0
    %v3259 = vmax.f32 %v3115, 0.0
    %v3260 = vmax.f32 %v3117, 0.0
    %v3261 = vmax.f32 %v3119, 0.0
    %v3262 = vmax.f32 %v3121, 0.0
    %v3263 = vmax.f32 %v3125, 0.0
    %v3264 = vmax.f32 %v3127, 0.0
    %v3265 = vmax.f32 %v3129, 0.0
    %v3266 = vmax.f32 %v3131, 0.0
    %v3267 = vmax.f32 %v3135, 0.0
    %v3268 = vmax.f32 %v3137, 0.0
    %v3269 = vmax.f32 %v3139, 0.0
    %v3270 = vmax.f32 %v3141, 0.0
    %v3271 = vpack.c.bf16 %v3145, %v3143
    %v3272 = vpack.c.bf16 %v3146, %v3144
    %v3273 = vpack.c.bf16 %v3149, %v3147
    %v3274 = vpack.c.bf16 %v3150, %v3148
    %v3275 = vpack.c.bf16 %v3153, %v3151
    %v3276 = vpack.c.bf16 %v3154, %v3152
    %v3277 = vpack.c.bf16 %v3157, %v3155
    %v3278 = vpack.c.bf16 %v3158, %v3156
    %v3279 = vpack.c.bf16 %v3161, %v3159
    %v3280 = vpack.c.bf16 %v3162, %v3160
    %v3281 = vpack.c.bf16 %v3165, %v3163
    %v3282 = vpack.c.bf16 %v3166, %v3164
    %v3283 = vpack.c.bf16 %v3169, %v3167
    %v3284 = vpack.c.bf16 %v3170, %v3168
    %v3285 = vpack.c.bf16 %v3173, %v3171
    %v3286 = vpack.c.bf16 %v3174, %v3172
    %v3287 = vpack.c.bf16 %v3177, %v3175
    %v3288 = vpack.c.bf16 %v3178, %v3176
    %v3289 = vpack.c.bf16 %v3181, %v3179
    %v3290 = vpack.c.bf16 %v3182, %v3180
    %v3291 = vpack.c.bf16 %v3185, %v3183
    %v3292 = vpack.c.bf16 %v3186, %v3184
    %v3293 = vpack.c.bf16 %v3189, %v3187
    %v3294 = vpack.c.bf16 %v3190, %v3188
    %v3295 = vpack.c.bf16 %v3193, %v3191
    %v3296 = vpack.c.bf16 %v3194, %v3192
    %v3297 = vpack.c.bf16 %v3197, %v3195
    %v3298 = vpack.c.bf16 %v3198, %v3196
    %v3299 = vpack.c.bf16 %v3201, %v3199
    %v3300 = vpack.c.bf16 %v3202, %v3200
    %v3301 = vpack.c.bf16 %v3205, %v3203
    %v3302 = vpack.c.bf16 %v3206, %v3204
    %v3303 = vpack.c.bf16 %v3209, %v3207
    %v3304 = vpack.c.bf16 %v3210, %v3208
    %v3305 = vpack.c.bf16 %v3213, %v3211
    %v3306 = vpack.c.bf16 %v3214, %v3212
    %v3307 = vpack.c.bf16 %v3217, %v3215
    %v3308 = vpack.c.bf16 %v3218, %v3216
    %v3309 = vpack.c.bf16 %v3221, %v3219
    %v3310 = vpack.c.bf16 %v3222, %v3220
    %v3311 = vpack.c.bf16 %v3225, %v3223
    %v3312 = vpack.c.bf16 %v3226, %v3224
    %v3313 = vpack.c.bf16 %v3229, %v3227
    %v3314 = vpack.c.bf16 %v3230, %v3228
    %v3315 = vpack.c.bf16 %v3233, %v3231
    %v3316 = vpack.c.bf16 %v3234, %v3232
    %v3317 = vpack.c.bf16 %v3237, %v3235
    %v3318 = vpack.c.bf16 %v3238, %v3236
    %v3319 = vpack.c.bf16 %v3241, %v3239
    %v3320 = vpack.c.bf16 %v3242, %v3240
    %v3321 = vpack.c.bf16 %v3245, %v3243
    %v3322 = vpack.c.bf16 %v3246, %v3244
    %v3323 = vpack.c.bf16 %v3249, %v3247
    %v3324 = vpack.c.bf16 %v3250, %v3248
    %v3325 = vpack.c.bf16 %v3253, %v3251
    %v3326 = vpack.c.bf16 %v3254, %v3252
    %v3327 = vpack.c.bf16 %v3257, %v3255
    %v3328 = vpack.c.bf16 %v3258, %v3256
    %v3329 = vpack.c.bf16 %v3261, %v3259
    %v3330 = vpack.c.bf16 %v3262, %v3260
    %v3331 = vpack.c.bf16 %v3265, %v3263
    %v3332 = vpack.c.bf16 %v3266, %v3264
    %v3333 = vpack.c.bf16 %v3269, %v3267
    %v3334 = vpack.c.bf16 %v3270, %v3268
    %v3335 = vld [vmem:[#allocation2 + $0x480] sm:$0xff]
    %v3336 = vld [vmem:[#allocation2 + $0x488] sm:$0xff]
    %v3337 = vld [vmem:[#allocation2 + $0x490] sm:$0xff]
    %v3338 = vld [vmem:[#allocation2 + $0x498] sm:$0xff]
    %v3339 = vld [vmem:[#allocation2 + $0x4a0] sm:$0xff]
    %v3340 = vld [vmem:[#allocation2 + $0x4a8] sm:$0xff]
    %v3341 = vld [vmem:[#allocation2 + $0x4b0] sm:$0xff]
    %v3342 = vld [vmem:[#allocation2 + $0x4b8] sm:$0xff]
    %v3343 = vld [vmem:[#allocation2 + $0x4c0] sm:$0xff]
    %v3344 = vld [vmem:[#allocation2 + $0x4c8] sm:$0xff]
    %v3345 = vld [vmem:[#allocation2 + $0x4d0] sm:$0xff]
    %v3346 = vld [vmem:[#allocation2 + $0x4d8] sm:$0xff]
    %v3347 = vld [vmem:[#allocation2 + $0x4e0] sm:$0xff]
    %v3348 = vld [vmem:[#allocation2 + $0x4e8] sm:$0xff]
    %v3349 = vld [vmem:[#allocation2 + $0x4f0] sm:$0xff]
    %v3350 = vld [vmem:[#allocation2 + $0x4f8] sm:$0xff]
    %v3351 = vld [vmem:[#allocation2 + $0x500] sm:$0xff]
    %v3352 = vld [vmem:[#allocation2 + $0x508] sm:$0xff]
    %v3353 = vld [vmem:[#allocation2 + $0x510] sm:$0xff]
    %v3354 = vld [vmem:[#allocation2 + $0x518] sm:$0xff]
    %v3355 = vld [vmem:[#allocation2 + $0x520] sm:$0xff]
    %v3356 = vld [vmem:[#allocation2 + $0x528] sm:$0xff]
    %v3357 = vld [vmem:[#allocation2 + $0x530] sm:$0xff]
    %v3358 = vld [vmem:[#allocation2 + $0x538] sm:$0xff]
    %v3359 = vld [vmem:[#allocation2 + $0x540] sm:$0xff]
    %v3360 = vld [vmem:[#allocation2 + $0x548] sm:$0xff]
    %v3361 = vld [vmem:[#allocation2 + $0x550] sm:$0xff]
    %v3362 = vld [vmem:[#allocation2 + $0x558] sm:$0xff]
    %v3363 = vld [vmem:[#allocation2 + $0x560] sm:$0xff]
    %v3364 = vld [vmem:[#allocation2 + $0x568] sm:$0xff]
    %v3365 = vld [vmem:[#allocation2 + $0x570] sm:$0xff]
    %v3366 = vld [vmem:[#allocation2 + $0x578] sm:$0xff]
    %v3367 = vld [vmem:[#allocation2 + $0x580] sm:$0xff]
    %v3368 = vld [vmem:[#allocation2 + $0x588] sm:$0xff]
    %v3369 = vld [vmem:[#allocation2 + $0x590] sm:$0xff]
    %v3370 = vld [vmem:[#allocation2 + $0x598] sm:$0xff]
    %v3371 = vld [vmem:[#allocation2 + $0x5a0] sm:$0xff]
    %v3372 = vld [vmem:[#allocation2 + $0x5a8] sm:$0xff]
    %v3373 = vld [vmem:[#allocation2 + $0x5b0] sm:$0xff]
    %v3374 = vld [vmem:[#allocation2 + $0x5b8] sm:$0xff]
    %v3375 = vld [vmem:[#allocation2 + $0x5c0] sm:$0xff]
    %v3376 = vld [vmem:[#allocation2 + $0x5c8] sm:$0xff]
    %v3377 = vld [vmem:[#allocation2 + $0x5d0] sm:$0xff]
    %v3378 = vld [vmem:[#allocation2 + $0x5d8] sm:$0xff]
    %v3379 = vld [vmem:[#allocation2 + $0x5e0] sm:$0xff]
    %v3380 = vld [vmem:[#allocation2 + $0x5e8] sm:$0xff]
    %v3381 = vld [vmem:[#allocation2 + $0x5f0] sm:$0xff]
    %v3382 = vld [vmem:[#allocation2 + $0x5f8] sm:$0xff]
    %v3383 = vld [vmem:[#allocation2 + $0x600] sm:$0xff]
    %v3384 = vld [vmem:[#allocation2 + $0x608] sm:$0xff]
    %v3385 = vld [vmem:[#allocation2 + $0x610] sm:$0xff]
    %v3386 = vld [vmem:[#allocation2 + $0x618] sm:$0xff]
    %v3387 = vld [vmem:[#allocation2 + $0x620] sm:$0xff]
    %v3388 = vld [vmem:[#allocation2 + $0x628] sm:$0xff]
    %v3389 = vld [vmem:[#allocation2 + $0x630] sm:$0xff]
    %v3390 = vld [vmem:[#allocation2 + $0x638] sm:$0xff]
    %v3391 = vld [vmem:[#allocation2 + $0x640] sm:$0xff]
    %v3392 = vld [vmem:[#allocation2 + $0x648] sm:$0xff]
    %v3393 = vld [vmem:[#allocation2 + $0x650] sm:$0xff]
    %v3394 = vld [vmem:[#allocation2 + $0x658] sm:$0xff]
    %v3395 = vld [vmem:[#allocation2 + $0x660] sm:$0xff]
    %v3396 = vld [vmem:[#allocation2 + $0x668] sm:$0xff]
    %v3397 = vld [vmem:[#allocation2 + $0x670] sm:$0xff]
    %v3398 = vld [vmem:[#allocation2 + $0x678] sm:$0xff]
    %v3399 = vld [vmem:[#allocation2 + $0x680] sm:$0xff]
    %v3400 = vld [vmem:[#allocation2 + $0x688] sm:$0xff]
    %v3401 = vld [vmem:[#allocation2 + $0x690] sm:$0xff]
    %v3402 = vld [vmem:[#allocation2 + $0x698] sm:$0xff]
    %v3403 = vld [vmem:[#allocation2 + $0x6a0] sm:$0xff]
    %v3404 = vld [vmem:[#allocation2 + $0x6a8] sm:$0xff]
    %v3405 = vld [vmem:[#allocation2 + $0x6b0] sm:$0xff]
    %v3406 = vld [vmem:[#allocation2 + $0x6b8] sm:$0xff]
    %v3407 = vld [vmem:[#allocation2 + $0x6c0] sm:$0xff]
    %v3408 = vld [vmem:[#allocation2 + $0x6c8] sm:$0xff]
    %v3409 = vld [vmem:[#allocation2 + $0x6d0] sm:$0xff]
    %v3410 = vld [vmem:[#allocation2 + $0x6d8] sm:$0xff]
    %v3411 = vld [vmem:[#allocation2 + $0x6e0] sm:$0xff]
    %v3412 = vld [vmem:[#allocation2 + $0x6e8] sm:$0xff]
    %v3413 = vld [vmem:[#allocation2 + $0x6f0] sm:$0xff]
    %v3414 = vld [vmem:[#allocation2 + $0x6f8] sm:$0xff]
    %v3415 = vld [vmem:[#allocation2 + $0x700] sm:$0xff]
    %v3416 = vld [vmem:[#allocation2 + $0x708] sm:$0xff]
    %v3417 = vld [vmem:[#allocation2 + $0x710] sm:$0xff]
    %v3418 = vld [vmem:[#allocation2 + $0x718] sm:$0xff]
    %v3419 = vld [vmem:[#allocation2 + $0x720] sm:$0xff]
    %v3420 = vld [vmem:[#allocation2 + $0x728] sm:$0xff]
    %v3421 = vld [vmem:[#allocation2 + $0x730] sm:$0xff]
    %v3422 = vld [vmem:[#allocation2 + $0x738] sm:$0xff]
    %v3423 = vld [vmem:[#allocation2 + $0x740] sm:$0xff]
    %v3424 = vld [vmem:[#allocation2 + $0x748] sm:$0xff]
    %v3425 = vld [vmem:[#allocation2 + $0x750] sm:$0xff]
    %v3426 = vld [vmem:[#allocation2 + $0x758] sm:$0xff]
    %v3427 = vld [vmem:[#allocation2 + $0x760] sm:$0xff]
    %v3428 = vld [vmem:[#allocation2 + $0x768] sm:$0xff]
    %v3429 = vld [vmem:[#allocation2 + $0x770] sm:$0xff]
    %v3430 = vld [vmem:[#allocation2 + $0x778] sm:$0xff]
    %s3431 = scalar_lea.vmem [#allocation4], 2
    %v3432 = vld [vmem:[%s3431] ss:$8 sm:$0x3]
    %v3434 = vlaneseq
    %v3435 = vshrl.u32 %v3434, 7
    %v3436 = vsub.s32 0, %v3435
    %v3437 = vrot.slane %v3432, %v3436
    %v3438 = vlaneseq
    %v3439 = vshrl.u32 %v3438, 7
    %v3440 = vsub.s32 1, %v3439
    %v3441 = vrot.slane %v3432, %v3440
    %v3540 = vunpack.c.l.b16 %v3335
    %v3541 = vunpack.c.h.b16 %v3335
    %v3542 = vunpack.c.l.b16 %v3336
    %v3543 = vunpack.c.h.b16 %v3336
    %v3544 = vunpack.c.l.b16 %v3337
    %v3545 = vunpack.c.h.b16 %v3337
    %v3546 = vunpack.c.l.b16 %v3338
    %v3547 = vunpack.c.h.b16 %v3338
    %v3548 = vunpack.c.l.b16 %v3339
    %v3549 = vunpack.c.h.b16 %v3339
    %v3550 = vunpack.c.l.b16 %v3340
    %v3551 = vunpack.c.h.b16 %v3340
    %v3552 = vunpack.c.l.b16 %v3341
    %v3553 = vunpack.c.h.b16 %v3341
    %v3554 = vunpack.c.l.b16 %v3342
    %v3555 = vunpack.c.h.b16 %v3342
    %v3556 = vunpack.c.l.b16 %v3343
    %v3557 = vunpack.c.h.b16 %v3343
    %v3558 = vunpack.c.l.b16 %v3344
    %v3559 = vunpack.c.h.b16 %v3344
    %v3560 = vunpack.c.l.b16 %v3345
    %v3561 = vunpack.c.h.b16 %v3345
    %v3562 = vunpack.c.l.b16 %v3346
    %v3563 = vunpack.c.h.b16 %v3346
    %v3564 = vunpack.c.l.b16 %v3347
    %v3565 = vunpack.c.h.b16 %v3347
    %v3566 = vunpack.c.l.b16 %v3348
    %v3567 = vunpack.c.h.b16 %v3348
    %v3568 = vunpack.c.l.b16 %v3349
    %v3569 = vunpack.c.h.b16 %v3349
    %v3570 = vunpack.c.l.b16 %v3350
    %v3571 = vunpack.c.h.b16 %v3350
    %v3572 = vunpack.c.l.b16 %v3351
    %v3573 = vunpack.c.h.b16 %v3351
    %v3574 = vunpack.c.l.b16 %v3352
    %v3575 = vunpack.c.h.b16 %v3352
    %v3576 = vunpack.c.l.b16 %v3353
    %v3577 = vunpack.c.h.b16 %v3353
    %v3578 = vunpack.c.l.b16 %v3354
    %v3579 = vunpack.c.h.b16 %v3354
    %v3580 = vunpack.c.l.b16 %v3355
    %v3581 = vunpack.c.h.b16 %v3355
    %v3582 = vunpack.c.l.b16 %v3356
    %v3583 = vunpack.c.h.b16 %v3356
    %v3584 = vunpack.c.l.b16 %v3357
    %v3585 = vunpack.c.h.b16 %v3357
    %v3586 = vunpack.c.l.b16 %v3358
    %v3587 = vunpack.c.h.b16 %v3358
    %v3588 = vunpack.c.l.b16 %v3359
    %v3589 = vunpack.c.h.b16 %v3359
    %v3590 = vunpack.c.l.b16 %v3360
    %v3591 = vunpack.c.h.b16 %v3360
    %v3592 = vunpack.c.l.b16 %v3361
    %v3593 = vunpack.c.h.b16 %v3361
    %v3594 = vunpack.c.l.b16 %v3362
    %v3595 = vunpack.c.h.b16 %v3362
    %v3596 = vunpack.c.l.b16 %v3363
    %v3597 = vunpack.c.h.b16 %v3363
    %v3598 = vunpack.c.l.b16 %v3364
    %v3599 = vunpack.c.h.b16 %v3364
    %v3600 = vunpack.c.l.b16 %v3365
    %v3601 = vunpack.c.h.b16 %v3365
    %v3602 = vunpack.c.l.b16 %v3366
    %v3603 = vunpack.c.h.b16 %v3366
    %v3604 = vunpack.c.l.b16 %v3367
    %v3605 = vunpack.c.h.b16 %v3367
    %v3606 = vunpack.c.l.b16 %v3368
    %v3607 = vunpack.c.h.b16 %v3368
    %v3608 = vunpack.c.l.b16 %v3369
    %v3609 = vunpack.c.h.b16 %v3369
    %v3610 = vunpack.c.l.b16 %v3370
    %v3611 = vunpack.c.h.b16 %v3370
    %v3612 = vunpack.c.l.b16 %v3371
    %v3613 = vunpack.c.h.b16 %v3371
    %v3614 = vunpack.c.l.b16 %v3372
    %v3615 = vunpack.c.h.b16 %v3372
    %v3616 = vunpack.c.l.b16 %v3373
    %v3617 = vunpack.c.h.b16 %v3373
    %v3618 = vunpack.c.l.b16 %v3374
    %v3619 = vunpack.c.h.b16 %v3374
    %v3620 = vunpack.c.l.b16 %v3375
    %v3621 = vunpack.c.h.b16 %v3375
    %v3622 = vunpack.c.l.b16 %v3376
    %v3623 = vunpack.c.h.b16 %v3376
    %v3624 = vunpack.c.l.b16 %v3377
    %v3625 = vunpack.c.h.b16 %v3377
    %v3626 = vunpack.c.l.b16 %v3378
    %v3627 = vunpack.c.h.b16 %v3378
    %v3628 = vunpack.c.l.b16 %v3379
    %v3629 = vunpack.c.h.b16 %v3379
    %v3630 = vunpack.c.l.b16 %v3380
    %v3631 = vunpack.c.h.b16 %v3380
    %v3632 = vunpack.c.l.b16 %v3381
    %v3633 = vunpack.c.h.b16 %v3381
    %v3634 = vunpack.c.l.b16 %v3382
    %v3635 = vunpack.c.h.b16 %v3382
    %v3636 = vunpack.c.l.b16 %v3383
    %v3637 = vunpack.c.h.b16 %v3383
    %v3638 = vunpack.c.l.b16 %v3384
    %v3639 = vunpack.c.h.b16 %v3384
    %v3640 = vunpack.c.l.b16 %v3385
    %v3641 = vunpack.c.h.b16 %v3385
    %v3642 = vunpack.c.l.b16 %v3386
    %v3643 = vunpack.c.h.b16 %v3386
    %v3644 = vunpack.c.l.b16 %v3387
    %v3645 = vunpack.c.h.b16 %v3387
    %v3646 = vunpack.c.l.b16 %v3388
    %v3647 = vunpack.c.h.b16 %v3388
    %v3648 = vunpack.c.l.b16 %v3389
    %v3649 = vunpack.c.h.b16 %v3389
    %v3650 = vunpack.c.l.b16 %v3390
    %v3651 = vunpack.c.h.b16 %v3390
    %v3652 = vunpack.c.l.b16 %v3391
    %v3653 = vunpack.c.h.b16 %v3391
    %v3654 = vunpack.c.l.b16 %v3392
    %v3655 = vunpack.c.h.b16 %v3392
    %v3656 = vunpack.c.l.b16 %v3393
    %v3657 = vunpack.c.h.b16 %v3393
    %v3658 = vunpack.c.l.b16 %v3394
    %v3659 = vunpack.c.h.b16 %v3394
    %v3660 = vunpack.c.l.b16 %v3395
    %v3661 = vunpack.c.h.b16 %v3395
    %v3662 = vunpack.c.l.b16 %v3396
    %v3663 = vunpack.c.h.b16 %v3396
    %v3664 = vunpack.c.l.b16 %v3397
    %v3665 = vunpack.c.h.b16 %v3397
    %v3666 = vunpack.c.l.b16 %v3398
    %v3667 = vunpack.c.h.b16 %v3398
    %v3668 = vunpack.c.l.b16 %v3399
    %v3669 = vunpack.c.h.b16 %v3399
    %v3670 = vunpack.c.l.b16 %v3400
    %v3671 = vunpack.c.h.b16 %v3400
    %v3672 = vunpack.c.l.b16 %v3401
    %v3673 = vunpack.c.h.b16 %v3401
    %v3674 = vunpack.c.l.b16 %v3402
    %v3675 = vunpack.c.h.b16 %v3402
    %v3676 = vunpack.c.l.b16 %v3403
    %v3677 = vunpack.c.h.b16 %v3403
    %v3678 = vunpack.c.l.b16 %v3404
    %v3679 = vunpack.c.h.b16 %v3404
    %v3680 = vunpack.c.l.b16 %v3405
    %v3681 = vunpack.c.h.b16 %v3405
    %v3682 = vunpack.c.l.b16 %v3406
    %v3683 = vunpack.c.h.b16 %v3406
    %v3684 = vunpack.c.l.b16 %v3407
    %v3685 = vunpack.c.h.b16 %v3407
    %v3686 = vunpack.c.l.b16 %v3408
    %v3687 = vunpack.c.h.b16 %v3408
    %v3688 = vunpack.c.l.b16 %v3409
    %v3689 = vunpack.c.h.b16 %v3409
    %v3690 = vunpack.c.l.b16 %v3410
    %v3691 = vunpack.c.h.b16 %v3410
    %v3692 = vunpack.c.l.b16 %v3411
    %v3693 = vunpack.c.h.b16 %v3411
    %v3694 = vunpack.c.l.b16 %v3412
    %v3695 = vunpack.c.h.b16 %v3412
    %v3696 = vunpack.c.l.b16 %v3413
    %v3697 = vunpack.c.h.b16 %v3413
    %v3698 = vunpack.c.l.b16 %v3414
    %v3699 = vunpack.c.h.b16 %v3414
    %v3700 = vunpack.c.l.b16 %v3415
    %v3701 = vunpack.c.h.b16 %v3415
    %v3702 = vunpack.c.l.b16 %v3416
    %v3703 = vunpack.c.h.b16 %v3416
    %v3704 = vunpack.c.l.b16 %v3417
    %v3705 = vunpack.c.h.b16 %v3417
    %v3706 = vunpack.c.l.b16 %v3418
    %v3707 = vunpack.c.h.b16 %v3418
    %v3708 = vunpack.c.l.b16 %v3419
    %v3709 = vunpack.c.h.b16 %v3419
    %v3710 = vunpack.c.l.b16 %v3420
    %v3711 = vunpack.c.h.b16 %v3420
    %v3712 = vunpack.c.l.b16 %v3421
    %v3713 = vunpack.c.h.b16 %v3421
    %v3714 = vunpack.c.l.b16 %v3422
    %v3715 = vunpack.c.h.b16 %v3422
    %v3716 = vunpack.c.l.b16 %v3423
    %v3717 = vunpack.c.h.b16 %v3423
    %v3718 = vunpack.c.l.b16 %v3424
    %v3719 = vunpack.c.h.b16 %v3424
    %v3720 = vunpack.c.l.b16 %v3425
    %v3721 = vunpack.c.h.b16 %v3425
    %v3722 = vunpack.c.l.b16 %v3426
    %v3723 = vunpack.c.h.b16 %v3426
    %v3724 = vunpack.c.l.b16 %v3427
    %v3725 = vunpack.c.h.b16 %v3427
    %v3726 = vunpack.c.l.b16 %v3428
    %v3727 = vunpack.c.h.b16 %v3428
    %v3728 = vunpack.c.l.b16 %v3429
    %v3729 = vunpack.c.h.b16 %v3429
    %v3730 = vunpack.c.l.b16 %v3430
    %v3731 = vunpack.c.h.b16 %v3430
    %v3732 = vpack.c.b16 %v3542, %v3540
    %v3733 = vpack.c.b16 %v3543, %v3541
    %v3734 = vpack.c.b16 %v3546, %v3544
    %v3735 = vpack.c.b16 %v3547, %v3545
    %v3736 = vpack.c.b16 %v3550, %v3548
    %v3737 = vpack.c.b16 %v3551, %v3549
    %v3738 = vpack.c.b16 %v3554, %v3552
    %v3739 = vpack.c.b16 %v3555, %v3553
    %v3740 = vpack.c.b16 %v3558, %v3556
    %v3741 = vpack.c.b16 %v3559, %v3557
    %v3742 = vpack.c.b16 %v3562, %v3560
    %v3743 = vpack.c.b16 %v3563, %v3561
    %v3744 = vpack.c.b16 %v3566, %v3564
    %v3745 = vpack.c.b16 %v3567, %v3565
    %v3746 = vpack.c.b16 %v3570, %v3568
    %v3747 = vpack.c.b16 %v3571, %v3569
    %v3748 = vpack.c.b16 %v3574, %v3572
    %v3749 = vpack.c.b16 %v3575, %v3573
    %v3750 = vpack.c.b16 %v3578, %v3576
    %v3751 = vpack.c.b16 %v3579, %v3577
    %v3752 = vpack.c.b16 %v3582, %v3580
    %v3753 = vpack.c.b16 %v3583, %v3581
    %v3754 = vpack.c.b16 %v3586, %v3584
    %v3755 = vpack.c.b16 %v3587, %v3585
    %v3756 = vpack.c.b16 %v3590, %v3588
    %v3757 = vpack.c.b16 %v3591, %v3589
    %v3758 = vpack.c.b16 %v3594, %v3592
    %v3759 = vpack.c.b16 %v3595, %v3593
    %v3760 = vpack.c.b16 %v3598, %v3596
    %v3761 = vpack.c.b16 %v3599, %v3597
    %v3762 = vpack.c.b16 %v3602, %v3600
    %v3763 = vpack.c.b16 %v3603, %v3601
    %v3764 = vpack.c.b16 %v3606, %v3604
    %v3765 = vpack.c.b16 %v3607, %v3605
    %v3766 = vpack.c.b16 %v3610, %v3608
    %v3767 = vpack.c.b16 %v3611, %v3609
    %v3768 = vpack.c.b16 %v3614, %v3612
    %v3769 = vpack.c.b16 %v3615, %v3613
    %v3770 = vpack.c.b16 %v3618, %v3616
    %v3771 = vpack.c.b16 %v3619, %v3617
    %v3772 = vpack.c.b16 %v3622, %v3620
    %v3773 = vpack.c.b16 %v3623, %v3621
    %v3774 = vpack.c.b16 %v3626, %v3624
    %v3775 = vpack.c.b16 %v3627, %v3625
    %v3776 = vpack.c.b16 %v3630, %v3628
    %v3777 = vpack.c.b16 %v3631, %v3629
    %v3778 = vpack.c.b16 %v3634, %v3632
    %v3779 = vpack.c.b16 %v3635, %v3633
    %v3780 = vpack.c.b16 %v3638, %v3636
    %v3781 = vpack.c.b16 %v3639, %v3637
    %v3782 = vpack.c.b16 %v3642, %v3640
    %v3783 = vpack.c.b16 %v3643, %v3641
    %v3784 = vpack.c.b16 %v3646, %v3644
    %v3785 = vpack.c.b16 %v3647, %v3645
    %v3786 = vpack.c.b16 %v3650, %v3648
    %v3787 = vpack.c.b16 %v3651, %v3649
    %v3788 = vpack.c.b16 %v3654, %v3652
    %v3789 = vpack.c.b16 %v3655, %v3653
    %v3790 = vpack.c.b16 %v3658, %v3656
    %v3791 = vpack.c.b16 %v3659, %v3657
    %v3792 = vpack.c.b16 %v3662, %v3660
    %v3793 = vpack.c.b16 %v3663, %v3661
    %v3794 = vpack.c.b16 %v3666, %v3664
    %v3795 = vpack.c.b16 %v3667, %v3665
    %v3796 = vpack.c.b16 %v3670, %v3668
    %v3797 = vpack.c.b16 %v3671, %v3669
    %v3798 = vpack.c.b16 %v3674, %v3672
    %v3799 = vpack.c.b16 %v3675, %v3673
    %v3800 = vpack.c.b16 %v3678, %v3676
    %v3801 = vpack.c.b16 %v3679, %v3677
    %v3802 = vpack.c.b16 %v3682, %v3680
    %v3803 = vpack.c.b16 %v3683, %v3681
    %v3804 = vpack.c.b16 %v3686, %v3684
    %v3805 = vpack.c.b16 %v3687, %v3685
    %v3806 = vpack.c.b16 %v3690, %v3688
    %v3807 = vpack.c.b16 %v3691, %v3689
    %v3808 = vpack.c.b16 %v3694, %v3692
    %v3809 = vpack.c.b16 %v3695, %v3693
    %v3810 = vpack.c.b16 %v3698, %v3696
    %v3811 = vpack.c.b16 %v3699, %v3697
    %v3812 = vpack.c.b16 %v3702, %v3700
    %v3813 = vpack.c.b16 %v3703, %v3701
    %v3814 = vpack.c.b16 %v3706, %v3704
    %v3815 = vpack.c.b16 %v3707, %v3705
    %v3816 = vpack.c.b16 %v3710, %v3708
    %v3817 = vpack.c.b16 %v3711, %v3709
    %v3818 = vpack.c.b16 %v3714, %v3712
    %v3819 = vpack.c.b16 %v3715, %v3713
    %v3820 = vpack.c.b16 %v3718, %v3716
    %v3821 = vpack.c.b16 %v3719, %v3717
    %v3822 = vpack.c.b16 %v3722, %v3720
    %v3823 = vpack.c.b16 %v3723, %v3721
    %v3824 = vpack.c.b16 %v3726, %v3724
    %v3825 = vpack.c.b16 %v3727, %v3725
    %v3826 = vpack.c.b16 %v3730, %v3728
    %v3827 = vpack.c.b16 %v3731, %v3729
    %3924 = vmatprep.subr.bf16.mxu0 %v3747
    %3925 = vmatpush1.bf16.msra.mxu0 %v3746
    %3926 = vmatprep.subr.bf16.mxu0 %v3745
    %3927 = vmatpush1.bf16.msra.mxu0 %v3744
    %3928 = vmatprep.subr.bf16.mxu0 %v3743
    %3929 = vmatpush1.bf16.msra.mxu0 %v3742
    %3930 = vmatprep.subr.bf16.mxu0 %v3741
    %3931 = vmatpush1.bf16.msra.mxu0 %v3740
    %3932 = vmatprep.subr.bf16.mxu0 %v3739
    %3933 = vmatpush1.bf16.msra.mxu0 %v3738
    %3934 = vmatprep.subr.bf16.mxu0 %v3737
    %3935 = vmatpush1.bf16.msra.mxu0 %v3736
    %3936 = vmatprep.subr.bf16.mxu0 %v3735
    %3937 = vmatpush1.bf16.msra.mxu0 %v3734
    %3938 = vmatprep.subr.bf16.mxu0 %v3733
    %3939 = vmatpush1.bf16.msra.mxu0 %v3732
    %3940 = vmatprep.subr.bf16.mxu0 %v3763
    %3941 = vmatpush2.bf16.msra.mxu0 %v3762
    %3942 = vmatprep.subr.bf16.mxu0 %v3761
    %3943 = vmatpush2.bf16.msra.mxu0 %v3760
    %3944 = vmatprep.subr.bf16.mxu0 %v3759
    %3945 = vmatpush2.bf16.msra.mxu0 %v3758
    %3946 = vmatprep.subr.bf16.mxu0 %v3757
    %3947 = vmatpush2.bf16.msra.mxu0 %v3756
    %3948 = vmatprep.subr.bf16.mxu0 %v3755
    %3949 = vmatpush2.bf16.msra.mxu0 %v3754
    %3950 = vmatprep.subr.bf16.mxu0 %v3753
    %3951 = vmatpush2.bf16.msra.mxu0 %v3752
    %3952 = vmatprep.subr.bf16.mxu0 %v3751
    %3953 = vmatpush2.bf16.msra.mxu0 %v3750
    %3954 = vmatprep.subr.bf16.mxu0 %v3749
    %3955 = vmatpush2.bf16.msra.mxu0 %v3748
    %3956 = vmatprep.mubr.bf16.mxu0 0
    %3957 = vmatmul.mubr.bf16.gmra.mxu0 0
    %v3958 = vpop.f32.mrf.mxu0
    %v3959 = vadd.f32 %v3437, %v3958
    %v3960 = vpop.f32.mrf.mxu0
    %v3961 = vadd.f32 %v3441, %v3960
    %v3962 = vpop.f32.mrf.mxu0
    %v3963 = vadd.f32 %v3437, %v3962
    %v3964 = vpop.f32.mrf.mxu0
    %v3965 = vadd.f32 %v3441, %v3964
    %3966 = vmatprep.mubr.bf16.mxu0 0
    %3967 = vmatmul.mubr.bf16.gmra.mxu0 0
    %v3968 = vpop.f32.mrf.mxu0
    %v3969 = vadd.f32 %v3437, %v3968
    %v3970 = vpop.f32.mrf.mxu0
    %v3971 = vadd.f32 %v3441, %v3970
    %v3972 = vpop.f32.mrf.mxu0
    %v3973 = vadd.f32 %v3437, %v3972
    %v3974 = vpop.f32.mrf.mxu0
    %v3975 = vadd.f32 %v3441, %v3974
    %3976 = vmatprep.mubr.bf16.mxu0 %v3272
    %3977 = vmatmul.mubr.bf16.gmra.mxu0 %v3271
    %v3978 = vpop.f32.mrf.mxu0
    %v3979 = vadd.f32 %v3437, %v3978
    %v3980 = vpop.f32.mrf.mxu0
    %v3981 = vadd.f32 %v3441, %v3980
    %v3982 = vpop.f32.mrf.mxu0
    %v3983 = vadd.f32 %v3437, %v3982
    %v3984 = vpop.f32.mrf.mxu0
    %v3985 = vadd.f32 %v3441, %v3984
    %3986 = vmatprep.mubr.bf16.mxu0 %v3274
    %3987 = vmatmul.mubr.bf16.gmra.mxu0 %v3273
    %v3988 = vpop.f32.mrf.mxu0
    %v3989 = vadd.f32 %v3437, %v3988
    %v3990 = vpop.f32.mrf.mxu0
    %v3991 = vadd.f32 %v3441, %v3990
    %v3992 = vpop.f32.mrf.mxu0
    %v3993 = vadd.f32 %v3437, %v3992
    %v3994 = vpop.f32.mrf.mxu0
    %v3995 = vadd.f32 %v3441, %v3994
    %3996 = vmatprep.mubr.bf16.mxu0 %v3276
    %3997 = vmatmul.mubr.bf16.gmra.mxu0 %v3275
    %v3998 = vpop.f32.mrf.mxu0
    %v3999 = vadd.f32 %v3437, %v3998
    %v4000 = vpop.f32.mrf.mxu0
    %v4001 = vadd.f32 %v3441, %v4000
    %v4002 = vpop.f32.mrf.mxu0
    %v4003 = vadd.f32 %v3437, %v4002
    %v4004 = vpop.f32.mrf.mxu0
    %v4005 = vadd.f32 %v3441, %v4004
    %4006 = vmatprep.mubr.bf16.mxu0 %v3278
    %4007 = vmatmul.mubr.bf16.gmra.mxu0 %v3277
    %v4008 = vpop.f32.mrf.mxu0
    %v4009 = vadd.f32 %v3437, %v4008
    %v4010 = vpop.f32.mrf.mxu0
    %v4011 = vadd.f32 %v3441, %v4010
    %v4012 = vpop.f32.mrf.mxu0
    %v4013 = vadd.f32 %v3437, %v4012
    %v4014 = vpop.f32.mrf.mxu0
    %v4015 = vadd.f32 %v3441, %v4014
    %4016 = vmatprep.mubr.bf16.mxu0 %v3280
    %4017 = vmatmul.mubr.bf16.gmra.mxu0 %v3279
    %v4018 = vpop.f32.mrf.mxu0
    %v4019 = vadd.f32 %v3437, %v4018
    %v4020 = vpop.f32.mrf.mxu0
    %v4021 = vadd.f32 %v3441, %v4020
    %v4022 = vpop.f32.mrf.mxu0
    %v4023 = vadd.f32 %v3437, %v4022
    %v4024 = vpop.f32.mrf.mxu0
    %v4025 = vadd.f32 %v3441, %v4024
    %4026 = vmatprep.mubr.bf16.mxu0 %v3282
    %4027 = vmatmul.mubr.bf16.gmra.mxu0 %v3281
    %v4028 = vpop.f32.mrf.mxu0
    %v4029 = vadd.f32 %v3437, %v4028
    %v4030 = vpop.f32.mrf.mxu0
    %v4031 = vadd.f32 %v3441, %v4030
    %v4032 = vpop.f32.mrf.mxu0
    %v4033 = vadd.f32 %v3437, %v4032
    %v4034 = vpop.f32.mrf.mxu0
    %v4035 = vadd.f32 %v3441, %v4034
    %4036 = vmatprep.mubr.bf16.mxu0 %v3284
    %4037 = vmatmul.mubr.bf16.gmra.mxu0 %v3283
    %v4038 = vpop.f32.mrf.mxu0
    %v4039 = vadd.f32 %v3437, %v4038
    %v4040 = vpop.f32.mrf.mxu0
    %v4041 = vadd.f32 %v3441, %v4040
    %v4042 = vpop.f32.mrf.mxu0
    %v4043 = vadd.f32 %v3437, %v4042
    %v4044 = vpop.f32.mrf.mxu0
    %v4045 = vadd.f32 %v3441, %v4044
    %4046 = vmatprep.mubr.bf16.mxu0 %v3286
    %4047 = vmatmul.mubr.bf16.gmra.mxu0 %v3285
    %v4048 = vpop.f32.mrf.mxu0
    %v4049 = vadd.f32 %v3437, %v4048
    %v4050 = vpop.f32.mrf.mxu0
    %v4051 = vadd.f32 %v3441, %v4050
    %v4052 = vpop.f32.mrf.mxu0
    %v4053 = vadd.f32 %v3437, %v4052
    %v4054 = vpop.f32.mrf.mxu0
    %v4055 = vadd.f32 %v3441, %v4054
    %4056 = vmatprep.mubr.bf16.mxu0 %v3288
    %4057 = vmatmul.mubr.bf16.gmra.mxu0 %v3287
    %v4058 = vpop.f32.mrf.mxu0
    %v4059 = vadd.f32 %v3437, %v4058
    %v4060 = vpop.f32.mrf.mxu0
    %v4061 = vadd.f32 %v3441, %v4060
    %v4062 = vpop.f32.mrf.mxu0
    %v4063 = vadd.f32 %v3437, %v4062
    %v4064 = vpop.f32.mrf.mxu0
    %v4065 = vadd.f32 %v3441, %v4064
    %4066 = vmatprep.mubr.bf16.mxu0 %v3290
    %4067 = vmatmul.mubr.bf16.gmra.mxu0 %v3289
    %v4068 = vpop.f32.mrf.mxu0
    %v4069 = vadd.f32 %v3437, %v4068
    %v4070 = vpop.f32.mrf.mxu0
    %v4071 = vadd.f32 %v3441, %v4070
    %v4072 = vpop.f32.mrf.mxu0
    %v4073 = vadd.f32 %v3437, %v4072
    %v4074 = vpop.f32.mrf.mxu0
    %v4075 = vadd.f32 %v3441, %v4074
    %4076 = vmatprep.mubr.bf16.mxu0 %v3292
    %4077 = vmatmul.mubr.bf16.gmra.mxu0 %v3291
    %v4078 = vpop.f32.mrf.mxu0
    %v4079 = vadd.f32 %v3437, %v4078
    %v4080 = vpop.f32.mrf.mxu0
    %v4081 = vadd.f32 %v3441, %v4080
    %v4082 = vpop.f32.mrf.mxu0
    %v4083 = vadd.f32 %v3437, %v4082
    %v4084 = vpop.f32.mrf.mxu0
    %v4085 = vadd.f32 %v3441, %v4084
    %4086 = vmatprep.mubr.bf16.mxu0 %v3294
    %4087 = vmatmul.mubr.bf16.gmra.mxu0 %v3293
    %v4088 = vpop.f32.mrf.mxu0
    %v4089 = vadd.f32 %v3437, %v4088
    %v4090 = vpop.f32.mrf.mxu0
    %v4091 = vadd.f32 %v3441, %v4090
    %v4092 = vpop.f32.mrf.mxu0
    %v4093 = vadd.f32 %v3437, %v4092
    %v4094 = vpop.f32.mrf.mxu0
    %v4095 = vadd.f32 %v3441, %v4094
    %4096 = vmatprep.mubr.bf16.mxu0 %v3296
    %4097 = vmatmul.mubr.bf16.gmra.mxu0 %v3295
    %v4098 = vpop.f32.mrf.mxu0
    %v4099 = vadd.f32 %v3437, %v4098
    %v4100 = vpop.f32.mrf.mxu0
    %v4101 = vadd.f32 %v3441, %v4100
    %v4102 = vpop.f32.mrf.mxu0
    %v4103 = vadd.f32 %v3437, %v4102
    %v4104 = vpop.f32.mrf.mxu0
    %v4105 = vadd.f32 %v3441, %v4104
    %4106 = vmatprep.mubr.bf16.mxu0 %v3298
    %4107 = vmatmul.mubr.bf16.gmra.mxu0 %v3297
    %v4108 = vpop.f32.mrf.mxu0
    %v4109 = vadd.f32 %v3437, %v4108
    %v4110 = vpop.f32.mrf.mxu0
    %v4111 = vadd.f32 %v3441, %v4110
    %v4112 = vpop.f32.mrf.mxu0
    %v4113 = vadd.f32 %v3437, %v4112
    %v4114 = vpop.f32.mrf.mxu0
    %v4115 = vadd.f32 %v3441, %v4114
    %4116 = vmatprep.mubr.bf16.mxu0 %v3300
    %4117 = vmatmul.mubr.bf16.gmra.mxu0 %v3299
    %v4118 = vpop.f32.mrf.mxu0
    %v4119 = vadd.f32 %v3437, %v4118
    %v4120 = vpop.f32.mrf.mxu0
    %v4121 = vadd.f32 %v3441, %v4120
    %v4122 = vpop.f32.mrf.mxu0
    %v4123 = vadd.f32 %v3437, %v4122
    %v4124 = vpop.f32.mrf.mxu0
    %v4125 = vadd.f32 %v3441, %v4124
    %4126 = vmatprep.mubr.bf16.mxu0 %v3302
    %4127 = vmatmul.mubr.bf16.gmra.mxu0 %v3301
    %v4128 = vpop.f32.mrf.mxu0
    %v4129 = vadd.f32 %v3437, %v4128
    %v4130 = vpop.f32.mrf.mxu0
    %v4131 = vadd.f32 %v3441, %v4130
    %v4132 = vpop.f32.mrf.mxu0
    %v4133 = vadd.f32 %v3437, %v4132
    %v4134 = vpop.f32.mrf.mxu0
    %v4135 = vadd.f32 %v3441, %v4134
    %4136 = vmatprep.mubr.bf16.mxu0 %v3304
    %4137 = vmatmul.mubr.bf16.gmra.mxu0 %v3303
    %v4138 = vpop.f32.mrf.mxu0
    %v4139 = vadd.f32 %v3437, %v4138
    %v4140 = vpop.f32.mrf.mxu0
    %v4141 = vadd.f32 %v3441, %v4140
    %v4142 = vpop.f32.mrf.mxu0
    %v4143 = vadd.f32 %v3437, %v4142
    %v4144 = vpop.f32.mrf.mxu0
    %v4145 = vadd.f32 %v3441, %v4144
    %4146 = vmatprep.mubr.bf16.mxu0 %v3306
    %4147 = vmatmul.mubr.bf16.gmra.mxu0 %v3305
    %v4148 = vpop.f32.mrf.mxu0
    %v4149 = vadd.f32 %v3437, %v4148
    %v4150 = vpop.f32.mrf.mxu0
    %v4151 = vadd.f32 %v3441, %v4150
    %v4152 = vpop.f32.mrf.mxu0
    %v4153 = vadd.f32 %v3437, %v4152
    %v4154 = vpop.f32.mrf.mxu0
    %v4155 = vadd.f32 %v3441, %v4154
    %4156 = vmatprep.mubr.bf16.mxu0 %v3308
    %4157 = vmatmul.mubr.bf16.gmra.mxu0 %v3307
    %v4158 = vpop.f32.mrf.mxu0
    %v4159 = vadd.f32 %v3437, %v4158
    %v4160 = vpop.f32.mrf.mxu0
    %v4161 = vadd.f32 %v3441, %v4160
    %v4162 = vpop.f32.mrf.mxu0
    %v4163 = vadd.f32 %v3437, %v4162
    %v4164 = vpop.f32.mrf.mxu0
    %v4165 = vadd.f32 %v3441, %v4164
    %4166 = vmatprep.mubr.bf16.mxu0 %v3310
    %4167 = vmatmul.mubr.bf16.gmra.mxu0 %v3309
    %v4168 = vpop.f32.mrf.mxu0
    %v4169 = vadd.f32 %v3437, %v4168
    %v4170 = vpop.f32.mrf.mxu0
    %v4171 = vadd.f32 %v3441, %v4170
    %v4172 = vpop.f32.mrf.mxu0
    %v4173 = vadd.f32 %v3437, %v4172
    %v4174 = vpop.f32.mrf.mxu0
    %v4175 = vadd.f32 %v3441, %v4174
    %4176 = vmatprep.mubr.bf16.mxu0 %v3312
    %4177 = vmatmul.mubr.bf16.gmra.mxu0 %v3311
    %v4178 = vpop.f32.mrf.mxu0
    %v4179 = vadd.f32 %v3437, %v4178
    %v4180 = vpop.f32.mrf.mxu0
    %v4181 = vadd.f32 %v3441, %v4180
    %v4182 = vpop.f32.mrf.mxu0
    %v4183 = vadd.f32 %v3437, %v4182
    %v4184 = vpop.f32.mrf.mxu0
    %v4185 = vadd.f32 %v3441, %v4184
    %4186 = vmatprep.mubr.bf16.mxu0 %v3314
    %4187 = vmatmul.mubr.bf16.gmra.mxu0 %v3313
    %v4188 = vpop.f32.mrf.mxu0
    %v4189 = vadd.f32 %v3437, %v4188
    %v4190 = vpop.f32.mrf.mxu0
    %v4191 = vadd.f32 %v3441, %v4190
    %v4192 = vpop.f32.mrf.mxu0
    %v4193 = vadd.f32 %v3437, %v4192
    %v4194 = vpop.f32.mrf.mxu0
    %v4195 = vadd.f32 %v3441, %v4194
    %4196 = vmatprep.mubr.bf16.mxu0 %v3316
    %4197 = vmatmul.mubr.bf16.gmra.mxu0 %v3315
    %v4198 = vpop.f32.mrf.mxu0
    %v4199 = vadd.f32 %v3437, %v4198
    %v4200 = vpop.f32.mrf.mxu0
    %v4201 = vadd.f32 %v3441, %v4200
    %v4202 = vpop.f32.mrf.mxu0
    %v4203 = vadd.f32 %v3437, %v4202
    %v4204 = vpop.f32.mrf.mxu0
    %v4205 = vadd.f32 %v3441, %v4204
    %4206 = vmatprep.mubr.bf16.mxu0 %v3318
    %4207 = vmatmul.mubr.bf16.gmra.mxu0 %v3317
    %v4208 = vpop.f32.mrf.mxu0
    %v4209 = vadd.f32 %v3437, %v4208
    %v4210 = vpop.f32.mrf.mxu0
    %v4211 = vadd.f32 %v3441, %v4210
    %v4212 = vpop.f32.mrf.mxu0
    %v4213 = vadd.f32 %v3437, %v4212
    %v4214 = vpop.f32.mrf.mxu0
    %v4215 = vadd.f32 %v3441, %v4214
    %4216 = vmatprep.mubr.bf16.mxu0 %v3320
    %4217 = vmatmul.mubr.bf16.gmra.mxu0 %v3319
    %v4218 = vpop.f32.mrf.mxu0
    %v4219 = vadd.f32 %v3437, %v4218
    %v4220 = vpop.f32.mrf.mxu0
    %v4221 = vadd.f32 %v3441, %v4220
    %v4222 = vpop.f32.mrf.mxu0
    %v4223 = vadd.f32 %v3437, %v4222
    %v4224 = vpop.f32.mrf.mxu0
    %v4225 = vadd.f32 %v3441, %v4224
    %4226 = vmatprep.mubr.bf16.mxu0 %v3322
    %4227 = vmatmul.mubr.bf16.gmra.mxu0 %v3321
    %v4228 = vpop.f32.mrf.mxu0
    %v4229 = vadd.f32 %v3437, %v4228
    %v4230 = vpop.f32.mrf.mxu0
    %v4231 = vadd.f32 %v3441, %v4230
    %v4232 = vpop.f32.mrf.mxu0
    %v4233 = vadd.f32 %v3437, %v4232
    %v4234 = vpop.f32.mrf.mxu0
    %v4235 = vadd.f32 %v3441, %v4234
    %4236 = vmatprep.mubr.bf16.mxu0 %v3324
    %4237 = vmatmul.mubr.bf16.gmra.mxu0 %v3323
    %v4238 = vpop.f32.mrf.mxu0
    %v4239 = vadd.f32 %v3437, %v4238
    %v4240 = vpop.f32.mrf.mxu0
    %v4241 = vadd.f32 %v3441, %v4240
    %v4242 = vpop.f32.mrf.mxu0
    %v4243 = vadd.f32 %v3437, %v4242
    %v4244 = vpop.f32.mrf.mxu0
    %v4245 = vadd.f32 %v3441, %v4244
    %4246 = vmatprep.mubr.bf16.mxu0 %v3326
    %4247 = vmatmul.mubr.bf16.gmra.mxu0 %v3325
    %v4248 = vpop.f32.mrf.mxu0
    %v4249 = vadd.f32 %v3437, %v4248
    %v4250 = vpop.f32.mrf.mxu0
    %v4251 = vadd.f32 %v3441, %v4250
    %v4252 = vpop.f32.mrf.mxu0
    %v4253 = vadd.f32 %v3437, %v4252
    %v4254 = vpop.f32.mrf.mxu0
    %v4255 = vadd.f32 %v3441, %v4254
    %4256 = vmatprep.mubr.bf16.mxu0 %v3328
    %4257 = vmatmul.mubr.bf16.gmra.mxu0 %v3327
    %v4258 = vpop.f32.mrf.mxu0
    %v4259 = vadd.f32 %v3437, %v4258
    %v4260 = vpop.f32.mrf.mxu0
    %v4261 = vadd.f32 %v3441, %v4260
    %v4262 = vpop.f32.mrf.mxu0
    %v4263 = vadd.f32 %v3437, %v4262
    %v4264 = vpop.f32.mrf.mxu0
    %v4265 = vadd.f32 %v3441, %v4264
    %4266 = vmatprep.mubr.bf16.mxu0 %v3330
    %4267 = vmatmul.mubr.bf16.gmra.mxu0 %v3329
    %v4268 = vpop.f32.mrf.mxu0
    %v4269 = vadd.f32 %v3437, %v4268
    %v4270 = vpop.f32.mrf.mxu0
    %v4271 = vadd.f32 %v3441, %v4270
    %v4272 = vpop.f32.mrf.mxu0
    %v4273 = vadd.f32 %v3437, %v4272
    %v4274 = vpop.f32.mrf.mxu0
    %v4275 = vadd.f32 %v3441, %v4274
    %4276 = vdwg.mxu0
    %4277 = vmatprep.subr.bf16.mxu0 %v3779
    %4278 = vmatpush1.bf16.msra.mxu0 %v3778
    %4279 = vmatprep.subr.bf16.mxu0 %v3777
    %4280 = vmatpush1.bf16.msra.mxu0 %v3776
    %4281 = vmatprep.subr.bf16.mxu0 %v3775
    %4282 = vmatpush1.bf16.msra.mxu0 %v3774
    %4283 = vmatprep.subr.bf16.mxu0 %v3773
    %4284 = vmatpush1.bf16.msra.mxu0 %v3772
    %4285 = vmatprep.subr.bf16.mxu0 %v3771
    %4286 = vmatpush1.bf16.msra.mxu0 %v3770
    %4287 = vmatprep.subr.bf16.mxu0 %v3769
    %4288 = vmatpush1.bf16.msra.mxu0 %v3768
    %4289 = vmatprep.subr.bf16.mxu0 %v3767
    %4290 = vmatpush1.bf16.msra.mxu0 %v3766
    %4291 = vmatprep.subr.bf16.mxu0 %v3765
    %4292 = vmatpush1.bf16.msra.mxu0 %v3764
    %4293 = vmatprep.subr.bf16.mxu0 %v3795
    %4294 = vmatpush2.bf16.msra.mxu0 %v3794
    %4295 = vmatprep.subr.bf16.mxu0 %v3793
    %4296 = vmatpush2.bf16.msra.mxu0 %v3792
    %4297 = vmatprep.subr.bf16.mxu0 %v3791
    %4298 = vmatpush2.bf16.msra.mxu0 %v3790
    %4299 = vmatprep.subr.bf16.mxu0 %v3789
    %4300 = vmatpush2.bf16.msra.mxu0 %v3788
    %4301 = vmatprep.subr.bf16.mxu0 %v3787
    %4302 = vmatpush2.bf16.msra.mxu0 %v3786
    %4303 = vmatprep.subr.bf16.mxu0 %v3785
    %4304 = vmatpush2.bf16.msra.mxu0 %v3784
    %4305 = vmatprep.subr.bf16.mxu0 %v3783
    %4306 = vmatpush2.bf16.msra.mxu0 %v3782
    %4307 = vmatprep.subr.bf16.mxu0 %v3781
    %4308 = vmatpush2.bf16.msra.mxu0 %v3780
    %4309 = vmatprep.mubr.bf16.mxu0 %v3272
    %4310 = vmatmul.mubr.bf16.gmra.mxu0 %v3271
    %v4311 = vpop.f32.mrf.mxu0
    %v4312 = vadd.f32 %v3959, %v4311
    %v4313 = vpop.f32.mrf.mxu0
    %v4314 = vadd.f32 %v3961, %v4313
    %v4315 = vpop.f32.mrf.mxu0
    %v4316 = vadd.f32 %v3963, %v4315
    %v4317 = vpop.f32.mrf.mxu0
    %v4318 = vadd.f32 %v3965, %v4317
    %4319 = vmatprep.mubr.bf16.mxu0 %v3274
    %4320 = vmatmul.mubr.bf16.gmra.mxu0 %v3273
    %v4321 = vpop.f32.mrf.mxu0
    %v4322 = vadd.f32 %v3969, %v4321
    %v4323 = vpop.f32.mrf.mxu0
    %v4324 = vadd.f32 %v3971, %v4323
    %v4325 = vpop.f32.mrf.mxu0
    %v4326 = vadd.f32 %v3973, %v4325
    %v4327 = vpop.f32.mrf.mxu0
    %v4328 = vadd.f32 %v3975, %v4327
    %4329 = vmatprep.mubr.bf16.mxu0 %v3276
    %4330 = vmatmul.mubr.bf16.gmra.mxu0 %v3275
    %v4331 = vpop.f32.mrf.mxu0
    %v4332 = vadd.f32 %v3979, %v4331
    %v4333 = vpop.f32.mrf.mxu0
    %v4334 = vadd.f32 %v3981, %v4333
    %v4335 = vpop.f32.mrf.mxu0
    %v4336 = vadd.f32 %v3983, %v4335
    %v4337 = vpop.f32.mrf.mxu0
    %v4338 = vadd.f32 %v3985, %v4337
    %4339 = vmatprep.mubr.bf16.mxu0 %v3278
    %4340 = vmatmul.mubr.bf16.gmra.mxu0 %v3277
    %v4341 = vpop.f32.mrf.mxu0
    %v4342 = vadd.f32 %v3989, %v4341
    %v4343 = vpop.f32.mrf.mxu0
    %v4344 = vadd.f32 %v3991, %v4343
    %v4345 = vpop.f32.mrf.mxu0
    %v4346 = vadd.f32 %v3993, %v4345
    %v4347 = vpop.f32.mrf.mxu0
    %v4348 = vadd.f32 %v3995, %v4347
    %4349 = vmatprep.mubr.bf16.mxu0 %v3280
    %4350 = vmatmul.mubr.bf16.gmra.mxu0 %v3279
    %v4351 = vpop.f32.mrf.mxu0
    %v4352 = vadd.f32 %v3999, %v4351
    %v4353 = vpop.f32.mrf.mxu0
    %v4354 = vadd.f32 %v4001, %v4353
    %v4355 = vpop.f32.mrf.mxu0
    %v4356 = vadd.f32 %v4003, %v4355
    %v4357 = vpop.f32.mrf.mxu0
    %v4358 = vadd.f32 %v4005, %v4357
    %4359 = vmatprep.mubr.bf16.mxu0 %v3282
    %4360 = vmatmul.mubr.bf16.gmra.mxu0 %v3281
    %v4361 = vpop.f32.mrf.mxu0
    %v4362 = vadd.f32 %v4009, %v4361
    %v4363 = vpop.f32.mrf.mxu0
    %v4364 = vadd.f32 %v4011, %v4363
    %v4365 = vpop.f32.mrf.mxu0
    %v4366 = vadd.f32 %v4013, %v4365
    %v4367 = vpop.f32.mrf.mxu0
    %v4368 = vadd.f32 %v4015, %v4367
    %4369 = vmatprep.mubr.bf16.mxu0 %v3284
    %4370 = vmatmul.mubr.bf16.gmra.mxu0 %v3283
    %v4371 = vpop.f32.mrf.mxu0
    %v4372 = vadd.f32 %v4019, %v4371
    %v4373 = vpop.f32.mrf.mxu0
    %v4374 = vadd.f32 %v4021, %v4373
    %v4375 = vpop.f32.mrf.mxu0
    %v4376 = vadd.f32 %v4023, %v4375
    %v4377 = vpop.f32.mrf.mxu0
    %v4378 = vadd.f32 %v4025, %v4377
    %4379 = vmatprep.mubr.bf16.mxu0 %v3286
    %4380 = vmatmul.mubr.bf16.gmra.mxu0 %v3285
    %v4381 = vpop.f32.mrf.mxu0
    %v4382 = vadd.f32 %v4029, %v4381
    %v4383 = vpop.f32.mrf.mxu0
    %v4384 = vadd.f32 %v4031, %v4383
    %v4385 = vpop.f32.mrf.mxu0
    %v4386 = vadd.f32 %v4033, %v4385
    %v4387 = vpop.f32.mrf.mxu0
    %v4388 = vadd.f32 %v4035, %v4387
    %4389 = vmatprep.mubr.bf16.mxu0 %v3288
    %4390 = vmatmul.mubr.bf16.gmra.mxu0 %v3287
    %v4391 = vpop.f32.mrf.mxu0
    %v4392 = vadd.f32 %v4039, %v4391
    %v4393 = vpop.f32.mrf.mxu0
    %v4394 = vadd.f32 %v4041, %v4393
    %v4395 = vpop.f32.mrf.mxu0
    %v4396 = vadd.f32 %v4043, %v4395
    %v4397 = vpop.f32.mrf.mxu0
    %v4398 = vadd.f32 %v4045, %v4397
    %4399 = vmatprep.mubr.bf16.mxu0 %v3290
    %4400 = vmatmul.mubr.bf16.gmra.mxu0 %v3289
    %v4401 = vpop.f32.mrf.mxu0
    %v4402 = vadd.f32 %v4049, %v4401
    %v4403 = vpop.f32.mrf.mxu0
    %v4404 = vadd.f32 %v4051, %v4403
    %v4405 = vpop.f32.mrf.mxu0
    %v4406 = vadd.f32 %v4053, %v4405
    %v4407 = vpop.f32.mrf.mxu0
    %v4408 = vadd.f32 %v4055, %v4407
    %4409 = vmatprep.mubr.bf16.mxu0 %v3292
    %4410 = vmatmul.mubr.bf16.gmra.mxu0 %v3291
    %v4411 = vpop.f32.mrf.mxu0
    %v4412 = vadd.f32 %v4059, %v4411
    %v4413 = vpop.f32.mrf.mxu0
    %v4414 = vadd.f32 %v4061, %v4413
    %v4415 = vpop.f32.mrf.mxu0
    %v4416 = vadd.f32 %v4063, %v4415
    %v4417 = vpop.f32.mrf.mxu0
    %v4418 = vadd.f32 %v4065, %v4417
    %4419 = vmatprep.mubr.bf16.mxu0 %v3294
    %4420 = vmatmul.mubr.bf16.gmra.mxu0 %v3293
    %v4421 = vpop.f32.mrf.mxu0
    %v4422 = vadd.f32 %v4069, %v4421
    %v4423 = vpop.f32.mrf.mxu0
    %v4424 = vadd.f32 %v4071, %v4423
    %v4425 = vpop.f32.mrf.mxu0
    %v4426 = vadd.f32 %v4073, %v4425
    %v4427 = vpop.f32.mrf.mxu0
    %v4428 = vadd.f32 %v4075, %v4427
    %4429 = vmatprep.mubr.bf16.mxu0 %v3296
    %4430 = vmatmul.mubr.bf16.gmra.mxu0 %v3295
    %v4431 = vpop.f32.mrf.mxu0
    %v4432 = vadd.f32 %v4079, %v4431
    %v4433 = vpop.f32.mrf.mxu0
    %v4434 = vadd.f32 %v4081, %v4433
    %v4435 = vpop.f32.mrf.mxu0
    %v4436 = vadd.f32 %v4083, %v4435
    %v4437 = vpop.f32.mrf.mxu0
    %v4438 = vadd.f32 %v4085, %v4437
    %4439 = vmatprep.mubr.bf16.mxu0 %v3298
    %4440 = vmatmul.mubr.bf16.gmra.mxu0 %v3297
    %v4441 = vpop.f32.mrf.mxu0
    %v4442 = vadd.f32 %v4089, %v4441
    %v4443 = vpop.f32.mrf.mxu0
    %v4444 = vadd.f32 %v4091, %v4443
    %v4445 = vpop.f32.mrf.mxu0
    %v4446 = vadd.f32 %v4093, %v4445
    %v4447 = vpop.f32.mrf.mxu0
    %v4448 = vadd.f32 %v4095, %v4447
    %4449 = vmatprep.mubr.bf16.mxu0 %v3300
    %4450 = vmatmul.mubr.bf16.gmra.mxu0 %v3299
    %v4451 = vpop.f32.mrf.mxu0
    %v4452 = vadd.f32 %v4099, %v4451
    %v4453 = vpop.f32.mrf.mxu0
    %v4454 = vadd.f32 %v4101, %v4453
    %v4455 = vpop.f32.mrf.mxu0
    %v4456 = vadd.f32 %v4103, %v4455
    %v4457 = vpop.f32.mrf.mxu0
    %v4458 = vadd.f32 %v4105, %v4457
    %4459 = vmatprep.mubr.bf16.mxu0 %v3302
    %4460 = vmatmul.mubr.bf16.gmra.mxu0 %v3301
    %v4461 = vpop.f32.mrf.mxu0
    %v4462 = vadd.f32 %v4109, %v4461
    %v4463 = vpop.f32.mrf.mxu0
    %v4464 = vadd.f32 %v4111, %v4463
    %v4465 = vpop.f32.mrf.mxu0
    %v4466 = vadd.f32 %v4113, %v4465
    %v4467 = vpop.f32.mrf.mxu0
    %v4468 = vadd.f32 %v4115, %v4467
    %4469 = vmatprep.mubr.bf16.mxu0 %v3304
    %4470 = vmatmul.mubr.bf16.gmra.mxu0 %v3303
    %v4471 = vpop.f32.mrf.mxu0
    %v4472 = vadd.f32 %v4119, %v4471
    %v4473 = vpop.f32.mrf.mxu0
    %v4474 = vadd.f32 %v4121, %v4473
    %v4475 = vpop.f32.mrf.mxu0
    %v4476 = vadd.f32 %v4123, %v4475
    %v4477 = vpop.f32.mrf.mxu0
    %v4478 = vadd.f32 %v4125, %v4477
    %4479 = vmatprep.mubr.bf16.mxu0 %v3306
    %4480 = vmatmul.mubr.bf16.gmra.mxu0 %v3305
    %v4481 = vpop.f32.mrf.mxu0
    %v4482 = vadd.f32 %v4129, %v4481
    %v4483 = vpop.f32.mrf.mxu0
    %v4484 = vadd.f32 %v4131, %v4483
    %v4485 = vpop.f32.mrf.mxu0
    %v4486 = vadd.f32 %v4133, %v4485
    %v4487 = vpop.f32.mrf.mxu0
    %v4488 = vadd.f32 %v4135, %v4487
    %4489 = vmatprep.mubr.bf16.mxu0 %v3308
    %4490 = vmatmul.mubr.bf16.gmra.mxu0 %v3307
    %v4491 = vpop.f32.mrf.mxu0
    %v4492 = vadd.f32 %v4139, %v4491
    %v4493 = vpop.f32.mrf.mxu0
    %v4494 = vadd.f32 %v4141, %v4493
    %v4495 = vpop.f32.mrf.mxu0
    %v4496 = vadd.f32 %v4143, %v4495
    %v4497 = vpop.f32.mrf.mxu0
    %v4498 = vadd.f32 %v4145, %v4497
    %4499 = vmatprep.mubr.bf16.mxu0 %v3310
    %4500 = vmatmul.mubr.bf16.gmra.mxu0 %v3309
    %v4501 = vpop.f32.mrf.mxu0
    %v4502 = vadd.f32 %v4149, %v4501
    %v4503 = vpop.f32.mrf.mxu0
    %v4504 = vadd.f32 %v4151, %v4503
    %v4505 = vpop.f32.mrf.mxu0
    %v4506 = vadd.f32 %v4153, %v4505
    %v4507 = vpop.f32.mrf.mxu0
    %v4508 = vadd.f32 %v4155, %v4507
    %4509 = vmatprep.mubr.bf16.mxu0 %v3312
    %4510 = vmatmul.mubr.bf16.gmra.mxu0 %v3311
    %v4511 = vpop.f32.mrf.mxu0
    %v4512 = vadd.f32 %v4159, %v4511
    %v4513 = vpop.f32.mrf.mxu0
    %v4514 = vadd.f32 %v4161, %v4513
    %v4515 = vpop.f32.mrf.mxu0
    %v4516 = vadd.f32 %v4163, %v4515
    %v4517 = vpop.f32.mrf.mxu0
    %v4518 = vadd.f32 %v4165, %v4517
    %4519 = vmatprep.mubr.bf16.mxu0 %v3314
    %4520 = vmatmul.mubr.bf16.gmra.mxu0 %v3313
    %v4521 = vpop.f32.mrf.mxu0
    %v4522 = vadd.f32 %v4169, %v4521
    %v4523 = vpop.f32.mrf.mxu0
    %v4524 = vadd.f32 %v4171, %v4523
    %v4525 = vpop.f32.mrf.mxu0
    %v4526 = vadd.f32 %v4173, %v4525
    %v4527 = vpop.f32.mrf.mxu0
    %v4528 = vadd.f32 %v4175, %v4527
    %4529 = vmatprep.mubr.bf16.mxu0 %v3316
    %4530 = vmatmul.mubr.bf16.gmra.mxu0 %v3315
    %v4531 = vpop.f32.mrf.mxu0
    %v4532 = vadd.f32 %v4179, %v4531
    %v4533 = vpop.f32.mrf.mxu0
    %v4534 = vadd.f32 %v4181, %v4533
    %v4535 = vpop.f32.mrf.mxu0
    %v4536 = vadd.f32 %v4183, %v4535
    %v4537 = vpop.f32.mrf.mxu0
    %v4538 = vadd.f32 %v4185, %v4537
    %4539 = vmatprep.mubr.bf16.mxu0 %v3318
    %4540 = vmatmul.mubr.bf16.gmra.mxu0 %v3317
    %v4541 = vpop.f32.mrf.mxu0
    %v4542 = vadd.f32 %v4189, %v4541
    %v4543 = vpop.f32.mrf.mxu0
    %v4544 = vadd.f32 %v4191, %v4543
    %v4545 = vpop.f32.mrf.mxu0
    %v4546 = vadd.f32 %v4193, %v4545
    %v4547 = vpop.f32.mrf.mxu0
    %v4548 = vadd.f32 %v4195, %v4547
    %4549 = vmatprep.mubr.bf16.mxu0 %v3320
    %4550 = vmatmul.mubr.bf16.gmra.mxu0 %v3319
    %v4551 = vpop.f32.mrf.mxu0
    %v4552 = vadd.f32 %v4199, %v4551
    %v4553 = vpop.f32.mrf.mxu0
    %v4554 = vadd.f32 %v4201, %v4553
    %v4555 = vpop.f32.mrf.mxu0
    %v4556 = vadd.f32 %v4203, %v4555
    %v4557 = vpop.f32.mrf.mxu0
    %v4558 = vadd.f32 %v4205, %v4557
    %4559 = vmatprep.mubr.bf16.mxu0 %v3322
    %4560 = vmatmul.mubr.bf16.gmra.mxu0 %v3321
    %v4561 = vpop.f32.mrf.mxu0
    %v4562 = vadd.f32 %v4209, %v4561
    %v4563 = vpop.f32.mrf.mxu0
    %v4564 = vadd.f32 %v4211, %v4563
    %v4565 = vpop.f32.mrf.mxu0
    %v4566 = vadd.f32 %v4213, %v4565
    %v4567 = vpop.f32.mrf.mxu0
    %v4568 = vadd.f32 %v4215, %v4567
    %4569 = vmatprep.mubr.bf16.mxu0 %v3324
    %4570 = vmatmul.mubr.bf16.gmra.mxu0 %v3323
    %v4571 = vpop.f32.mrf.mxu0
    %v4572 = vadd.f32 %v4219, %v4571
    %v4573 = vpop.f32.mrf.mxu0
    %v4574 = vadd.f32 %v4221, %v4573
    %v4575 = vpop.f32.mrf.mxu0
    %v4576 = vadd.f32 %v4223, %v4575
    %v4577 = vpop.f32.mrf.mxu0
    %v4578 = vadd.f32 %v4225, %v4577
    %4579 = vmatprep.mubr.bf16.mxu0 %v3326
    %4580 = vmatmul.mubr.bf16.gmra.mxu0 %v3325
    %v4581 = vpop.f32.mrf.mxu0
    %v4582 = vadd.f32 %v4229, %v4581
    %v4583 = vpop.f32.mrf.mxu0
    %v4584 = vadd.f32 %v4231, %v4583
    %v4585 = vpop.f32.mrf.mxu0
    %v4586 = vadd.f32 %v4233, %v4585
    %v4587 = vpop.f32.mrf.mxu0
    %v4588 = vadd.f32 %v4235, %v4587
    %4589 = vmatprep.mubr.bf16.mxu0 %v3328
    %4590 = vmatmul.mubr.bf16.gmra.mxu0 %v3327
    %v4591 = vpop.f32.mrf.mxu0
    %v4592 = vadd.f32 %v4239, %v4591
    %v4593 = vpop.f32.mrf.mxu0
    %v4594 = vadd.f32 %v4241, %v4593
    %v4595 = vpop.f32.mrf.mxu0
    %v4596 = vadd.f32 %v4243, %v4595
    %v4597 = vpop.f32.mrf.mxu0
    %v4598 = vadd.f32 %v4245, %v4597
    %4599 = vmatprep.mubr.bf16.mxu0 %v3330
    %4600 = vmatmul.mubr.bf16.gmra.mxu0 %v3329
    %v4601 = vpop.f32.mrf.mxu0
    %v4602 = vadd.f32 %v4249, %v4601
    %v4603 = vpop.f32.mrf.mxu0
    %v4604 = vadd.f32 %v4251, %v4603
    %v4605 = vpop.f32.mrf.mxu0
    %v4606 = vadd.f32 %v4253, %v4605
    %v4607 = vpop.f32.mrf.mxu0
    %v4608 = vadd.f32 %v4255, %v4607
    %4609 = vmatprep.mubr.bf16.mxu0 %v3332
    %4610 = vmatmul.mubr.bf16.gmra.mxu0 %v3331
    %v4611 = vpop.f32.mrf.mxu0
    %v4612 = vadd.f32 %v4259, %v4611
    %v4613 = vpop.f32.mrf.mxu0
    %v4614 = vadd.f32 %v4261, %v4613
    %v4615 = vpop.f32.mrf.mxu0
    %v4616 = vadd.f32 %v4263, %v4615
    %v4617 = vpop.f32.mrf.mxu0
    %v4618 = vadd.f32 %v4265, %v4617
    %4619 = vmatprep.mubr.bf16.mxu0 %v3334
    %4620 = vmatmul.mubr.bf16.gmra.mxu0 %v3333
    %v4621 = vpop.f32.mrf.mxu0
    %v4622 = vadd.f32 %v4269, %v4621
    %v4623 = vpop.f32.mrf.mxu0
    %v4624 = vadd.f32 %v4271, %v4623
    %v4625 = vpop.f32.mrf.mxu0
    %v4626 = vadd.f32 %v4273, %v4625
    %v4627 = vpop.f32.mrf.mxu0
    %v4628 = vadd.f32 %v4275, %v4627
    %4629 = vdwg.mxu0
    %4630 = vmatprep.subr.bf16.mxu0 %v3811
    %4631 = vmatpush1.bf16.msra.mxu0 %v3810
    %4632 = vmatprep.subr.bf16.mxu0 %v3809
    %4633 = vmatpush1.bf16.msra.mxu0 %v3808
    %4634 = vmatprep.subr.bf16.mxu0 %v3807
    %4635 = vmatpush1.bf16.msra.mxu0 %v3806
    %4636 = vmatprep.subr.bf16.mxu0 %v3805
    %4637 = vmatpush1.bf16.msra.mxu0 %v3804
    %4638 = vmatprep.subr.bf16.mxu0 %v3803
    %4639 = vmatpush1.bf16.msra.mxu0 %v3802
    %4640 = vmatprep.subr.bf16.mxu0 %v3801
    %4641 = vmatpush1.bf16.msra.mxu0 %v3800
    %4642 = vmatprep.subr.bf16.mxu0 %v3799
    %4643 = vmatpush1.bf16.msra.mxu0 %v3798
    %4644 = vmatprep.subr.bf16.mxu0 %v3797
    %4645 = vmatpush1.bf16.msra.mxu0 %v3796
    %4646 = vmatprep.subr.bf16.mxu0 %v3827
    %4647 = vmatpush2.bf16.msra.mxu0 %v3826
    %4648 = vmatprep.subr.bf16.mxu0 %v3825
    %4649 = vmatpush2.bf16.msra.mxu0 %v3824
    %4650 = vmatprep.subr.bf16.mxu0 %v3823
    %4651 = vmatpush2.bf16.msra.mxu0 %v3822
    %4652 = vmatprep.subr.bf16.mxu0 %v3821
    %4653 = vmatpush2.bf16.msra.mxu0 %v3820
    %4654 = vmatprep.subr.bf16.mxu0 %v3819
    %4655 = vmatpush2.bf16.msra.mxu0 %v3818
    %4656 = vmatprep.subr.bf16.mxu0 %v3817
    %4657 = vmatpush2.bf16.msra.mxu0 %v3816
    %4658 = vmatprep.subr.bf16.mxu0 %v3815
    %4659 = vmatpush2.bf16.msra.mxu0 %v3814
    %4660 = vmatprep.subr.bf16.mxu0 %v3813
    %4661 = vmatpush2.bf16.msra.mxu0 %v3812
    %4662 = vmatprep.mubr.bf16.mxu0 %v3276
    %4663 = vmatmul.mubr.bf16.gmra.mxu0 %v3275
    %v4664 = vpop.f32.mrf.mxu0
    %v4665 = vadd.f32 %v4312, %v4664
    %v4666 = vpop.f32.mrf.mxu0
    %v4667 = vadd.f32 %v4314, %v4666
    %v4668 = vpop.f32.mrf.mxu0
    %v4669 = vadd.f32 %v4316, %v4668
    %v4670 = vpop.f32.mrf.mxu0
    %v4671 = vadd.f32 %v4318, %v4670
    %4672 = vmatprep.mubr.bf16.mxu0 %v3278
    %4673 = vmatmul.mubr.bf16.gmra.mxu0 %v3277
    %v4674 = vpop.f32.mrf.mxu0
    %v4675 = vadd.f32 %v4322, %v4674
    %v4676 = vpop.f32.mrf.mxu0
    %v4677 = vadd.f32 %v4324, %v4676
    %v4678 = vpop.f32.mrf.mxu0
    %v4679 = vadd.f32 %v4326, %v4678
    %v4680 = vpop.f32.mrf.mxu0
    %v4681 = vadd.f32 %v4328, %v4680
    %4682 = vmatprep.mubr.bf16.mxu0 %v3280
    %4683 = vmatmul.mubr.bf16.gmra.mxu0 %v3279
    %v4684 = vpop.f32.mrf.mxu0
    %v4685 = vadd.f32 %v4332, %v4684
    %v4686 = vpop.f32.mrf.mxu0
    %v4687 = vadd.f32 %v4334, %v4686
    %v4688 = vpop.f32.mrf.mxu0
    %v4689 = vadd.f32 %v4336, %v4688
    %v4690 = vpop.f32.mrf.mxu0
    %v4691 = vadd.f32 %v4338, %v4690
    %4692 = vmatprep.mubr.bf16.mxu0 %v3282
    %4693 = vmatmul.mubr.bf16.gmra.mxu0 %v3281
    %v4694 = vpop.f32.mrf.mxu0
    %v4695 = vadd.f32 %v4342, %v4694
    %v4696 = vpop.f32.mrf.mxu0
    %v4697 = vadd.f32 %v4344, %v4696
    %v4698 = vpop.f32.mrf.mxu0
    %v4699 = vadd.f32 %v4346, %v4698
    %v4700 = vpop.f32.mrf.mxu0
    %v4701 = vadd.f32 %v4348, %v4700
    %4702 = vmatprep.mubr.bf16.mxu0 %v3284
    %4703 = vmatmul.mubr.bf16.gmra.mxu0 %v3283
    %v4704 = vpop.f32.mrf.mxu0
    %v4705 = vadd.f32 %v4352, %v4704
    %v4706 = vpop.f32.mrf.mxu0
    %v4707 = vadd.f32 %v4354, %v4706
    %v4708 = vpop.f32.mrf.mxu0
    %v4709 = vadd.f32 %v4356, %v4708
    %v4710 = vpop.f32.mrf.mxu0
    %v4711 = vadd.f32 %v4358, %v4710
    %4712 = vmatprep.mubr.bf16.mxu0 %v3286
    %4713 = vmatmul.mubr.bf16.gmra.mxu0 %v3285
    %v4714 = vpop.f32.mrf.mxu0
    %v4715 = vadd.f32 %v4362, %v4714
    %v4716 = vpop.f32.mrf.mxu0
    %v4717 = vadd.f32 %v4364, %v4716
    %v4718 = vpop.f32.mrf.mxu0
    %v4719 = vadd.f32 %v4366, %v4718
    %v4720 = vpop.f32.mrf.mxu0
    %v4721 = vadd.f32 %v4368, %v4720
    %4722 = vmatprep.mubr.bf16.mxu0 %v3288
    %4723 = vmatmul.mubr.bf16.gmra.mxu0 %v3287
    %v4724 = vpop.f32.mrf.mxu0
    %v4725 = vadd.f32 %v4372, %v4724
    %v4726 = vpop.f32.mrf.mxu0
    %v4727 = vadd.f32 %v4374, %v4726
    %v4728 = vpop.f32.mrf.mxu0
    %v4729 = vadd.f32 %v4376, %v4728
    %v4730 = vpop.f32.mrf.mxu0
    %v4731 = vadd.f32 %v4378, %v4730
    %4732 = vmatprep.mubr.bf16.mxu0 %v3290
    %4733 = vmatmul.mubr.bf16.gmra.mxu0 %v3289
    %v4734 = vpop.f32.mrf.mxu0
    %v4735 = vadd.f32 %v4382, %v4734
    %v4736 = vpop.f32.mrf.mxu0
    %v4737 = vadd.f32 %v4384, %v4736
    %v4738 = vpop.f32.mrf.mxu0
    %v4739 = vadd.f32 %v4386, %v4738
    %v4740 = vpop.f32.mrf.mxu0
    %v4741 = vadd.f32 %v4388, %v4740
    %4742 = vmatprep.mubr.bf16.mxu0 %v3292
    %4743 = vmatmul.mubr.bf16.gmra.mxu0 %v3291
    %v4744 = vpop.f32.mrf.mxu0
    %v4745 = vadd.f32 %v4392, %v4744
    %v4746 = vpop.f32.mrf.mxu0
    %v4747 = vadd.f32 %v4394, %v4746
    %v4748 = vpop.f32.mrf.mxu0
    %v4749 = vadd.f32 %v4396, %v4748
    %v4750 = vpop.f32.mrf.mxu0
    %v4751 = vadd.f32 %v4398, %v4750
    %4752 = vmatprep.mubr.bf16.mxu0 %v3294
    %4753 = vmatmul.mubr.bf16.gmra.mxu0 %v3293
    %v4754 = vpop.f32.mrf.mxu0
    %v4755 = vadd.f32 %v4402, %v4754
    %v4756 = vpop.f32.mrf.mxu0
    %v4757 = vadd.f32 %v4404, %v4756
    %v4758 = vpop.f32.mrf.mxu0
    %v4759 = vadd.f32 %v4406, %v4758
    %v4760 = vpop.f32.mrf.mxu0
    %v4761 = vadd.f32 %v4408, %v4760
    %4762 = vmatprep.mubr.bf16.mxu0 %v3296
    %4763 = vmatmul.mubr.bf16.gmra.mxu0 %v3295
    %v4764 = vpop.f32.mrf.mxu0
    %v4765 = vadd.f32 %v4412, %v4764
    %v4766 = vpop.f32.mrf.mxu0
    %v4767 = vadd.f32 %v4414, %v4766
    %v4768 = vpop.f32.mrf.mxu0
    %v4769 = vadd.f32 %v4416, %v4768
    %v4770 = vpop.f32.mrf.mxu0
    %v4771 = vadd.f32 %v4418, %v4770
    %4772 = vmatprep.mubr.bf16.mxu0 %v3298
    %4773 = vmatmul.mubr.bf16.gmra.mxu0 %v3297
    %v4774 = vpop.f32.mrf.mxu0
    %v4775 = vadd.f32 %v4422, %v4774
    %v4776 = vpop.f32.mrf.mxu0
    %v4777 = vadd.f32 %v4424, %v4776
    %v4778 = vpop.f32.mrf.mxu0
    %v4779 = vadd.f32 %v4426, %v4778
    %v4780 = vpop.f32.mrf.mxu0
    %v4781 = vadd.f32 %v4428, %v4780
    %4782 = vmatprep.mubr.bf16.mxu0 %v3300
    %4783 = vmatmul.mubr.bf16.gmra.mxu0 %v3299
    %v4784 = vpop.f32.mrf.mxu0
    %v4785 = vadd.f32 %v4432, %v4784
    %v4786 = vpop.f32.mrf.mxu0
    %v4787 = vadd.f32 %v4434, %v4786
    %v4788 = vpop.f32.mrf.mxu0
    %v4789 = vadd.f32 %v4436, %v4788
    %v4790 = vpop.f32.mrf.mxu0
    %v4791 = vadd.f32 %v4438, %v4790
    %4792 = vmatprep.mubr.bf16.mxu0 %v3302
    %4793 = vmatmul.mubr.bf16.gmra.mxu0 %v3301
    %v4794 = vpop.f32.mrf.mxu0
    %v4795 = vadd.f32 %v4442, %v4794
    %v4796 = vpop.f32.mrf.mxu0
    %v4797 = vadd.f32 %v4444, %v4796
    %v4798 = vpop.f32.mrf.mxu0
    %v4799 = vadd.f32 %v4446, %v4798
    %v4800 = vpop.f32.mrf.mxu0
    %v4801 = vadd.f32 %v4448, %v4800
    %4802 = vmatprep.mubr.bf16.mxu0 %v3304
    %4803 = vmatmul.mubr.bf16.gmra.mxu0 %v3303
    %v4804 = vpop.f32.mrf.mxu0
    %v4805 = vadd.f32 %v4452, %v4804
    %v4806 = vpop.f32.mrf.mxu0
    %v4807 = vadd.f32 %v4454, %v4806
    %v4808 = vpop.f32.mrf.mxu0
    %v4809 = vadd.f32 %v4456, %v4808
    %v4810 = vpop.f32.mrf.mxu0
    %v4811 = vadd.f32 %v4458, %v4810
    %4812 = vmatprep.mubr.bf16.mxu0 %v3306
    %4813 = vmatmul.mubr.bf16.gmra.mxu0 %v3305
    %v4814 = vpop.f32.mrf.mxu0
    %v4815 = vadd.f32 %v4462, %v4814
    %v4816 = vpop.f32.mrf.mxu0
    %v4817 = vadd.f32 %v4464, %v4816
    %v4818 = vpop.f32.mrf.mxu0
    %v4819 = vadd.f32 %v4466, %v4818
    %v4820 = vpop.f32.mrf.mxu0
    %v4821 = vadd.f32 %v4468, %v4820
    %4822 = vmatprep.mubr.bf16.mxu0 %v3308
    %4823 = vmatmul.mubr.bf16.gmra.mxu0 %v3307
    %v4824 = vpop.f32.mrf.mxu0
    %v4825 = vadd.f32 %v4472, %v4824
    %v4826 = vpop.f32.mrf.mxu0
    %v4827 = vadd.f32 %v4474, %v4826
    %v4828 = vpop.f32.mrf.mxu0
    %v4829 = vadd.f32 %v4476, %v4828
    %v4830 = vpop.f32.mrf.mxu0
    %v4831 = vadd.f32 %v4478, %v4830
    %4832 = vmatprep.mubr.bf16.mxu0 %v3310
    %4833 = vmatmul.mubr.bf16.gmra.mxu0 %v3309
    %v4834 = vpop.f32.mrf.mxu0
    %v4835 = vadd.f32 %v4482, %v4834
    %v4836 = vpop.f32.mrf.mxu0
    %v4837 = vadd.f32 %v4484, %v4836
    %v4838 = vpop.f32.mrf.mxu0
    %v4839 = vadd.f32 %v4486, %v4838
    %v4840 = vpop.f32.mrf.mxu0
    %v4841 = vadd.f32 %v4488, %v4840
    %4842 = vmatprep.mubr.bf16.mxu0 %v3312
    %4843 = vmatmul.mubr.bf16.gmra.mxu0 %v3311
    %v4844 = vpop.f32.mrf.mxu0
    %v4845 = vadd.f32 %v4492, %v4844
    %v4846 = vpop.f32.mrf.mxu0
    %v4847 = vadd.f32 %v4494, %v4846
    %v4848 = vpop.f32.mrf.mxu0
    %v4849 = vadd.f32 %v4496, %v4848
    %v4850 = vpop.f32.mrf.mxu0
    %v4851 = vadd.f32 %v4498, %v4850
    %4852 = vmatprep.mubr.bf16.mxu0 %v3314
    %4853 = vmatmul.mubr.bf16.gmra.mxu0 %v3313
    %v4854 = vpop.f32.mrf.mxu0
    %v4855 = vadd.f32 %v4502, %v4854
    %v4856 = vpop.f32.mrf.mxu0
    %v4857 = vadd.f32 %v4504, %v4856
    %v4858 = vpop.f32.mrf.mxu0
    %v4859 = vadd.f32 %v4506, %v4858
    %v4860 = vpop.f32.mrf.mxu0
    %v4861 = vadd.f32 %v4508, %v4860
    %4862 = vmatprep.mubr.bf16.mxu0 %v3316
    %4863 = vmatmul.mubr.bf16.gmra.mxu0 %v3315
    %v4864 = vpop.f32.mrf.mxu0
    %v4865 = vadd.f32 %v4512, %v4864
    %v4866 = vpop.f32.mrf.mxu0
    %v4867 = vadd.f32 %v4514, %v4866
    %v4868 = vpop.f32.mrf.mxu0
    %v4869 = vadd.f32 %v4516, %v4868
    %v4870 = vpop.f32.mrf.mxu0
    %v4871 = vadd.f32 %v4518, %v4870
    %4872 = vmatprep.mubr.bf16.mxu0 %v3318
    %4873 = vmatmul.mubr.bf16.gmra.mxu0 %v3317
    %v4874 = vpop.f32.mrf.mxu0
    %v4875 = vadd.f32 %v4522, %v4874
    %v4876 = vpop.f32.mrf.mxu0
    %v4877 = vadd.f32 %v4524, %v4876
    %v4878 = vpop.f32.mrf.mxu0
    %v4879 = vadd.f32 %v4526, %v4878
    %v4880 = vpop.f32.mrf.mxu0
    %v4881 = vadd.f32 %v4528, %v4880
    %4882 = vmatprep.mubr.bf16.mxu0 %v3320
    %4883 = vmatmul.mubr.bf16.gmra.mxu0 %v3319
    %v4884 = vpop.f32.mrf.mxu0
    %v4885 = vadd.f32 %v4532, %v4884
    %v4886 = vpop.f32.mrf.mxu0
    %v4887 = vadd.f32 %v4534, %v4886
    %v4888 = vpop.f32.mrf.mxu0
    %v4889 = vadd.f32 %v4536, %v4888
    %v4890 = vpop.f32.mrf.mxu0
    %v4891 = vadd.f32 %v4538, %v4890
    %4892 = vmatprep.mubr.bf16.mxu0 %v3322
    %4893 = vmatmul.mubr.bf16.gmra.mxu0 %v3321
    %v4894 = vpop.f32.mrf.mxu0
    %v4895 = vadd.f32 %v4542, %v4894
    %v4896 = vpop.f32.mrf.mxu0
    %v4897 = vadd.f32 %v4544, %v4896
    %v4898 = vpop.f32.mrf.mxu0
    %v4899 = vadd.f32 %v4546, %v4898
    %v4900 = vpop.f32.mrf.mxu0
    %v4901 = vadd.f32 %v4548, %v4900
    %4902 = vmatprep.mubr.bf16.mxu0 %v3324
    %4903 = vmatmul.mubr.bf16.gmra.mxu0 %v3323
    %v4904 = vpop.f32.mrf.mxu0
    %v4905 = vadd.f32 %v4552, %v4904
    %v4906 = vpop.f32.mrf.mxu0
    %v4907 = vadd.f32 %v4554, %v4906
    %v4908 = vpop.f32.mrf.mxu0
    %v4909 = vadd.f32 %v4556, %v4908
    %v4910 = vpop.f32.mrf.mxu0
    %v4911 = vadd.f32 %v4558, %v4910
    %4912 = vmatprep.mubr.bf16.mxu0 %v3326
    %4913 = vmatmul.mubr.bf16.gmra.mxu0 %v3325
    %v4914 = vpop.f32.mrf.mxu0
    %v4915 = vadd.f32 %v4562, %v4914
    %v4916 = vpop.f32.mrf.mxu0
    %v4917 = vadd.f32 %v4564, %v4916
    %v4918 = vpop.f32.mrf.mxu0
    %v4919 = vadd.f32 %v4566, %v4918
    %v4920 = vpop.f32.mrf.mxu0
    %v4921 = vadd.f32 %v4568, %v4920
    %4922 = vmatprep.mubr.bf16.mxu0 %v3328
    %4923 = vmatmul.mubr.bf16.gmra.mxu0 %v3327
    %v4924 = vpop.f32.mrf.mxu0
    %v4925 = vadd.f32 %v4572, %v4924
    %v4926 = vpop.f32.mrf.mxu0
    %v4927 = vadd.f32 %v4574, %v4926
    %v4928 = vpop.f32.mrf.mxu0
    %v4929 = vadd.f32 %v4576, %v4928
    %v4930 = vpop.f32.mrf.mxu0
    %v4931 = vadd.f32 %v4578, %v4930
    %4932 = vmatprep.mubr.bf16.mxu0 %v3330
    %4933 = vmatmul.mubr.bf16.gmra.mxu0 %v3329
    %v4934 = vpop.f32.mrf.mxu0
    %v4935 = vadd.f32 %v4582, %v4934
    %v4936 = vpop.f32.mrf.mxu0
    %v4937 = vadd.f32 %v4584, %v4936
    %v4938 = vpop.f32.mrf.mxu0
    %v4939 = vadd.f32 %v4586, %v4938
    %v4940 = vpop.f32.mrf.mxu0
    %v4941 = vadd.f32 %v4588, %v4940
    %4942 = vmatprep.mubr.bf16.mxu0 %v3332
    %4943 = vmatmul.mubr.bf16.gmra.mxu0 %v3331
    %v4944 = vpop.f32.mrf.mxu0
    %v4945 = vadd.f32 %v4592, %v4944
    %v4946 = vpop.f32.mrf.mxu0
    %v4947 = vadd.f32 %v4594, %v4946
    %v4948 = vpop.f32.mrf.mxu0
    %v4949 = vadd.f32 %v4596, %v4948
    %v4950 = vpop.f32.mrf.mxu0
    %v4951 = vadd.f32 %v4598, %v4950
    %4952 = vmatprep.mubr.bf16.mxu0 %v3334
    %4953 = vmatmul.mubr.bf16.gmra.mxu0 %v3333
    %v4954 = vpop.f32.mrf.mxu0
    %v4955 = vadd.f32 %v4602, %v4954
    %v4956 = vpop.f32.mrf.mxu0
    %v4957 = vadd.f32 %v4604, %v4956
    %v4958 = vpop.f32.mrf.mxu0
    %v4959 = vadd.f32 %v4606, %v4958
    %v4960 = vpop.f32.mrf.mxu0
    %v4961 = vadd.f32 %v4608, %v4960
    %4962 = vmatprep.mubr.bf16.mxu0 0
    %4963 = vmatmul.mubr.bf16.gmra.mxu0 0
    %v4964 = vpop.f32.mrf.mxu0
    %v4965 = vadd.f32 %v4612, %v4964
    %v4966 = vpop.f32.mrf.mxu0
    %v4967 = vadd.f32 %v4614, %v4966
    %v4968 = vpop.f32.mrf.mxu0
    %v4969 = vadd.f32 %v4616, %v4968
    %v4970 = vpop.f32.mrf.mxu0
    %v4971 = vadd.f32 %v4618, %v4970
    %4972 = vmatprep.mubr.bf16.mxu0 0
    %4973 = vmatmul.mubr.bf16.gmra.mxu0 0
    %v4974 = vpop.f32.mrf.mxu0
    %v4975 = vadd.f32 %v4622, %v4974
    %v4976 = vpop.f32.mrf.mxu0
    %v4977 = vadd.f32 %v4624, %v4976
    %v4978 = vpop.f32.mrf.mxu0
    %v4979 = vadd.f32 %v4626, %v4978
    %v4980 = vpop.f32.mrf.mxu0
    %v4981 = vadd.f32 %v4628, %v4980
    %4982 = vdwg.mxu0
    %v4983 = vadd.f32 %v4665, %v1303
    %v4984 = vadd.f32 %v4667, %v1304
    %v4985 = vadd.f32 %v4669, %v1305
    %v4986 = vadd.f32 %v4671, %v1306
    %v4987 = vadd.f32 %v4675, %v1307
    %v4988 = vadd.f32 %v4677, %v1308
    %v4989 = vadd.f32 %v4679, %v1309
    %v4990 = vadd.f32 %v4681, %v1310
    %v4991 = vadd.f32 %v4685, %v1311
    %v4992 = vadd.f32 %v4687, %v1312
    %v4993 = vadd.f32 %v4689, %v1313
    %v4994 = vadd.f32 %v4691, %v1314
    %v4995 = vadd.f32 %v4695, %v1315
    %v4996 = vadd.f32 %v4697, %v1316
    %v4997 = vadd.f32 %v4699, %v1317
    %v4998 = vadd.f32 %v4701, %v1318
    %v4999 = vadd.f32 %v4705, %v1319
    %v5000 = vadd.f32 %v4707, %v1320
    %v5001 = vadd.f32 %v4709, %v1321
    %v5002 = vadd.f32 %v4711, %v1322
    %v5003 = vadd.f32 %v4715, %v1323
    %v5004 = vadd.f32 %v4717, %v1324
    %v5005 = vadd.f32 %v4719, %v1325
    %v5006 = vadd.f32 %v4721, %v1326
    %v5007 = vadd.f32 %v4725, %v1327
    %v5008 = vadd.f32 %v4727, %v1328
    %v5009 = vadd.f32 %v4729, %v1329
    %v5010 = vadd.f32 %v4731, %v1330
    %v5011 = vadd.f32 %v4735, %v1331
    %v5012 = vadd.f32 %v4737, %v1332
    %v5013 = vadd.f32 %v4739, %v1333
    %v5014 = vadd.f32 %v4741, %v1334
    %v5015 = vadd.f32 %v4745, %v1335
    %v5016 = vadd.f32 %v4747, %v1336
    %v5017 = vadd.f32 %v4749, %v1337
    %v5018 = vadd.f32 %v4751, %v1338
    %v5019 = vadd.f32 %v4755, %v1339
    %v5020 = vadd.f32 %v4757, %v1340
    %v5021 = vadd.f32 %v4759, %v1341
    %v5022 = vadd.f32 %v4761, %v1342
    %v5023 = vadd.f32 %v4765, %v1343
    %v5024 = vadd.f32 %v4767, %v1344
    %v5025 = vadd.f32 %v4769, %v1345
    %v5026 = vadd.f32 %v4771, %v1346
    %v5027 = vadd.f32 %v4775, %v1347
    %v5028 = vadd.f32 %v4777, %v1348
    %v5029 = vadd.f32 %v4779, %v1349
    %v5030 = vadd.f32 %v4781, %v1350
    %v5031 = vadd.f32 %v4785, %v1351
    %v5032 = vadd.f32 %v4787, %v1352
    %v5033 = vadd.f32 %v4789, %v1353
    %v5034 = vadd.f32 %v4791, %v1354
    %v5035 = vadd.f32 %v4795, %v1355
    %v5036 = vadd.f32 %v4797, %v1356
    %v5037 = vadd.f32 %v4799, %v1357
    %v5038 = vadd.f32 %v4801, %v1358
    %v5039 = vadd.f32 %v4805, %v1359
    %v5040 = vadd.f32 %v4807, %v1360
    %v5041 = vadd.f32 %v4809, %v1361
    %v5042 = vadd.f32 %v4811, %v1362
    %v5043 = vadd.f32 %v4815, %v1363
    %v5044 = vadd.f32 %v4817, %v1364
    %v5045 = vadd.f32 %v4819, %v1365
    %v5046 = vadd.f32 %v4821, %v1366
    %v5047 = vadd.f32 %v4825, %v1367
    %v5048 = vadd.f32 %v4827, %v1368
    %v5049 = vadd.f32 %v4829, %v1369
    %v5050 = vadd.f32 %v4831, %v1370
    %v5051 = vadd.f32 %v4835, %v1371
    %v5052 = vadd.f32 %v4837, %v1372
    %v5053 = vadd.f32 %v4839, %v1373
    %v5054 = vadd.f32 %v4841, %v1374
    %v5055 = vadd.f32 %v4845, %v1375
    %v5056 = vadd.f32 %v4847, %v1376
    %v5057 = vadd.f32 %v4849, %v1377
    %v5058 = vadd.f32 %v4851, %v1378
    %v5059 = vadd.f32 %v4855, %v1379
    %v5060 = vadd.f32 %v4857, %v1380
    %v5061 = vadd.f32 %v4859, %v1381
    %v5062 = vadd.f32 %v4861, %v1382
    %v5063 = vadd.f32 %v4865, %v1383
    %v5064 = vadd.f32 %v4867, %v1384
    %v5065 = vadd.f32 %v4869, %v1385
    %v5066 = vadd.f32 %v4871, %v1386
    %v5067 = vadd.f32 %v4875, %v1387
    %v5068 = vadd.f32 %v4877, %v1388
    %v5069 = vadd.f32 %v4879, %v1389
    %v5070 = vadd.f32 %v4881, %v1390
    %v5071 = vadd.f32 %v4885, %v1391
    %v5072 = vadd.f32 %v4887, %v1392
    %v5073 = vadd.f32 %v4889, %v1393
    %v5074 = vadd.f32 %v4891, %v1394
    %v5075 = vadd.f32 %v4895, %v1395
    %v5076 = vadd.f32 %v4897, %v1396
    %v5077 = vadd.f32 %v4899, %v1397
    %v5078 = vadd.f32 %v4901, %v1398
    %v5079 = vadd.f32 %v4905, %v1399
    %v5080 = vadd.f32 %v4907, %v1400
    %v5081 = vadd.f32 %v4909, %v1401
    %v5082 = vadd.f32 %v4911, %v1402
    %v5083 = vadd.f32 %v4915, %v1403
    %v5084 = vadd.f32 %v4917, %v1404
    %v5085 = vadd.f32 %v4919, %v1405
    %v5086 = vadd.f32 %v4921, %v1406
    %v5087 = vadd.f32 %v4925, %v1407
    %v5088 = vadd.f32 %v4927, %v1408
    %v5089 = vadd.f32 %v4929, %v1409
    %v5090 = vadd.f32 %v4931, %v1410
    %v5091 = vadd.f32 %v4935, %v1411
    %v5092 = vadd.f32 %v4937, %v1412
    %v5093 = vadd.f32 %v4939, %v1413
    %v5094 = vadd.f32 %v4941, %v1414
    %v5095 = vadd.f32 %v4945, %v1415
    %v5096 = vadd.f32 %v4947, %v1416
    %v5097 = vadd.f32 %v4949, %v1417
    %v5098 = vadd.f32 %v4951, %v1418
    %v5099 = vadd.f32 %v4955, %v1419
    %v5100 = vadd.f32 %v4957, %v1420
    %v5101 = vadd.f32 %v4959, %v1421
    %v5102 = vadd.f32 %v4961, %v1422
    %v5103 = vadd.f32 %v4965, %v1423
    %v5104 = vadd.f32 %v4967, %v1424
    %v5105 = vadd.f32 %v4969, %v1425
    %v5106 = vadd.f32 %v4971, %v1426
    %v5107 = vadd.f32 %v4975, %v1427
    %v5108 = vadd.f32 %v4977, %v1428
    %v5109 = vadd.f32 %v4979, %v1429
    %v5110 = vadd.f32 %v4981, %v1430
    %v5111 = vmax.f32 %v4983, 0.0
    %v5112 = vmax.f32 %v4984, 0.0
    %v5113 = vmax.f32 %v4985, 0.0
    %v5114 = vmax.f32 %v4986, 0.0
    %v5115 = vmax.f32 %v4987, 0.0
    %v5116 = vmax.f32 %v4988, 0.0
    %v5117 = vmax.f32 %v4989, 0.0
    %v5118 = vmax.f32 %v4990, 0.0
    %v5119 = vmax.f32 %v4991, 0.0
    %v5120 = vmax.f32 %v4992, 0.0
    %v5121 = vmax.f32 %v4993, 0.0
    %v5122 = vmax.f32 %v4994, 0.0
    %v5123 = vmax.f32 %v4995, 0.0
    %v5124 = vmax.f32 %v4996, 0.0
    %v5125 = vmax.f32 %v4997, 0.0
    %v5126 = vmax.f32 %v4998, 0.0
    %v5127 = vmax.f32 %v4999, 0.0
    %v5128 = vmax.f32 %v5000, 0.0
    %v5129 = vmax.f32 %v5001, 0.0
    %v5130 = vmax.f32 %v5002, 0.0
    %v5131 = vmax.f32 %v5003, 0.0
    %v5132 = vmax.f32 %v5004, 0.0
    %v5133 = vmax.f32 %v5005, 0.0
    %v5134 = vmax.f32 %v5006, 0.0
    %v5135 = vmax.f32 %v5007, 0.0
    %v5136 = vmax.f32 %v5008, 0.0
    %v5137 = vmax.f32 %v5009, 0.0
    %v5138 = vmax.f32 %v5010, 0.0
    %v5139 = vmax.f32 %v5011, 0.0
    %v5140 = vmax.f32 %v5012, 0.0
    %v5141 = vmax.f32 %v5013, 0.0
    %v5142 = vmax.f32 %v5014, 0.0
    %v5143 = vmax.f32 %v5015, 0.0
    %v5144 = vmax.f32 %v5016, 0.0
    %v5145 = vmax.f32 %v5017, 0.0
    %v5146 = vmax.f32 %v5018, 0.0
    %v5147 = vmax.f32 %v5019, 0.0
    %v5148 = vmax.f32 %v5020, 0.0
    %v5149 = vmax.f32 %v5021, 0.0
    %v5150 = vmax.f32 %v5022, 0.0
    %v5151 = vmax.f32 %v5023, 0.0
    %v5152 = vmax.f32 %v5024, 0.0
    %v5153 = vmax.f32 %v5025, 0.0
    %v5154 = vmax.f32 %v5026, 0.0
    %v5155 = vmax.f32 %v5027, 0.0
    %v5156 = vmax.f32 %v5028, 0.0
    %v5157 = vmax.f32 %v5029, 0.0
    %v5158 = vmax.f32 %v5030, 0.0
    %v5159 = vmax.f32 %v5031, 0.0
    %v5160 = vmax.f32 %v5032, 0.0
    %v5161 = vmax.f32 %v5033, 0.0
    %v5162 = vmax.f32 %v5034, 0.0
    %v5163 = vmax.f32 %v5035, 0.0
    %v5164 = vmax.f32 %v5036, 0.0
    %v5165 = vmax.f32 %v5037, 0.0
    %v5166 = vmax.f32 %v5038, 0.0
    %v5167 = vmax.f32 %v5039, 0.0
    %v5168 = vmax.f32 %v5040, 0.0
    %v5169 = vmax.f32 %v5041, 0.0
    %v5170 = vmax.f32 %v5042, 0.0
    %v5171 = vmax.f32 %v5043, 0.0
    %v5172 = vmax.f32 %v5044, 0.0
    %v5173 = vmax.f32 %v5045, 0.0
    %v5174 = vmax.f32 %v5046, 0.0
    %v5175 = vmax.f32 %v5047, 0.0
    %v5176 = vmax.f32 %v5048, 0.0
    %v5177 = vmax.f32 %v5049, 0.0
    %v5178 = vmax.f32 %v5050, 0.0
    %v5179 = vmax.f32 %v5051, 0.0
    %v5180 = vmax.f32 %v5052, 0.0
    %v5181 = vmax.f32 %v5053, 0.0
    %v5182 = vmax.f32 %v5054, 0.0
    %v5183 = vmax.f32 %v5055, 0.0
    %v5184 = vmax.f32 %v5056, 0.0
    %v5185 = vmax.f32 %v5057, 0.0
    %v5186 = vmax.f32 %v5058, 0.0
    %v5187 = vmax.f32 %v5059, 0.0
    %v5188 = vmax.f32 %v5060, 0.0
    %v5189 = vmax.f32 %v5061, 0.0
    %v5190 = vmax.f32 %v5062, 0.0
    %v5191 = vmax.f32 %v5063, 0.0
    %v5192 = vmax.f32 %v5064, 0.0
    %v5193 = vmax.f32 %v5065, 0.0
    %v5194 = vmax.f32 %v5066, 0.0
    %v5195 = vmax.f32 %v5067, 0.0
    %v5196 = vmax.f32 %v5068, 0.0
    %v5197 = vmax.f32 %v5069, 0.0
    %v5198 = vmax.f32 %v5070, 0.0
    %v5199 = vmax.f32 %v5071, 0.0
    %v5200 = vmax.f32 %v5072, 0.0
    %v5201 = vmax.f32 %v5073, 0.0
    %v5202 = vmax.f32 %v5074, 0.0
    %v5203 = vmax.f32 %v5075, 0.0
    %v5204 = vmax.f32 %v5076, 0.0
    %v5205 = vmax.f32 %v5077, 0.0
    %v5206 = vmax.f32 %v5078, 0.0
    %v5207 = vmax.f32 %v5079, 0.0
    %v5208 = vmax.f32 %v5080, 0.0
    %v5209 = vmax.f32 %v5081, 0.0
    %v5210 = vmax.f32 %v5082, 0.0
    %v5211 = vmax.f32 %v5083, 0.0
    %v5212 = vmax.f32 %v5084, 0.0
    %v5213 = vmax.f32 %v5085, 0.0
    %v5214 = vmax.f32 %v5086, 0.0
    %v5215 = vmax.f32 %v5087, 0.0
    %v5216 = vmax.f32 %v5088, 0.0
    %v5217 = vmax.f32 %v5089, 0.0
    %v5218 = vmax.f32 %v5090, 0.0
    %v5219 = vmax.f32 %v5091, 0.0
    %v5220 = vmax.f32 %v5092, 0.0
    %v5221 = vmax.f32 %v5093, 0.0
    %v5222 = vmax.f32 %v5094, 0.0
    %v5223 = vmax.f32 %v5095, 0.0
    %v5224 = vmax.f32 %v5096, 0.0
    %v5225 = vmax.f32 %v5097, 0.0
    %v5226 = vmax.f32 %v5098, 0.0
    %v5227 = vmax.f32 %v5099, 0.0
    %v5228 = vmax.f32 %v5100, 0.0
    %v5229 = vmax.f32 %v5101, 0.0
    %v5230 = vmax.f32 %v5102, 0.0
    %v5231 = vmax.f32 %v5103, 0.0
    %v5232 = vmax.f32 %v5104, 0.0
    %v5233 = vmax.f32 %v5105, 0.0
    %v5234 = vmax.f32 %v5106, 0.0
    %v5235 = vmax.f32 %v5107, 0.0
    %v5236 = vmax.f32 %v5108, 0.0
    %v5237 = vmax.f32 %v5109, 0.0
    %v5238 = vmax.f32 %v5110, 0.0
    %v5239 = vpack.c.bf16 %v5113, %v5111
    %v5240 = vpack.c.bf16 %v5114, %v5112
    %v5241 = vpack.c.bf16 %v5117, %v5115
    %v5242 = vpack.c.bf16 %v5118, %v5116
    %v5243 = vpack.c.bf16 %v5121, %v5119
    %v5244 = vpack.c.bf16 %v5122, %v5120
    %v5245 = vpack.c.bf16 %v5125, %v5123
    %v5246 = vpack.c.bf16 %v5126, %v5124
    %v5247 = vpack.c.bf16 %v5129, %v5127
    %v5248 = vpack.c.bf16 %v5130, %v5128
    %v5249 = vpack.c.bf16 %v5133, %v5131
    %v5250 = vpack.c.bf16 %v5134, %v5132
    %v5251 = vpack.c.bf16 %v5137, %v5135
    %v5252 = vpack.c.bf16 %v5138, %v5136
    %v5253 = vpack.c.bf16 %v5141, %v5139
    %v5254 = vpack.c.bf16 %v5142, %v5140
    %v5255 = vpack.c.bf16 %v5145, %v5143
    %v5256 = vpack.c.bf16 %v5146, %v5144
    %v5257 = vpack.c.bf16 %v5149, %v5147
    %v5258 = vpack.c.bf16 %v5150, %v5148
    %v5259 = vpack.c.bf16 %v5153, %v5151
    %v5260 = vpack.c.bf16 %v5154, %v5152
    %v5261 = vpack.c.bf16 %v5157, %v5155
    %v5262 = vpack.c.bf16 %v5158, %v5156
    %v5263 = vpack.c.bf16 %v5161, %v5159
    %v5264 = vpack.c.bf16 %v5162, %v5160
    %v5265 = vpack.c.bf16 %v5165, %v5163
    %v5266 = vpack.c.bf16 %v5166, %v5164
    %v5267 = vpack.c.bf16 %v5169, %v5167
    %v5268 = vpack.c.bf16 %v5170, %v5168
    %v5269 = vpack.c.bf16 %v5173, %v5171
    %v5270 = vpack.c.bf16 %v5174, %v5172
    %v5271 = vpack.c.bf16 %v5177, %v5175
    %v5272 = vpack.c.bf16 %v5178, %v5176
    %v5273 = vpack.c.bf16 %v5181, %v5179
    %v5274 = vpack.c.bf16 %v5182, %v5180
    %v5275 = vpack.c.bf16 %v5185, %v5183
    %v5276 = vpack.c.bf16 %v5186, %v5184
    %v5277 = vpack.c.bf16 %v5189, %v5187
    %v5278 = vpack.c.bf16 %v5190, %v5188
    %v5279 = vpack.c.bf16 %v5193, %v5191
    %v5280 = vpack.c.bf16 %v5194, %v5192
    %v5281 = vpack.c.bf16 %v5197, %v5195
    %v5282 = vpack.c.bf16 %v5198, %v5196
    %v5283 = vpack.c.bf16 %v5201, %v5199
    %v5284 = vpack.c.bf16 %v5202, %v5200
    %v5285 = vpack.c.bf16 %v5205, %v5203
    %v5286 = vpack.c.bf16 %v5206, %v5204
    %v5287 = vpack.c.bf16 %v5209, %v5207
    %v5288 = vpack.c.bf16 %v5210, %v5208
    %v5289 = vpack.c.bf16 %v5213, %v5211
    %v5290 = vpack.c.bf16 %v5214, %v5212
    %v5291 = vpack.c.bf16 %v5217, %v5215
    %v5292 = vpack.c.bf16 %v5218, %v5216
    %v5293 = vpack.c.bf16 %v5221, %v5219
    %v5294 = vpack.c.bf16 %v5222, %v5220
    %v5295 = vpack.c.bf16 %v5225, %v5223
    %v5296 = vpack.c.bf16 %v5226, %v5224
    %v5297 = vpack.c.bf16 %v5229, %v5227
    %v5298 = vpack.c.bf16 %v5230, %v5228
    %v5299 = vpack.c.bf16 %v5233, %v5231
    %v5300 = vpack.c.bf16 %v5234, %v5232
    %v5301 = vpack.c.bf16 %v5237, %v5235
    %v5302 = vpack.c.bf16 %v5238, %v5236
    %v5303 = vld [vmem:[#allocation2 + $0x780] sm:$0xff]
    %v5304 = vld [vmem:[#allocation2 + $0x788] sm:$0xff]
    %v5305 = vld [vmem:[#allocation2 + $0x790] sm:$0xff]
    %v5306 = vld [vmem:[#allocation2 + $0x798] sm:$0xff]
    %v5307 = vld [vmem:[#allocation2 + $0x7a0] sm:$0xff]
    %v5308 = vld [vmem:[#allocation2 + $0x7a8] sm:$0xff]
    %v5309 = vld [vmem:[#allocation2 + $0x7b0] sm:$0xff]
    %v5310 = vld [vmem:[#allocation2 + $0x7b8] sm:$0xff]
    %v5311 = vld [vmem:[#allocation2 + $0x7c0] sm:$0xff]
    %v5312 = vld [vmem:[#allocation2 + $0x7c8] sm:$0xff]
    %v5313 = vld [vmem:[#allocation2 + $0x7d0] sm:$0xff]
    %v5314 = vld [vmem:[#allocation2 + $0x7d8] sm:$0xff]
    %v5315 = vld [vmem:[#allocation2 + $0x7e0] sm:$0xff]
    %v5316 = vld [vmem:[#allocation2 + $0x7e8] sm:$0xff]
    %v5317 = vld [vmem:[#allocation2 + $0x7f0] sm:$0xff]
    %v5318 = vld [vmem:[#allocation2 + $0x7f8] sm:$0xff]
    %v5319 = vld [vmem:[#allocation2 + $0x800] sm:$0xff]
    %v5320 = vld [vmem:[#allocation2 + $0x808] sm:$0xff]
    %v5321 = vld [vmem:[#allocation2 + $0x810] sm:$0xff]
    %v5322 = vld [vmem:[#allocation2 + $0x818] sm:$0xff]
    %v5323 = vld [vmem:[#allocation2 + $0x820] sm:$0xff]
    %v5324 = vld [vmem:[#allocation2 + $0x828] sm:$0xff]
    %v5325 = vld [vmem:[#allocation2 + $0x830] sm:$0xff]
    %v5326 = vld [vmem:[#allocation2 + $0x838] sm:$0xff]
    %v5327 = vld [vmem:[#allocation2 + $0x840] sm:$0xff]
    %v5328 = vld [vmem:[#allocation2 + $0x848] sm:$0xff]
    %v5329 = vld [vmem:[#allocation2 + $0x850] sm:$0xff]
    %v5330 = vld [vmem:[#allocation2 + $0x858] sm:$0xff]
    %v5331 = vld [vmem:[#allocation2 + $0x860] sm:$0xff]
    %v5332 = vld [vmem:[#allocation2 + $0x868] sm:$0xff]
    %v5333 = vld [vmem:[#allocation2 + $0x870] sm:$0xff]
    %v5334 = vld [vmem:[#allocation2 + $0x878] sm:$0xff]
    %v5335 = vld [vmem:[#allocation2 + $0x880] sm:$0xff]
    %v5336 = vld [vmem:[#allocation2 + $0x888] sm:$0xff]
    %v5337 = vld [vmem:[#allocation2 + $0x890] sm:$0xff]
    %v5338 = vld [vmem:[#allocation2 + $0x898] sm:$0xff]
    %v5339 = vld [vmem:[#allocation2 + $0x8a0] sm:$0xff]
    %v5340 = vld [vmem:[#allocation2 + $0x8a8] sm:$0xff]
    %v5341 = vld [vmem:[#allocation2 + $0x8b0] sm:$0xff]
    %v5342 = vld [vmem:[#allocation2 + $0x8b8] sm:$0xff]
    %v5343 = vld [vmem:[#allocation2 + $0x8c0] sm:$0xff]
    %v5344 = vld [vmem:[#allocation2 + $0x8c8] sm:$0xff]
    %v5345 = vld [vmem:[#allocation2 + $0x8d0] sm:$0xff]
    %v5346 = vld [vmem:[#allocation2 + $0x8d8] sm:$0xff]
    %v5347 = vld [vmem:[#allocation2 + $0x8e0] sm:$0xff]
    %v5348 = vld [vmem:[#allocation2 + $0x8e8] sm:$0xff]
    %v5349 = vld [vmem:[#allocation2 + $0x8f0] sm:$0xff]
    %v5350 = vld [vmem:[#allocation2 + $0x8f8] sm:$0xff]
    %v5351 = vld [vmem:[#allocation2 + $0x900] sm:$0xff]
    %v5352 = vld [vmem:[#allocation2 + $0x908] sm:$0xff]
    %v5353 = vld [vmem:[#allocation2 + $0x910] sm:$0xff]
    %v5354 = vld [vmem:[#allocation2 + $0x918] sm:$0xff]
    %v5355 = vld [vmem:[#allocation2 + $0x920] sm:$0xff]
    %v5356 = vld [vmem:[#allocation2 + $0x928] sm:$0xff]
    %v5357 = vld [vmem:[#allocation2 + $0x930] sm:$0xff]
    %v5358 = vld [vmem:[#allocation2 + $0x938] sm:$0xff]
    %v5359 = vld [vmem:[#allocation2 + $0x940] sm:$0xff]
    %v5360 = vld [vmem:[#allocation2 + $0x948] sm:$0xff]
    %v5361 = vld [vmem:[#allocation2 + $0x950] sm:$0xff]
    %v5362 = vld [vmem:[#allocation2 + $0x958] sm:$0xff]
    %v5363 = vld [vmem:[#allocation2 + $0x960] sm:$0xff]
    %v5364 = vld [vmem:[#allocation2 + $0x968] sm:$0xff]
    %v5365 = vld [vmem:[#allocation2 + $0x970] sm:$0xff]
    %v5366 = vld [vmem:[#allocation2 + $0x978] sm:$0xff]
    %v5367 = vld [vmem:[#allocation2 + $0x980] sm:$0xff]
    %v5368 = vld [vmem:[#allocation2 + $0x988] sm:$0xff]
    %v5369 = vld [vmem:[#allocation2 + $0x990] sm:$0xff]
    %v5370 = vld [vmem:[#allocation2 + $0x998] sm:$0xff]
    %v5371 = vld [vmem:[#allocation2 + $0x9a0] sm:$0xff]
    %v5372 = vld [vmem:[#allocation2 + $0x9a8] sm:$0xff]
    %v5373 = vld [vmem:[#allocation2 + $0x9b0] sm:$0xff]
    %v5374 = vld [vmem:[#allocation2 + $0x9b8] sm:$0xff]
    %v5375 = vld [vmem:[#allocation2 + $0x9c0] sm:$0xff]
    %v5376 = vld [vmem:[#allocation2 + $0x9c8] sm:$0xff]
    %v5377 = vld [vmem:[#allocation2 + $0x9d0] sm:$0xff]
    %v5378 = vld [vmem:[#allocation2 + $0x9d8] sm:$0xff]
    %v5379 = vld [vmem:[#allocation2 + $0x9e0] sm:$0xff]
    %v5380 = vld [vmem:[#allocation2 + $0x9e8] sm:$0xff]
    %v5381 = vld [vmem:[#allocation2 + $0x9f0] sm:$0xff]
    %v5382 = vld [vmem:[#allocation2 + $0x9f8] sm:$0xff]
    %v5383 = vld [vmem:[#allocation2 + $0xa00] sm:$0xff]
    %v5384 = vld [vmem:[#allocation2 + $0xa08] sm:$0xff]
    %v5385 = vld [vmem:[#allocation2 + $0xa10] sm:$0xff]
    %v5386 = vld [vmem:[#allocation2 + $0xa18] sm:$0xff]
    %v5387 = vld [vmem:[#allocation2 + $0xa20] sm:$0xff]
    %v5388 = vld [vmem:[#allocation2 + $0xa28] sm:$0xff]
    %v5389 = vld [vmem:[#allocation2 + $0xa30] sm:$0xff]
    %v5390 = vld [vmem:[#allocation2 + $0xa38] sm:$0xff]
    %v5391 = vld [vmem:[#allocation2 + $0xa40] sm:$0xff]
    %v5392 = vld [vmem:[#allocation2 + $0xa48] sm:$0xff]
    %v5393 = vld [vmem:[#allocation2 + $0xa50] sm:$0xff]
    %v5394 = vld [vmem:[#allocation2 + $0xa58] sm:$0xff]
    %v5395 = vld [vmem:[#allocation2 + $0xa60] sm:$0xff]
    %v5396 = vld [vmem:[#allocation2 + $0xa68] sm:$0xff]
    %v5397 = vld [vmem:[#allocation2 + $0xa70] sm:$0xff]
    %v5398 = vld [vmem:[#allocation2 + $0xa78] sm:$0xff]
    %s5399 = scalar_lea.vmem [#allocation4], 3
    %v5400 = vld [vmem:[%s5399] ss:$8 sm:$0x3]
    %v5402 = vlaneseq
    %v5403 = vshrl.u32 %v5402, 7
    %v5404 = vsub.s32 0, %v5403
    %v5405 = vrot.slane %v5400, %v5404
    %v5406 = vlaneseq
    %v5407 = vshrl.u32 %v5406, 7
    %v5408 = vsub.s32 1, %v5407
    %v5409 = vrot.slane %v5400, %v5408
    %v5508 = vunpack.c.l.b16 %v5303
    %v5509 = vunpack.c.h.b16 %v5303
    %v5510 = vunpack.c.l.b16 %v5304
    %v5511 = vunpack.c.h.b16 %v5304
    %v5512 = vunpack.c.l.b16 %v5305
    %v5513 = vunpack.c.h.b16 %v5305
    %v5514 = vunpack.c.l.b16 %v5306
    %v5515 = vunpack.c.h.b16 %v5306
    %v5516 = vunpack.c.l.b16 %v5307
    %v5517 = vunpack.c.h.b16 %v5307
    %v5518 = vunpack.c.l.b16 %v5308
    %v5519 = vunpack.c.h.b16 %v5308
    %v5520 = vunpack.c.l.b16 %v5309
    %v5521 = vunpack.c.h.b16 %v5309
    %v5522 = vunpack.c.l.b16 %v5310
    %v5523 = vunpack.c.h.b16 %v5310
    %v5524 = vunpack.c.l.b16 %v5311
    %v5525 = vunpack.c.h.b16 %v5311
    %v5526 = vunpack.c.l.b16 %v5312
    %v5527 = vunpack.c.h.b16 %v5312
    %v5528 = vunpack.c.l.b16 %v5313
    %v5529 = vunpack.c.h.b16 %v5313
    %v5530 = vunpack.c.l.b16 %v5314
    %v5531 = vunpack.c.h.b16 %v5314
    %v5532 = vunpack.c.l.b16 %v5315
    %v5533 = vunpack.c.h.b16 %v5315
    %v5534 = vunpack.c.l.b16 %v5316
    %v5535 = vunpack.c.h.b16 %v5316
    %v5536 = vunpack.c.l.b16 %v5317
    %v5537 = vunpack.c.h.b16 %v5317
    %v5538 = vunpack.c.l.b16 %v5318
    %v5539 = vunpack.c.h.b16 %v5318
    %v5540 = vunpack.c.l.b16 %v5319
    %v5541 = vunpack.c.h.b16 %v5319
    %v5542 = vunpack.c.l.b16 %v5320
    %v5543 = vunpack.c.h.b16 %v5320
    %v5544 = vunpack.c.l.b16 %v5321
    %v5545 = vunpack.c.h.b16 %v5321
    %v5546 = vunpack.c.l.b16 %v5322
    %v5547 = vunpack.c.h.b16 %v5322
    %v5548 = vunpack.c.l.b16 %v5323
    %v5549 = vunpack.c.h.b16 %v5323
    %v5550 = vunpack.c.l.b16 %v5324
    %v5551 = vunpack.c.h.b16 %v5324
    %v5552 = vunpack.c.l.b16 %v5325
    %v5553 = vunpack.c.h.b16 %v5325
    %v5554 = vunpack.c.l.b16 %v5326
    %v5555 = vunpack.c.h.b16 %v5326
    %v5556 = vunpack.c.l.b16 %v5327
    %v5557 = vunpack.c.h.b16 %v5327
    %v5558 = vunpack.c.l.b16 %v5328
    %v5559 = vunpack.c.h.b16 %v5328
    %v5560 = vunpack.c.l.b16 %v5329
    %v5561 = vunpack.c.h.b16 %v5329
    %v5562 = vunpack.c.l.b16 %v5330
    %v5563 = vunpack.c.h.b16 %v5330
    %v5564 = vunpack.c.l.b16 %v5331
    %v5565 = vunpack.c.h.b16 %v5331
    %v5566 = vunpack.c.l.b16 %v5332
    %v5567 = vunpack.c.h.b16 %v5332
    %v5568 = vunpack.c.l.b16 %v5333
    %v5569 = vunpack.c.h.b16 %v5333
    %v5570 = vunpack.c.l.b16 %v5334
    %v5571 = vunpack.c.h.b16 %v5334
    %v5572 = vunpack.c.l.b16 %v5335
    %v5573 = vunpack.c.h.b16 %v5335
    %v5574 = vunpack.c.l.b16 %v5336
    %v5575 = vunpack.c.h.b16 %v5336
    %v5576 = vunpack.c.l.b16 %v5337
    %v5577 = vunpack.c.h.b16 %v5337
    %v5578 = vunpack.c.l.b16 %v5338
    %v5579 = vunpack.c.h.b16 %v5338
    %v5580 = vunpack.c.l.b16 %v5339
    %v5581 = vunpack.c.h.b16 %v5339
    %v5582 = vunpack.c.l.b16 %v5340
    %v5583 = vunpack.c.h.b16 %v5340
    %v5584 = vunpack.c.l.b16 %v5341
    %v5585 = vunpack.c.h.b16 %v5341
    %v5586 = vunpack.c.l.b16 %v5342
    %v5587 = vunpack.c.h.b16 %v5342
    %v5588 = vunpack.c.l.b16 %v5343
    %v5589 = vunpack.c.h.b16 %v5343
    %v5590 = vunpack.c.l.b16 %v5344
    %v5591 = vunpack.c.h.b16 %v5344
    %v5592 = vunpack.c.l.b16 %v5345
    %v5593 = vunpack.c.h.b16 %v5345
    %v5594 = vunpack.c.l.b16 %v5346
    %v5595 = vunpack.c.h.b16 %v5346
    %v5596 = vunpack.c.l.b16 %v5347
    %v5597 = vunpack.c.h.b16 %v5347
    %v5598 = vunpack.c.l.b16 %v5348
    %v5599 = vunpack.c.h.b16 %v5348
    %v5600 = vunpack.c.l.b16 %v5349
    %v5601 = vunpack.c.h.b16 %v5349
    %v5602 = vunpack.c.l.b16 %v5350
    %v5603 = vunpack.c.h.b16 %v5350
    %v5604 = vunpack.c.l.b16 %v5351
    %v5605 = vunpack.c.h.b16 %v5351
    %v5606 = vunpack.c.l.b16 %v5352
    %v5607 = vunpack.c.h.b16 %v5352
    %v5608 = vunpack.c.l.b16 %v5353
    %v5609 = vunpack.c.h.b16 %v5353
    %v5610 = vunpack.c.l.b16 %v5354
    %v5611 = vunpack.c.h.b16 %v5354
    %v5612 = vunpack.c.l.b16 %v5355
    %v5613 = vunpack.c.h.b16 %v5355
    %v5614 = vunpack.c.l.b16 %v5356
    %v5615 = vunpack.c.h.b16 %v5356
    %v5616 = vunpack.c.l.b16 %v5357
    %v5617 = vunpack.c.h.b16 %v5357
    %v5618 = vunpack.c.l.b16 %v5358
    %v5619 = vunpack.c.h.b16 %v5358
    %v5620 = vunpack.c.l.b16 %v5359
    %v5621 = vunpack.c.h.b16 %v5359
    %v5622 = vunpack.c.l.b16 %v5360
    %v5623 = vunpack.c.h.b16 %v5360
    %v5624 = vunpack.c.l.b16 %v5361
    %v5625 = vunpack.c.h.b16 %v5361
    %v5626 = vunpack.c.l.b16 %v5362
    %v5627 = vunpack.c.h.b16 %v5362
    %v5628 = vunpack.c.l.b16 %v5363
    %v5629 = vunpack.c.h.b16 %v5363
    %v5630 = vunpack.c.l.b16 %v5364
    %v5631 = vunpack.c.h.b16 %v5364
    %v5632 = vunpack.c.l.b16 %v5365
    %v5633 = vunpack.c.h.b16 %v5365
    %v5634 = vunpack.c.l.b16 %v5366
    %v5635 = vunpack.c.h.b16 %v5366
    %v5636 = vunpack.c.l.b16 %v5367
    %v5637 = vunpack.c.h.b16 %v5367
    %v5638 = vunpack.c.l.b16 %v5368
    %v5639 = vunpack.c.h.b16 %v5368
    %v5640 = vunpack.c.l.b16 %v5369
    %v5641 = vunpack.c.h.b16 %v5369
    %v5642 = vunpack.c.l.b16 %v5370
    %v5643 = vunpack.c.h.b16 %v5370
    %v5644 = vunpack.c.l.b16 %v5371
    %v5645 = vunpack.c.h.b16 %v5371
    %v5646 = vunpack.c.l.b16 %v5372
    %v5647 = vunpack.c.h.b16 %v5372
    %v5648 = vunpack.c.l.b16 %v5373
    %v5649 = vunpack.c.h.b16 %v5373
    %v5650 = vunpack.c.l.b16 %v5374
    %v5651 = vunpack.c.h.b16 %v5374
    %v5652 = vunpack.c.l.b16 %v5375
    %v5653 = vunpack.c.h.b16 %v5375
    %v5654 = vunpack.c.l.b16 %v5376
    %v5655 = vunpack.c.h.b16 %v5376
    %v5656 = vunpack.c.l.b16 %v5377
    %v5657 = vunpack.c.h.b16 %v5377
    %v5658 = vunpack.c.l.b16 %v5378
    %v5659 = vunpack.c.h.b16 %v5378
    %v5660 = vunpack.c.l.b16 %v5379
    %v5661 = vunpack.c.h.b16 %v5379
    %v5662 = vunpack.c.l.b16 %v5380
    %v5663 = vunpack.c.h.b16 %v5380
    %v5664 = vunpack.c.l.b16 %v5381
    %v5665 = vunpack.c.h.b16 %v5381
    %v5666 = vunpack.c.l.b16 %v5382
    %v5667 = vunpack.c.h.b16 %v5382
    %v5668 = vunpack.c.l.b16 %v5383
    %v5669 = vunpack.c.h.b16 %v5383
    %v5670 = vunpack.c.l.b16 %v5384
    %v5671 = vunpack.c.h.b16 %v5384
    %v5672 = vunpack.c.l.b16 %v5385
    %v5673 = vunpack.c.h.b16 %v5385
    %v5674 = vunpack.c.l.b16 %v5386
    %v5675 = vunpack.c.h.b16 %v5386
    %v5676 = vunpack.c.l.b16 %v5387
    %v5677 = vunpack.c.h.b16 %v5387
    %v5678 = vunpack.c.l.b16 %v5388
    %v5679 = vunpack.c.h.b16 %v5388
    %v5680 = vunpack.c.l.b16 %v5389
    %v5681 = vunpack.c.h.b16 %v5389
    %v5682 = vunpack.c.l.b16 %v5390
    %v5683 = vunpack.c.h.b16 %v5390
    %v5684 = vunpack.c.l.b16 %v5391
    %v5685 = vunpack.c.h.b16 %v5391
    %v5686 = vunpack.c.l.b16 %v5392
    %v5687 = vunpack.c.h.b16 %v5392
    %v5688 = vunpack.c.l.b16 %v5393
    %v5689 = vunpack.c.h.b16 %v5393
    %v5690 = vunpack.c.l.b16 %v5394
    %v5691 = vunpack.c.h.b16 %v5394
    %v5692 = vunpack.c.l.b16 %v5395
    %v5693 = vunpack.c.h.b16 %v5395
    %v5694 = vunpack.c.l.b16 %v5396
    %v5695 = vunpack.c.h.b16 %v5396
    %v5696 = vunpack.c.l.b16 %v5397
    %v5697 = vunpack.c.h.b16 %v5397
    %v5698 = vunpack.c.l.b16 %v5398
    %v5699 = vunpack.c.h.b16 %v5398
    %v5700 = vpack.c.b16 %v5510, %v5508
    %v5701 = vpack.c.b16 %v5511, %v5509
    %v5702 = vpack.c.b16 %v5514, %v5512
    %v5703 = vpack.c.b16 %v5515, %v5513
    %v5704 = vpack.c.b16 %v5518, %v5516
    %v5705 = vpack.c.b16 %v5519, %v5517
    %v5706 = vpack.c.b16 %v5522, %v5520
    %v5707 = vpack.c.b16 %v5523, %v5521
    %v5708 = vpack.c.b16 %v5526, %v5524
    %v5709 = vpack.c.b16 %v5527, %v5525
    %v5710 = vpack.c.b16 %v5530, %v5528
    %v5711 = vpack.c.b16 %v5531, %v5529
    %v5712 = vpack.c.b16 %v5534, %v5532
    %v5713 = vpack.c.b16 %v5535, %v5533
    %v5714 = vpack.c.b16 %v5538, %v5536
    %v5715 = vpack.c.b16 %v5539, %v5537
    %v5716 = vpack.c.b16 %v5542, %v5540
    %v5717 = vpack.c.b16 %v5543, %v5541
    %v5718 = vpack.c.b16 %v5546, %v5544
    %v5719 = vpack.c.b16 %v5547, %v5545
    %v5720 = vpack.c.b16 %v5550, %v5548
    %v5721 = vpack.c.b16 %v5551, %v5549
    %v5722 = vpack.c.b16 %v5554, %v5552
    %v5723 = vpack.c.b16 %v5555, %v5553
    %v5724 = vpack.c.b16 %v5558, %v5556
    %v5725 = vpack.c.b16 %v5559, %v5557
    %v5726 = vpack.c.b16 %v5562, %v5560
    %v5727 = vpack.c.b16 %v5563, %v5561
    %v5728 = vpack.c.b16 %v5566, %v5564
    %v5729 = vpack.c.b16 %v5567, %v5565
    %v5730 = vpack.c.b16 %v5570, %v5568
    %v5731 = vpack.c.b16 %v5571, %v5569
    %v5732 = vpack.c.b16 %v5574, %v5572
    %v5733 = vpack.c.b16 %v5575, %v5573
    %v5734 = vpack.c.b16 %v5578, %v5576
    %v5735 = vpack.c.b16 %v5579, %v5577
    %v5736 = vpack.c.b16 %v5582, %v5580
    %v5737 = vpack.c.b16 %v5583, %v5581
    %v5738 = vpack.c.b16 %v5586, %v5584
    %v5739 = vpack.c.b16 %v5587, %v5585
    %v5740 = vpack.c.b16 %v5590, %v5588
    %v5741 = vpack.c.b16 %v5591, %v5589
    %v5742 = vpack.c.b16 %v5594, %v5592
    %v5743 = vpack.c.b16 %v5595, %v5593
    %v5744 = vpack.c.b16 %v5598, %v5596
    %v5745 = vpack.c.b16 %v5599, %v5597
    %v5746 = vpack.c.b16 %v5602, %v5600
    %v5747 = vpack.c.b16 %v5603, %v5601
    %v5748 = vpack.c.b16 %v5606, %v5604
    %v5749 = vpack.c.b16 %v5607, %v5605
    %v5750 = vpack.c.b16 %v5610, %v5608
    %v5751 = vpack.c.b16 %v5611, %v5609
    %v5752 = vpack.c.b16 %v5614, %v5612
    %v5753 = vpack.c.b16 %v5615, %v5613
    %v5754 = vpack.c.b16 %v5618, %v5616
    %v5755 = vpack.c.b16 %v5619, %v5617
    %v5756 = vpack.c.b16 %v5622, %v5620
    %v5757 = vpack.c.b16 %v5623, %v5621
    %v5758 = vpack.c.b16 %v5626, %v5624
    %v5759 = vpack.c.b16 %v5627, %v5625
    %v5760 = vpack.c.b16 %v5630, %v5628
    %v5761 = vpack.c.b16 %v5631, %v5629
    %v5762 = vpack.c.b16 %v5634, %v5632
    %v5763 = vpack.c.b16 %v5635, %v5633
    %v5764 = vpack.c.b16 %v5638, %v5636
    %v5765 = vpack.c.b16 %v5639, %v5637
    %v5766 = vpack.c.b16 %v5642, %v5640
    %v5767 = vpack.c.b16 %v5643, %v5641
    %v5768 = vpack.c.b16 %v5646, %v5644
    %v5769 = vpack.c.b16 %v5647, %v5645
    %v5770 = vpack.c.b16 %v5650, %v5648
    %v5771 = vpack.c.b16 %v5651, %v5649
    %v5772 = vpack.c.b16 %v5654, %v5652
    %v5773 = vpack.c.b16 %v5655, %v5653
    %v5774 = vpack.c.b16 %v5658, %v5656
    %v5775 = vpack.c.b16 %v5659, %v5657
    %v5776 = vpack.c.b16 %v5662, %v5660
    %v5777 = vpack.c.b16 %v5663, %v5661
    %v5778 = vpack.c.b16 %v5666, %v5664
    %v5779 = vpack.c.b16 %v5667, %v5665
    %v5780 = vpack.c.b16 %v5670, %v5668
    %v5781 = vpack.c.b16 %v5671, %v5669
    %v5782 = vpack.c.b16 %v5674, %v5672
    %v5783 = vpack.c.b16 %v5675, %v5673
    %v5784 = vpack.c.b16 %v5678, %v5676
    %v5785 = vpack.c.b16 %v5679, %v5677
    %v5786 = vpack.c.b16 %v5682, %v5680
    %v5787 = vpack.c.b16 %v5683, %v5681
    %v5788 = vpack.c.b16 %v5686, %v5684
    %v5789 = vpack.c.b16 %v5687, %v5685
    %v5790 = vpack.c.b16 %v5690, %v5688
    %v5791 = vpack.c.b16 %v5691, %v5689
    %v5792 = vpack.c.b16 %v5694, %v5692
    %v5793 = vpack.c.b16 %v5695, %v5693
    %v5794 = vpack.c.b16 %v5698, %v5696
    %v5795 = vpack.c.b16 %v5699, %v5697
    %5892 = vmatprep.subr.bf16.mxu0 %v5715
    %5893 = vmatpush1.bf16.msra.mxu0 %v5714
    %5894 = vmatprep.subr.bf16.mxu0 %v5713
    %5895 = vmatpush1.bf16.msra.mxu0 %v5712
    %5896 = vmatprep.subr.bf16.mxu0 %v5711
    %5897 = vmatpush1.bf16.msra.mxu0 %v5710
    %5898 = vmatprep.subr.bf16.mxu0 %v5709
    %5899 = vmatpush1.bf16.msra.mxu0 %v5708
    %5900 = vmatprep.subr.bf16.mxu0 %v5707
    %5901 = vmatpush1.bf16.msra.mxu0 %v5706
    %5902 = vmatprep.subr.bf16.mxu0 %v5705
    %5903 = vmatpush1.bf16.msra.mxu0 %v5704
    %5904 = vmatprep.subr.bf16.mxu0 %v5703
    %5905 = vmatpush1.bf16.msra.mxu0 %v5702
    %5906 = vmatprep.subr.bf16.mxu0 %v5701
    %5907 = vmatpush1.bf16.msra.mxu0 %v5700
    %5908 = vmatprep.subr.bf16.mxu0 %v5731
    %5909 = vmatpush2.bf16.msra.mxu0 %v5730
    %5910 = vmatprep.subr.bf16.mxu0 %v5729
    %5911 = vmatpush2.bf16.msra.mxu0 %v5728
    %5912 = vmatprep.subr.bf16.mxu0 %v5727
    %5913 = vmatpush2.bf16.msra.mxu0 %v5726
    %5914 = vmatprep.subr.bf16.mxu0 %v5725
    %5915 = vmatpush2.bf16.msra.mxu0 %v5724
    %5916 = vmatprep.subr.bf16.mxu0 %v5723
    %5917 = vmatpush2.bf16.msra.mxu0 %v5722
    %5918 = vmatprep.subr.bf16.mxu0 %v5721
    %5919 = vmatpush2.bf16.msra.mxu0 %v5720
    %5920 = vmatprep.subr.bf16.mxu0 %v5719
    %5921 = vmatpush2.bf16.msra.mxu0 %v5718
    %5922 = vmatprep.subr.bf16.mxu0 %v5717
    %5923 = vmatpush2.bf16.msra.mxu0 %v5716
    %5924 = vmatprep.mubr.bf16.mxu0 0
    %5925 = vmatmul.mubr.bf16.gmra.mxu0 0
    %v5926 = vpop.f32.mrf.mxu0
    %v5927 = vadd.f32 %v5405, %v5926
    %v5928 = vpop.f32.mrf.mxu0
    %v5929 = vadd.f32 %v5409, %v5928
    %v5930 = vpop.f32.mrf.mxu0
    %v5931 = vadd.f32 %v5405, %v5930
    %v5932 = vpop.f32.mrf.mxu0
    %v5933 = vadd.f32 %v5409, %v5932
    %5934 = vmatprep.mubr.bf16.mxu0 0
    %5935 = vmatmul.mubr.bf16.gmra.mxu0 0
    %v5936 = vpop.f32.mrf.mxu0
    %v5937 = vadd.f32 %v5405, %v5936
    %v5938 = vpop.f32.mrf.mxu0
    %v5939 = vadd.f32 %v5409, %v5938
    %v5940 = vpop.f32.mrf.mxu0
    %v5941 = vadd.f32 %v5405, %v5940
    %v5942 = vpop.f32.mrf.mxu0
    %v5943 = vadd.f32 %v5409, %v5942
    %5944 = vmatprep.mubr.bf16.mxu0 %v5244
    %5945 = vmatmul.mubr.bf16.gmra.mxu0 %v5243
    %v5946 = vpop.f32.mrf.mxu0
    %v5947 = vadd.f32 %v5405, %v5946
    %v5948 = vpop.f32.mrf.mxu0
    %v5949 = vadd.f32 %v5409, %v5948
    %v5950 = vpop.f32.mrf.mxu0
    %v5951 = vadd.f32 %v5405, %v5950
    %v5952 = vpop.f32.mrf.mxu0
    %v5953 = vadd.f32 %v5409, %v5952
    %5954 = vmatprep.mubr.bf16.mxu0 %v5246
    %5955 = vmatmul.mubr.bf16.gmra.mxu0 %v5245
    %v5956 = vpop.f32.mrf.mxu0
    %v5957 = vadd.f32 %v5405, %v5956
    %v5958 = vpop.f32.mrf.mxu0
    %v5959 = vadd.f32 %v5409, %v5958
    %v5960 = vpop.f32.mrf.mxu0
    %v5961 = vadd.f32 %v5405, %v5960
    %v5962 = vpop.f32.mrf.mxu0
    %v5963 = vadd.f32 %v5409, %v5962
    %5964 = vmatprep.mubr.bf16.mxu0 %v5252
    %5965 = vmatmul.mubr.bf16.gmra.mxu0 %v5251
    %v5966 = vpop.f32.mrf.mxu0
    %v5967 = vadd.f32 %v5405, %v5966
    %v5968 = vpop.f32.mrf.mxu0
    %v5969 = vadd.f32 %v5409, %v5968
    %v5970 = vpop.f32.mrf.mxu0
    %v5971 = vadd.f32 %v5405, %v5970
    %v5972 = vpop.f32.mrf.mxu0
    %v5973 = vadd.f32 %v5409, %v5972
    %5974 = vmatprep.mubr.bf16.mxu0 %v5254
    %5975 = vmatmul.mubr.bf16.gmra.mxu0 %v5253
    %v5976 = vpop.f32.mrf.mxu0
    %v5977 = vadd.f32 %v5405, %v5976
    %v5978 = vpop.f32.mrf.mxu0
    %v5979 = vadd.f32 %v5409, %v5978
    %v5980 = vpop.f32.mrf.mxu0
    %v5981 = vadd.f32 %v5405, %v5980
    %v5982 = vpop.f32.mrf.mxu0
    %v5983 = vadd.f32 %v5409, %v5982
    %5984 = vmatprep.mubr.bf16.mxu0 %v5260
    %5985 = vmatmul.mubr.bf16.gmra.mxu0 %v5259
    %v5986 = vpop.f32.mrf.mxu0
    %v5987 = vadd.f32 %v5405, %v5986
    %v5988 = vpop.f32.mrf.mxu0
    %v5989 = vadd.f32 %v5409, %v5988
    %v5990 = vpop.f32.mrf.mxu0
    %v5991 = vadd.f32 %v5405, %v5990
    %v5992 = vpop.f32.mrf.mxu0
    %v5993 = vadd.f32 %v5409, %v5992
    %5994 = vmatprep.mubr.bf16.mxu0 %v5262
    %5995 = vmatmul.mubr.bf16.gmra.mxu0 %v5261
    %v5996 = vpop.f32.mrf.mxu0
    %v5997 = vadd.f32 %v5405, %v5996
    %v5998 = vpop.f32.mrf.mxu0
    %v5999 = vadd.f32 %v5409, %v5998
    %v6000 = vpop.f32.mrf.mxu0
    %v6001 = vadd.f32 %v5405, %v6000
    %v6002 = vpop.f32.mrf.mxu0
    %v6003 = vadd.f32 %v5409, %v6002
    %6004 = vmatprep.mubr.bf16.mxu0 %v5268
    %6005 = vmatmul.mubr.bf16.gmra.mxu0 %v5267
    %v6006 = vpop.f32.mrf.mxu0
    %v6007 = vadd.f32 %v5405, %v6006
    %v6008 = vpop.f32.mrf.mxu0
    %v6009 = vadd.f32 %v5409, %v6008
    %v6010 = vpop.f32.mrf.mxu0
    %v6011 = vadd.f32 %v5405, %v6010
    %v6012 = vpop.f32.mrf.mxu0
    %v6013 = vadd.f32 %v5409, %v6012
    %6014 = vmatprep.mubr.bf16.mxu0 %v5270
    %6015 = vmatmul.mubr.bf16.gmra.mxu0 %v5269
    %v6016 = vpop.f32.mrf.mxu0
    %v6017 = vadd.f32 %v5405, %v6016
    %v6018 = vpop.f32.mrf.mxu0
    %v6019 = vadd.f32 %v5409, %v6018
    %v6020 = vpop.f32.mrf.mxu0
    %v6021 = vadd.f32 %v5405, %v6020
    %v6022 = vpop.f32.mrf.mxu0
    %v6023 = vadd.f32 %v5409, %v6022
    %6024 = vmatprep.mubr.bf16.mxu0 %v5276
    %6025 = vmatmul.mubr.bf16.gmra.mxu0 %v5275
    %v6026 = vpop.f32.mrf.mxu0
    %v6027 = vadd.f32 %v5405, %v6026
    %v6028 = vpop.f32.mrf.mxu0
    %v6029 = vadd.f32 %v5409, %v6028
    %v6030 = vpop.f32.mrf.mxu0
    %v6031 = vadd.f32 %v5405, %v6030
    %v6032 = vpop.f32.mrf.mxu0
    %v6033 = vadd.f32 %v5409, %v6032
    %6034 = vmatprep.mubr.bf16.mxu0 %v5278
    %6035 = vmatmul.mubr.bf16.gmra.mxu0 %v5277
    %v6036 = vpop.f32.mrf.mxu0
    %v6037 = vadd.f32 %v5405, %v6036
    %v6038 = vpop.f32.mrf.mxu0
    %v6039 = vadd.f32 %v5409, %v6038
    %v6040 = vpop.f32.mrf.mxu0
    %v6041 = vadd.f32 %v5405, %v6040
    %v6042 = vpop.f32.mrf.mxu0
    %v6043 = vadd.f32 %v5409, %v6042
    %6044 = vmatprep.mubr.bf16.mxu0 %v5284
    %6045 = vmatmul.mubr.bf16.gmra.mxu0 %v5283
    %v6046 = vpop.f32.mrf.mxu0
    %v6047 = vadd.f32 %v5405, %v6046
    %v6048 = vpop.f32.mrf.mxu0
    %v6049 = vadd.f32 %v5409, %v6048
    %v6050 = vpop.f32.mrf.mxu0
    %v6051 = vadd.f32 %v5405, %v6050
    %v6052 = vpop.f32.mrf.mxu0
    %v6053 = vadd.f32 %v5409, %v6052
    %6054 = vmatprep.mubr.bf16.mxu0 %v5286
    %6055 = vmatmul.mubr.bf16.gmra.mxu0 %v5285
    %v6056 = vpop.f32.mrf.mxu0
    %v6057 = vadd.f32 %v5405, %v6056
    %v6058 = vpop.f32.mrf.mxu0
    %v6059 = vadd.f32 %v5409, %v6058
    %v6060 = vpop.f32.mrf.mxu0
    %v6061 = vadd.f32 %v5405, %v6060
    %v6062 = vpop.f32.mrf.mxu0
    %v6063 = vadd.f32 %v5409, %v6062
    %6064 = vmatprep.mubr.bf16.mxu0 %v5292
    %6065 = vmatmul.mubr.bf16.gmra.mxu0 %v5291
    %v6066 = vpop.f32.mrf.mxu0
    %v6067 = vadd.f32 %v5405, %v6066
    %v6068 = vpop.f32.mrf.mxu0
    %v6069 = vadd.f32 %v5409, %v6068
    %v6070 = vpop.f32.mrf.mxu0
    %v6071 = vadd.f32 %v5405, %v6070
    %v6072 = vpop.f32.mrf.mxu0
    %v6073 = vadd.f32 %v5409, %v6072
    %6074 = vmatprep.mubr.bf16.mxu0 %v5294
    %6075 = vmatmul.mubr.bf16.gmra.mxu0 %v5293
    %v6076 = vpop.f32.mrf.mxu0
    %v6077 = vadd.f32 %v5405, %v6076
    %v6078 = vpop.f32.mrf.mxu0
    %v6079 = vadd.f32 %v5409, %v6078
    %v6080 = vpop.f32.mrf.mxu0
    %v6081 = vadd.f32 %v5405, %v6080
    %v6082 = vpop.f32.mrf.mxu0
    %v6083 = vadd.f32 %v5409, %v6082
    %6084 = vdwg.mxu0
    %6085 = vmatprep.subr.bf16.mxu0 %v5747
    %6086 = vmatpush1.bf16.msra.mxu0 %v5746
    %6087 = vmatprep.subr.bf16.mxu0 %v5745
    %6088 = vmatpush1.bf16.msra.mxu0 %v5744
    %6089 = vmatprep.subr.bf16.mxu0 %v5743
    %6090 = vmatpush1.bf16.msra.mxu0 %v5742
    %6091 = vmatprep.subr.bf16.mxu0 %v5741
    %6092 = vmatpush1.bf16.msra.mxu0 %v5740
    %6093 = vmatprep.subr.bf16.mxu0 %v5739
    %6094 = vmatpush1.bf16.msra.mxu0 %v5738
    %6095 = vmatprep.subr.bf16.mxu0 %v5737
    %6096 = vmatpush1.bf16.msra.mxu0 %v5736
    %6097 = vmatprep.subr.bf16.mxu0 %v5735
    %6098 = vmatpush1.bf16.msra.mxu0 %v5734
    %6099 = vmatprep.subr.bf16.mxu0 %v5733
    %6100 = vmatpush1.bf16.msra.mxu0 %v5732
    %6101 = vmatprep.subr.bf16.mxu0 %v5763
    %6102 = vmatpush2.bf16.msra.mxu0 %v5762
    %6103 = vmatprep.subr.bf16.mxu0 %v5761
    %6104 = vmatpush2.bf16.msra.mxu0 %v5760
    %6105 = vmatprep.subr.bf16.mxu0 %v5759
    %6106 = vmatpush2.bf16.msra.mxu0 %v5758
    %6107 = vmatprep.subr.bf16.mxu0 %v5757
    %6108 = vmatpush2.bf16.msra.mxu0 %v5756
    %6109 = vmatprep.subr.bf16.mxu0 %v5755
    %6110 = vmatpush2.bf16.msra.mxu0 %v5754
    %6111 = vmatprep.subr.bf16.mxu0 %v5753
    %6112 = vmatpush2.bf16.msra.mxu0 %v5752
    %6113 = vmatprep.subr.bf16.mxu0 %v5751
    %6114 = vmatpush2.bf16.msra.mxu0 %v5750
    %6115 = vmatprep.subr.bf16.mxu0 %v5749
    %6116 = vmatpush2.bf16.msra.mxu0 %v5748
    %6117 = vmatprep.mubr.bf16.mxu0 %v5240
    %6118 = vmatmul.mubr.bf16.gmra.mxu0 %v5239
    %v6119 = vpop.f32.mrf.mxu0
    %v6120 = vadd.f32 %v5927, %v6119
    %v6121 = vpop.f32.mrf.mxu0
    %v6122 = vadd.f32 %v5929, %v6121
    %v6123 = vpop.f32.mrf.mxu0
    %v6124 = vadd.f32 %v5931, %v6123
    %v6125 = vpop.f32.mrf.mxu0
    %v6126 = vadd.f32 %v5933, %v6125
    %6127 = vmatprep.mubr.bf16.mxu0 %v5242
    %6128 = vmatmul.mubr.bf16.gmra.mxu0 %v5241
    %v6129 = vpop.f32.mrf.mxu0
    %v6130 = vadd.f32 %v5937, %v6129
    %v6131 = vpop.f32.mrf.mxu0
    %v6132 = vadd.f32 %v5939, %v6131
    %v6133 = vpop.f32.mrf.mxu0
    %v6134 = vadd.f32 %v5941, %v6133
    %v6135 = vpop.f32.mrf.mxu0
    %v6136 = vadd.f32 %v5943, %v6135
    %6137 = vmatprep.mubr.bf16.mxu0 %v5248
    %6138 = vmatmul.mubr.bf16.gmra.mxu0 %v5247
    %v6139 = vpop.f32.mrf.mxu0
    %v6140 = vadd.f32 %v5947, %v6139
    %v6141 = vpop.f32.mrf.mxu0
    %v6142 = vadd.f32 %v5949, %v6141
    %v6143 = vpop.f32.mrf.mxu0
    %v6144 = vadd.f32 %v5951, %v6143
    %v6145 = vpop.f32.mrf.mxu0
    %v6146 = vadd.f32 %v5953, %v6145
    %6147 = vmatprep.mubr.bf16.mxu0 %v5250
    %6148 = vmatmul.mubr.bf16.gmra.mxu0 %v5249
    %v6149 = vpop.f32.mrf.mxu0
    %v6150 = vadd.f32 %v5957, %v6149
    %v6151 = vpop.f32.mrf.mxu0
    %v6152 = vadd.f32 %v5959, %v6151
    %v6153 = vpop.f32.mrf.mxu0
    %v6154 = vadd.f32 %v5961, %v6153
    %v6155 = vpop.f32.mrf.mxu0
    %v6156 = vadd.f32 %v5963, %v6155
    %6157 = vmatprep.mubr.bf16.mxu0 %v5256
    %6158 = vmatmul.mubr.bf16.gmra.mxu0 %v5255
    %v6159 = vpop.f32.mrf.mxu0
    %v6160 = vadd.f32 %v5967, %v6159
    %v6161 = vpop.f32.mrf.mxu0
    %v6162 = vadd.f32 %v5969, %v6161
    %v6163 = vpop.f32.mrf.mxu0
    %v6164 = vadd.f32 %v5971, %v6163
    %v6165 = vpop.f32.mrf.mxu0
    %v6166 = vadd.f32 %v5973, %v6165
    %6167 = vmatprep.mubr.bf16.mxu0 %v5258
    %6168 = vmatmul.mubr.bf16.gmra.mxu0 %v5257
    %v6169 = vpop.f32.mrf.mxu0
    %v6170 = vadd.f32 %v5977, %v6169
    %v6171 = vpop.f32.mrf.mxu0
    %v6172 = vadd.f32 %v5979, %v6171
    %v6173 = vpop.f32.mrf.mxu0
    %v6174 = vadd.f32 %v5981, %v6173
    %v6175 = vpop.f32.mrf.mxu0
    %v6176 = vadd.f32 %v5983, %v6175
    %6177 = vmatprep.mubr.bf16.mxu0 %v5264
    %6178 = vmatmul.mubr.bf16.gmra.mxu0 %v5263
    %v6179 = vpop.f32.mrf.mxu0
    %v6180 = vadd.f32 %v5987, %v6179
    %v6181 = vpop.f32.mrf.mxu0
    %v6182 = vadd.f32 %v5989, %v6181
    %v6183 = vpop.f32.mrf.mxu0
    %v6184 = vadd.f32 %v5991, %v6183
    %v6185 = vpop.f32.mrf.mxu0
    %v6186 = vadd.f32 %v5993, %v6185
    %6187 = vmatprep.mubr.bf16.mxu0 %v5266
    %6188 = vmatmul.mubr.bf16.gmra.mxu0 %v5265
    %v6189 = vpop.f32.mrf.mxu0
    %v6190 = vadd.f32 %v5997, %v6189
    %v6191 = vpop.f32.mrf.mxu0
    %v6192 = vadd.f32 %v5999, %v6191
    %v6193 = vpop.f32.mrf.mxu0
    %v6194 = vadd.f32 %v6001, %v6193
    %v6195 = vpop.f32.mrf.mxu0
    %v6196 = vadd.f32 %v6003, %v6195
    %6197 = vmatprep.mubr.bf16.mxu0 %v5272
    %6198 = vmatmul.mubr.bf16.gmra.mxu0 %v5271
    %v6199 = vpop.f32.mrf.mxu0
    %v6200 = vadd.f32 %v6007, %v6199
    %v6201 = vpop.f32.mrf.mxu0
    %v6202 = vadd.f32 %v6009, %v6201
    %v6203 = vpop.f32.mrf.mxu0
    %v6204 = vadd.f32 %v6011, %v6203
    %v6205 = vpop.f32.mrf.mxu0
    %v6206 = vadd.f32 %v6013, %v6205
    %6207 = vmatprep.mubr.bf16.mxu0 %v5274
    %6208 = vmatmul.mubr.bf16.gmra.mxu0 %v5273
    %v6209 = vpop.f32.mrf.mxu0
    %v6210 = vadd.f32 %v6017, %v6209
    %v6211 = vpop.f32.mrf.mxu0
    %v6212 = vadd.f32 %v6019, %v6211
    %v6213 = vpop.f32.mrf.mxu0
    %v6214 = vadd.f32 %v6021, %v6213
    %v6215 = vpop.f32.mrf.mxu0
    %v6216 = vadd.f32 %v6023, %v6215
    %6217 = vmatprep.mubr.bf16.mxu0 %v5280
    %6218 = vmatmul.mubr.bf16.gmra.mxu0 %v5279
    %v6219 = vpop.f32.mrf.mxu0
    %v6220 = vadd.f32 %v6027, %v6219
    %v6221 = vpop.f32.mrf.mxu0
    %v6222 = vadd.f32 %v6029, %v6221
    %v6223 = vpop.f32.mrf.mxu0
    %v6224 = vadd.f32 %v6031, %v6223
    %v6225 = vpop.f32.mrf.mxu0
    %v6226 = vadd.f32 %v6033, %v6225
    %6227 = vmatprep.mubr.bf16.mxu0 %v5282
    %6228 = vmatmul.mubr.bf16.gmra.mxu0 %v5281
    %v6229 = vpop.f32.mrf.mxu0
    %v6230 = vadd.f32 %v6037, %v6229
    %v6231 = vpop.f32.mrf.mxu0
    %v6232 = vadd.f32 %v6039, %v6231
    %v6233 = vpop.f32.mrf.mxu0
    %v6234 = vadd.f32 %v6041, %v6233
    %v6235 = vpop.f32.mrf.mxu0
    %v6236 = vadd.f32 %v6043, %v6235
    %6237 = vmatprep.mubr.bf16.mxu0 %v5288
    %6238 = vmatmul.mubr.bf16.gmra.mxu0 %v5287
    %v6239 = vpop.f32.mrf.mxu0
    %v6240 = vadd.f32 %v6047, %v6239
    %v6241 = vpop.f32.mrf.mxu0
    %v6242 = vadd.f32 %v6049, %v6241
    %v6243 = vpop.f32.mrf.mxu0
    %v6244 = vadd.f32 %v6051, %v6243
    %v6245 = vpop.f32.mrf.mxu0
    %v6246 = vadd.f32 %v6053, %v6245
    %6247 = vmatprep.mubr.bf16.mxu0 %v5290
    %6248 = vmatmul.mubr.bf16.gmra.mxu0 %v5289
    %v6249 = vpop.f32.mrf.mxu0
    %v6250 = vadd.f32 %v6057, %v6249
    %v6251 = vpop.f32.mrf.mxu0
    %v6252 = vadd.f32 %v6059, %v6251
    %v6253 = vpop.f32.mrf.mxu0
    %v6254 = vadd.f32 %v6061, %v6253
    %v6255 = vpop.f32.mrf.mxu0
    %v6256 = vadd.f32 %v6063, %v6255
    %6257 = vmatprep.mubr.bf16.mxu0 %v5296
    %6258 = vmatmul.mubr.bf16.gmra.mxu0 %v5295
    %v6259 = vpop.f32.mrf.mxu0
    %v6260 = vadd.f32 %v6067, %v6259
    %v6261 = vpop.f32.mrf.mxu0
    %v6262 = vadd.f32 %v6069, %v6261
    %v6263 = vpop.f32.mrf.mxu0
    %v6264 = vadd.f32 %v6071, %v6263
    %v6265 = vpop.f32.mrf.mxu0
    %v6266 = vadd.f32 %v6073, %v6265
    %6267 = vmatprep.mubr.bf16.mxu0 %v5298
    %6268 = vmatmul.mubr.bf16.gmra.mxu0 %v5297
    %v6269 = vpop.f32.mrf.mxu0
    %v6270 = vadd.f32 %v6077, %v6269
    %v6271 = vpop.f32.mrf.mxu0
    %v6272 = vadd.f32 %v6079, %v6271
    %v6273 = vpop.f32.mrf.mxu0
    %v6274 = vadd.f32 %v6081, %v6273
    %v6275 = vpop.f32.mrf.mxu0
    %v6276 = vadd.f32 %v6083, %v6275
    %6277 = vdwg.mxu0
    %6278 = vmatprep.subr.bf16.mxu0 %v5779
    %6279 = vmatpush1.bf16.msra.mxu0 %v5778
    %6280 = vmatprep.subr.bf16.mxu0 %v5777
    %6281 = vmatpush1.bf16.msra.mxu0 %v5776
    %6282 = vmatprep.subr.bf16.mxu0 %v5775
    %6283 = vmatpush1.bf16.msra.mxu0 %v5774
    %6284 = vmatprep.subr.bf16.mxu0 %v5773
    %6285 = vmatpush1.bf16.msra.mxu0 %v5772
    %6286 = vmatprep.subr.bf16.mxu0 %v5771
    %6287 = vmatpush1.bf16.msra.mxu0 %v5770
    %6288 = vmatprep.subr.bf16.mxu0 %v5769
    %6289 = vmatpush1.bf16.msra.mxu0 %v5768
    %6290 = vmatprep.subr.bf16.mxu0 %v5767
    %6291 = vmatpush1.bf16.msra.mxu0 %v5766
    %6292 = vmatprep.subr.bf16.mxu0 %v5765
    %6293 = vmatpush1.bf16.msra.mxu0 %v5764
    %6294 = vmatprep.subr.bf16.mxu0 %v5795
    %6295 = vmatpush2.bf16.msra.mxu0 %v5794
    %6296 = vmatprep.subr.bf16.mxu0 %v5793
    %6297 = vmatpush2.bf16.msra.mxu0 %v5792
    %6298 = vmatprep.subr.bf16.mxu0 %v5791
    %6299 = vmatpush2.bf16.msra.mxu0 %v5790
    %6300 = vmatprep.subr.bf16.mxu0 %v5789
    %6301 = vmatpush2.bf16.msra.mxu0 %v5788
    %6302 = vmatprep.subr.bf16.mxu0 %v5787
    %6303 = vmatpush2.bf16.msra.mxu0 %v5786
    %6304 = vmatprep.subr.bf16.mxu0 %v5785
    %6305 = vmatpush2.bf16.msra.mxu0 %v5784
    %6306 = vmatprep.subr.bf16.mxu0 %v5783
    %6307 = vmatpush2.bf16.msra.mxu0 %v5782
    %6308 = vmatprep.subr.bf16.mxu0 %v5781
    %6309 = vmatpush2.bf16.msra.mxu0 %v5780
    %6310 = vmatprep.mubr.bf16.mxu0 %v5244
    %6311 = vmatmul.mubr.bf16.gmra.mxu0 %v5243
    %v6312 = vpop.f32.mrf.mxu0
    %v6313 = vadd.f32 %v6120, %v6312
    %v6314 = vpop.f32.mrf.mxu0
    %v6315 = vadd.f32 %v6122, %v6314
    %v6316 = vpop.f32.mrf.mxu0
    %v6317 = vadd.f32 %v6124, %v6316
    %v6318 = vpop.f32.mrf.mxu0
    %v6319 = vadd.f32 %v6126, %v6318
    %6320 = vmatprep.mubr.bf16.mxu0 %v5246
    %6321 = vmatmul.mubr.bf16.gmra.mxu0 %v5245
    %v6322 = vpop.f32.mrf.mxu0
    %v6323 = vadd.f32 %v6130, %v6322
    %v6324 = vpop.f32.mrf.mxu0
    %v6325 = vadd.f32 %v6132, %v6324
    %v6326 = vpop.f32.mrf.mxu0
    %v6327 = vadd.f32 %v6134, %v6326
    %v6328 = vpop.f32.mrf.mxu0
    %v6329 = vadd.f32 %v6136, %v6328
    %6330 = vmatprep.mubr.bf16.mxu0 %v5252
    %6331 = vmatmul.mubr.bf16.gmra.mxu0 %v5251
    %v6332 = vpop.f32.mrf.mxu0
    %v6333 = vadd.f32 %v6140, %v6332
    %v6334 = vpop.f32.mrf.mxu0
    %v6335 = vadd.f32 %v6142, %v6334
    %v6336 = vpop.f32.mrf.mxu0
    %v6337 = vadd.f32 %v6144, %v6336
    %v6338 = vpop.f32.mrf.mxu0
    %v6339 = vadd.f32 %v6146, %v6338
    %6340 = vmatprep.mubr.bf16.mxu0 %v5254
    %6341 = vmatmul.mubr.bf16.gmra.mxu0 %v5253
    %v6342 = vpop.f32.mrf.mxu0
    %v6343 = vadd.f32 %v6150, %v6342
    %v6344 = vpop.f32.mrf.mxu0
    %v6345 = vadd.f32 %v6152, %v6344
    %v6346 = vpop.f32.mrf.mxu0
    %v6347 = vadd.f32 %v6154, %v6346
    %v6348 = vpop.f32.mrf.mxu0
    %v6349 = vadd.f32 %v6156, %v6348
    %6350 = vmatprep.mubr.bf16.mxu0 %v5260
    %6351 = vmatmul.mubr.bf16.gmra.mxu0 %v5259
    %v6352 = vpop.f32.mrf.mxu0
    %v6353 = vadd.f32 %v6160, %v6352
    %v6354 = vpop.f32.mrf.mxu0
    %v6355 = vadd.f32 %v6162, %v6354
    %v6356 = vpop.f32.mrf.mxu0
    %v6357 = vadd.f32 %v6164, %v6356
    %v6358 = vpop.f32.mrf.mxu0
    %v6359 = vadd.f32 %v6166, %v6358
    %6360 = vmatprep.mubr.bf16.mxu0 %v5262
    %6361 = vmatmul.mubr.bf16.gmra.mxu0 %v5261
    %v6362 = vpop.f32.mrf.mxu0
    %v6363 = vadd.f32 %v6170, %v6362
    %v6364 = vpop.f32.mrf.mxu0
    %v6365 = vadd.f32 %v6172, %v6364
    %v6366 = vpop.f32.mrf.mxu0
    %v6367 = vadd.f32 %v6174, %v6366
    %v6368 = vpop.f32.mrf.mxu0
    %v6369 = vadd.f32 %v6176, %v6368
    %6370 = vmatprep.mubr.bf16.mxu0 %v5268
    %6371 = vmatmul.mubr.bf16.gmra.mxu0 %v5267
    %v6372 = vpop.f32.mrf.mxu0
    %v6373 = vadd.f32 %v6180, %v6372
    %v6374 = vpop.f32.mrf.mxu0
    %v6375 = vadd.f32 %v6182, %v6374
    %v6376 = vpop.f32.mrf.mxu0
    %v6377 = vadd.f32 %v6184, %v6376
    %v6378 = vpop.f32.mrf.mxu0
    %v6379 = vadd.f32 %v6186, %v6378
    %6380 = vmatprep.mubr.bf16.mxu0 %v5270
    %6381 = vmatmul.mubr.bf16.gmra.mxu0 %v5269
    %v6382 = vpop.f32.mrf.mxu0
    %v6383 = vadd.f32 %v6190, %v6382
    %v6384 = vpop.f32.mrf.mxu0
    %v6385 = vadd.f32 %v6192, %v6384
    %v6386 = vpop.f32.mrf.mxu0
    %v6387 = vadd.f32 %v6194, %v6386
    %v6388 = vpop.f32.mrf.mxu0
    %v6389 = vadd.f32 %v6196, %v6388
    %6390 = vmatprep.mubr.bf16.mxu0 %v5276
    %6391 = vmatmul.mubr.bf16.gmra.mxu0 %v5275
    %v6392 = vpop.f32.mrf.mxu0
    %v6393 = vadd.f32 %v6200, %v6392
    %v6394 = vpop.f32.mrf.mxu0
    %v6395 = vadd.f32 %v6202, %v6394
    %v6396 = vpop.f32.mrf.mxu0
    %v6397 = vadd.f32 %v6204, %v6396
    %v6398 = vpop.f32.mrf.mxu0
    %v6399 = vadd.f32 %v6206, %v6398
    %6400 = vmatprep.mubr.bf16.mxu0 %v5278
    %6401 = vmatmul.mubr.bf16.gmra.mxu0 %v5277
    %v6402 = vpop.f32.mrf.mxu0
    %v6403 = vadd.f32 %v6210, %v6402
    %v6404 = vpop.f32.mrf.mxu0
    %v6405 = vadd.f32 %v6212, %v6404
    %v6406 = vpop.f32.mrf.mxu0
    %v6407 = vadd.f32 %v6214, %v6406
    %v6408 = vpop.f32.mrf.mxu0
    %v6409 = vadd.f32 %v6216, %v6408
    %6410 = vmatprep.mubr.bf16.mxu0 %v5284
    %6411 = vmatmul.mubr.bf16.gmra.mxu0 %v5283
    %v6412 = vpop.f32.mrf.mxu0
    %v6413 = vadd.f32 %v6220, %v6412
    %v6414 = vpop.f32.mrf.mxu0
    %v6415 = vadd.f32 %v6222, %v6414
    %v6416 = vpop.f32.mrf.mxu0
    %v6417 = vadd.f32 %v6224, %v6416
    %v6418 = vpop.f32.mrf.mxu0
    %v6419 = vadd.f32 %v6226, %v6418
    %6420 = vmatprep.mubr.bf16.mxu0 %v5286
    %6421 = vmatmul.mubr.bf16.gmra.mxu0 %v5285
    %v6422 = vpop.f32.mrf.mxu0
    %v6423 = vadd.f32 %v6230, %v6422
    %v6424 = vpop.f32.mrf.mxu0
    %v6425 = vadd.f32 %v6232, %v6424
    %v6426 = vpop.f32.mrf.mxu0
    %v6427 = vadd.f32 %v6234, %v6426
    %v6428 = vpop.f32.mrf.mxu0
    %v6429 = vadd.f32 %v6236, %v6428
    %6430 = vmatprep.mubr.bf16.mxu0 %v5292
    %6431 = vmatmul.mubr.bf16.gmra.mxu0 %v5291
    %v6432 = vpop.f32.mrf.mxu0
    %v6433 = vadd.f32 %v6240, %v6432
    %v6434 = vpop.f32.mrf.mxu0
    %v6435 = vadd.f32 %v6242, %v6434
    %v6436 = vpop.f32.mrf.mxu0
    %v6437 = vadd.f32 %v6244, %v6436
    %v6438 = vpop.f32.mrf.mxu0
    %v6439 = vadd.f32 %v6246, %v6438
    %6440 = vmatprep.mubr.bf16.mxu0 %v5294
    %6441 = vmatmul.mubr.bf16.gmra.mxu0 %v5293
    %v6442 = vpop.f32.mrf.mxu0
    %v6443 = vadd.f32 %v6250, %v6442
    %v6444 = vpop.f32.mrf.mxu0
    %v6445 = vadd.f32 %v6252, %v6444
    %v6446 = vpop.f32.mrf.mxu0
    %v6447 = vadd.f32 %v6254, %v6446
    %v6448 = vpop.f32.mrf.mxu0
    %v6449 = vadd.f32 %v6256, %v6448
    %6450 = vmatprep.mubr.bf16.mxu0 %v5300
    %6451 = vmatmul.mubr.bf16.gmra.mxu0 %v5299
    %v6452 = vpop.f32.mrf.mxu0
    %v6453 = vadd.f32 %v6260, %v6452
    %v6454 = vpop.f32.mrf.mxu0
    %v6455 = vadd.f32 %v6262, %v6454
    %v6456 = vpop.f32.mrf.mxu0
    %v6457 = vadd.f32 %v6264, %v6456
    %v6458 = vpop.f32.mrf.mxu0
    %v6459 = vadd.f32 %v6266, %v6458
    %6460 = vmatprep.mubr.bf16.mxu0 %v5302
    %6461 = vmatmul.mubr.bf16.gmra.mxu0 %v5301
    %v6462 = vpop.f32.mrf.mxu0
    %v6463 = vadd.f32 %v6270, %v6462
    %v6464 = vpop.f32.mrf.mxu0
    %v6465 = vadd.f32 %v6272, %v6464
    %v6466 = vpop.f32.mrf.mxu0
    %v6467 = vadd.f32 %v6274, %v6466
    %v6468 = vpop.f32.mrf.mxu0
    %v6469 = vadd.f32 %v6276, %v6468
    %6470 = vdwg.mxu0
    %v6471 = vmax.f32 %v6313, 0.0
    %v6472 = vmax.f32 %v6315, 0.0
    %v6473 = vmax.f32 %v6317, 0.0
    %v6474 = vmax.f32 %v6319, 0.0
    %v6475 = vmax.f32 %v6323, 0.0
    %v6476 = vmax.f32 %v6325, 0.0
    %v6477 = vmax.f32 %v6327, 0.0
    %v6478 = vmax.f32 %v6329, 0.0
    %v6479 = vmax.f32 %v6333, 0.0
    %v6480 = vmax.f32 %v6335, 0.0
    %v6481 = vmax.f32 %v6337, 0.0
    %v6482 = vmax.f32 %v6339, 0.0
    %v6483 = vmax.f32 %v6343, 0.0
    %v6484 = vmax.f32 %v6345, 0.0
    %v6485 = vmax.f32 %v6347, 0.0
    %v6486 = vmax.f32 %v6349, 0.0
    %v6487 = vmax.f32 %v6353, 0.0
    %v6488 = vmax.f32 %v6355, 0.0
    %v6489 = vmax.f32 %v6357, 0.0
    %v6490 = vmax.f32 %v6359, 0.0
    %v6491 = vmax.f32 %v6363, 0.0
    %v6492 = vmax.f32 %v6365, 0.0
    %v6493 = vmax.f32 %v6367, 0.0
    %v6494 = vmax.f32 %v6369, 0.0
    %v6495 = vmax.f32 %v6373, 0.0
    %v6496 = vmax.f32 %v6375, 0.0
    %v6497 = vmax.f32 %v6377, 0.0
    %v6498 = vmax.f32 %v6379, 0.0
    %v6499 = vmax.f32 %v6383, 0.0
    %v6500 = vmax.f32 %v6385, 0.0
    %v6501 = vmax.f32 %v6387, 0.0
    %v6502 = vmax.f32 %v6389, 0.0
    %v6503 = vmax.f32 %v6393, 0.0
    %v6504 = vmax.f32 %v6395, 0.0
    %v6505 = vmax.f32 %v6397, 0.0
    %v6506 = vmax.f32 %v6399, 0.0
    %v6507 = vmax.f32 %v6403, 0.0
    %v6508 = vmax.f32 %v6405, 0.0
    %v6509 = vmax.f32 %v6407, 0.0
    %v6510 = vmax.f32 %v6409, 0.0
    %v6511 = vmax.f32 %v6413, 0.0
    %v6512 = vmax.f32 %v6415, 0.0
    %v6513 = vmax.f32 %v6417, 0.0
    %v6514 = vmax.f32 %v6419, 0.0
    %v6515 = vmax.f32 %v6423, 0.0
    %v6516 = vmax.f32 %v6425, 0.0
    %v6517 = vmax.f32 %v6427, 0.0
    %v6518 = vmax.f32 %v6429, 0.0
    %v6519 = vmax.f32 %v6433, 0.0
    %v6520 = vmax.f32 %v6435, 0.0
    %v6521 = vmax.f32 %v6437, 0.0
    %v6522 = vmax.f32 %v6439, 0.0
    %v6523 = vmax.f32 %v6443, 0.0
    %v6524 = vmax.f32 %v6445, 0.0
    %v6525 = vmax.f32 %v6447, 0.0
    %v6526 = vmax.f32 %v6449, 0.0
    %v6527 = vmax.f32 %v6453, 0.0
    %v6528 = vmax.f32 %v6455, 0.0
    %v6529 = vmax.f32 %v6457, 0.0
    %v6530 = vmax.f32 %v6459, 0.0
    %v6531 = vmax.f32 %v6463, 0.0
    %v6532 = vmax.f32 %v6465, 0.0
    %v6533 = vmax.f32 %v6467, 0.0
    %v6534 = vmax.f32 %v6469, 0.0
    %v6535 = vpack.c.bf16 %v6473, %v6471
    %v6536 = vpack.c.bf16 %v6474, %v6472
    %v6537 = vpack.c.bf16 %v6477, %v6475
    %v6538 = vpack.c.bf16 %v6478, %v6476
    %v6539 = vpack.c.bf16 %v6481, %v6479
    %v6540 = vpack.c.bf16 %v6482, %v6480
    %v6541 = vpack.c.bf16 %v6485, %v6483
    %v6542 = vpack.c.bf16 %v6486, %v6484
    %v6543 = vpack.c.bf16 %v6489, %v6487
    %v6544 = vpack.c.bf16 %v6490, %v6488
    %v6545 = vpack.c.bf16 %v6493, %v6491
    %v6546 = vpack.c.bf16 %v6494, %v6492
    %v6547 = vpack.c.bf16 %v6497, %v6495
    %v6548 = vpack.c.bf16 %v6498, %v6496
    %v6549 = vpack.c.bf16 %v6501, %v6499
    %v6550 = vpack.c.bf16 %v6502, %v6500
    %v6551 = vpack.c.bf16 %v6505, %v6503
    %v6552 = vpack.c.bf16 %v6506, %v6504
    %v6553 = vpack.c.bf16 %v6509, %v6507
    %v6554 = vpack.c.bf16 %v6510, %v6508
    %v6555 = vpack.c.bf16 %v6513, %v6511
    %v6556 = vpack.c.bf16 %v6514, %v6512
    %v6557 = vpack.c.bf16 %v6517, %v6515
    %v6558 = vpack.c.bf16 %v6518, %v6516
    %v6559 = vpack.c.bf16 %v6521, %v6519
    %v6560 = vpack.c.bf16 %v6522, %v6520
    %v6561 = vpack.c.bf16 %v6525, %v6523
    %v6562 = vpack.c.bf16 %v6526, %v6524
    %v6563 = vpack.c.bf16 %v6529, %v6527
    %v6564 = vpack.c.bf16 %v6530, %v6528
    %v6565 = vpack.c.bf16 %v6533, %v6531
    %v6566 = vpack.c.bf16 %v6534, %v6532
    %v6567 = vld [vmem:[#allocation2 + $0xa80] sm:$0xff]
    %v6568 = vld [vmem:[#allocation2 + $0xa88] sm:$0xff]
    %v6569 = vld [vmem:[#allocation2 + $0xa90] sm:$0xff]
    %v6570 = vld [vmem:[#allocation2 + $0xa98] sm:$0xff]
    %v6571 = vld [vmem:[#allocation2 + $0xaa0] sm:$0xff]
    %v6572 = vld [vmem:[#allocation2 + $0xaa8] sm:$0xff]
    %v6573 = vld [vmem:[#allocation2 + $0xab0] sm:$0xff]
    %v6574 = vld [vmem:[#allocation2 + $0xab8] sm:$0xff]
    %v6575 = vld [vmem:[#allocation2 + $0xac0] sm:$0xff]
    %v6576 = vld [vmem:[#allocation2 + $0xac8] sm:$0xff]
    %v6577 = vld [vmem:[#allocation2 + $0xad0] sm:$0xff]
    %v6578 = vld [vmem:[#allocation2 + $0xad8] sm:$0xff]
    %v6579 = vld [vmem:[#allocation2 + $0xae0] sm:$0xff]
    %v6580 = vld [vmem:[#allocation2 + $0xae8] sm:$0xff]
    %v6581 = vld [vmem:[#allocation2 + $0xaf0] sm:$0xff]
    %v6582 = vld [vmem:[#allocation2 + $0xaf8] sm:$0xff]
    %v6583 = vld [vmem:[#allocation2 + $0xb00] sm:$0xff]
    %v6584 = vld [vmem:[#allocation2 + $0xb08] sm:$0xff]
    %v6585 = vld [vmem:[#allocation2 + $0xb10] sm:$0xff]
    %v6586 = vld [vmem:[#allocation2 + $0xb18] sm:$0xff]
    %v6587 = vld [vmem:[#allocation2 + $0xb20] sm:$0xff]
    %v6588 = vld [vmem:[#allocation2 + $0xb28] sm:$0xff]
    %v6589 = vld [vmem:[#allocation2 + $0xb30] sm:$0xff]
    %v6590 = vld [vmem:[#allocation2 + $0xb38] sm:$0xff]
    %v6591 = vld [vmem:[#allocation2 + $0xb40] sm:$0xff]
    %v6592 = vld [vmem:[#allocation2 + $0xb48] sm:$0xff]
    %v6593 = vld [vmem:[#allocation2 + $0xb50] sm:$0xff]
    %v6594 = vld [vmem:[#allocation2 + $0xb58] sm:$0xff]
    %v6595 = vld [vmem:[#allocation2 + $0xb60] sm:$0xff]
    %v6596 = vld [vmem:[#allocation2 + $0xb68] sm:$0xff]
    %v6597 = vld [vmem:[#allocation2 + $0xb70] sm:$0xff]
    %v6598 = vld [vmem:[#allocation2 + $0xb78] sm:$0xff]
    %v6599 = vld [vmem:[#allocation2 + $0xb80] sm:$0xff]
    %v6600 = vld [vmem:[#allocation2 + $0xb88] sm:$0xff]
    %v6601 = vld [vmem:[#allocation2 + $0xb90] sm:$0xff]
    %v6602 = vld [vmem:[#allocation2 + $0xb98] sm:$0xff]
    %v6603 = vld [vmem:[#allocation2 + $0xba0] sm:$0xff]
    %v6604 = vld [vmem:[#allocation2 + $0xba8] sm:$0xff]
    %v6605 = vld [vmem:[#allocation2 + $0xbb0] sm:$0xff]
    %v6606 = vld [vmem:[#allocation2 + $0xbb8] sm:$0xff]
    %v6607 = vld [vmem:[#allocation2 + $0xbc0] sm:$0xff]
    %v6608 = vld [vmem:[#allocation2 + $0xbc8] sm:$0xff]
    %v6609 = vld [vmem:[#allocation2 + $0xbd0] sm:$0xff]
    %v6610 = vld [vmem:[#allocation2 + $0xbd8] sm:$0xff]
    %v6611 = vld [vmem:[#allocation2 + $0xbe0] sm:$0xff]
    %v6612 = vld [vmem:[#allocation2 + $0xbe8] sm:$0xff]
    %v6613 = vld [vmem:[#allocation2 + $0xbf0] sm:$0xff]
    %v6614 = vld [vmem:[#allocation2 + $0xbf8] sm:$0xff]
    %v6615 = vld [vmem:[#allocation2 + $0xc00] sm:$0xff]
    %v6616 = vld [vmem:[#allocation2 + $0xc08] sm:$0xff]
    %v6617 = vld [vmem:[#allocation2 + $0xc10] sm:$0xff]
    %v6618 = vld [vmem:[#allocation2 + $0xc18] sm:$0xff]
    %v6619 = vld [vmem:[#allocation2 + $0xc20] sm:$0xff]
    %v6620 = vld [vmem:[#allocation2 + $0xc28] sm:$0xff]
    %v6621 = vld [vmem:[#allocation2 + $0xc30] sm:$0xff]
    %v6622 = vld [vmem:[#allocation2 + $0xc38] sm:$0xff]
    %v6623 = vld [vmem:[#allocation2 + $0xc40] sm:$0xff]
    %v6624 = vld [vmem:[#allocation2 + $0xc48] sm:$0xff]
    %v6625 = vld [vmem:[#allocation2 + $0xc50] sm:$0xff]
    %v6626 = vld [vmem:[#allocation2 + $0xc58] sm:$0xff]
    %v6627 = vld [vmem:[#allocation2 + $0xc60] sm:$0xff]
    %v6628 = vld [vmem:[#allocation2 + $0xc68] sm:$0xff]
    %v6629 = vld [vmem:[#allocation2 + $0xc70] sm:$0xff]
    %v6630 = vld [vmem:[#allocation2 + $0xc78] sm:$0xff]
    %v6631 = vld [vmem:[#allocation2 + $0xc80] sm:$0xff]
    %v6632 = vld [vmem:[#allocation2 + $0xc88] sm:$0xff]
    %v6633 = vld [vmem:[#allocation2 + $0xc90] sm:$0xff]
    %v6634 = vld [vmem:[#allocation2 + $0xc98] sm:$0xff]
    %v6635 = vld [vmem:[#allocation2 + $0xca0] sm:$0xff]
    %v6636 = vld [vmem:[#allocation2 + $0xca8] sm:$0xff]
    %v6637 = vld [vmem:[#allocation2 + $0xcb0] sm:$0xff]
    %v6638 = vld [vmem:[#allocation2 + $0xcb8] sm:$0xff]
    %v6639 = vld [vmem:[#allocation2 + $0xcc0] sm:$0xff]
    %v6640 = vld [vmem:[#allocation2 + $0xcc8] sm:$0xff]
    %v6641 = vld [vmem:[#allocation2 + $0xcd0] sm:$0xff]
    %v6642 = vld [vmem:[#allocation2 + $0xcd8] sm:$0xff]
    %v6643 = vld [vmem:[#allocation2 + $0xce0] sm:$0xff]
    %v6644 = vld [vmem:[#allocation2 + $0xce8] sm:$0xff]
    %v6645 = vld [vmem:[#allocation2 + $0xcf0] sm:$0xff]
    %v6646 = vld [vmem:[#allocation2 + $0xcf8] sm:$0xff]
    %v6647 = vld [vmem:[#allocation2 + $0xd00] sm:$0xff]
    %v6648 = vld [vmem:[#allocation2 + $0xd08] sm:$0xff]
    %v6649 = vld [vmem:[#allocation2 + $0xd10] sm:$0xff]
    %v6650 = vld [vmem:[#allocation2 + $0xd18] sm:$0xff]
    %v6651 = vld [vmem:[#allocation2 + $0xd20] sm:$0xff]
    %v6652 = vld [vmem:[#allocation2 + $0xd28] sm:$0xff]
    %v6653 = vld [vmem:[#allocation2 + $0xd30] sm:$0xff]
    %v6654 = vld [vmem:[#allocation2 + $0xd38] sm:$0xff]
    %v6655 = vld [vmem:[#allocation2 + $0xd40] sm:$0xff]
    %v6656 = vld [vmem:[#allocation2 + $0xd48] sm:$0xff]
    %v6657 = vld [vmem:[#allocation2 + $0xd50] sm:$0xff]
    %v6658 = vld [vmem:[#allocation2 + $0xd58] sm:$0xff]
    %v6659 = vld [vmem:[#allocation2 + $0xd60] sm:$0xff]
    %v6660 = vld [vmem:[#allocation2 + $0xd68] sm:$0xff]
    %v6661 = vld [vmem:[#allocation2 + $0xd70] sm:$0xff]
    %v6662 = vld [vmem:[#allocation2 + $0xd78] sm:$0xff]
    %s6663 = scalar_lea.vmem [#allocation4], 4
    %v6664 = vld [vmem:[%s6663] ss:$8 sm:$0x3]
    %v6666 = vlaneseq
    %v6667 = vshrl.u32 %v6666, 7
    %v6668 = vsub.s32 0, %v6667
    %v6669 = vrot.slane %v6664, %v6668
    %v6670 = vlaneseq
    %v6671 = vshrl.u32 %v6670, 7
    %v6672 = vsub.s32 1, %v6671
    %v6673 = vrot.slane %v6664, %v6672
    %v6772 = vunpack.c.l.b16 %v6567
    %v6773 = vunpack.c.h.b16 %v6567
    %v6774 = vunpack.c.l.b16 %v6568
    %v6775 = vunpack.c.h.b16 %v6568
    %v6776 = vunpack.c.l.b16 %v6569
    %v6777 = vunpack.c.h.b16 %v6569
    %v6778 = vunpack.c.l.b16 %v6570
    %v6779 = vunpack.c.h.b16 %v6570
    %v6780 = vunpack.c.l.b16 %v6571
    %v6781 = vunpack.c.h.b16 %v6571
    %v6782 = vunpack.c.l.b16 %v6572
    %v6783 = vunpack.c.h.b16 %v6572
    %v6784 = vunpack.c.l.b16 %v6573
    %v6785 = vunpack.c.h.b16 %v6573
    %v6786 = vunpack.c.l.b16 %v6574
    %v6787 = vunpack.c.h.b16 %v6574
    %v6788 = vunpack.c.l.b16 %v6575
    %v6789 = vunpack.c.h.b16 %v6575
    %v6790 = vunpack.c.l.b16 %v6576
    %v6791 = vunpack.c.h.b16 %v6576
    %v6792 = vunpack.c.l.b16 %v6577
    %v6793 = vunpack.c.h.b16 %v6577
    %v6794 = vunpack.c.l.b16 %v6578
    %v6795 = vunpack.c.h.b16 %v6578
    %v6796 = vunpack.c.l.b16 %v6579
    %v6797 = vunpack.c.h.b16 %v6579
    %v6798 = vunpack.c.l.b16 %v6580
    %v6799 = vunpack.c.h.b16 %v6580
    %v6800 = vunpack.c.l.b16 %v6581
    %v6801 = vunpack.c.h.b16 %v6581
    %v6802 = vunpack.c.l.b16 %v6582
    %v6803 = vunpack.c.h.b16 %v6582
    %v6804 = vunpack.c.l.b16 %v6583
    %v6805 = vunpack.c.h.b16 %v6583
    %v6806 = vunpack.c.l.b16 %v6584
    %v6807 = vunpack.c.h.b16 %v6584
    %v6808 = vunpack.c.l.b16 %v6585
    %v6809 = vunpack.c.h.b16 %v6585
    %v6810 = vunpack.c.l.b16 %v6586
    %v6811 = vunpack.c.h.b16 %v6586
    %v6812 = vunpack.c.l.b16 %v6587
    %v6813 = vunpack.c.h.b16 %v6587
    %v6814 = vunpack.c.l.b16 %v6588
    %v6815 = vunpack.c.h.b16 %v6588
    %v6816 = vunpack.c.l.b16 %v6589
    %v6817 = vunpack.c.h.b16 %v6589
    %v6818 = vunpack.c.l.b16 %v6590
    %v6819 = vunpack.c.h.b16 %v6590
    %v6820 = vunpack.c.l.b16 %v6591
    %v6821 = vunpack.c.h.b16 %v6591
    %v6822 = vunpack.c.l.b16 %v6592
    %v6823 = vunpack.c.h.b16 %v6592
    %v6824 = vunpack.c.l.b16 %v6593
    %v6825 = vunpack.c.h.b16 %v6593
    %v6826 = vunpack.c.l.b16 %v6594
    %v6827 = vunpack.c.h.b16 %v6594
    %v6828 = vunpack.c.l.b16 %v6595
    %v6829 = vunpack.c.h.b16 %v6595
    %v6830 = vunpack.c.l.b16 %v6596
    %v6831 = vunpack.c.h.b16 %v6596
    %v6832 = vunpack.c.l.b16 %v6597
    %v6833 = vunpack.c.h.b16 %v6597
    %v6834 = vunpack.c.l.b16 %v6598
    %v6835 = vunpack.c.h.b16 %v6598
    %v6836 = vunpack.c.l.b16 %v6599
    %v6837 = vunpack.c.h.b16 %v6599
    %v6838 = vunpack.c.l.b16 %v6600
    %v6839 = vunpack.c.h.b16 %v6600
    %v6840 = vunpack.c.l.b16 %v6601
    %v6841 = vunpack.c.h.b16 %v6601
    %v6842 = vunpack.c.l.b16 %v6602
    %v6843 = vunpack.c.h.b16 %v6602
    %v6844 = vunpack.c.l.b16 %v6603
    %v6845 = vunpack.c.h.b16 %v6603
    %v6846 = vunpack.c.l.b16 %v6604
    %v6847 = vunpack.c.h.b16 %v6604
    %v6848 = vunpack.c.l.b16 %v6605
    %v6849 = vunpack.c.h.b16 %v6605
    %v6850 = vunpack.c.l.b16 %v6606
    %v6851 = vunpack.c.h.b16 %v6606
    %v6852 = vunpack.c.l.b16 %v6607
    %v6853 = vunpack.c.h.b16 %v6607
    %v6854 = vunpack.c.l.b16 %v6608
    %v6855 = vunpack.c.h.b16 %v6608
    %v6856 = vunpack.c.l.b16 %v6609
    %v6857 = vunpack.c.h.b16 %v6609
    %v6858 = vunpack.c.l.b16 %v6610
    %v6859 = vunpack.c.h.b16 %v6610
    %v6860 = vunpack.c.l.b16 %v6611
    %v6861 = vunpack.c.h.b16 %v6611
    %v6862 = vunpack.c.l.b16 %v6612
    %v6863 = vunpack.c.h.b16 %v6612
    %v6864 = vunpack.c.l.b16 %v6613
    %v6865 = vunpack.c.h.b16 %v6613
    %v6866 = vunpack.c.l.b16 %v6614
    %v6867 = vunpack.c.h.b16 %v6614
    %v6868 = vunpack.c.l.b16 %v6615
    %v6869 = vunpack.c.h.b16 %v6615
    %v6870 = vunpack.c.l.b16 %v6616
    %v6871 = vunpack.c.h.b16 %v6616
    %v6872 = vunpack.c.l.b16 %v6617
    %v6873 = vunpack.c.h.b16 %v6617
    %v6874 = vunpack.c.l.b16 %v6618
    %v6875 = vunpack.c.h.b16 %v6618
    %v6876 = vunpack.c.l.b16 %v6619
    %v6877 = vunpack.c.h.b16 %v6619
    %v6878 = vunpack.c.l.b16 %v6620
    %v6879 = vunpack.c.h.b16 %v6620
    %v6880 = vunpack.c.l.b16 %v6621
    %v6881 = vunpack.c.h.b16 %v6621
    %v6882 = vunpack.c.l.b16 %v6622
    %v6883 = vunpack.c.h.b16 %v6622
    %v6884 = vunpack.c.l.b16 %v6623
    %v6885 = vunpack.c.h.b16 %v6623
    %v6886 = vunpack.c.l.b16 %v6624
    %v6887 = vunpack.c.h.b16 %v6624
    %v6888 = vunpack.c.l.b16 %v6625
    %v6889 = vunpack.c.h.b16 %v6625
    %v6890 = vunpack.c.l.b16 %v6626
    %v6891 = vunpack.c.h.b16 %v6626
    %v6892 = vunpack.c.l.b16 %v6627
    %v6893 = vunpack.c.h.b16 %v6627
    %v6894 = vunpack.c.l.b16 %v6628
    %v6895 = vunpack.c.h.b16 %v6628
    %v6896 = vunpack.c.l.b16 %v6629
    %v6897 = vunpack.c.h.b16 %v6629
    %v6898 = vunpack.c.l.b16 %v6630
    %v6899 = vunpack.c.h.b16 %v6630
    %v6900 = vunpack.c.l.b16 %v6631
    %v6901 = vunpack.c.h.b16 %v6631
    %v6902 = vunpack.c.l.b16 %v6632
    %v6903 = vunpack.c.h.b16 %v6632
    %v6904 = vunpack.c.l.b16 %v6633
    %v6905 = vunpack.c.h.b16 %v6633
    %v6906 = vunpack.c.l.b16 %v6634
    %v6907 = vunpack.c.h.b16 %v6634
    %v6908 = vunpack.c.l.b16 %v6635
    %v6909 = vunpack.c.h.b16 %v6635
    %v6910 = vunpack.c.l.b16 %v6636
    %v6911 = vunpack.c.h.b16 %v6636
    %v6912 = vunpack.c.l.b16 %v6637
    %v6913 = vunpack.c.h.b16 %v6637
    %v6914 = vunpack.c.l.b16 %v6638
    %v6915 = vunpack.c.h.b16 %v6638
    %v6916 = vunpack.c.l.b16 %v6639
    %v6917 = vunpack.c.h.b16 %v6639
    %v6918 = vunpack.c.l.b16 %v6640
    %v6919 = vunpack.c.h.b16 %v6640
    %v6920 = vunpack.c.l.b16 %v6641
    %v6921 = vunpack.c.h.b16 %v6641
    %v6922 = vunpack.c.l.b16 %v6642
    %v6923 = vunpack.c.h.b16 %v6642
    %v6924 = vunpack.c.l.b16 %v6643
    %v6925 = vunpack.c.h.b16 %v6643
    %v6926 = vunpack.c.l.b16 %v6644
    %v6927 = vunpack.c.h.b16 %v6644
    %v6928 = vunpack.c.l.b16 %v6645
    %v6929 = vunpack.c.h.b16 %v6645
    %v6930 = vunpack.c.l.b16 %v6646
    %v6931 = vunpack.c.h.b16 %v6646
    %v6932 = vunpack.c.l.b16 %v6647
    %v6933 = vunpack.c.h.b16 %v6647
    %v6934 = vunpack.c.l.b16 %v6648
    %v6935 = vunpack.c.h.b16 %v6648
    %v6936 = vunpack.c.l.b16 %v6649
    %v6937 = vunpack.c.h.b16 %v6649
    %v6938 = vunpack.c.l.b16 %v6650
    %v6939 = vunpack.c.h.b16 %v6650
    %v6940 = vunpack.c.l.b16 %v6651
    %v6941 = vunpack.c.h.b16 %v6651
    %v6942 = vunpack.c.l.b16 %v6652
    %v6943 = vunpack.c.h.b16 %v6652
    %v6944 = vunpack.c.l.b16 %v6653
    %v6945 = vunpack.c.h.b16 %v6653
    %v6946 = vunpack.c.l.b16 %v6654
    %v6947 = vunpack.c.h.b16 %v6654
    %v6948 = vunpack.c.l.b16 %v6655
    %v6949 = vunpack.c.h.b16 %v6655
    %v6950 = vunpack.c.l.b16 %v6656
    %v6951 = vunpack.c.h.b16 %v6656
    %v6952 = vunpack.c.l.b16 %v6657
    %v6953 = vunpack.c.h.b16 %v6657
    %v6954 = vunpack.c.l.b16 %v6658
    %v6955 = vunpack.c.h.b16 %v6658
    %v6956 = vunpack.c.l.b16 %v6659
    %v6957 = vunpack.c.h.b16 %v6659
    %v6958 = vunpack.c.l.b16 %v6660
    %v6959 = vunpack.c.h.b16 %v6660
    %v6960 = vunpack.c.l.b16 %v6661
    %v6961 = vunpack.c.h.b16 %v6661
    %v6962 = vunpack.c.l.b16 %v6662
    %v6963 = vunpack.c.h.b16 %v6662
    %v6964 = vpack.c.b16 %v6774, %v6772
    %v6965 = vpack.c.b16 %v6775, %v6773
    %v6966 = vpack.c.b16 %v6778, %v6776
    %v6967 = vpack.c.b16 %v6779, %v6777
    %v6968 = vpack.c.b16 %v6782, %v6780
    %v6969 = vpack.c.b16 %v6783, %v6781
    %v6970 = vpack.c.b16 %v6786, %v6784
    %v6971 = vpack.c.b16 %v6787, %v6785
    %v6972 = vpack.c.b16 %v6790, %v6788
    %v6973 = vpack.c.b16 %v6791, %v6789
    %v6974 = vpack.c.b16 %v6794, %v6792
    %v6975 = vpack.c.b16 %v6795, %v6793
    %v6976 = vpack.c.b16 %v6798, %v6796
    %v6977 = vpack.c.b16 %v6799, %v6797
    %v6978 = vpack.c.b16 %v6802, %v6800
    %v6979 = vpack.c.b16 %v6803, %v6801
    %v6980 = vpack.c.b16 %v6806, %v6804
    %v6981 = vpack.c.b16 %v6807, %v6805
    %v6982 = vpack.c.b16 %v6810, %v6808
    %v6983 = vpack.c.b16 %v6811, %v6809
    %v6984 = vpack.c.b16 %v6814, %v6812
    %v6985 = vpack.c.b16 %v6815, %v6813
    %v6986 = vpack.c.b16 %v6818, %v6816
    %v6987 = vpack.c.b16 %v6819, %v6817
    %v6988 = vpack.c.b16 %v6822, %v6820
    %v6989 = vpack.c.b16 %v6823, %v6821
    %v6990 = vpack.c.b16 %v6826, %v6824
    %v6991 = vpack.c.b16 %v6827, %v6825
    %v6992 = vpack.c.b16 %v6830, %v6828
    %v6993 = vpack.c.b16 %v6831, %v6829
    %v6994 = vpack.c.b16 %v6834, %v6832
    %v6995 = vpack.c.b16 %v6835, %v6833
    %v6996 = vpack.c.b16 %v6838, %v6836
    %v6997 = vpack.c.b16 %v6839, %v6837
    %v6998 = vpack.c.b16 %v6842, %v6840
    %v6999 = vpack.c.b16 %v6843, %v6841
    %v7000 = vpack.c.b16 %v6846, %v6844
    %v7001 = vpack.c.b16 %v6847, %v6845
    %v7002 = vpack.c.b16 %v6850, %v6848
    %v7003 = vpack.c.b16 %v6851, %v6849
    %v7004 = vpack.c.b16 %v6854, %v6852
    %v7005 = vpack.c.b16 %v6855, %v6853
    %v7006 = vpack.c.b16 %v6858, %v6856
    %v7007 = vpack.c.b16 %v6859, %v6857
    %v7008 = vpack.c.b16 %v6862, %v6860
    %v7009 = vpack.c.b16 %v6863, %v6861
    %v7010 = vpack.c.b16 %v6866, %v6864
    %v7011 = vpack.c.b16 %v6867, %v6865
    %v7012 = vpack.c.b16 %v6870, %v6868
    %v7013 = vpack.c.b16 %v6871, %v6869
    %v7014 = vpack.c.b16 %v6874, %v6872
    %v7015 = vpack.c.b16 %v6875, %v6873
    %v7016 = vpack.c.b16 %v6878, %v6876
    %v7017 = vpack.c.b16 %v6879, %v6877
    %v7018 = vpack.c.b16 %v6882, %v6880
    %v7019 = vpack.c.b16 %v6883, %v6881
    %v7020 = vpack.c.b16 %v6886, %v6884
    %v7021 = vpack.c.b16 %v6887, %v6885
    %v7022 = vpack.c.b16 %v6890, %v6888
    %v7023 = vpack.c.b16 %v6891, %v6889
    %v7024 = vpack.c.b16 %v6894, %v6892
    %v7025 = vpack.c.b16 %v6895, %v6893
    %v7026 = vpack.c.b16 %v6898, %v6896
    %v7027 = vpack.c.b16 %v6899, %v6897
    %v7028 = vpack.c.b16 %v6902, %v6900
    %v7029 = vpack.c.b16 %v6903, %v6901
    %v7030 = vpack.c.b16 %v6906, %v6904
    %v7031 = vpack.c.b16 %v6907, %v6905
    %v7032 = vpack.c.b16 %v6910, %v6908
    %v7033 = vpack.c.b16 %v6911, %v6909
    %v7034 = vpack.c.b16 %v6914, %v6912
    %v7035 = vpack.c.b16 %v6915, %v6913
    %v7036 = vpack.c.b16 %v6918, %v6916
    %v7037 = vpack.c.b16 %v6919, %v6917
    %v7038 = vpack.c.b16 %v6922, %v6920
    %v7039 = vpack.c.b16 %v6923, %v6921
    %v7040 = vpack.c.b16 %v6926, %v6924
    %v7041 = vpack.c.b16 %v6927, %v6925
    %v7042 = vpack.c.b16 %v6930, %v6928
    %v7043 = vpack.c.b16 %v6931, %v6929
    %v7044 = vpack.c.b16 %v6934, %v6932
    %v7045 = vpack.c.b16 %v6935, %v6933
    %v7046 = vpack.c.b16 %v6938, %v6936
    %v7047 = vpack.c.b16 %v6939, %v6937
    %v7048 = vpack.c.b16 %v6942, %v6940
    %v7049 = vpack.c.b16 %v6943, %v6941
    %v7050 = vpack.c.b16 %v6946, %v6944
    %v7051 = vpack.c.b16 %v6947, %v6945
    %v7052 = vpack.c.b16 %v6950, %v6948
    %v7053 = vpack.c.b16 %v6951, %v6949
    %v7054 = vpack.c.b16 %v6954, %v6952
    %v7055 = vpack.c.b16 %v6955, %v6953
    %v7056 = vpack.c.b16 %v6958, %v6956
    %v7057 = vpack.c.b16 %v6959, %v6957
    %v7058 = vpack.c.b16 %v6962, %v6960
    %v7059 = vpack.c.b16 %v6963, %v6961
    %7156 = vmatprep.subr.bf16.mxu0 %v6979
    %7157 = vmatpush1.bf16.msra.mxu0 %v6978
    %7158 = vmatprep.subr.bf16.mxu0 %v6977
    %7159 = vmatpush1.bf16.msra.mxu0 %v6976
    %7160 = vmatprep.subr.bf16.mxu0 %v6975
    %7161 = vmatpush1.bf16.msra.mxu0 %v6974
    %7162 = vmatprep.subr.bf16.mxu0 %v6973
    %7163 = vmatpush1.bf16.msra.mxu0 %v6972
    %7164 = vmatprep.subr.bf16.mxu0 %v6971
    %7165 = vmatpush1.bf16.msra.mxu0 %v6970
    %7166 = vmatprep.subr.bf16.mxu0 %v6969
    %7167 = vmatpush1.bf16.msra.mxu0 %v6968
    %7168 = vmatprep.subr.bf16.mxu0 %v6967
    %7169 = vmatpush1.bf16.msra.mxu0 %v6966
    %7170 = vmatprep.subr.bf16.mxu0 %v6965
    %7171 = vmatpush1.bf16.msra.mxu0 %v6964
    %7172 = vmatprep.subr.bf16.mxu0 %v6995
    %7173 = vmatpush2.bf16.msra.mxu0 %v6994
    %7174 = vmatprep.subr.bf16.mxu0 %v6993
    %7175 = vmatpush2.bf16.msra.mxu0 %v6992
    %7176 = vmatprep.subr.bf16.mxu0 %v6991
    %7177 = vmatpush2.bf16.msra.mxu0 %v6990
    %7178 = vmatprep.subr.bf16.mxu0 %v6989
    %7179 = vmatpush2.bf16.msra.mxu0 %v6988
    %7180 = vmatprep.subr.bf16.mxu0 %v6987
    %7181 = vmatpush2.bf16.msra.mxu0 %v6986
    %7182 = vmatprep.subr.bf16.mxu0 %v6985
    %7183 = vmatpush2.bf16.msra.mxu0 %v6984
    %7184 = vmatprep.subr.bf16.mxu0 %v6983
    %7185 = vmatpush2.bf16.msra.mxu0 %v6982
    %7186 = vmatprep.subr.bf16.mxu0 %v6981
    %7187 = vmatpush2.bf16.msra.mxu0 %v6980
    %7188 = vmatprep.mubr.bf16.mxu0 0
    %7189 = vmatmul.mubr.bf16.gmra.mxu0 0
    %v7190 = vpop.f32.mrf.mxu0
    %v7191 = vadd.f32 %v6669, %v7190
    %v7192 = vpop.f32.mrf.mxu0
    %v7193 = vadd.f32 %v6673, %v7192
    %v7194 = vpop.f32.mrf.mxu0
    %v7195 = vadd.f32 %v6669, %v7194
    %v7196 = vpop.f32.mrf.mxu0
    %v7197 = vadd.f32 %v6673, %v7196
    %7198 = vmatprep.mubr.bf16.mxu0 0
    %7199 = vmatmul.mubr.bf16.gmra.mxu0 0
    %v7200 = vpop.f32.mrf.mxu0
    %v7201 = vadd.f32 %v6669, %v7200
    %v7202 = vpop.f32.mrf.mxu0
    %v7203 = vadd.f32 %v6673, %v7202
    %v7204 = vpop.f32.mrf.mxu0
    %v7205 = vadd.f32 %v6669, %v7204
    %v7206 = vpop.f32.mrf.mxu0
    %v7207 = vadd.f32 %v6673, %v7206
    %7208 = vmatprep.mubr.bf16.mxu0 %v6536
    %7209 = vmatmul.mubr.bf16.gmra.mxu0 %v6535
    %v7210 = vpop.f32.mrf.mxu0
    %v7211 = vadd.f32 %v6669, %v7210
    %v7212 = vpop.f32.mrf.mxu0
    %v7213 = vadd.f32 %v6673, %v7212
    %v7214 = vpop.f32.mrf.mxu0
    %v7215 = vadd.f32 %v6669, %v7214
    %v7216 = vpop.f32.mrf.mxu0
    %v7217 = vadd.f32 %v6673, %v7216
    %7218 = vmatprep.mubr.bf16.mxu0 %v6538
    %7219 = vmatmul.mubr.bf16.gmra.mxu0 %v6537
    %v7220 = vpop.f32.mrf.mxu0
    %v7221 = vadd.f32 %v6669, %v7220
    %v7222 = vpop.f32.mrf.mxu0
    %v7223 = vadd.f32 %v6673, %v7222
    %v7224 = vpop.f32.mrf.mxu0
    %v7225 = vadd.f32 %v6669, %v7224
    %v7226 = vpop.f32.mrf.mxu0
    %v7227 = vadd.f32 %v6673, %v7226
    %7228 = vmatprep.mubr.bf16.mxu0 %v6540
    %7229 = vmatmul.mubr.bf16.gmra.mxu0 %v6539
    %v7230 = vpop.f32.mrf.mxu0
    %v7231 = vadd.f32 %v6669, %v7230
    %v7232 = vpop.f32.mrf.mxu0
    %v7233 = vadd.f32 %v6673, %v7232
    %v7234 = vpop.f32.mrf.mxu0
    %v7235 = vadd.f32 %v6669, %v7234
    %v7236 = vpop.f32.mrf.mxu0
    %v7237 = vadd.f32 %v6673, %v7236
    %7238 = vmatprep.mubr.bf16.mxu0 %v6542
    %7239 = vmatmul.mubr.bf16.gmra.mxu0 %v6541
    %v7240 = vpop.f32.mrf.mxu0
    %v7241 = vadd.f32 %v6669, %v7240
    %v7242 = vpop.f32.mrf.mxu0
    %v7243 = vadd.f32 %v6673, %v7242
    %v7244 = vpop.f32.mrf.mxu0
    %v7245 = vadd.f32 %v6669, %v7244
    %v7246 = vpop.f32.mrf.mxu0
    %v7247 = vadd.f32 %v6673, %v7246
    %7248 = vmatprep.mubr.bf16.mxu0 %v6544
    %7249 = vmatmul.mubr.bf16.gmra.mxu0 %v6543
    %v7250 = vpop.f32.mrf.mxu0
    %v7251 = vadd.f32 %v6669, %v7250
    %v7252 = vpop.f32.mrf.mxu0
    %v7253 = vadd.f32 %v6673, %v7252
    %v7254 = vpop.f32.mrf.mxu0
    %v7255 = vadd.f32 %v6669, %v7254
    %v7256 = vpop.f32.mrf.mxu0
    %v7257 = vadd.f32 %v6673, %v7256
    %7258 = vmatprep.mubr.bf16.mxu0 %v6546
    %7259 = vmatmul.mubr.bf16.gmra.mxu0 %v6545
    %v7260 = vpop.f32.mrf.mxu0
    %v7261 = vadd.f32 %v6669, %v7260
    %v7262 = vpop.f32.mrf.mxu0
    %v7263 = vadd.f32 %v6673, %v7262
    %v7264 = vpop.f32.mrf.mxu0
    %v7265 = vadd.f32 %v6669, %v7264
    %v7266 = vpop.f32.mrf.mxu0
    %v7267 = vadd.f32 %v6673, %v7266
    %7268 = vmatprep.mubr.bf16.mxu0 %v6548
    %7269 = vmatmul.mubr.bf16.gmra.mxu0 %v6547
    %v7270 = vpop.f32.mrf.mxu0
    %v7271 = vadd.f32 %v6669, %v7270
    %v7272 = vpop.f32.mrf.mxu0
    %v7273 = vadd.f32 %v6673, %v7272
    %v7274 = vpop.f32.mrf.mxu0
    %v7275 = vadd.f32 %v6669, %v7274
    %v7276 = vpop.f32.mrf.mxu0
    %v7277 = vadd.f32 %v6673, %v7276
    %7278 = vmatprep.mubr.bf16.mxu0 %v6550
    %7279 = vmatmul.mubr.bf16.gmra.mxu0 %v6549
    %v7280 = vpop.f32.mrf.mxu0
    %v7281 = vadd.f32 %v6669, %v7280
    %v7282 = vpop.f32.mrf.mxu0
    %v7283 = vadd.f32 %v6673, %v7282
    %v7284 = vpop.f32.mrf.mxu0
    %v7285 = vadd.f32 %v6669, %v7284
    %v7286 = vpop.f32.mrf.mxu0
    %v7287 = vadd.f32 %v6673, %v7286
    %7288 = vmatprep.mubr.bf16.mxu0 %v6552
    %7289 = vmatmul.mubr.bf16.gmra.mxu0 %v6551
    %v7290 = vpop.f32.mrf.mxu0
    %v7291 = vadd.f32 %v6669, %v7290
    %v7292 = vpop.f32.mrf.mxu0
    %v7293 = vadd.f32 %v6673, %v7292
    %v7294 = vpop.f32.mrf.mxu0
    %v7295 = vadd.f32 %v6669, %v7294
    %v7296 = vpop.f32.mrf.mxu0
    %v7297 = vadd.f32 %v6673, %v7296
    %7298 = vmatprep.mubr.bf16.mxu0 %v6554
    %7299 = vmatmul.mubr.bf16.gmra.mxu0 %v6553
    %v7300 = vpop.f32.mrf.mxu0
    %v7301 = vadd.f32 %v6669, %v7300
    %v7302 = vpop.f32.mrf.mxu0
    %v7303 = vadd.f32 %v6673, %v7302
    %v7304 = vpop.f32.mrf.mxu0
    %v7305 = vadd.f32 %v6669, %v7304
    %v7306 = vpop.f32.mrf.mxu0
    %v7307 = vadd.f32 %v6673, %v7306
    %7308 = vmatprep.mubr.bf16.mxu0 %v6556
    %7309 = vmatmul.mubr.bf16.gmra.mxu0 %v6555
    %v7310 = vpop.f32.mrf.mxu0
    %v7311 = vadd.f32 %v6669, %v7310
    %v7312 = vpop.f32.mrf.mxu0
    %v7313 = vadd.f32 %v6673, %v7312
    %v7314 = vpop.f32.mrf.mxu0
    %v7315 = vadd.f32 %v6669, %v7314
    %v7316 = vpop.f32.mrf.mxu0
    %v7317 = vadd.f32 %v6673, %v7316
    %7318 = vmatprep.mubr.bf16.mxu0 %v6558
    %7319 = vmatmul.mubr.bf16.gmra.mxu0 %v6557
    %v7320 = vpop.f32.mrf.mxu0
    %v7321 = vadd.f32 %v6669, %v7320
    %v7322 = vpop.f32.mrf.mxu0
    %v7323 = vadd.f32 %v6673, %v7322
    %v7324 = vpop.f32.mrf.mxu0
    %v7325 = vadd.f32 %v6669, %v7324
    %v7326 = vpop.f32.mrf.mxu0
    %v7327 = vadd.f32 %v6673, %v7326
    %7328 = vmatprep.mubr.bf16.mxu0 %v6560
    %7329 = vmatmul.mubr.bf16.gmra.mxu0 %v6559
    %v7330 = vpop.f32.mrf.mxu0
    %v7331 = vadd.f32 %v6669, %v7330
    %v7332 = vpop.f32.mrf.mxu0
    %v7333 = vadd.f32 %v6673, %v7332
    %v7334 = vpop.f32.mrf.mxu0
    %v7335 = vadd.f32 %v6669, %v7334
    %v7336 = vpop.f32.mrf.mxu0
    %v7337 = vadd.f32 %v6673, %v7336
    %7338 = vmatprep.mubr.bf16.mxu0 %v6562
    %7339 = vmatmul.mubr.bf16.gmra.mxu0 %v6561
    %v7340 = vpop.f32.mrf.mxu0
    %v7341 = vadd.f32 %v6669, %v7340
    %v7342 = vpop.f32.mrf.mxu0
    %v7343 = vadd.f32 %v6673, %v7342
    %v7344 = vpop.f32.mrf.mxu0
    %v7345 = vadd.f32 %v6669, %v7344
    %v7346 = vpop.f32.mrf.mxu0
    %v7347 = vadd.f32 %v6673, %v7346
    %7348 = vdwg.mxu0
    %7349 = vmatprep.subr.bf16.mxu0 %v7011
    %7350 = vmatpush1.bf16.msra.mxu0 %v7010
    %7351 = vmatprep.subr.bf16.mxu0 %v7009
    %7352 = vmatpush1.bf16.msra.mxu0 %v7008
    %7353 = vmatprep.subr.bf16.mxu0 %v7007
    %7354 = vmatpush1.bf16.msra.mxu0 %v7006
    %7355 = vmatprep.subr.bf16.mxu0 %v7005
    %7356 = vmatpush1.bf16.msra.mxu0 %v7004
    %7357 = vmatprep.subr.bf16.mxu0 %v7003
    %7358 = vmatpush1.bf16.msra.mxu0 %v7002
    %7359 = vmatprep.subr.bf16.mxu0 %v7001
    %7360 = vmatpush1.bf16.msra.mxu0 %v7000
    %7361 = vmatprep.subr.bf16.mxu0 %v6999
    %7362 = vmatpush1.bf16.msra.mxu0 %v6998
    %7363 = vmatprep.subr.bf16.mxu0 %v6997
    %7364 = vmatpush1.bf16.msra.mxu0 %v6996
    %7365 = vmatprep.subr.bf16.mxu0 %v7027
    %7366 = vmatpush2.bf16.msra.mxu0 %v7026
    %7367 = vmatprep.subr.bf16.mxu0 %v7025
    %7368 = vmatpush2.bf16.msra.mxu0 %v7024
    %7369 = vmatprep.subr.bf16.mxu0 %v7023
    %7370 = vmatpush2.bf16.msra.mxu0 %v7022
    %7371 = vmatprep.subr.bf16.mxu0 %v7021
    %7372 = vmatpush2.bf16.msra.mxu0 %v7020
    %7373 = vmatprep.subr.bf16.mxu0 %v7019
    %7374 = vmatpush2.bf16.msra.mxu0 %v7018
    %7375 = vmatprep.subr.bf16.mxu0 %v7017
    %7376 = vmatpush2.bf16.msra.mxu0 %v7016
    %7377 = vmatprep.subr.bf16.mxu0 %v7015
    %7378 = vmatpush2.bf16.msra.mxu0 %v7014
    %7379 = vmatprep.subr.bf16.mxu0 %v7013
    %7380 = vmatpush2.bf16.msra.mxu0 %v7012
    %7381 = vmatprep.mubr.bf16.mxu0 %v6536
    %7382 = vmatmul.mubr.bf16.gmra.mxu0 %v6535
    %v7383 = vpop.f32.mrf.mxu0
    %v7384 = vadd.f32 %v7191, %v7383
    %v7385 = vpop.f32.mrf.mxu0
    %v7386 = vadd.f32 %v7193, %v7385
    %v7387 = vpop.f32.mrf.mxu0
    %v7388 = vadd.f32 %v7195, %v7387
    %v7389 = vpop.f32.mrf.mxu0
    %v7390 = vadd.f32 %v7197, %v7389
    %7391 = vmatprep.mubr.bf16.mxu0 %v6538
    %7392 = vmatmul.mubr.bf16.gmra.mxu0 %v6537
    %v7393 = vpop.f32.mrf.mxu0
    %v7394 = vadd.f32 %v7201, %v7393
    %v7395 = vpop.f32.mrf.mxu0
    %v7396 = vadd.f32 %v7203, %v7395
    %v7397 = vpop.f32.mrf.mxu0
    %v7398 = vadd.f32 %v7205, %v7397
    %v7399 = vpop.f32.mrf.mxu0
    %v7400 = vadd.f32 %v7207, %v7399
    %7401 = vmatprep.mubr.bf16.mxu0 %v6540
    %7402 = vmatmul.mubr.bf16.gmra.mxu0 %v6539
    %v7403 = vpop.f32.mrf.mxu0
    %v7404 = vadd.f32 %v7211, %v7403
    %v7405 = vpop.f32.mrf.mxu0
    %v7406 = vadd.f32 %v7213, %v7405
    %v7407 = vpop.f32.mrf.mxu0
    %v7408 = vadd.f32 %v7215, %v7407
    %v7409 = vpop.f32.mrf.mxu0
    %v7410 = vadd.f32 %v7217, %v7409
    %7411 = vmatprep.mubr.bf16.mxu0 %v6542
    %7412 = vmatmul.mubr.bf16.gmra.mxu0 %v6541
    %v7413 = vpop.f32.mrf.mxu0
    %v7414 = vadd.f32 %v7221, %v7413
    %v7415 = vpop.f32.mrf.mxu0
    %v7416 = vadd.f32 %v7223, %v7415
    %v7417 = vpop.f32.mrf.mxu0
    %v7418 = vadd.f32 %v7225, %v7417
    %v7419 = vpop.f32.mrf.mxu0
    %v7420 = vadd.f32 %v7227, %v7419
    %7421 = vmatprep.mubr.bf16.mxu0 %v6544
    %7422 = vmatmul.mubr.bf16.gmra.mxu0 %v6543
    %v7423 = vpop.f32.mrf.mxu0
    %v7424 = vadd.f32 %v7231, %v7423
    %v7425 = vpop.f32.mrf.mxu0
    %v7426 = vadd.f32 %v7233, %v7425
    %v7427 = vpop.f32.mrf.mxu0
    %v7428 = vadd.f32 %v7235, %v7427
    %v7429 = vpop.f32.mrf.mxu0
    %v7430 = vadd.f32 %v7237, %v7429
    %7431 = vmatprep.mubr.bf16.mxu0 %v6546
    %7432 = vmatmul.mubr.bf16.gmra.mxu0 %v6545
    %v7433 = vpop.f32.mrf.mxu0
    %v7434 = vadd.f32 %v7241, %v7433
    %v7435 = vpop.f32.mrf.mxu0
    %v7436 = vadd.f32 %v7243, %v7435
    %v7437 = vpop.f32.mrf.mxu0
    %v7438 = vadd.f32 %v7245, %v7437
    %v7439 = vpop.f32.mrf.mxu0
    %v7440 = vadd.f32 %v7247, %v7439
    %7441 = vmatprep.mubr.bf16.mxu0 %v6548
    %7442 = vmatmul.mubr.bf16.gmra.mxu0 %v6547
    %v7443 = vpop.f32.mrf.mxu0
    %v7444 = vadd.f32 %v7251, %v7443
    %v7445 = vpop.f32.mrf.mxu0
    %v7446 = vadd.f32 %v7253, %v7445
    %v7447 = vpop.f32.mrf.mxu0
    %v7448 = vadd.f32 %v7255, %v7447
    %v7449 = vpop.f32.mrf.mxu0
    %v7450 = vadd.f32 %v7257, %v7449
    %7451 = vmatprep.mubr.bf16.mxu0 %v6550
    %7452 = vmatmul.mubr.bf16.gmra.mxu0 %v6549
    %v7453 = vpop.f32.mrf.mxu0
    %v7454 = vadd.f32 %v7261, %v7453
    %v7455 = vpop.f32.mrf.mxu0
    %v7456 = vadd.f32 %v7263, %v7455
    %v7457 = vpop.f32.mrf.mxu0
    %v7458 = vadd.f32 %v7265, %v7457
    %v7459 = vpop.f32.mrf.mxu0
    %v7460 = vadd.f32 %v7267, %v7459
    %7461 = vmatprep.mubr.bf16.mxu0 %v6552
    %7462 = vmatmul.mubr.bf16.gmra.mxu0 %v6551
    %v7463 = vpop.f32.mrf.mxu0
    %v7464 = vadd.f32 %v7271, %v7463
    %v7465 = vpop.f32.mrf.mxu0
    %v7466 = vadd.f32 %v7273, %v7465
    %v7467 = vpop.f32.mrf.mxu0
    %v7468 = vadd.f32 %v7275, %v7467
    %v7469 = vpop.f32.mrf.mxu0
    %v7470 = vadd.f32 %v7277, %v7469
    %7471 = vmatprep.mubr.bf16.mxu0 %v6554
    %7472 = vmatmul.mubr.bf16.gmra.mxu0 %v6553
    %v7473 = vpop.f32.mrf.mxu0
    %v7474 = vadd.f32 %v7281, %v7473
    %v7475 = vpop.f32.mrf.mxu0
    %v7476 = vadd.f32 %v7283, %v7475
    %v7477 = vpop.f32.mrf.mxu0
    %v7478 = vadd.f32 %v7285, %v7477
    %v7479 = vpop.f32.mrf.mxu0
    %v7480 = vadd.f32 %v7287, %v7479
    %7481 = vmatprep.mubr.bf16.mxu0 %v6556
    %7482 = vmatmul.mubr.bf16.gmra.mxu0 %v6555
    %v7483 = vpop.f32.mrf.mxu0
    %v7484 = vadd.f32 %v7291, %v7483
    %v7485 = vpop.f32.mrf.mxu0
    %v7486 = vadd.f32 %v7293, %v7485
    %v7487 = vpop.f32.mrf.mxu0
    %v7488 = vadd.f32 %v7295, %v7487
    %v7489 = vpop.f32.mrf.mxu0
    %v7490 = vadd.f32 %v7297, %v7489
    %7491 = vmatprep.mubr.bf16.mxu0 %v6558
    %7492 = vmatmul.mubr.bf16.gmra.mxu0 %v6557
    %v7493 = vpop.f32.mrf.mxu0
    %v7494 = vadd.f32 %v7301, %v7493
    %v7495 = vpop.f32.mrf.mxu0
    %v7496 = vadd.f32 %v7303, %v7495
    %v7497 = vpop.f32.mrf.mxu0
    %v7498 = vadd.f32 %v7305, %v7497
    %v7499 = vpop.f32.mrf.mxu0
    %v7500 = vadd.f32 %v7307, %v7499
    %7501 = vmatprep.mubr.bf16.mxu0 %v6560
    %7502 = vmatmul.mubr.bf16.gmra.mxu0 %v6559
    %v7503 = vpop.f32.mrf.mxu0
    %v7504 = vadd.f32 %v7311, %v7503
    %v7505 = vpop.f32.mrf.mxu0
    %v7506 = vadd.f32 %v7313, %v7505
    %v7507 = vpop.f32.mrf.mxu0
    %v7508 = vadd.f32 %v7315, %v7507
    %v7509 = vpop.f32.mrf.mxu0
    %v7510 = vadd.f32 %v7317, %v7509
    %7511 = vmatprep.mubr.bf16.mxu0 %v6562
    %7512 = vmatmul.mubr.bf16.gmra.mxu0 %v6561
    %v7513 = vpop.f32.mrf.mxu0
    %v7514 = vadd.f32 %v7321, %v7513
    %v7515 = vpop.f32.mrf.mxu0
    %v7516 = vadd.f32 %v7323, %v7515
    %v7517 = vpop.f32.mrf.mxu0
    %v7518 = vadd.f32 %v7325, %v7517
    %v7519 = vpop.f32.mrf.mxu0
    %v7520 = vadd.f32 %v7327, %v7519
    %7521 = vmatprep.mubr.bf16.mxu0 %v6564
    %7522 = vmatmul.mubr.bf16.gmra.mxu0 %v6563
    %v7523 = vpop.f32.mrf.mxu0
    %v7524 = vadd.f32 %v7331, %v7523
    %v7525 = vpop.f32.mrf.mxu0
    %v7526 = vadd.f32 %v7333, %v7525
    %v7527 = vpop.f32.mrf.mxu0
    %v7528 = vadd.f32 %v7335, %v7527
    %v7529 = vpop.f32.mrf.mxu0
    %v7530 = vadd.f32 %v7337, %v7529
    %7531 = vmatprep.mubr.bf16.mxu0 %v6566
    %7532 = vmatmul.mubr.bf16.gmra.mxu0 %v6565
    %v7533 = vpop.f32.mrf.mxu0
    %v7534 = vadd.f32 %v7341, %v7533
    %v7535 = vpop.f32.mrf.mxu0
    %v7536 = vadd.f32 %v7343, %v7535
    %v7537 = vpop.f32.mrf.mxu0
    %v7538 = vadd.f32 %v7345, %v7537
    %v7539 = vpop.f32.mrf.mxu0
    %v7540 = vadd.f32 %v7347, %v7539
    %7541 = vdwg.mxu0
    %7542 = vmatprep.subr.bf16.mxu0 %v7043
    %7543 = vmatpush1.bf16.msra.mxu0 %v7042
    %7544 = vmatprep.subr.bf16.mxu0 %v7041
    %7545 = vmatpush1.bf16.msra.mxu0 %v7040
    %7546 = vmatprep.subr.bf16.mxu0 %v7039
    %7547 = vmatpush1.bf16.msra.mxu0 %v7038
    %7548 = vmatprep.subr.bf16.mxu0 %v7037
    %7549 = vmatpush1.bf16.msra.mxu0 %v7036
    %7550 = vmatprep.subr.bf16.mxu0 %v7035
    %7551 = vmatpush1.bf16.msra.mxu0 %v7034
    %7552 = vmatprep.subr.bf16.mxu0 %v7033
    %7553 = vmatpush1.bf16.msra.mxu0 %v7032
    %7554 = vmatprep.subr.bf16.mxu0 %v7031
    %7555 = vmatpush1.bf16.msra.mxu0 %v7030
    %7556 = vmatprep.subr.bf16.mxu0 %v7029
    %7557 = vmatpush1.bf16.msra.mxu0 %v7028
    %7558 = vmatprep.subr.bf16.mxu0 %v7059
    %7559 = vmatpush2.bf16.msra.mxu0 %v7058
    %7560 = vmatprep.subr.bf16.mxu0 %v7057
    %7561 = vmatpush2.bf16.msra.mxu0 %v7056
    %7562 = vmatprep.subr.bf16.mxu0 %v7055
    %7563 = vmatpush2.bf16.msra.mxu0 %v7054
    %7564 = vmatprep.subr.bf16.mxu0 %v7053
    %7565 = vmatpush2.bf16.msra.mxu0 %v7052
    %7566 = vmatprep.subr.bf16.mxu0 %v7051
    %7567 = vmatpush2.bf16.msra.mxu0 %v7050
    %7568 = vmatprep.subr.bf16.mxu0 %v7049
    %7569 = vmatpush2.bf16.msra.mxu0 %v7048
    %7570 = vmatprep.subr.bf16.mxu0 %v7047
    %7571 = vmatpush2.bf16.msra.mxu0 %v7046
    %7572 = vmatprep.subr.bf16.mxu0 %v7045
    %7573 = vmatpush2.bf16.msra.mxu0 %v7044
    %7574 = vmatprep.mubr.bf16.mxu0 %v6540
    %7575 = vmatmul.mubr.bf16.gmra.mxu0 %v6539
    %v7576 = vpop.f32.mrf.mxu0
    %v7577 = vadd.f32 %v7384, %v7576
    %v7578 = vpop.f32.mrf.mxu0
    %v7579 = vadd.f32 %v7386, %v7578
    %v7580 = vpop.f32.mrf.mxu0
    %v7581 = vadd.f32 %v7388, %v7580
    %v7582 = vpop.f32.mrf.mxu0
    %v7583 = vadd.f32 %v7390, %v7582
    %7584 = vmatprep.mubr.bf16.mxu0 %v6542
    %7585 = vmatmul.mubr.bf16.gmra.mxu0 %v6541
    %v7586 = vpop.f32.mrf.mxu0
    %v7587 = vadd.f32 %v7394, %v7586
    %v7588 = vpop.f32.mrf.mxu0
    %v7589 = vadd.f32 %v7396, %v7588
    %v7590 = vpop.f32.mrf.mxu0
    %v7591 = vadd.f32 %v7398, %v7590
    %v7592 = vpop.f32.mrf.mxu0
    %v7593 = vadd.f32 %v7400, %v7592
    %7594 = vmatprep.mubr.bf16.mxu0 %v6544
    %7595 = vmatmul.mubr.bf16.gmra.mxu0 %v6543
    %v7596 = vpop.f32.mrf.mxu0
    %v7597 = vadd.f32 %v7404, %v7596
    %v7598 = vpop.f32.mrf.mxu0
    %v7599 = vadd.f32 %v7406, %v7598
    %v7600 = vpop.f32.mrf.mxu0
    %v7601 = vadd.f32 %v7408, %v7600
    %v7602 = vpop.f32.mrf.mxu0
    %v7603 = vadd.f32 %v7410, %v7602
    %7604 = vmatprep.mubr.bf16.mxu0 %v6546
    %7605 = vmatmul.mubr.bf16.gmra.mxu0 %v6545
    %v7606 = vpop.f32.mrf.mxu0
    %v7607 = vadd.f32 %v7414, %v7606
    %v7608 = vpop.f32.mrf.mxu0
    %v7609 = vadd.f32 %v7416, %v7608
    %v7610 = vpop.f32.mrf.mxu0
    %v7611 = vadd.f32 %v7418, %v7610
    %v7612 = vpop.f32.mrf.mxu0
    %v7613 = vadd.f32 %v7420, %v7612
    %7614 = vmatprep.mubr.bf16.mxu0 %v6548
    %7615 = vmatmul.mubr.bf16.gmra.mxu0 %v6547
    %v7616 = vpop.f32.mrf.mxu0
    %v7617 = vadd.f32 %v7424, %v7616
    %v7618 = vpop.f32.mrf.mxu0
    %v7619 = vadd.f32 %v7426, %v7618
    %v7620 = vpop.f32.mrf.mxu0
    %v7621 = vadd.f32 %v7428, %v7620
    %v7622 = vpop.f32.mrf.mxu0
    %v7623 = vadd.f32 %v7430, %v7622
    %7624 = vmatprep.mubr.bf16.mxu0 %v6550
    %7625 = vmatmul.mubr.bf16.gmra.mxu0 %v6549
    %v7626 = vpop.f32.mrf.mxu0
    %v7627 = vadd.f32 %v7434, %v7626
    %v7628 = vpop.f32.mrf.mxu0
    %v7629 = vadd.f32 %v7436, %v7628
    %v7630 = vpop.f32.mrf.mxu0
    %v7631 = vadd.f32 %v7438, %v7630
    %v7632 = vpop.f32.mrf.mxu0
    %v7633 = vadd.f32 %v7440, %v7632
    %7634 = vmatprep.mubr.bf16.mxu0 %v6552
    %7635 = vmatmul.mubr.bf16.gmra.mxu0 %v6551
    %v7636 = vpop.f32.mrf.mxu0
    %v7637 = vadd.f32 %v7444, %v7636
    %v7638 = vpop.f32.mrf.mxu0
    %v7639 = vadd.f32 %v7446, %v7638
    %v7640 = vpop.f32.mrf.mxu0
    %v7641 = vadd.f32 %v7448, %v7640
    %v7642 = vpop.f32.mrf.mxu0
    %v7643 = vadd.f32 %v7450, %v7642
    %7644 = vmatprep.mubr.bf16.mxu0 %v6554
    %7645 = vmatmul.mubr.bf16.gmra.mxu0 %v6553
    %v7646 = vpop.f32.mrf.mxu0
    %v7647 = vadd.f32 %v7454, %v7646
    %v7648 = vpop.f32.mrf.mxu0
    %v7649 = vadd.f32 %v7456, %v7648
    %v7650 = vpop.f32.mrf.mxu0
    %v7651 = vadd.f32 %v7458, %v7650
    %v7652 = vpop.f32.mrf.mxu0
    %v7653 = vadd.f32 %v7460, %v7652
    %7654 = vmatprep.mubr.bf16.mxu0 %v6556
    %7655 = vmatmul.mubr.bf16.gmra.mxu0 %v6555
    %v7656 = vpop.f32.mrf.mxu0
    %v7657 = vadd.f32 %v7464, %v7656
    %v7658 = vpop.f32.mrf.mxu0
    %v7659 = vadd.f32 %v7466, %v7658
    %v7660 = vpop.f32.mrf.mxu0
    %v7661 = vadd.f32 %v7468, %v7660
    %v7662 = vpop.f32.mrf.mxu0
    %v7663 = vadd.f32 %v7470, %v7662
    %7664 = vmatprep.mubr.bf16.mxu0 %v6558
    %7665 = vmatmul.mubr.bf16.gmra.mxu0 %v6557
    %v7666 = vpop.f32.mrf.mxu0
    %v7667 = vadd.f32 %v7474, %v7666
    %v7668 = vpop.f32.mrf.mxu0
    %v7669 = vadd.f32 %v7476, %v7668
    %v7670 = vpop.f32.mrf.mxu0
    %v7671 = vadd.f32 %v7478, %v7670
    %v7672 = vpop.f32.mrf.mxu0
    %v7673 = vadd.f32 %v7480, %v7672
    %7674 = vmatprep.mubr.bf16.mxu0 %v6560
    %7675 = vmatmul.mubr.bf16.gmra.mxu0 %v6559
    %v7676 = vpop.f32.mrf.mxu0
    %v7677 = vadd.f32 %v7484, %v7676
    %v7678 = vpop.f32.mrf.mxu0
    %v7679 = vadd.f32 %v7486, %v7678
    %v7680 = vpop.f32.mrf.mxu0
    %v7681 = vadd.f32 %v7488, %v7680
    %v7682 = vpop.f32.mrf.mxu0
    %v7683 = vadd.f32 %v7490, %v7682
    %7684 = vmatprep.mubr.bf16.mxu0 %v6562
    %7685 = vmatmul.mubr.bf16.gmra.mxu0 %v6561
    %v7686 = vpop.f32.mrf.mxu0
    %v7687 = vadd.f32 %v7494, %v7686
    %v7688 = vpop.f32.mrf.mxu0
    %v7689 = vadd.f32 %v7496, %v7688
    %v7690 = vpop.f32.mrf.mxu0
    %v7691 = vadd.f32 %v7498, %v7690
    %v7692 = vpop.f32.mrf.mxu0
    %v7693 = vadd.f32 %v7500, %v7692
    %7694 = vmatprep.mubr.bf16.mxu0 %v6564
    %7695 = vmatmul.mubr.bf16.gmra.mxu0 %v6563
    %v7696 = vpop.f32.mrf.mxu0
    %v7697 = vadd.f32 %v7504, %v7696
    %v7698 = vpop.f32.mrf.mxu0
    %v7699 = vadd.f32 %v7506, %v7698
    %v7700 = vpop.f32.mrf.mxu0
    %v7701 = vadd.f32 %v7508, %v7700
    %v7702 = vpop.f32.mrf.mxu0
    %v7703 = vadd.f32 %v7510, %v7702
    %7704 = vmatprep.mubr.bf16.mxu0 %v6566
    %7705 = vmatmul.mubr.bf16.gmra.mxu0 %v6565
    %v7706 = vpop.f32.mrf.mxu0
    %v7707 = vadd.f32 %v7514, %v7706
    %v7708 = vpop.f32.mrf.mxu0
    %v7709 = vadd.f32 %v7516, %v7708
    %v7710 = vpop.f32.mrf.mxu0
    %v7711 = vadd.f32 %v7518, %v7710
    %v7712 = vpop.f32.mrf.mxu0
    %v7713 = vadd.f32 %v7520, %v7712
    %7714 = vmatprep.mubr.bf16.mxu0 0
    %7715 = vmatmul.mubr.bf16.gmra.mxu0 0
    %v7716 = vpop.f32.mrf.mxu0
    %v7717 = vadd.f32 %v7524, %v7716
    %v7718 = vpop.f32.mrf.mxu0
    %v7719 = vadd.f32 %v7526, %v7718
    %v7720 = vpop.f32.mrf.mxu0
    %v7721 = vadd.f32 %v7528, %v7720
    %v7722 = vpop.f32.mrf.mxu0
    %v7723 = vadd.f32 %v7530, %v7722
    %7724 = vmatprep.mubr.bf16.mxu0 0
    %7725 = vmatmul.mubr.bf16.gmra.mxu0 0
    %v7726 = vpop.f32.mrf.mxu0
    %v7727 = vadd.f32 %v7534, %v7726
    %v7728 = vpop.f32.mrf.mxu0
    %v7729 = vadd.f32 %v7536, %v7728
    %v7730 = vpop.f32.mrf.mxu0
    %v7731 = vadd.f32 %v7538, %v7730
    %v7732 = vpop.f32.mrf.mxu0
    %v7733 = vadd.f32 %v7540, %v7732
    %7734 = vdwg.mxu0
    %v7735 = vld [vmem:[#allocation2 + $0xd80] sm:$0xff]
    %v7736 = vld [vmem:[#allocation2 + $0xd88] sm:$0xff]
    %v7737 = vld [vmem:[#allocation2 + $0xd90] sm:$0xff]
    %v7738 = vld [vmem:[#allocation2 + $0xd98] sm:$0xff]
    %v7739 = vld [vmem:[#allocation2 + $0xda0] sm:$0xff]
    %v7740 = vld [vmem:[#allocation2 + $0xda8] sm:$0xff]
    %v7741 = vld [vmem:[#allocation2 + $0xdb0] sm:$0xff]
    %v7742 = vld [vmem:[#allocation2 + $0xdb8] sm:$0xff]
    %v7743 = vld [vmem:[#allocation2 + $0xdc0] sm:$0xff]
    %v7744 = vld [vmem:[#allocation2 + $0xdc8] sm:$0xff]
    %v7745 = vld [vmem:[#allocation2 + $0xdd0] sm:$0xff]
    %v7746 = vld [vmem:[#allocation2 + $0xdd8] sm:$0xff]
    %v7747 = vld [vmem:[#allocation2 + $0xde0] sm:$0xff]
    %v7748 = vld [vmem:[#allocation2 + $0xde8] sm:$0xff]
    %v7749 = vld [vmem:[#allocation2 + $0xdf0] sm:$0xff]
    %v7750 = vld [vmem:[#allocation2 + $0xdf8] sm:$0xff]
    %v7751 = vld [vmem:[#allocation2 + $0xe00] sm:$0xff]
    %v7752 = vld [vmem:[#allocation2 + $0xe08] sm:$0xff]
    %v7753 = vld [vmem:[#allocation2 + $0xe10] sm:$0xff]
    %v7754 = vld [vmem:[#allocation2 + $0xe18] sm:$0xff]
    %v7755 = vld [vmem:[#allocation2 + $0xe20] sm:$0xff]
    %v7756 = vld [vmem:[#allocation2 + $0xe28] sm:$0xff]
    %v7757 = vld [vmem:[#allocation2 + $0xe30] sm:$0xff]
    %v7758 = vld [vmem:[#allocation2 + $0xe38] sm:$0xff]
    %v7759 = vld [vmem:[#allocation2 + $0xe40] sm:$0xff]
    %v7760 = vld [vmem:[#allocation2 + $0xe48] sm:$0xff]
    %v7761 = vld [vmem:[#allocation2 + $0xe50] sm:$0xff]
    %v7762 = vld [vmem:[#allocation2 + $0xe58] sm:$0xff]
    %v7763 = vld [vmem:[#allocation2 + $0xe60] sm:$0xff]
    %v7764 = vld [vmem:[#allocation2 + $0xe68] sm:$0xff]
    %v7765 = vld [vmem:[#allocation2 + $0xe70] sm:$0xff]
    %v7766 = vld [vmem:[#allocation2 + $0xe78] sm:$0xff]
    %v7799 = vunpack.c.l.b16 %v7735
    %v7800 = vunpack.c.h.b16 %v7735
    %v7801 = vunpack.c.l.b16 %v7736
    %v7802 = vunpack.c.h.b16 %v7736
    %v7803 = vunpack.c.l.b16 %v7737
    %v7804 = vunpack.c.h.b16 %v7737
    %v7805 = vunpack.c.l.b16 %v7738
    %v7806 = vunpack.c.h.b16 %v7738
    %v7807 = vunpack.c.l.b16 %v7739
    %v7808 = vunpack.c.h.b16 %v7739
    %v7809 = vunpack.c.l.b16 %v7740
    %v7810 = vunpack.c.h.b16 %v7740
    %v7811 = vunpack.c.l.b16 %v7741
    %v7812 = vunpack.c.h.b16 %v7741
    %v7813 = vunpack.c.l.b16 %v7742
    %v7814 = vunpack.c.h.b16 %v7742
    %v7815 = vunpack.c.l.b16 %v7743
    %v7816 = vunpack.c.h.b16 %v7743
    %v7817 = vunpack.c.l.b16 %v7744
    %v7818 = vunpack.c.h.b16 %v7744
    %v7819 = vunpack.c.l.b16 %v7745
    %v7820 = vunpack.c.h.b16 %v7745
    %v7821 = vunpack.c.l.b16 %v7746
    %v7822 = vunpack.c.h.b16 %v7746
    %v7823 = vunpack.c.l.b16 %v7747
    %v7824 = vunpack.c.h.b16 %v7747
    %v7825 = vunpack.c.l.b16 %v7748
    %v7826 = vunpack.c.h.b16 %v7748
    %v7827 = vunpack.c.l.b16 %v7749
    %v7828 = vunpack.c.h.b16 %v7749
    %v7829 = vunpack.c.l.b16 %v7750
    %v7830 = vunpack.c.h.b16 %v7750
    %v7831 = vunpack.c.l.b16 %v7751
    %v7832 = vunpack.c.h.b16 %v7751
    %v7833 = vunpack.c.l.b16 %v7752
    %v7834 = vunpack.c.h.b16 %v7752
    %v7835 = vunpack.c.l.b16 %v7753
    %v7836 = vunpack.c.h.b16 %v7753
    %v7837 = vunpack.c.l.b16 %v7754
    %v7838 = vunpack.c.h.b16 %v7754
    %v7839 = vunpack.c.l.b16 %v7755
    %v7840 = vunpack.c.h.b16 %v7755
    %v7841 = vunpack.c.l.b16 %v7756
    %v7842 = vunpack.c.h.b16 %v7756
    %v7843 = vunpack.c.l.b16 %v7757
    %v7844 = vunpack.c.h.b16 %v7757
    %v7845 = vunpack.c.l.b16 %v7758
    %v7846 = vunpack.c.h.b16 %v7758
    %v7847 = vunpack.c.l.b16 %v7759
    %v7848 = vunpack.c.h.b16 %v7759
    %v7849 = vunpack.c.l.b16 %v7760
    %v7850 = vunpack.c.h.b16 %v7760
    %v7851 = vunpack.c.l.b16 %v7761
    %v7852 = vunpack.c.h.b16 %v7761
    %v7853 = vunpack.c.l.b16 %v7762
    %v7854 = vunpack.c.h.b16 %v7762
    %v7855 = vunpack.c.l.b16 %v7763
    %v7856 = vunpack.c.h.b16 %v7763
    %v7857 = vunpack.c.l.b16 %v7764
    %v7858 = vunpack.c.h.b16 %v7764
    %v7859 = vunpack.c.l.b16 %v7765
    %v7860 = vunpack.c.h.b16 %v7765
    %v7861 = vunpack.c.l.b16 %v7766
    %v7862 = vunpack.c.h.b16 %v7766
    %v7863 = vpack.c.b16 %v7801, %v7799
    %v7864 = vpack.c.b16 %v7802, %v7800
    %v7865 = vpack.c.b16 %v7805, %v7803
    %v7866 = vpack.c.b16 %v7806, %v7804
    %v7867 = vpack.c.b16 %v7809, %v7807
    %v7868 = vpack.c.b16 %v7810, %v7808
    %v7869 = vpack.c.b16 %v7813, %v7811
    %v7870 = vpack.c.b16 %v7814, %v7812
    %v7871 = vpack.c.b16 %v7817, %v7815
    %v7872 = vpack.c.b16 %v7818, %v7816
    %v7873 = vpack.c.b16 %v7821, %v7819
    %v7874 = vpack.c.b16 %v7822, %v7820
    %v7875 = vpack.c.b16 %v7825, %v7823
    %v7876 = vpack.c.b16 %v7826, %v7824
    %v7877 = vpack.c.b16 %v7829, %v7827
    %v7878 = vpack.c.b16 %v7830, %v7828
    %v7879 = vpack.c.b16 %v7833, %v7831
    %v7880 = vpack.c.b16 %v7834, %v7832
    %v7881 = vpack.c.b16 %v7837, %v7835
    %v7882 = vpack.c.b16 %v7838, %v7836
    %v7883 = vpack.c.b16 %v7841, %v7839
    %v7884 = vpack.c.b16 %v7842, %v7840
    %v7885 = vpack.c.b16 %v7845, %v7843
    %v7886 = vpack.c.b16 %v7846, %v7844
    %v7887 = vpack.c.b16 %v7849, %v7847
    %v7888 = vpack.c.b16 %v7850, %v7848
    %v7889 = vpack.c.b16 %v7853, %v7851
    %v7890 = vpack.c.b16 %v7854, %v7852
    %v7891 = vpack.c.b16 %v7857, %v7855
    %v7892 = vpack.c.b16 %v7858, %v7856
    %v7893 = vpack.c.b16 %v7861, %v7859
    %v7894 = vpack.c.b16 %v7862, %v7860
    %7927 = vmatprep.subr.bf16.mxu0 %v7878
    %7928 = vmatpush1.bf16.msra.mxu0 %v7877
    %7929 = vmatprep.subr.bf16.mxu0 %v7876
    %7930 = vmatpush1.bf16.msra.mxu0 %v7875
    %7931 = vmatprep.subr.bf16.mxu0 %v7874
    %7932 = vmatpush1.bf16.msra.mxu0 %v7873
    %7933 = vmatprep.subr.bf16.mxu0 %v7872
    %7934 = vmatpush1.bf16.msra.mxu0 %v7871
    %7935 = vmatprep.subr.bf16.mxu0 %v7870
    %7936 = vmatpush1.bf16.msra.mxu0 %v7869
    %7937 = vmatprep.subr.bf16.mxu0 %v7868
    %7938 = vmatpush1.bf16.msra.mxu0 %v7867
    %7939 = vmatprep.subr.bf16.mxu0 %v7866
    %7940 = vmatpush1.bf16.msra.mxu0 %v7865
    %7941 = vmatprep.subr.bf16.mxu0 %v7864
    %7942 = vmatpush1.bf16.msra.mxu0 %v7863
    %7943 = vmatprep.subr.bf16.mxu0 %v7894
    %7944 = vmatpush2.bf16.msra.mxu0 %v7893
    %7945 = vmatprep.subr.bf16.mxu0 %v7892
    %7946 = vmatpush2.bf16.msra.mxu0 %v7891
    %7947 = vmatprep.subr.bf16.mxu0 %v7890
    %7948 = vmatpush2.bf16.msra.mxu0 %v7889
    %7949 = vmatprep.subr.bf16.mxu0 %v7888
    %7950 = vmatpush2.bf16.msra.mxu0 %v7887
    %7951 = vmatprep.subr.bf16.mxu0 %v7886
    %7952 = vmatpush2.bf16.msra.mxu0 %v7885
    %7953 = vmatprep.subr.bf16.mxu0 %v7884
    %7954 = vmatpush2.bf16.msra.mxu0 %v7883
    %7955 = vmatprep.subr.bf16.mxu0 %v7882
    %7956 = vmatpush2.bf16.msra.mxu0 %v7881
    %7957 = vmatprep.subr.bf16.mxu0 %v7880
    %7958 = vmatpush2.bf16.msra.mxu0 %v7879
    %7959 = vmatprep.mubr.bf16.mxu0 %v5240
    %7960 = vmatmul.mubr.bf16.gmra.mxu0 %v5239
    %v7961 = vpop.f32.mrf.mxu0
    %v7962 = vadd.f32 0.0, %v7961
    %v7963 = vpop.f32.mrf.mxu0
    %v7964 = vadd.f32 0.0, %v7963
    %v7965 = vpop.f32.mrf.mxu0
    %v7966 = vadd.f32 0.0, %v7965
    %v7967 = vpop.f32.mrf.mxu0
    %v7968 = vadd.f32 0.0, %v7967
    %7969 = vmatprep.mubr.bf16.mxu0 %v5242
    %7970 = vmatmul.mubr.bf16.gmra.mxu0 %v5241
    %v7971 = vpop.f32.mrf.mxu0
    %v7972 = vadd.f32 0.0, %v7971
    %v7973 = vpop.f32.mrf.mxu0
    %v7974 = vadd.f32 0.0, %v7973
    %v7975 = vpop.f32.mrf.mxu0
    %v7976 = vadd.f32 0.0, %v7975
    %v7977 = vpop.f32.mrf.mxu0
    %v7978 = vadd.f32 0.0, %v7977
    %7979 = vmatprep.mubr.bf16.mxu0 %v5248
    %7980 = vmatmul.mubr.bf16.gmra.mxu0 %v5247
    %v7981 = vpop.f32.mrf.mxu0
    %v7982 = vadd.f32 0.0, %v7981
    %v7983 = vpop.f32.mrf.mxu0
    %v7984 = vadd.f32 0.0, %v7983
    %v7985 = vpop.f32.mrf.mxu0
    %v7986 = vadd.f32 0.0, %v7985
    %v7987 = vpop.f32.mrf.mxu0
    %v7988 = vadd.f32 0.0, %v7987
    %7989 = vmatprep.mubr.bf16.mxu0 %v5250
    %7990 = vmatmul.mubr.bf16.gmra.mxu0 %v5249
    %v7991 = vpop.f32.mrf.mxu0
    %v7992 = vadd.f32 0.0, %v7991
    %v7993 = vpop.f32.mrf.mxu0
    %v7994 = vadd.f32 0.0, %v7993
    %v7995 = vpop.f32.mrf.mxu0
    %v7996 = vadd.f32 0.0, %v7995
    %v7997 = vpop.f32.mrf.mxu0
    %v7998 = vadd.f32 0.0, %v7997
    %7999 = vmatprep.mubr.bf16.mxu0 %v5256
    %8000 = vmatmul.mubr.bf16.gmra.mxu0 %v5255
    %v8001 = vpop.f32.mrf.mxu0
    %v8002 = vadd.f32 0.0, %v8001
    %v8003 = vpop.f32.mrf.mxu0
    %v8004 = vadd.f32 0.0, %v8003
    %v8005 = vpop.f32.mrf.mxu0
    %v8006 = vadd.f32 0.0, %v8005
    %v8007 = vpop.f32.mrf.mxu0
    %v8008 = vadd.f32 0.0, %v8007
    %8009 = vmatprep.mubr.bf16.mxu0 %v5258
    %8010 = vmatmul.mubr.bf16.gmra.mxu0 %v5257
    %v8011 = vpop.f32.mrf.mxu0
    %v8012 = vadd.f32 0.0, %v8011
    %v8013 = vpop.f32.mrf.mxu0
    %v8014 = vadd.f32 0.0, %v8013
    %v8015 = vpop.f32.mrf.mxu0
    %v8016 = vadd.f32 0.0, %v8015
    %v8017 = vpop.f32.mrf.mxu0
    %v8018 = vadd.f32 0.0, %v8017
    %8019 = vmatprep.mubr.bf16.mxu0 %v5264
    %8020 = vmatmul.mubr.bf16.gmra.mxu0 %v5263
    %v8021 = vpop.f32.mrf.mxu0
    %v8022 = vadd.f32 0.0, %v8021
    %v8023 = vpop.f32.mrf.mxu0
    %v8024 = vadd.f32 0.0, %v8023
    %v8025 = vpop.f32.mrf.mxu0
    %v8026 = vadd.f32 0.0, %v8025
    %v8027 = vpop.f32.mrf.mxu0
    %v8028 = vadd.f32 0.0, %v8027
    %8029 = vmatprep.mubr.bf16.mxu0 %v5266
    %8030 = vmatmul.mubr.bf16.gmra.mxu0 %v5265
    %v8031 = vpop.f32.mrf.mxu0
    %v8032 = vadd.f32 0.0, %v8031
    %v8033 = vpop.f32.mrf.mxu0
    %v8034 = vadd.f32 0.0, %v8033
    %v8035 = vpop.f32.mrf.mxu0
    %v8036 = vadd.f32 0.0, %v8035
    %v8037 = vpop.f32.mrf.mxu0
    %v8038 = vadd.f32 0.0, %v8037
    %8039 = vmatprep.mubr.bf16.mxu0 %v5272
    %8040 = vmatmul.mubr.bf16.gmra.mxu0 %v5271
    %v8041 = vpop.f32.mrf.mxu0
    %v8042 = vadd.f32 0.0, %v8041
    %v8043 = vpop.f32.mrf.mxu0
    %v8044 = vadd.f32 0.0, %v8043
    %v8045 = vpop.f32.mrf.mxu0
    %v8046 = vadd.f32 0.0, %v8045
    %v8047 = vpop.f32.mrf.mxu0
    %v8048 = vadd.f32 0.0, %v8047
    %8049 = vmatprep.mubr.bf16.mxu0 %v5274
    %8050 = vmatmul.mubr.bf16.gmra.mxu0 %v5273
    %v8051 = vpop.f32.mrf.mxu0
    %v8052 = vadd.f32 0.0, %v8051
    %v8053 = vpop.f32.mrf.mxu0
    %v8054 = vadd.f32 0.0, %v8053
    %v8055 = vpop.f32.mrf.mxu0
    %v8056 = vadd.f32 0.0, %v8055
    %v8057 = vpop.f32.mrf.mxu0
    %v8058 = vadd.f32 0.0, %v8057
    %8059 = vmatprep.mubr.bf16.mxu0 %v5280
    %8060 = vmatmul.mubr.bf16.gmra.mxu0 %v5279
    %v8061 = vpop.f32.mrf.mxu0
    %v8062 = vadd.f32 0.0, %v8061
    %v8063 = vpop.f32.mrf.mxu0
    %v8064 = vadd.f32 0.0, %v8063
    %v8065 = vpop.f32.mrf.mxu0
    %v8066 = vadd.f32 0.0, %v8065
    %v8067 = vpop.f32.mrf.mxu0
    %v8068 = vadd.f32 0.0, %v8067
    %8069 = vmatprep.mubr.bf16.mxu0 %v5282
    %8070 = vmatmul.mubr.bf16.gmra.mxu0 %v5281
    %v8071 = vpop.f32.mrf.mxu0
    %v8072 = vadd.f32 0.0, %v8071
    %v8073 = vpop.f32.mrf.mxu0
    %v8074 = vadd.f32 0.0, %v8073
    %v8075 = vpop.f32.mrf.mxu0
    %v8076 = vadd.f32 0.0, %v8075
    %v8077 = vpop.f32.mrf.mxu0
    %v8078 = vadd.f32 0.0, %v8077
    %8079 = vmatprep.mubr.bf16.mxu0 %v5288
    %8080 = vmatmul.mubr.bf16.gmra.mxu0 %v5287
    %v8081 = vpop.f32.mrf.mxu0
    %v8082 = vadd.f32 0.0, %v8081
    %v8083 = vpop.f32.mrf.mxu0
    %v8084 = vadd.f32 0.0, %v8083
    %v8085 = vpop.f32.mrf.mxu0
    %v8086 = vadd.f32 0.0, %v8085
    %v8087 = vpop.f32.mrf.mxu0
    %v8088 = vadd.f32 0.0, %v8087
    %8089 = vmatprep.mubr.bf16.mxu0 %v5290
    %8090 = vmatmul.mubr.bf16.gmra.mxu0 %v5289
    %v8091 = vpop.f32.mrf.mxu0
    %v8092 = vadd.f32 0.0, %v8091
    %v8093 = vpop.f32.mrf.mxu0
    %v8094 = vadd.f32 0.0, %v8093
    %v8095 = vpop.f32.mrf.mxu0
    %v8096 = vadd.f32 0.0, %v8095
    %v8097 = vpop.f32.mrf.mxu0
    %v8098 = vadd.f32 0.0, %v8097
    %8099 = vmatprep.mubr.bf16.mxu0 %v5296
    %8100 = vmatmul.mubr.bf16.gmra.mxu0 %v5295
    %v8101 = vpop.f32.mrf.mxu0
    %v8102 = vadd.f32 0.0, %v8101
    %v8103 = vpop.f32.mrf.mxu0
    %v8104 = vadd.f32 0.0, %v8103
    %v8105 = vpop.f32.mrf.mxu0
    %v8106 = vadd.f32 0.0, %v8105
    %v8107 = vpop.f32.mrf.mxu0
    %v8108 = vadd.f32 0.0, %v8107
    %8109 = vmatprep.mubr.bf16.mxu0 %v5298
    %8110 = vmatmul.mubr.bf16.gmra.mxu0 %v5297
    %v8111 = vpop.f32.mrf.mxu0
    %v8112 = vadd.f32 0.0, %v8111
    %v8113 = vpop.f32.mrf.mxu0
    %v8114 = vadd.f32 0.0, %v8113
    %v8115 = vpop.f32.mrf.mxu0
    %v8116 = vadd.f32 0.0, %v8115
    %v8117 = vpop.f32.mrf.mxu0
    %v8118 = vadd.f32 0.0, %v8117
    %8119 = vdwg.mxu0
    %v8120 = vadd.f32 %v7577, %v7962
    %v8121 = vadd.f32 %v7579, %v7964
    %v8122 = vadd.f32 %v7581, %v7966
    %v8123 = vadd.f32 %v7583, %v7968
    %v8124 = vadd.f32 %v7587, %v7972
    %v8125 = vadd.f32 %v7589, %v7974
    %v8126 = vadd.f32 %v7591, %v7976
    %v8127 = vadd.f32 %v7593, %v7978
    %v8128 = vadd.f32 %v7597, %v7982
    %v8129 = vadd.f32 %v7599, %v7984
    %v8130 = vadd.f32 %v7601, %v7986
    %v8131 = vadd.f32 %v7603, %v7988
    %v8132 = vadd.f32 %v7607, %v7992
    %v8133 = vadd.f32 %v7609, %v7994
    %v8134 = vadd.f32 %v7611, %v7996
    %v8135 = vadd.f32 %v7613, %v7998
    %v8136 = vadd.f32 %v7617, %v8002
    %v8137 = vadd.f32 %v7619, %v8004
    %v8138 = vadd.f32 %v7621, %v8006
    %v8139 = vadd.f32 %v7623, %v8008
    %v8140 = vadd.f32 %v7627, %v8012
    %v8141 = vadd.f32 %v7629, %v8014
    %v8142 = vadd.f32 %v7631, %v8016
    %v8143 = vadd.f32 %v7633, %v8018
    %v8144 = vadd.f32 %v7637, %v8022
    %v8145 = vadd.f32 %v7639, %v8024
    %v8146 = vadd.f32 %v7641, %v8026
    %v8147 = vadd.f32 %v7643, %v8028
    %v8148 = vadd.f32 %v7647, %v8032
    %v8149 = vadd.f32 %v7649, %v8034
    %v8150 = vadd.f32 %v7651, %v8036
    %v8151 = vadd.f32 %v7653, %v8038
    %v8152 = vadd.f32 %v7657, %v8042
    %v8153 = vadd.f32 %v7659, %v8044
    %v8154 = vadd.f32 %v7661, %v8046
    %v8155 = vadd.f32 %v7663, %v8048
    %v8156 = vadd.f32 %v7667, %v8052
    %v8157 = vadd.f32 %v7669, %v8054
    %v8158 = vadd.f32 %v7671, %v8056
    %v8159 = vadd.f32 %v7673, %v8058
    %v8160 = vadd.f32 %v7677, %v8062
    %v8161 = vadd.f32 %v7679, %v8064
    %v8162 = vadd.f32 %v7681, %v8066
    %v8163 = vadd.f32 %v7683, %v8068
    %v8164 = vadd.f32 %v7687, %v8072
    %v8165 = vadd.f32 %v7689, %v8074
    %v8166 = vadd.f32 %v7691, %v8076
    %v8167 = vadd.f32 %v7693, %v8078
    %v8168 = vadd.f32 %v7697, %v8082
    %v8169 = vadd.f32 %v7699, %v8084
    %v8170 = vadd.f32 %v7701, %v8086
    %v8171 = vadd.f32 %v7703, %v8088
    %v8172 = vadd.f32 %v7707, %v8092
    %v8173 = vadd.f32 %v7709, %v8094
    %v8174 = vadd.f32 %v7711, %v8096
    %v8175 = vadd.f32 %v7713, %v8098
    %v8176 = vadd.f32 %v7717, %v8102
    %v8177 = vadd.f32 %v7719, %v8104
    %v8178 = vadd.f32 %v7721, %v8106
    %v8179 = vadd.f32 %v7723, %v8108
    %v8180 = vadd.f32 %v7727, %v8112
    %v8181 = vadd.f32 %v7729, %v8114
    %v8182 = vadd.f32 %v7731, %v8116
    %v8183 = vadd.f32 %v7733, %v8118
    %v8184 = vmax.f32 %v8120, 0.0
    %v8185 = vmax.f32 %v8121, 0.0
    %v8186 = vmax.f32 %v8122, 0.0
    %v8187 = vmax.f32 %v8123, 0.0
    %v8188 = vmax.f32 %v8124, 0.0
    %v8189 = vmax.f32 %v8125, 0.0
    %v8190 = vmax.f32 %v8126, 0.0
    %v8191 = vmax.f32 %v8127, 0.0
    %v8192 = vmax.f32 %v8128, 0.0
    %v8193 = vmax.f32 %v8129, 0.0
    %v8194 = vmax.f32 %v8130, 0.0
    %v8195 = vmax.f32 %v8131, 0.0
    %v8196 = vmax.f32 %v8132, 0.0
    %v8197 = vmax.f32 %v8133, 0.0
    %v8198 = vmax.f32 %v8134, 0.0
    %v8199 = vmax.f32 %v8135, 0.0
    %v8200 = vmax.f32 %v8136, 0.0
    %v8201 = vmax.f32 %v8137, 0.0
    %v8202 = vmax.f32 %v8138, 0.0
    %v8203 = vmax.f32 %v8139, 0.0
    %v8204 = vmax.f32 %v8140, 0.0
    %v8205 = vmax.f32 %v8141, 0.0
    %v8206 = vmax.f32 %v8142, 0.0
    %v8207 = vmax.f32 %v8143, 0.0
    %v8208 = vmax.f32 %v8144, 0.0
    %v8209 = vmax.f32 %v8145, 0.0
    %v8210 = vmax.f32 %v8146, 0.0
    %v8211 = vmax.f32 %v8147, 0.0
    %v8212 = vmax.f32 %v8148, 0.0
    %v8213 = vmax.f32 %v8149, 0.0
    %v8214 = vmax.f32 %v8150, 0.0
    %v8215 = vmax.f32 %v8151, 0.0
    %v8216 = vmax.f32 %v8152, 0.0
    %v8217 = vmax.f32 %v8153, 0.0
    %v8218 = vmax.f32 %v8154, 0.0
    %v8219 = vmax.f32 %v8155, 0.0
    %v8220 = vmax.f32 %v8156, 0.0
    %v8221 = vmax.f32 %v8157, 0.0
    %v8222 = vmax.f32 %v8158, 0.0
    %v8223 = vmax.f32 %v8159, 0.0
    %v8224 = vmax.f32 %v8160, 0.0
    %v8225 = vmax.f32 %v8161, 0.0
    %v8226 = vmax.f32 %v8162, 0.0
    %v8227 = vmax.f32 %v8163, 0.0
    %v8228 = vmax.f32 %v8164, 0.0
    %v8229 = vmax.f32 %v8165, 0.0
    %v8230 = vmax.f32 %v8166, 0.0
    %v8231 = vmax.f32 %v8167, 0.0
    %v8232 = vmax.f32 %v8168, 0.0
    %v8233 = vmax.f32 %v8169, 0.0
    %v8234 = vmax.f32 %v8170, 0.0
    %v8235 = vmax.f32 %v8171, 0.0
    %v8236 = vmax.f32 %v8172, 0.0
    %v8237 = vmax.f32 %v8173, 0.0
    %v8238 = vmax.f32 %v8174, 0.0
    %v8239 = vmax.f32 %v8175, 0.0
    %v8240 = vmax.f32 %v8176, 0.0
    %v8241 = vmax.f32 %v8177, 0.0
    %v8242 = vmax.f32 %v8178, 0.0
    %v8243 = vmax.f32 %v8179, 0.0
    %v8244 = vmax.f32 %v8180, 0.0
    %v8245 = vmax.f32 %v8181, 0.0
    %v8246 = vmax.f32 %v8182, 0.0
    %v8247 = vmax.f32 %v8183, 0.0
    %v8248 = vpack.c.bf16 %v8186, %v8184
    %v8249 = vpack.c.bf16 %v8187, %v8185
    %v8250 = vpack.c.bf16 %v8190, %v8188
    %v8251 = vpack.c.bf16 %v8191, %v8189
    %v8252 = vpack.c.bf16 %v8194, %v8192
    %v8253 = vpack.c.bf16 %v8195, %v8193
    %v8254 = vpack.c.bf16 %v8198, %v8196
    %v8255 = vpack.c.bf16 %v8199, %v8197
    %v8256 = vpack.c.bf16 %v8202, %v8200
    %v8257 = vpack.c.bf16 %v8203, %v8201
    %v8258 = vpack.c.bf16 %v8206, %v8204
    %v8259 = vpack.c.bf16 %v8207, %v8205
    %v8260 = vpack.c.bf16 %v8210, %v8208
    %v8261 = vpack.c.bf16 %v8211, %v8209
    %v8262 = vpack.c.bf16 %v8214, %v8212
    %v8263 = vpack.c.bf16 %v8215, %v8213
    %v8264 = vpack.c.bf16 %v8218, %v8216
    %v8265 = vpack.c.bf16 %v8219, %v8217
    %v8266 = vpack.c.bf16 %v8222, %v8220
    %v8267 = vpack.c.bf16 %v8223, %v8221
    %v8268 = vpack.c.bf16 %v8226, %v8224
    %v8269 = vpack.c.bf16 %v8227, %v8225
    %v8270 = vpack.c.bf16 %v8230, %v8228
    %v8271 = vpack.c.bf16 %v8231, %v8229
    %v8272 = vpack.c.bf16 %v8234, %v8232
    %v8273 = vpack.c.bf16 %v8235, %v8233
    %v8274 = vpack.c.bf16 %v8238, %v8236
    %v8275 = vpack.c.bf16 %v8239, %v8237
    %v8276 = vpack.c.bf16 %v8242, %v8240
    %v8277 = vpack.c.bf16 %v8243, %v8241
    %v8278 = vpack.c.bf16 %v8246, %v8244
    %v8279 = vpack.c.bf16 %v8247, %v8245
    %v8280 = vld [vmem:[#allocation2 + $0xe80] sm:$0xff]
    %v8281 = vld [vmem:[#allocation2 + $0xe88] sm:$0xff]
    %v8282 = vld [vmem:[#allocation2 + $0xe90] sm:$0xff]
    %v8283 = vld [vmem:[#allocation2 + $0xe98] sm:$0xff]
    %v8284 = vld [vmem:[#allocation2 + $0xea0] sm:$0xff]
    %v8285 = vld [vmem:[#allocation2 + $0xea8] sm:$0xff]
    %v8286 = vld [vmem:[#allocation2 + $0xeb0] sm:$0xff]
    %v8287 = vld [vmem:[#allocation2 + $0xeb8] sm:$0xff]
    %v8288 = vld [vmem:[#allocation2 + $0xec0] sm:$0xff]
    %v8289 = vld [vmem:[#allocation2 + $0xec8] sm:$0xff]
    %v8290 = vld [vmem:[#allocation2 + $0xed0] sm:$0xff]
    %v8291 = vld [vmem:[#allocation2 + $0xed8] sm:$0xff]
    %v8292 = vld [vmem:[#allocation2 + $0xee0] sm:$0xff]
    %v8293 = vld [vmem:[#allocation2 + $0xee8] sm:$0xff]
    %v8294 = vld [vmem:[#allocation2 + $0xef0] sm:$0xff]
    %v8295 = vld [vmem:[#allocation2 + $0xef8] sm:$0xff]
    %v8296 = vld [vmem:[#allocation2 + $0xf00] sm:$0xff]
    %v8297 = vld [vmem:[#allocation2 + $0xf08] sm:$0xff]
    %v8298 = vld [vmem:[#allocation2 + $0xf10] sm:$0xff]
    %v8299 = vld [vmem:[#allocation2 + $0xf18] sm:$0xff]
    %v8300 = vld [vmem:[#allocation2 + $0xf20] sm:$0xff]
    %v8301 = vld [vmem:[#allocation2 + $0xf28] sm:$0xff]
    %v8302 = vld [vmem:[#allocation2 + $0xf30] sm:$0xff]
    %v8303 = vld [vmem:[#allocation2 + $0xf38] sm:$0xff]
    %v8304 = vld [vmem:[#allocation2 + $0xf40] sm:$0xff]
    %v8305 = vld [vmem:[#allocation2 + $0xf48] sm:$0xff]
    %v8306 = vld [vmem:[#allocation2 + $0xf50] sm:$0xff]
    %v8307 = vld [vmem:[#allocation2 + $0xf58] sm:$0xff]
    %v8308 = vld [vmem:[#allocation2 + $0xf60] sm:$0xff]
    %v8309 = vld [vmem:[#allocation2 + $0xf68] sm:$0xff]
    %v8310 = vld [vmem:[#allocation2 + $0xf70] sm:$0xff]
    %v8311 = vld [vmem:[#allocation2 + $0xf78] sm:$0xff]
    %v8312 = vld [vmem:[#allocation2 + $0xf80] sm:$0xff]
    %v8313 = vld [vmem:[#allocation2 + $0xf88] sm:$0xff]
    %v8314 = vld [vmem:[#allocation2 + $0xf90] sm:$0xff]
    %v8315 = vld [vmem:[#allocation2 + $0xf98] sm:$0xff]
    %v8316 = vld [vmem:[#allocation2 + $0xfa0] sm:$0xff]
    %v8317 = vld [vmem:[#allocation2 + $0xfa8] sm:$0xff]
    %v8318 = vld [vmem:[#allocation2 + $0xfb0] sm:$0xff]
    %v8319 = vld [vmem:[#allocation2 + $0xfb8] sm:$0xff]
    %v8320 = vld [vmem:[#allocation2 + $0xfc0] sm:$0xff]
    %v8321 = vld [vmem:[#allocation2 + $0xfc8] sm:$0xff]
    %v8322 = vld [vmem:[#allocation2 + $0xfd0] sm:$0xff]
    %v8323 = vld [vmem:[#allocation2 + $0xfd8] sm:$0xff]
    %v8324 = vld [vmem:[#allocation2 + $0xfe0] sm:$0xff]
    %v8325 = vld [vmem:[#allocation2 + $0xfe8] sm:$0xff]
    %v8326 = vld [vmem:[#allocation2 + $0xff0] sm:$0xff]
    %v8327 = vld [vmem:[#allocation2 + $0xff8] sm:$0xff]
    %v8328 = vld [vmem:[#allocation2 + $0x1000] sm:$0xff]
    %v8329 = vld [vmem:[#allocation2 + $0x1008] sm:$0xff]
    %v8330 = vld [vmem:[#allocation2 + $0x1010] sm:$0xff]
    %v8331 = vld [vmem:[#allocation2 + $0x1018] sm:$0xff]
    %v8332 = vld [vmem:[#allocation2 + $0x1020] sm:$0xff]
    %v8333 = vld [vmem:[#allocation2 + $0x1028] sm:$0xff]
    %v8334 = vld [vmem:[#allocation2 + $0x1030] sm:$0xff]
    %v8335 = vld [vmem:[#allocation2 + $0x1038] sm:$0xff]
    %v8336 = vld [vmem:[#allocation2 + $0x1040] sm:$0xff]
    %v8337 = vld [vmem:[#allocation2 + $0x1048] sm:$0xff]
    %v8338 = vld [vmem:[#allocation2 + $0x1050] sm:$0xff]
    %v8339 = vld [vmem:[#allocation2 + $0x1058] sm:$0xff]
    %v8340 = vld [vmem:[#allocation2 + $0x1060] sm:$0xff]
    %v8341 = vld [vmem:[#allocation2 + $0x1068] sm:$0xff]
    %v8342 = vld [vmem:[#allocation2 + $0x1070] sm:$0xff]
    %v8343 = vld [vmem:[#allocation2 + $0x1078] sm:$0xff]
    %v8344 = vld [vmem:[#allocation2 + $0x1080] sm:$0xff]
    %v8345 = vld [vmem:[#allocation2 + $0x1088] sm:$0xff]
    %v8346 = vld [vmem:[#allocation2 + $0x1090] sm:$0xff]
    %v8347 = vld [vmem:[#allocation2 + $0x1098] sm:$0xff]
    %v8348 = vld [vmem:[#allocation2 + $0x10a0] sm:$0xff]
    %v8349 = vld [vmem:[#allocation2 + $0x10a8] sm:$0xff]
    %v8350 = vld [vmem:[#allocation2 + $0x10b0] sm:$0xff]
    %v8351 = vld [vmem:[#allocation2 + $0x10b8] sm:$0xff]
    %v8352 = vld [vmem:[#allocation2 + $0x10c0] sm:$0xff]
    %v8353 = vld [vmem:[#allocation2 + $0x10c8] sm:$0xff]
    %v8354 = vld [vmem:[#allocation2 + $0x10d0] sm:$0xff]
    %v8355 = vld [vmem:[#allocation2 + $0x10d8] sm:$0xff]
    %v8356 = vld [vmem:[#allocation2 + $0x10e0] sm:$0xff]
    %v8357 = vld [vmem:[#allocation2 + $0x10e8] sm:$0xff]
    %v8358 = vld [vmem:[#allocation2 + $0x10f0] sm:$0xff]
    %v8359 = vld [vmem:[#allocation2 + $0x10f8] sm:$0xff]
    %v8360 = vld [vmem:[#allocation2 + $0x1100] sm:$0xff]
    %v8361 = vld [vmem:[#allocation2 + $0x1108] sm:$0xff]
    %v8362 = vld [vmem:[#allocation2 + $0x1110] sm:$0xff]
    %v8363 = vld [vmem:[#allocation2 + $0x1118] sm:$0xff]
    %v8364 = vld [vmem:[#allocation2 + $0x1120] sm:$0xff]
    %v8365 = vld [vmem:[#allocation2 + $0x1128] sm:$0xff]
    %v8366 = vld [vmem:[#allocation2 + $0x1130] sm:$0xff]
    %v8367 = vld [vmem:[#allocation2 + $0x1138] sm:$0xff]
    %v8368 = vld [vmem:[#allocation2 + $0x1140] sm:$0xff]
    %v8369 = vld [vmem:[#allocation2 + $0x1148] sm:$0xff]
    %v8370 = vld [vmem:[#allocation2 + $0x1150] sm:$0xff]
    %v8371 = vld [vmem:[#allocation2 + $0x1158] sm:$0xff]
    %v8372 = vld [vmem:[#allocation2 + $0x1160] sm:$0xff]
    %v8373 = vld [vmem:[#allocation2 + $0x1168] sm:$0xff]
    %v8374 = vld [vmem:[#allocation2 + $0x1170] sm:$0xff]
    %v8375 = vld [vmem:[#allocation2 + $0x1178] sm:$0xff]
    %s8376 = scalar_lea.vmem [#allocation4], 5
    %v8377 = vld [vmem:[%s8376] ss:$8 sm:$0x3]
    %v8379 = vlaneseq
    %v8380 = vshrl.u32 %v8379, 7
    %v8381 = vsub.s32 0, %v8380
    %v8382 = vrot.slane %v8377, %v8381
    %v8383 = vlaneseq
    %v8384 = vshrl.u32 %v8383, 7
    %v8385 = vsub.s32 1, %v8384
    %v8386 = vrot.slane %v8377, %v8385
    %v8485 = vunpack.c.l.b16 %v8280
    %v8486 = vunpack.c.h.b16 %v8280
    %v8487 = vunpack.c.l.b16 %v8281
    %v8488 = vunpack.c.h.b16 %v8281
    %v8489 = vunpack.c.l.b16 %v8282
    %v8490 = vunpack.c.h.b16 %v8282
    %v8491 = vunpack.c.l.b16 %v8283
    %v8492 = vunpack.c.h.b16 %v8283
    %v8493 = vunpack.c.l.b16 %v8284
    %v8494 = vunpack.c.h.b16 %v8284
    %v8495 = vunpack.c.l.b16 %v8285
    %v8496 = vunpack.c.h.b16 %v8285
    %v8497 = vunpack.c.l.b16 %v8286
    %v8498 = vunpack.c.h.b16 %v8286
    %v8499 = vunpack.c.l.b16 %v8287
    %v8500 = vunpack.c.h.b16 %v8287
    %v8501 = vunpack.c.l.b16 %v8288
    %v8502 = vunpack.c.h.b16 %v8288
    %v8503 = vunpack.c.l.b16 %v8289
    %v8504 = vunpack.c.h.b16 %v8289
    %v8505 = vunpack.c.l.b16 %v8290
    %v8506 = vunpack.c.h.b16 %v8290
    %v8507 = vunpack.c.l.b16 %v8291
    %v8508 = vunpack.c.h.b16 %v8291
    %v8509 = vunpack.c.l.b16 %v8292
    %v8510 = vunpack.c.h.b16 %v8292
    %v8511 = vunpack.c.l.b16 %v8293
    %v8512 = vunpack.c.h.b16 %v8293
    %v8513 = vunpack.c.l.b16 %v8294
    %v8514 = vunpack.c.h.b16 %v8294
    %v8515 = vunpack.c.l.b16 %v8295
    %v8516 = vunpack.c.h.b16 %v8295
    %v8517 = vunpack.c.l.b16 %v8296
    %v8518 = vunpack.c.h.b16 %v8296
    %v8519 = vunpack.c.l.b16 %v8297
    %v8520 = vunpack.c.h.b16 %v8297
    %v8521 = vunpack.c.l.b16 %v8298
    %v8522 = vunpack.c.h.b16 %v8298
    %v8523 = vunpack.c.l.b16 %v8299
    %v8524 = vunpack.c.h.b16 %v8299
    %v8525 = vunpack.c.l.b16 %v8300
    %v8526 = vunpack.c.h.b16 %v8300
    %v8527 = vunpack.c.l.b16 %v8301
    %v8528 = vunpack.c.h.b16 %v8301
    %v8529 = vunpack.c.l.b16 %v8302
    %v8530 = vunpack.c.h.b16 %v8302
    %v8531 = vunpack.c.l.b16 %v8303
    %v8532 = vunpack.c.h.b16 %v8303
    %v8533 = vunpack.c.l.b16 %v8304
    %v8534 = vunpack.c.h.b16 %v8304
    %v8535 = vunpack.c.l.b16 %v8305
    %v8536 = vunpack.c.h.b16 %v8305
    %v8537 = vunpack.c.l.b16 %v8306
    %v8538 = vunpack.c.h.b16 %v8306
    %v8539 = vunpack.c.l.b16 %v8307
    %v8540 = vunpack.c.h.b16 %v8307
    %v8541 = vunpack.c.l.b16 %v8308
    %v8542 = vunpack.c.h.b16 %v8308
    %v8543 = vunpack.c.l.b16 %v8309
    %v8544 = vunpack.c.h.b16 %v8309
    %v8545 = vunpack.c.l.b16 %v8310
    %v8546 = vunpack.c.h.b16 %v8310
    %v8547 = vunpack.c.l.b16 %v8311
    %v8548 = vunpack.c.h.b16 %v8311
    %v8549 = vunpack.c.l.b16 %v8312
    %v8550 = vunpack.c.h.b16 %v8312
    %v8551 = vunpack.c.l.b16 %v8313
    %v8552 = vunpack.c.h.b16 %v8313
    %v8553 = vunpack.c.l.b16 %v8314
    %v8554 = vunpack.c.h.b16 %v8314
    %v8555 = vunpack.c.l.b16 %v8315
    %v8556 = vunpack.c.h.b16 %v8315
    %v8557 = vunpack.c.l.b16 %v8316
    %v8558 = vunpack.c.h.b16 %v8316
    %v8559 = vunpack.c.l.b16 %v8317
    %v8560 = vunpack.c.h.b16 %v8317
    %v8561 = vunpack.c.l.b16 %v8318
    %v8562 = vunpack.c.h.b16 %v8318
    %v8563 = vunpack.c.l.b16 %v8319
    %v8564 = vunpack.c.h.b16 %v8319
    %v8565 = vunpack.c.l.b16 %v8320
    %v8566 = vunpack.c.h.b16 %v8320
    %v8567 = vunpack.c.l.b16 %v8321
    %v8568 = vunpack.c.h.b16 %v8321
    %v8569 = vunpack.c.l.b16 %v8322
    %v8570 = vunpack.c.h.b16 %v8322
    %v8571 = vunpack.c.l.b16 %v8323
    %v8572 = vunpack.c.h.b16 %v8323
    %v8573 = vunpack.c.l.b16 %v8324
    %v8574 = vunpack.c.h.b16 %v8324
    %v8575 = vunpack.c.l.b16 %v8325
    %v8576 = vunpack.c.h.b16 %v8325
    %v8577 = vunpack.c.l.b16 %v8326
    %v8578 = vunpack.c.h.b16 %v8326
    %v8579 = vunpack.c.l.b16 %v8327
    %v8580 = vunpack.c.h.b16 %v8327
    %v8581 = vunpack.c.l.b16 %v8328
    %v8582 = vunpack.c.h.b16 %v8328
    %v8583 = vunpack.c.l.b16 %v8329
    %v8584 = vunpack.c.h.b16 %v8329
    %v8585 = vunpack.c.l.b16 %v8330
    %v8586 = vunpack.c.h.b16 %v8330
    %v8587 = vunpack.c.l.b16 %v8331
    %v8588 = vunpack.c.h.b16 %v8331
    %v8589 = vunpack.c.l.b16 %v8332
    %v8590 = vunpack.c.h.b16 %v8332
    %v8591 = vunpack.c.l.b16 %v8333
    %v8592 = vunpack.c.h.b16 %v8333
    %v8593 = vunpack.c.l.b16 %v8334
    %v8594 = vunpack.c.h.b16 %v8334
    %v8595 = vunpack.c.l.b16 %v8335
    %v8596 = vunpack.c.h.b16 %v8335
    %v8597 = vunpack.c.l.b16 %v8336
    %v8598 = vunpack.c.h.b16 %v8336
    %v8599 = vunpack.c.l.b16 %v8337
    %v8600 = vunpack.c.h.b16 %v8337
    %v8601 = vunpack.c.l.b16 %v8338
    %v8602 = vunpack.c.h.b16 %v8338
    %v8603 = vunpack.c.l.b16 %v8339
    %v8604 = vunpack.c.h.b16 %v8339
    %v8605 = vunpack.c.l.b16 %v8340
    %v8606 = vunpack.c.h.b16 %v8340
    %v8607 = vunpack.c.l.b16 %v8341
    %v8608 = vunpack.c.h.b16 %v8341
    %v8609 = vunpack.c.l.b16 %v8342
    %v8610 = vunpack.c.h.b16 %v8342
    %v8611 = vunpack.c.l.b16 %v8343
    %v8612 = vunpack.c.h.b16 %v8343
    %v8613 = vunpack.c.l.b16 %v8344
    %v8614 = vunpack.c.h.b16 %v8344
    %v8615 = vunpack.c.l.b16 %v8345
    %v8616 = vunpack.c.h.b16 %v8345
    %v8617 = vunpack.c.l.b16 %v8346
    %v8618 = vunpack.c.h.b16 %v8346
    %v8619 = vunpack.c.l.b16 %v8347
    %v8620 = vunpack.c.h.b16 %v8347
    %v8621 = vunpack.c.l.b16 %v8348
    %v8622 = vunpack.c.h.b16 %v8348
    %v8623 = vunpack.c.l.b16 %v8349
    %v8624 = vunpack.c.h.b16 %v8349
    %v8625 = vunpack.c.l.b16 %v8350
    %v8626 = vunpack.c.h.b16 %v8350
    %v8627 = vunpack.c.l.b16 %v8351
    %v8628 = vunpack.c.h.b16 %v8351
    %v8629 = vunpack.c.l.b16 %v8352
    %v8630 = vunpack.c.h.b16 %v8352
    %v8631 = vunpack.c.l.b16 %v8353
    %v8632 = vunpack.c.h.b16 %v8353
    %v8633 = vunpack.c.l.b16 %v8354
    %v8634 = vunpack.c.h.b16 %v8354
    %v8635 = vunpack.c.l.b16 %v8355
    %v8636 = vunpack.c.h.b16 %v8355
    %v8637 = vunpack.c.l.b16 %v8356
    %v8638 = vunpack.c.h.b16 %v8356
    %v8639 = vunpack.c.l.b16 %v8357
    %v8640 = vunpack.c.h.b16 %v8357
    %v8641 = vunpack.c.l.b16 %v8358
    %v8642 = vunpack.c.h.b16 %v8358
    %v8643 = vunpack.c.l.b16 %v8359
    %v8644 = vunpack.c.h.b16 %v8359
    %v8645 = vunpack.c.l.b16 %v8360
    %v8646 = vunpack.c.h.b16 %v8360
    %v8647 = vunpack.c.l.b16 %v8361
    %v8648 = vunpack.c.h.b16 %v8361
    %v8649 = vunpack.c.l.b16 %v8362
    %v8650 = vunpack.c.h.b16 %v8362
    %v8651 = vunpack.c.l.b16 %v8363
    %v8652 = vunpack.c.h.b16 %v8363
    %v8653 = vunpack.c.l.b16 %v8364
    %v8654 = vunpack.c.h.b16 %v8364
    %v8655 = vunpack.c.l.b16 %v8365
    %v8656 = vunpack.c.h.b16 %v8365
    %v8657 = vunpack.c.l.b16 %v8366
    %v8658 = vunpack.c.h.b16 %v8366
    %v8659 = vunpack.c.l.b16 %v8367
    %v8660 = vunpack.c.h.b16 %v8367
    %v8661 = vunpack.c.l.b16 %v8368
    %v8662 = vunpack.c.h.b16 %v8368
    %v8663 = vunpack.c.l.b16 %v8369
    %v8664 = vunpack.c.h.b16 %v8369
    %v8665 = vunpack.c.l.b16 %v8370
    %v8666 = vunpack.c.h.b16 %v8370
    %v8667 = vunpack.c.l.b16 %v8371
    %v8668 = vunpack.c.h.b16 %v8371
    %v8669 = vunpack.c.l.b16 %v8372
    %v8670 = vunpack.c.h.b16 %v8372
    %v8671 = vunpack.c.l.b16 %v8373
    %v8672 = vunpack.c.h.b16 %v8373
    %v8673 = vunpack.c.l.b16 %v8374
    %v8674 = vunpack.c.h.b16 %v8374
    %v8675 = vunpack.c.l.b16 %v8375
    %v8676 = vunpack.c.h.b16 %v8375
    %v8677 = vpack.c.b16 %v8487, %v8485
    %v8678 = vpack.c.b16 %v8488, %v8486
    %v8679 = vpack.c.b16 %v8491, %v8489
    %v8680 = vpack.c.b16 %v8492, %v8490
    %v8681 = vpack.c.b16 %v8495, %v8493
    %v8682 = vpack.c.b16 %v8496, %v8494
    %v8683 = vpack.c.b16 %v8499, %v8497
    %v8684 = vpack.c.b16 %v8500, %v8498
    %v8685 = vpack.c.b16 %v8503, %v8501
    %v8686 = vpack.c.b16 %v8504, %v8502
    %v8687 = vpack.c.b16 %v8507, %v8505
    %v8688 = vpack.c.b16 %v8508, %v8506
    %v8689 = vpack.c.b16 %v8511, %v8509
    %v8690 = vpack.c.b16 %v8512, %v8510
    %v8691 = vpack.c.b16 %v8515, %v8513
    %v8692 = vpack.c.b16 %v8516, %v8514
    %v8693 = vpack.c.b16 %v8519, %v8517
    %v8694 = vpack.c.b16 %v8520, %v8518
    %v8695 = vpack.c.b16 %v8523, %v8521
    %v8696 = vpack.c.b16 %v8524, %v8522
    %v8697 = vpack.c.b16 %v8527, %v8525
    %v8698 = vpack.c.b16 %v8528, %v8526
    %v8699 = vpack.c.b16 %v8531, %v8529
    %v8700 = vpack.c.b16 %v8532, %v8530
    %v8701 = vpack.c.b16 %v8535, %v8533
    %v8702 = vpack.c.b16 %v8536, %v8534
    %v8703 = vpack.c.b16 %v8539, %v8537
    %v8704 = vpack.c.b16 %v8540, %v8538
    %v8705 = vpack.c.b16 %v8543, %v8541
    %v8706 = vpack.c.b16 %v8544, %v8542
    %v8707 = vpack.c.b16 %v8547, %v8545
    %v8708 = vpack.c.b16 %v8548, %v8546
    %v8709 = vpack.c.b16 %v8551, %v8549
    %v8710 = vpack.c.b16 %v8552, %v8550
    %v8711 = vpack.c.b16 %v8555, %v8553
    %v8712 = vpack.c.b16 %v8556, %v8554
    %v8713 = vpack.c.b16 %v8559, %v8557
    %v8714 = vpack.c.b16 %v8560, %v8558
    %v8715 = vpack.c.b16 %v8563, %v8561
    %v8716 = vpack.c.b16 %v8564, %v8562
    %v8717 = vpack.c.b16 %v8567, %v8565
    %v8718 = vpack.c.b16 %v8568, %v8566
    %v8719 = vpack.c.b16 %v8571, %v8569
    %v8720 = vpack.c.b16 %v8572, %v8570
    %v8721 = vpack.c.b16 %v8575, %v8573
    %v8722 = vpack.c.b16 %v8576, %v8574
    %v8723 = vpack.c.b16 %v8579, %v8577
    %v8724 = vpack.c.b16 %v8580, %v8578
    %v8725 = vpack.c.b16 %v8583, %v8581
    %v8726 = vpack.c.b16 %v8584, %v8582
    %v8727 = vpack.c.b16 %v8587, %v8585
    %v8728 = vpack.c.b16 %v8588, %v8586
    %v8729 = vpack.c.b16 %v8591, %v8589
    %v8730 = vpack.c.b16 %v8592, %v8590
    %v8731 = vpack.c.b16 %v8595, %v8593
    %v8732 = vpack.c.b16 %v8596, %v8594
    %v8733 = vpack.c.b16 %v8599, %v8597
    %v8734 = vpack.c.b16 %v8600, %v8598
    %v8735 = vpack.c.b16 %v8603, %v8601
    %v8736 = vpack.c.b16 %v8604, %v8602
    %v8737 = vpack.c.b16 %v8607, %v8605
    %v8738 = vpack.c.b16 %v8608, %v8606
    %v8739 = vpack.c.b16 %v8611, %v8609
    %v8740 = vpack.c.b16 %v8612, %v8610
    %v8741 = vpack.c.b16 %v8615, %v8613
    %v8742 = vpack.c.b16 %v8616, %v8614
    %v8743 = vpack.c.b16 %v8619, %v8617
    %v8744 = vpack.c.b16 %v8620, %v8618
    %v8745 = vpack.c.b16 %v8623, %v8621
    %v8746 = vpack.c.b16 %v8624, %v8622
    %v8747 = vpack.c.b16 %v8627, %v8625
    %v8748 = vpack.c.b16 %v8628, %v8626
    %v8749 = vpack.c.b16 %v8631, %v8629
    %v8750 = vpack.c.b16 %v8632, %v8630
    %v8751 = vpack.c.b16 %v8635, %v8633
    %v8752 = vpack.c.b16 %v8636, %v8634
    %v8753 = vpack.c.b16 %v8639, %v8637
    %v8754 = vpack.c.b16 %v8640, %v8638
    %v8755 = vpack.c.b16 %v8643, %v8641
    %v8756 = vpack.c.b16 %v8644, %v8642
    %v8757 = vpack.c.b16 %v8647, %v8645
    %v8758 = vpack.c.b16 %v8648, %v8646
    %v8759 = vpack.c.b16 %v8651, %v8649
    %v8760 = vpack.c.b16 %v8652, %v8650
    %v8761 = vpack.c.b16 %v8655, %v8653
    %v8762 = vpack.c.b16 %v8656, %v8654
    %v8763 = vpack.c.b16 %v8659, %v8657
    %v8764 = vpack.c.b16 %v8660, %v8658
    %v8765 = vpack.c.b16 %v8663, %v8661
    %v8766 = vpack.c.b16 %v8664, %v8662
    %v8767 = vpack.c.b16 %v8667, %v8665
    %v8768 = vpack.c.b16 %v8668, %v8666
    %v8769 = vpack.c.b16 %v8671, %v8669
    %v8770 = vpack.c.b16 %v8672, %v8670
    %v8771 = vpack.c.b16 %v8675, %v8673
    %v8772 = vpack.c.b16 %v8676, %v8674
    %8869 = vmatprep.subr.bf16.mxu0 %v8692
    %8870 = vmatpush1.bf16.msra.mxu0 %v8691
    %8871 = vmatprep.subr.bf16.mxu0 %v8690
    %8872 = vmatpush1.bf16.msra.mxu0 %v8689
    %8873 = vmatprep.subr.bf16.mxu0 %v8688
    %8874 = vmatpush1.bf16.msra.mxu0 %v8687
    %8875 = vmatprep.subr.bf16.mxu0 %v8686
    %8876 = vmatpush1.bf16.msra.mxu0 %v8685
    %8877 = vmatprep.subr.bf16.mxu0 %v8684
    %8878 = vmatpush1.bf16.msra.mxu0 %v8683
    %8879 = vmatprep.subr.bf16.mxu0 %v8682
    %8880 = vmatpush1.bf16.msra.mxu0 %v8681
    %8881 = vmatprep.subr.bf16.mxu0 %v8680
    %8882 = vmatpush1.bf16.msra.mxu0 %v8679
    %8883 = vmatprep.subr.bf16.mxu0 %v8678
    %8884 = vmatpush1.bf16.msra.mxu0 %v8677
    %8885 = vmatprep.subr.bf16.mxu0 %v8708
    %8886 = vmatpush2.bf16.msra.mxu0 %v8707
    %8887 = vmatprep.subr.bf16.mxu0 %v8706
    %8888 = vmatpush2.bf16.msra.mxu0 %v8705
    %8889 = vmatprep.subr.bf16.mxu0 %v8704
    %8890 = vmatpush2.bf16.msra.mxu0 %v8703
    %8891 = vmatprep.subr.bf16.mxu0 %v8702
    %8892 = vmatpush2.bf16.msra.mxu0 %v8701
    %8893 = vmatprep.subr.bf16.mxu0 %v8700
    %8894 = vmatpush2.bf16.msra.mxu0 %v8699
    %8895 = vmatprep.subr.bf16.mxu0 %v8698
    %8896 = vmatpush2.bf16.msra.mxu0 %v8697
    %8897 = vmatprep.subr.bf16.mxu0 %v8696
    %8898 = vmatpush2.bf16.msra.mxu0 %v8695
    %8899 = vmatprep.subr.bf16.mxu0 %v8694
    %8900 = vmatpush2.bf16.msra.mxu0 %v8693
    %8901 = vmatprep.mubr.bf16.mxu0 0
    %8902 = vmatmul.mubr.bf16.gmra.mxu0 0
    %v8903 = vpop.f32.mrf.mxu0
    %v8904 = vadd.f32 %v8382, %v8903
    %v8905 = vpop.f32.mrf.mxu0
    %v8906 = vadd.f32 %v8386, %v8905
    %v8907 = vpop.f32.mrf.mxu0
    %v8908 = vadd.f32 %v8382, %v8907
    %v8909 = vpop.f32.mrf.mxu0
    %v8910 = vadd.f32 %v8386, %v8909
    %8911 = vmatprep.mubr.bf16.mxu0 0
    %8912 = vmatmul.mubr.bf16.gmra.mxu0 0
    %v8913 = vpop.f32.mrf.mxu0
    %v8914 = vadd.f32 %v8382, %v8913
    %v8915 = vpop.f32.mrf.mxu0
    %v8916 = vadd.f32 %v8386, %v8915
    %v8917 = vpop.f32.mrf.mxu0
    %v8918 = vadd.f32 %v8382, %v8917
    %v8919 = vpop.f32.mrf.mxu0
    %v8920 = vadd.f32 %v8386, %v8919
    %8921 = vmatprep.mubr.bf16.mxu0 %v8253
    %8922 = vmatmul.mubr.bf16.gmra.mxu0 %v8252
    %v8923 = vpop.f32.mrf.mxu0
    %v8924 = vadd.f32 %v8382, %v8923
    %v8925 = vpop.f32.mrf.mxu0
    %v8926 = vadd.f32 %v8386, %v8925
    %v8927 = vpop.f32.mrf.mxu0
    %v8928 = vadd.f32 %v8382, %v8927
    %v8929 = vpop.f32.mrf.mxu0
    %v8930 = vadd.f32 %v8386, %v8929
    %8931 = vmatprep.mubr.bf16.mxu0 %v8255
    %8932 = vmatmul.mubr.bf16.gmra.mxu0 %v8254
    %v8933 = vpop.f32.mrf.mxu0
    %v8934 = vadd.f32 %v8382, %v8933
    %v8935 = vpop.f32.mrf.mxu0
    %v8936 = vadd.f32 %v8386, %v8935
    %v8937 = vpop.f32.mrf.mxu0
    %v8938 = vadd.f32 %v8382, %v8937
    %v8939 = vpop.f32.mrf.mxu0
    %v8940 = vadd.f32 %v8386, %v8939
    %8941 = vmatprep.mubr.bf16.mxu0 %v8261
    %8942 = vmatmul.mubr.bf16.gmra.mxu0 %v8260
    %v8943 = vpop.f32.mrf.mxu0
    %v8944 = vadd.f32 %v8382, %v8943
    %v8945 = vpop.f32.mrf.mxu0
    %v8946 = vadd.f32 %v8386, %v8945
    %v8947 = vpop.f32.mrf.mxu0
    %v8948 = vadd.f32 %v8382, %v8947
    %v8949 = vpop.f32.mrf.mxu0
    %v8950 = vadd.f32 %v8386, %v8949
    %8951 = vmatprep.mubr.bf16.mxu0 %v8263
    %8952 = vmatmul.mubr.bf16.gmra.mxu0 %v8262
    %v8953 = vpop.f32.mrf.mxu0
    %v8954 = vadd.f32 %v8382, %v8953
    %v8955 = vpop.f32.mrf.mxu0
    %v8956 = vadd.f32 %v8386, %v8955
    %v8957 = vpop.f32.mrf.mxu0
    %v8958 = vadd.f32 %v8382, %v8957
    %v8959 = vpop.f32.mrf.mxu0
    %v8960 = vadd.f32 %v8386, %v8959
    %8961 = vmatprep.mubr.bf16.mxu0 %v8269
    %8962 = vmatmul.mubr.bf16.gmra.mxu0 %v8268
    %v8963 = vpop.f32.mrf.mxu0
    %v8964 = vadd.f32 %v8382, %v8963
    %v8965 = vpop.f32.mrf.mxu0
    %v8966 = vadd.f32 %v8386, %v8965
    %v8967 = vpop.f32.mrf.mxu0
    %v8968 = vadd.f32 %v8382, %v8967
    %v8969 = vpop.f32.mrf.mxu0
    %v8970 = vadd.f32 %v8386, %v8969
    %8971 = vmatprep.mubr.bf16.mxu0 %v8271
    %8972 = vmatmul.mubr.bf16.gmra.mxu0 %v8270
    %v8973 = vpop.f32.mrf.mxu0
    %v8974 = vadd.f32 %v8382, %v8973
    %v8975 = vpop.f32.mrf.mxu0
    %v8976 = vadd.f32 %v8386, %v8975
    %v8977 = vpop.f32.mrf.mxu0
    %v8978 = vadd.f32 %v8382, %v8977
    %v8979 = vpop.f32.mrf.mxu0
    %v8980 = vadd.f32 %v8386, %v8979
    %8981 = vdwg.mxu0
    %8982 = vmatprep.subr.bf16.mxu0 %v8724
    %8983 = vmatpush1.bf16.msra.mxu0 %v8723
    %8984 = vmatprep.subr.bf16.mxu0 %v8722
    %8985 = vmatpush1.bf16.msra.mxu0 %v8721
    %8986 = vmatprep.subr.bf16.mxu0 %v8720
    %8987 = vmatpush1.bf16.msra.mxu0 %v8719
    %8988 = vmatprep.subr.bf16.mxu0 %v8718
    %8989 = vmatpush1.bf16.msra.mxu0 %v8717
    %8990 = vmatprep.subr.bf16.mxu0 %v8716
    %8991 = vmatpush1.bf16.msra.mxu0 %v8715
    %8992 = vmatprep.subr.bf16.mxu0 %v8714
    %8993 = vmatpush1.bf16.msra.mxu0 %v8713
    %8994 = vmatprep.subr.bf16.mxu0 %v8712
    %8995 = vmatpush1.bf16.msra.mxu0 %v8711
    %8996 = vmatprep.subr.bf16.mxu0 %v8710
    %8997 = vmatpush1.bf16.msra.mxu0 %v8709
    %8998 = vmatprep.subr.bf16.mxu0 %v8740
    %8999 = vmatpush2.bf16.msra.mxu0 %v8739
    %9000 = vmatprep.subr.bf16.mxu0 %v8738
    %9001 = vmatpush2.bf16.msra.mxu0 %v8737
    %9002 = vmatprep.subr.bf16.mxu0 %v8736
    %9003 = vmatpush2.bf16.msra.mxu0 %v8735
    %9004 = vmatprep.subr.bf16.mxu0 %v8734
    %9005 = vmatpush2.bf16.msra.mxu0 %v8733
    %9006 = vmatprep.subr.bf16.mxu0 %v8732
    %9007 = vmatpush2.bf16.msra.mxu0 %v8731
    %9008 = vmatprep.subr.bf16.mxu0 %v8730
    %9009 = vmatpush2.bf16.msra.mxu0 %v8729
    %9010 = vmatprep.subr.bf16.mxu0 %v8728
    %9011 = vmatpush2.bf16.msra.mxu0 %v8727
    %9012 = vmatprep.subr.bf16.mxu0 %v8726
    %9013 = vmatpush2.bf16.msra.mxu0 %v8725
    %9014 = vmatprep.mubr.bf16.mxu0 %v8249
    %9015 = vmatmul.mubr.bf16.gmra.mxu0 %v8248
    %v9016 = vpop.f32.mrf.mxu0
    %v9017 = vadd.f32 %v8904, %v9016
    %v9018 = vpop.f32.mrf.mxu0
    %v9019 = vadd.f32 %v8906, %v9018
    %v9020 = vpop.f32.mrf.mxu0
    %v9021 = vadd.f32 %v8908, %v9020
    %v9022 = vpop.f32.mrf.mxu0
    %v9023 = vadd.f32 %v8910, %v9022
    %9024 = vmatprep.mubr.bf16.mxu0 %v8251
    %9025 = vmatmul.mubr.bf16.gmra.mxu0 %v8250
    %v9026 = vpop.f32.mrf.mxu0
    %v9027 = vadd.f32 %v8914, %v9026
    %v9028 = vpop.f32.mrf.mxu0
    %v9029 = vadd.f32 %v8916, %v9028
    %v9030 = vpop.f32.mrf.mxu0
    %v9031 = vadd.f32 %v8918, %v9030
    %v9032 = vpop.f32.mrf.mxu0
    %v9033 = vadd.f32 %v8920, %v9032
    %9034 = vmatprep.mubr.bf16.mxu0 %v8257
    %9035 = vmatmul.mubr.bf16.gmra.mxu0 %v8256
    %v9036 = vpop.f32.mrf.mxu0
    %v9037 = vadd.f32 %v8924, %v9036
    %v9038 = vpop.f32.mrf.mxu0
    %v9039 = vadd.f32 %v8926, %v9038
    %v9040 = vpop.f32.mrf.mxu0
    %v9041 = vadd.f32 %v8928, %v9040
    %v9042 = vpop.f32.mrf.mxu0
    %v9043 = vadd.f32 %v8930, %v9042
    %9044 = vmatprep.mubr.bf16.mxu0 %v8259
    %9045 = vmatmul.mubr.bf16.gmra.mxu0 %v8258
    %v9046 = vpop.f32.mrf.mxu0
    %v9047 = vadd.f32 %v8934, %v9046
    %v9048 = vpop.f32.mrf.mxu0
    %v9049 = vadd.f32 %v8936, %v9048
    %v9050 = vpop.f32.mrf.mxu0
    %v9051 = vadd.f32 %v8938, %v9050
    %v9052 = vpop.f32.mrf.mxu0
    %v9053 = vadd.f32 %v8940, %v9052
    %9054 = vmatprep.mubr.bf16.mxu0 %v8265
    %9055 = vmatmul.mubr.bf16.gmra.mxu0 %v8264
    %v9056 = vpop.f32.mrf.mxu0
    %v9057 = vadd.f32 %v8944, %v9056
    %v9058 = vpop.f32.mrf.mxu0
    %v9059 = vadd.f32 %v8946, %v9058
    %v9060 = vpop.f32.mrf.mxu0
    %v9061 = vadd.f32 %v8948, %v9060
    %v9062 = vpop.f32.mrf.mxu0
    %v9063 = vadd.f32 %v8950, %v9062
    %9064 = vmatprep.mubr.bf16.mxu0 %v8267
    %9065 = vmatmul.mubr.bf16.gmra.mxu0 %v8266
    %v9066 = vpop.f32.mrf.mxu0
    %v9067 = vadd.f32 %v8954, %v9066
    %v9068 = vpop.f32.mrf.mxu0
    %v9069 = vadd.f32 %v8956, %v9068
    %v9070 = vpop.f32.mrf.mxu0
    %v9071 = vadd.f32 %v8958, %v9070
    %v9072 = vpop.f32.mrf.mxu0
    %v9073 = vadd.f32 %v8960, %v9072
    %9074 = vmatprep.mubr.bf16.mxu0 %v8273
    %9075 = vmatmul.mubr.bf16.gmra.mxu0 %v8272
    %v9076 = vpop.f32.mrf.mxu0
    %v9077 = vadd.f32 %v8964, %v9076
    %v9078 = vpop.f32.mrf.mxu0
    %v9079 = vadd.f32 %v8966, %v9078
    %v9080 = vpop.f32.mrf.mxu0
    %v9081 = vadd.f32 %v8968, %v9080
    %v9082 = vpop.f32.mrf.mxu0
    %v9083 = vadd.f32 %v8970, %v9082
    %9084 = vmatprep.mubr.bf16.mxu0 %v8275
    %9085 = vmatmul.mubr.bf16.gmra.mxu0 %v8274
    %v9086 = vpop.f32.mrf.mxu0
    %v9087 = vadd.f32 %v8974, %v9086
    %v9088 = vpop.f32.mrf.mxu0
    %v9089 = vadd.f32 %v8976, %v9088
    %v9090 = vpop.f32.mrf.mxu0
    %v9091 = vadd.f32 %v8978, %v9090
    %v9092 = vpop.f32.mrf.mxu0
    %v9093 = vadd.f32 %v8980, %v9092
    %9094 = vdwg.mxu0
    %9095 = vmatprep.subr.bf16.mxu0 %v8756
    %9096 = vmatpush1.bf16.msra.mxu0 %v8755
    %9097 = vmatprep.subr.bf16.mxu0 %v8754
    %9098 = vmatpush1.bf16.msra.mxu0 %v8753
    %9099 = vmatprep.subr.bf16.mxu0 %v8752
    %9100 = vmatpush1.bf16.msra.mxu0 %v8751
    %9101 = vmatprep.subr.bf16.mxu0 %v8750
    %9102 = vmatpush1.bf16.msra.mxu0 %v8749
    %9103 = vmatprep.subr.bf16.mxu0 %v8748
    %9104 = vmatpush1.bf16.msra.mxu0 %v8747
    %9105 = vmatprep.subr.bf16.mxu0 %v8746
    %9106 = vmatpush1.bf16.msra.mxu0 %v8745
    %9107 = vmatprep.subr.bf16.mxu0 %v8744
    %9108 = vmatpush1.bf16.msra.mxu0 %v8743
    %9109 = vmatprep.subr.bf16.mxu0 %v8742
    %9110 = vmatpush1.bf16.msra.mxu0 %v8741
    %9111 = vmatprep.subr.bf16.mxu0 %v8772
    %9112 = vmatpush2.bf16.msra.mxu0 %v8771
    %9113 = vmatprep.subr.bf16.mxu0 %v8770
    %9114 = vmatpush2.bf16.msra.mxu0 %v8769
    %9115 = vmatprep.subr.bf16.mxu0 %v8768
    %9116 = vmatpush2.bf16.msra.mxu0 %v8767
    %9117 = vmatprep.subr.bf16.mxu0 %v8766
    %9118 = vmatpush2.bf16.msra.mxu0 %v8765
    %9119 = vmatprep.subr.bf16.mxu0 %v8764
    %9120 = vmatpush2.bf16.msra.mxu0 %v8763
    %9121 = vmatprep.subr.bf16.mxu0 %v8762
    %9122 = vmatpush2.bf16.msra.mxu0 %v8761
    %9123 = vmatprep.subr.bf16.mxu0 %v8760
    %9124 = vmatpush2.bf16.msra.mxu0 %v8759
    %9125 = vmatprep.subr.bf16.mxu0 %v8758
    %9126 = vmatpush2.bf16.msra.mxu0 %v8757
    %9127 = vmatprep.mubr.bf16.mxu0 %v8253
    %9128 = vmatmul.mubr.bf16.gmra.mxu0 %v8252
    %v9129 = vpop.f32.mrf.mxu0
    %v9130 = vadd.f32 %v9017, %v9129
    %v9131 = vpop.f32.mrf.mxu0
    %v9132 = vadd.f32 %v9019, %v9131
    %v9133 = vpop.f32.mrf.mxu0
    %v9134 = vadd.f32 %v9021, %v9133
    %v9135 = vpop.f32.mrf.mxu0
    %v9136 = vadd.f32 %v9023, %v9135
    %9137 = vmatprep.mubr.bf16.mxu0 %v8255
    %9138 = vmatmul.mubr.bf16.gmra.mxu0 %v8254
    %v9139 = vpop.f32.mrf.mxu0
    %v9140 = vadd.f32 %v9027, %v9139
    %v9141 = vpop.f32.mrf.mxu0
    %v9142 = vadd.f32 %v9029, %v9141
    %v9143 = vpop.f32.mrf.mxu0
    %v9144 = vadd.f32 %v9031, %v9143
    %v9145 = vpop.f32.mrf.mxu0
    %v9146 = vadd.f32 %v9033, %v9145
    %9147 = vmatprep.mubr.bf16.mxu0 %v8261
    %9148 = vmatmul.mubr.bf16.gmra.mxu0 %v8260
    %v9149 = vpop.f32.mrf.mxu0
    %v9150 = vadd.f32 %v9037, %v9149
    %v9151 = vpop.f32.mrf.mxu0
    %v9152 = vadd.f32 %v9039, %v9151
    %v9153 = vpop.f32.mrf.mxu0
    %v9154 = vadd.f32 %v9041, %v9153
    %v9155 = vpop.f32.mrf.mxu0
    %v9156 = vadd.f32 %v9043, %v9155
    %9157 = vmatprep.mubr.bf16.mxu0 %v8263
    %9158 = vmatmul.mubr.bf16.gmra.mxu0 %v8262
    %v9159 = vpop.f32.mrf.mxu0
    %v9160 = vadd.f32 %v9047, %v9159
    %v9161 = vpop.f32.mrf.mxu0
    %v9162 = vadd.f32 %v9049, %v9161
    %v9163 = vpop.f32.mrf.mxu0
    %v9164 = vadd.f32 %v9051, %v9163
    %v9165 = vpop.f32.mrf.mxu0
    %v9166 = vadd.f32 %v9053, %v9165
    %9167 = vmatprep.mubr.bf16.mxu0 %v8269
    %9168 = vmatmul.mubr.bf16.gmra.mxu0 %v8268
    %v9169 = vpop.f32.mrf.mxu0
    %v9170 = vadd.f32 %v9057, %v9169
    %v9171 = vpop.f32.mrf.mxu0
    %v9172 = vadd.f32 %v9059, %v9171
    %v9173 = vpop.f32.mrf.mxu0
    %v9174 = vadd.f32 %v9061, %v9173
    %v9175 = vpop.f32.mrf.mxu0
    %v9176 = vadd.f32 %v9063, %v9175
    %9177 = vmatprep.mubr.bf16.mxu0 %v8271
    %9178 = vmatmul.mubr.bf16.gmra.mxu0 %v8270
    %v9179 = vpop.f32.mrf.mxu0
    %v9180 = vadd.f32 %v9067, %v9179
    %v9181 = vpop.f32.mrf.mxu0
    %v9182 = vadd.f32 %v9069, %v9181
    %v9183 = vpop.f32.mrf.mxu0
    %v9184 = vadd.f32 %v9071, %v9183
    %v9185 = vpop.f32.mrf.mxu0
    %v9186 = vadd.f32 %v9073, %v9185
    %9187 = vmatprep.mubr.bf16.mxu0 %v8277
    %9188 = vmatmul.mubr.bf16.gmra.mxu0 %v8276
    %v9189 = vpop.f32.mrf.mxu0
    %v9190 = vadd.f32 %v9077, %v9189
    %v9191 = vpop.f32.mrf.mxu0
    %v9192 = vadd.f32 %v9079, %v9191
    %v9193 = vpop.f32.mrf.mxu0
    %v9194 = vadd.f32 %v9081, %v9193
    %v9195 = vpop.f32.mrf.mxu0
    %v9196 = vadd.f32 %v9083, %v9195
    %9197 = vmatprep.mubr.bf16.mxu0 %v8279
    %9198 = vmatmul.mubr.bf16.gmra.mxu0 %v8278
    %v9199 = vpop.f32.mrf.mxu0
    %v9200 = vadd.f32 %v9087, %v9199
    %v9201 = vpop.f32.mrf.mxu0
    %v9202 = vadd.f32 %v9089, %v9201
    %v9203 = vpop.f32.mrf.mxu0
    %v9204 = vadd.f32 %v9091, %v9203
    %v9205 = vpop.f32.mrf.mxu0
    %v9206 = vadd.f32 %v9093, %v9205
    %9207 = vdwg.mxu0
    %v9208 = vmax.f32 %v9130, 0.0
    %v9209 = vmax.f32 %v9132, 0.0
    %v9210 = vmax.f32 %v9134, 0.0
    %v9211 = vmax.f32 %v9136, 0.0
    %v9212 = vmax.f32 %v9140, 0.0
    %v9213 = vmax.f32 %v9142, 0.0
    %v9214 = vmax.f32 %v9144, 0.0
    %v9215 = vmax.f32 %v9146, 0.0
    %v9216 = vmax.f32 %v9150, 0.0
    %v9217 = vmax.f32 %v9152, 0.0
    %v9218 = vmax.f32 %v9154, 0.0
    %v9219 = vmax.f32 %v9156, 0.0
    %v9220 = vmax.f32 %v9160, 0.0
    %v9221 = vmax.f32 %v9162, 0.0
    %v9222 = vmax.f32 %v9164, 0.0
    %v9223 = vmax.f32 %v9166, 0.0
    %v9224 = vmax.f32 %v9170, 0.0
    %v9225 = vmax.f32 %v9172, 0.0
    %v9226 = vmax.f32 %v9174, 0.0
    %v9227 = vmax.f32 %v9176, 0.0
    %v9228 = vmax.f32 %v9180, 0.0
    %v9229 = vmax.f32 %v9182, 0.0
    %v9230 = vmax.f32 %v9184, 0.0
    %v9231 = vmax.f32 %v9186, 0.0
    %v9232 = vmax.f32 %v9190, 0.0
    %v9233 = vmax.f32 %v9192, 0.0
    %v9234 = vmax.f32 %v9194, 0.0
    %v9235 = vmax.f32 %v9196, 0.0
    %v9236 = vmax.f32 %v9200, 0.0
    %v9237 = vmax.f32 %v9202, 0.0
    %v9238 = vmax.f32 %v9204, 0.0
    %v9239 = vmax.f32 %v9206, 0.0
    %v9240 = vpack.c.bf16 %v9210, %v9208
    %v9241 = vpack.c.bf16 %v9211, %v9209
    %v9242 = vpack.c.bf16 %v9214, %v9212
    %v9243 = vpack.c.bf16 %v9215, %v9213
    %v9244 = vpack.c.bf16 %v9218, %v9216
    %v9245 = vpack.c.bf16 %v9219, %v9217
    %v9246 = vpack.c.bf16 %v9222, %v9220
    %v9247 = vpack.c.bf16 %v9223, %v9221
    %v9248 = vpack.c.bf16 %v9226, %v9224
    %v9249 = vpack.c.bf16 %v9227, %v9225
    %v9250 = vpack.c.bf16 %v9230, %v9228
    %v9251 = vpack.c.bf16 %v9231, %v9229
    %v9252 = vpack.c.bf16 %v9234, %v9232
    %v9253 = vpack.c.bf16 %v9235, %v9233
    %v9254 = vpack.c.bf16 %v9238, %v9236
    %v9255 = vpack.c.bf16 %v9239, %v9237
    %v9256 = vld [vmem:[#allocation2 + $0x1180] sm:$0xff]
    %v9257 = vld [vmem:[#allocation2 + $0x1188] sm:$0xff]
    %v9258 = vld [vmem:[#allocation2 + $0x1190] sm:$0xff]
    %v9259 = vld [vmem:[#allocation2 + $0x1198] sm:$0xff]
    %v9260 = vld [vmem:[#allocation2 + $0x11a0] sm:$0xff]
    %v9261 = vld [vmem:[#allocation2 + $0x11a8] sm:$0xff]
    %v9262 = vld [vmem:[#allocation2 + $0x11b0] sm:$0xff]
    %v9263 = vld [vmem:[#allocation2 + $0x11b8] sm:$0xff]
    %v9264 = vld [vmem:[#allocation2 + $0x11c0] sm:$0xff]
    %v9265 = vld [vmem:[#allocation2 + $0x11c8] sm:$0xff]
    %v9266 = vld [vmem:[#allocation2 + $0x11d0] sm:$0xff]
    %v9267 = vld [vmem:[#allocation2 + $0x11d8] sm:$0xff]
    %v9268 = vld [vmem:[#allocation2 + $0x11e0] sm:$0xff]
    %v9269 = vld [vmem:[#allocation2 + $0x11e8] sm:$0xff]
    %v9270 = vld [vmem:[#allocation2 + $0x11f0] sm:$0xff]
    %v9271 = vld [vmem:[#allocation2 + $0x11f8] sm:$0xff]
    %v9272 = vld [vmem:[#allocation2 + $0x1200] sm:$0xff]
    %v9273 = vld [vmem:[#allocation2 + $0x1208] sm:$0xff]
    %v9274 = vld [vmem:[#allocation2 + $0x1210] sm:$0xff]
    %v9275 = vld [vmem:[#allocation2 + $0x1218] sm:$0xff]
    %v9276 = vld [vmem:[#allocation2 + $0x1220] sm:$0xff]
    %v9277 = vld [vmem:[#allocation2 + $0x1228] sm:$0xff]
    %v9278 = vld [vmem:[#allocation2 + $0x1230] sm:$0xff]
    %v9279 = vld [vmem:[#allocation2 + $0x1238] sm:$0xff]
    %v9280 = vld [vmem:[#allocation2 + $0x1240] sm:$0xff]
    %v9281 = vld [vmem:[#allocation2 + $0x1248] sm:$0xff]
    %v9282 = vld [vmem:[#allocation2 + $0x1250] sm:$0xff]
    %v9283 = vld [vmem:[#allocation2 + $0x1258] sm:$0xff]
    %v9284 = vld [vmem:[#allocation2 + $0x1260] sm:$0xff]
    %v9285 = vld [vmem:[#allocation2 + $0x1268] sm:$0xff]
    %v9286 = vld [vmem:[#allocation2 + $0x1270] sm:$0xff]
    %v9287 = vld [vmem:[#allocation2 + $0x1278] sm:$0xff]
    %v9288 = vld [vmem:[#allocation2 + $0x1280] sm:$0xff]
    %v9289 = vld [vmem:[#allocation2 + $0x1288] sm:$0xff]
    %v9290 = vld [vmem:[#allocation2 + $0x1290] sm:$0xff]
    %v9291 = vld [vmem:[#allocation2 + $0x1298] sm:$0xff]
    %v9292 = vld [vmem:[#allocation2 + $0x12a0] sm:$0xff]
    %v9293 = vld [vmem:[#allocation2 + $0x12a8] sm:$0xff]
    %v9294 = vld [vmem:[#allocation2 + $0x12b0] sm:$0xff]
    %v9295 = vld [vmem:[#allocation2 + $0x12b8] sm:$0xff]
    %v9296 = vld [vmem:[#allocation2 + $0x12c0] sm:$0xff]
    %v9297 = vld [vmem:[#allocation2 + $0x12c8] sm:$0xff]
    %v9298 = vld [vmem:[#allocation2 + $0x12d0] sm:$0xff]
    %v9299 = vld [vmem:[#allocation2 + $0x12d8] sm:$0xff]
    %v9300 = vld [vmem:[#allocation2 + $0x12e0] sm:$0xff]
    %v9301 = vld [vmem:[#allocation2 + $0x12e8] sm:$0xff]
    %v9302 = vld [vmem:[#allocation2 + $0x12f0] sm:$0xff]
    %v9303 = vld [vmem:[#allocation2 + $0x12f8] sm:$0xff]
    %v9304 = vld [vmem:[#allocation2 + $0x1300] sm:$0xff]
    %v9305 = vld [vmem:[#allocation2 + $0x1308] sm:$0xff]
    %v9306 = vld [vmem:[#allocation2 + $0x1310] sm:$0xff]
    %v9307 = vld [vmem:[#allocation2 + $0x1318] sm:$0xff]
    %v9308 = vld [vmem:[#allocation2 + $0x1320] sm:$0xff]
    %v9309 = vld [vmem:[#allocation2 + $0x1328] sm:$0xff]
    %v9310 = vld [vmem:[#allocation2 + $0x1330] sm:$0xff]
    %v9311 = vld [vmem:[#allocation2 + $0x1338] sm:$0xff]
    %v9312 = vld [vmem:[#allocation2 + $0x1340] sm:$0xff]
    %v9313 = vld [vmem:[#allocation2 + $0x1348] sm:$0xff]
    %v9314 = vld [vmem:[#allocation2 + $0x1350] sm:$0xff]
    %v9315 = vld [vmem:[#allocation2 + $0x1358] sm:$0xff]
    %v9316 = vld [vmem:[#allocation2 + $0x1360] sm:$0xff]
    %v9317 = vld [vmem:[#allocation2 + $0x1368] sm:$0xff]
    %v9318 = vld [vmem:[#allocation2 + $0x1370] sm:$0xff]
    %v9319 = vld [vmem:[#allocation2 + $0x1378] sm:$0xff]
    %v9320 = vld [vmem:[#allocation2 + $0x1380] sm:$0xff]
    %v9321 = vld [vmem:[#allocation2 + $0x1388] sm:$0xff]
    %v9322 = vld [vmem:[#allocation2 + $0x1390] sm:$0xff]
    %v9323 = vld [vmem:[#allocation2 + $0x1398] sm:$0xff]
    %v9324 = vld [vmem:[#allocation2 + $0x13a0] sm:$0xff]
    %v9325 = vld [vmem:[#allocation2 + $0x13a8] sm:$0xff]
    %v9326 = vld [vmem:[#allocation2 + $0x13b0] sm:$0xff]
    %v9327 = vld [vmem:[#allocation2 + $0x13b8] sm:$0xff]
    %v9328 = vld [vmem:[#allocation2 + $0x13c0] sm:$0xff]
    %v9329 = vld [vmem:[#allocation2 + $0x13c8] sm:$0xff]
    %v9330 = vld [vmem:[#allocation2 + $0x13d0] sm:$0xff]
    %v9331 = vld [vmem:[#allocation2 + $0x13d8] sm:$0xff]
    %v9332 = vld [vmem:[#allocation2 + $0x13e0] sm:$0xff]
    %v9333 = vld [vmem:[#allocation2 + $0x13e8] sm:$0xff]
    %v9334 = vld [vmem:[#allocation2 + $0x13f0] sm:$0xff]
    %v9335 = vld [vmem:[#allocation2 + $0x13f8] sm:$0xff]
    %v9336 = vld [vmem:[#allocation2 + $0x1400] sm:$0xff]
    %v9337 = vld [vmem:[#allocation2 + $0x1408] sm:$0xff]
    %v9338 = vld [vmem:[#allocation2 + $0x1410] sm:$0xff]
    %v9339 = vld [vmem:[#allocation2 + $0x1418] sm:$0xff]
    %v9340 = vld [vmem:[#allocation2 + $0x1420] sm:$0xff]
    %v9341 = vld [vmem:[#allocation2 + $0x1428] sm:$0xff]
    %v9342 = vld [vmem:[#allocation2 + $0x1430] sm:$0xff]
    %v9343 = vld [vmem:[#allocation2 + $0x1438] sm:$0xff]
    %v9344 = vld [vmem:[#allocation2 + $0x1440] sm:$0xff]
    %v9345 = vld [vmem:[#allocation2 + $0x1448] sm:$0xff]
    %v9346 = vld [vmem:[#allocation2 + $0x1450] sm:$0xff]
    %v9347 = vld [vmem:[#allocation2 + $0x1458] sm:$0xff]
    %v9348 = vld [vmem:[#allocation2 + $0x1460] sm:$0xff]
    %v9349 = vld [vmem:[#allocation2 + $0x1468] sm:$0xff]
    %v9350 = vld [vmem:[#allocation2 + $0x1470] sm:$0xff]
    %v9351 = vld [vmem:[#allocation2 + $0x1478] sm:$0xff]
    %s9352 = scalar_lea.vmem [#allocation4], 6
    %v9353 = vld [vmem:[%s9352] ss:$8 sm:$0x3]
    %v9355 = vlaneseq
    %v9356 = vshrl.u32 %v9355, 7
    %v9357 = vsub.s32 0, %v9356
    %v9358 = vrot.slane %v9353, %v9357
    %v9359 = vlaneseq
    %v9360 = vshrl.u32 %v9359, 7
    %v9361 = vsub.s32 1, %v9360
    %v9362 = vrot.slane %v9353, %v9361
    %v9461 = vunpack.c.l.b16 %v9256
    %v9462 = vunpack.c.h.b16 %v9256
    %v9463 = vunpack.c.l.b16 %v9257
    %v9464 = vunpack.c.h.b16 %v9257
    %v9465 = vunpack.c.l.b16 %v9258
    %v9466 = vunpack.c.h.b16 %v9258
    %v9467 = vunpack.c.l.b16 %v9259
    %v9468 = vunpack.c.h.b16 %v9259
    %v9469 = vunpack.c.l.b16 %v9260
    %v9470 = vunpack.c.h.b16 %v9260
    %v9471 = vunpack.c.l.b16 %v9261
    %v9472 = vunpack.c.h.b16 %v9261
    %v9473 = vunpack.c.l.b16 %v9262
    %v9474 = vunpack.c.h.b16 %v9262
    %v9475 = vunpack.c.l.b16 %v9263
    %v9476 = vunpack.c.h.b16 %v9263
    %v9477 = vunpack.c.l.b16 %v9264
    %v9478 = vunpack.c.h.b16 %v9264
    %v9479 = vunpack.c.l.b16 %v9265
    %v9480 = vunpack.c.h.b16 %v9265
    %v9481 = vunpack.c.l.b16 %v9266
    %v9482 = vunpack.c.h.b16 %v9266
    %v9483 = vunpack.c.l.b16 %v9267
    %v9484 = vunpack.c.h.b16 %v9267
    %v9485 = vunpack.c.l.b16 %v9268
    %v9486 = vunpack.c.h.b16 %v9268
    %v9487 = vunpack.c.l.b16 %v9269
    %v9488 = vunpack.c.h.b16 %v9269
    %v9489 = vunpack.c.l.b16 %v9270
    %v9490 = vunpack.c.h.b16 %v9270
    %v9491 = vunpack.c.l.b16 %v9271
    %v9492 = vunpack.c.h.b16 %v9271
    %v9493 = vunpack.c.l.b16 %v9272
    %v9494 = vunpack.c.h.b16 %v9272
    %v9495 = vunpack.c.l.b16 %v9273
    %v9496 = vunpack.c.h.b16 %v9273
    %v9497 = vunpack.c.l.b16 %v9274
    %v9498 = vunpack.c.h.b16 %v9274
    %v9499 = vunpack.c.l.b16 %v9275
    %v9500 = vunpack.c.h.b16 %v9275
    %v9501 = vunpack.c.l.b16 %v9276
    %v9502 = vunpack.c.h.b16 %v9276
    %v9503 = vunpack.c.l.b16 %v9277
    %v9504 = vunpack.c.h.b16 %v9277
    %v9505 = vunpack.c.l.b16 %v9278
    %v9506 = vunpack.c.h.b16 %v9278
    %v9507 = vunpack.c.l.b16 %v9279
    %v9508 = vunpack.c.h.b16 %v9279
    %v9509 = vunpack.c.l.b16 %v9280
    %v9510 = vunpack.c.h.b16 %v9280
    %v9511 = vunpack.c.l.b16 %v9281
    %v9512 = vunpack.c.h.b16 %v9281
    %v9513 = vunpack.c.l.b16 %v9282
    %v9514 = vunpack.c.h.b16 %v9282
    %v9515 = vunpack.c.l.b16 %v9283
    %v9516 = vunpack.c.h.b16 %v9283
    %v9517 = vunpack.c.l.b16 %v9284
    %v9518 = vunpack.c.h.b16 %v9284
    %v9519 = vunpack.c.l.b16 %v9285
    %v9520 = vunpack.c.h.b16 %v9285
    %v9521 = vunpack.c.l.b16 %v9286
    %v9522 = vunpack.c.h.b16 %v9286
    %v9523 = vunpack.c.l.b16 %v9287
    %v9524 = vunpack.c.h.b16 %v9287
    %v9525 = vunpack.c.l.b16 %v9288
    %v9526 = vunpack.c.h.b16 %v9288
    %v9527 = vunpack.c.l.b16 %v9289
    %v9528 = vunpack.c.h.b16 %v9289
    %v9529 = vunpack.c.l.b16 %v9290
    %v9530 = vunpack.c.h.b16 %v9290
    %v9531 = vunpack.c.l.b16 %v9291
    %v9532 = vunpack.c.h.b16 %v9291
    %v9533 = vunpack.c.l.b16 %v9292
    %v9534 = vunpack.c.h.b16 %v9292
    %v9535 = vunpack.c.l.b16 %v9293
    %v9536 = vunpack.c.h.b16 %v9293
    %v9537 = vunpack.c.l.b16 %v9294
    %v9538 = vunpack.c.h.b16 %v9294
    %v9539 = vunpack.c.l.b16 %v9295
    %v9540 = vunpack.c.h.b16 %v9295
    %v9541 = vunpack.c.l.b16 %v9296
    %v9542 = vunpack.c.h.b16 %v9296
    %v9543 = vunpack.c.l.b16 %v9297
    %v9544 = vunpack.c.h.b16 %v9297
    %v9545 = vunpack.c.l.b16 %v9298
    %v9546 = vunpack.c.h.b16 %v9298
    %v9547 = vunpack.c.l.b16 %v9299
    %v9548 = vunpack.c.h.b16 %v9299
    %v9549 = vunpack.c.l.b16 %v9300
    %v9550 = vunpack.c.h.b16 %v9300
    %v9551 = vunpack.c.l.b16 %v9301
    %v9552 = vunpack.c.h.b16 %v9301
    %v9553 = vunpack.c.l.b16 %v9302
    %v9554 = vunpack.c.h.b16 %v9302
    %v9555 = vunpack.c.l.b16 %v9303
    %v9556 = vunpack.c.h.b16 %v9303
    %v9557 = vunpack.c.l.b16 %v9304
    %v9558 = vunpack.c.h.b16 %v9304
    %v9559 = vunpack.c.l.b16 %v9305
    %v9560 = vunpack.c.h.b16 %v9305
    %v9561 = vunpack.c.l.b16 %v9306
    %v9562 = vunpack.c.h.b16 %v9306
    %v9563 = vunpack.c.l.b16 %v9307
    %v9564 = vunpack.c.h.b16 %v9307
    %v9565 = vunpack.c.l.b16 %v9308
    %v9566 = vunpack.c.h.b16 %v9308
    %v9567 = vunpack.c.l.b16 %v9309
    %v9568 = vunpack.c.h.b16 %v9309
    %v9569 = vunpack.c.l.b16 %v9310
    %v9570 = vunpack.c.h.b16 %v9310
    %v9571 = vunpack.c.l.b16 %v9311
    %v9572 = vunpack.c.h.b16 %v9311
    %v9573 = vunpack.c.l.b16 %v9312
    %v9574 = vunpack.c.h.b16 %v9312
    %v9575 = vunpack.c.l.b16 %v9313
    %v9576 = vunpack.c.h.b16 %v9313
    %v9577 = vunpack.c.l.b16 %v9314
    %v9578 = vunpack.c.h.b16 %v9314
    %v9579 = vunpack.c.l.b16 %v9315
    %v9580 = vunpack.c.h.b16 %v9315
    %v9581 = vunpack.c.l.b16 %v9316
    %v9582 = vunpack.c.h.b16 %v9316
    %v9583 = vunpack.c.l.b16 %v9317
    %v9584 = vunpack.c.h.b16 %v9317
    %v9585 = vunpack.c.l.b16 %v9318
    %v9586 = vunpack.c.h.b16 %v9318
    %v9587 = vunpack.c.l.b16 %v9319
    %v9588 = vunpack.c.h.b16 %v9319
    %v9589 = vunpack.c.l.b16 %v9320
    %v9590 = vunpack.c.h.b16 %v9320
    %v9591 = vunpack.c.l.b16 %v9321
    %v9592 = vunpack.c.h.b16 %v9321
    %v9593 = vunpack.c.l.b16 %v9322
    %v9594 = vunpack.c.h.b16 %v9322
    %v9595 = vunpack.c.l.b16 %v9323
    %v9596 = vunpack.c.h.b16 %v9323
    %v9597 = vunpack.c.l.b16 %v9324
    %v9598 = vunpack.c.h.b16 %v9324
    %v9599 = vunpack.c.l.b16 %v9325
    %v9600 = vunpack.c.h.b16 %v9325
    %v9601 = vunpack.c.l.b16 %v9326
    %v9602 = vunpack.c.h.b16 %v9326
    %v9603 = vunpack.c.l.b16 %v9327
    %v9604 = vunpack.c.h.b16 %v9327
    %v9605 = vunpack.c.l.b16 %v9328
    %v9606 = vunpack.c.h.b16 %v9328
    %v9607 = vunpack.c.l.b16 %v9329
    %v9608 = vunpack.c.h.b16 %v9329
    %v9609 = vunpack.c.l.b16 %v9330
    %v9610 = vunpack.c.h.b16 %v9330
    %v9611 = vunpack.c.l.b16 %v9331
    %v9612 = vunpack.c.h.b16 %v9331
    %v9613 = vunpack.c.l.b16 %v9332
    %v9614 = vunpack.c.h.b16 %v9332
    %v9615 = vunpack.c.l.b16 %v9333
    %v9616 = vunpack.c.h.b16 %v9333
    %v9617 = vunpack.c.l.b16 %v9334
    %v9618 = vunpack.c.h.b16 %v9334
    %v9619 = vunpack.c.l.b16 %v9335
    %v9620 = vunpack.c.h.b16 %v9335
    %v9621 = vunpack.c.l.b16 %v9336
    %v9622 = vunpack.c.h.b16 %v9336
    %v9623 = vunpack.c.l.b16 %v9337
    %v9624 = vunpack.c.h.b16 %v9337
    %v9625 = vunpack.c.l.b16 %v9338
    %v9626 = vunpack.c.h.b16 %v9338
    %v9627 = vunpack.c.l.b16 %v9339
    %v9628 = vunpack.c.h.b16 %v9339
    %v9629 = vunpack.c.l.b16 %v9340
    %v9630 = vunpack.c.h.b16 %v9340
    %v9631 = vunpack.c.l.b16 %v9341
    %v9632 = vunpack.c.h.b16 %v9341
    %v9633 = vunpack.c.l.b16 %v9342
    %v9634 = vunpack.c.h.b16 %v9342
    %v9635 = vunpack.c.l.b16 %v9343
    %v9636 = vunpack.c.h.b16 %v9343
    %v9637 = vunpack.c.l.b16 %v9344
    %v9638 = vunpack.c.h.b16 %v9344
    %v9639 = vunpack.c.l.b16 %v9345
    %v9640 = vunpack.c.h.b16 %v9345
    %v9641 = vunpack.c.l.b16 %v9346
    %v9642 = vunpack.c.h.b16 %v9346
    %v9643 = vunpack.c.l.b16 %v9347
    %v9644 = vunpack.c.h.b16 %v9347
    %v9645 = vunpack.c.l.b16 %v9348
    %v9646 = vunpack.c.h.b16 %v9348
    %v9647 = vunpack.c.l.b16 %v9349
    %v9648 = vunpack.c.h.b16 %v9349
    %v9649 = vunpack.c.l.b16 %v9350
    %v9650 = vunpack.c.h.b16 %v9350
    %v9651 = vunpack.c.l.b16 %v9351
    %v9652 = vunpack.c.h.b16 %v9351
    %v9653 = vpack.c.b16 %v9463, %v9461
    %v9654 = vpack.c.b16 %v9464, %v9462
    %v9655 = vpack.c.b16 %v9467, %v9465
    %v9656 = vpack.c.b16 %v9468, %v9466
    %v9657 = vpack.c.b16 %v9471, %v9469
    %v9658 = vpack.c.b16 %v9472, %v9470
    %v9659 = vpack.c.b16 %v9475, %v9473
    %v9660 = vpack.c.b16 %v9476, %v9474
    %v9661 = vpack.c.b16 %v9479, %v9477
    %v9662 = vpack.c.b16 %v9480, %v9478
    %v9663 = vpack.c.b16 %v9483, %v9481
    %v9664 = vpack.c.b16 %v9484, %v9482
    %v9665 = vpack.c.b16 %v9487, %v9485
    %v9666 = vpack.c.b16 %v9488, %v9486
    %v9667 = vpack.c.b16 %v9491, %v9489
    %v9668 = vpack.c.b16 %v9492, %v9490
    %v9669 = vpack.c.b16 %v9495, %v9493
    %v9670 = vpack.c.b16 %v9496, %v9494
    %v9671 = vpack.c.b16 %v9499, %v9497
    %v9672 = vpack.c.b16 %v9500, %v9498
    %v9673 = vpack.c.b16 %v9503, %v9501
    %v9674 = vpack.c.b16 %v9504, %v9502
    %v9675 = vpack.c.b16 %v9507, %v9505
    %v9676 = vpack.c.b16 %v9508, %v9506
    %v9677 = vpack.c.b16 %v9511, %v9509
    %v9678 = vpack.c.b16 %v9512, %v9510
    %v9679 = vpack.c.b16 %v9515, %v9513
    %v9680 = vpack.c.b16 %v9516, %v9514
    %v9681 = vpack.c.b16 %v9519, %v9517
    %v9682 = vpack.c.b16 %v9520, %v9518
    %v9683 = vpack.c.b16 %v9523, %v9521
    %v9684 = vpack.c.b16 %v9524, %v9522
    %v9685 = vpack.c.b16 %v9527, %v9525
    %v9686 = vpack.c.b16 %v9528, %v9526
    %v9687 = vpack.c.b16 %v9531, %v9529
    %v9688 = vpack.c.b16 %v9532, %v9530
    %v9689 = vpack.c.b16 %v9535, %v9533
    %v9690 = vpack.c.b16 %v9536, %v9534
    %v9691 = vpack.c.b16 %v9539, %v9537
    %v9692 = vpack.c.b16 %v9540, %v9538
    %v9693 = vpack.c.b16 %v9543, %v9541
    %v9694 = vpack.c.b16 %v9544, %v9542
    %v9695 = vpack.c.b16 %v9547, %v9545
    %v9696 = vpack.c.b16 %v9548, %v9546
    %v9697 = vpack.c.b16 %v9551, %v9549
    %v9698 = vpack.c.b16 %v9552, %v9550
    %v9699 = vpack.c.b16 %v9555, %v9553
    %v9700 = vpack.c.b16 %v9556, %v9554
    %v9701 = vpack.c.b16 %v9559, %v9557
    %v9702 = vpack.c.b16 %v9560, %v9558
    %v9703 = vpack.c.b16 %v9563, %v9561
    %v9704 = vpack.c.b16 %v9564, %v9562
    %v9705 = vpack.c.b16 %v9567, %v9565
    %v9706 = vpack.c.b16 %v9568, %v9566
    %v9707 = vpack.c.b16 %v9571, %v9569
    %v9708 = vpack.c.b16 %v9572, %v9570
    %v9709 = vpack.c.b16 %v9575, %v9573
    %v9710 = vpack.c.b16 %v9576, %v9574
    %v9711 = vpack.c.b16 %v9579, %v9577
    %v9712 = vpack.c.b16 %v9580, %v9578
    %v9713 = vpack.c.b16 %v9583, %v9581
    %v9714 = vpack.c.b16 %v9584, %v9582
    %v9715 = vpack.c.b16 %v9587, %v9585
    %v9716 = vpack.c.b16 %v9588, %v9586
    %v9717 = vpack.c.b16 %v9591, %v9589
    %v9718 = vpack.c.b16 %v9592, %v9590
    %v9719 = vpack.c.b16 %v9595, %v9593
    %v9720 = vpack.c.b16 %v9596, %v9594
    %v9721 = vpack.c.b16 %v9599, %v9597
    %v9722 = vpack.c.b16 %v9600, %v9598
    %v9723 = vpack.c.b16 %v9603, %v9601
    %v9724 = vpack.c.b16 %v9604, %v9602
    %v9725 = vpack.c.b16 %v9607, %v9605
    %v9726 = vpack.c.b16 %v9608, %v9606
    %v9727 = vpack.c.b16 %v9611, %v9609
    %v9728 = vpack.c.b16 %v9612, %v9610
    %v9729 = vpack.c.b16 %v9615, %v9613
    %v9730 = vpack.c.b16 %v9616, %v9614
    %v9731 = vpack.c.b16 %v9619, %v9617
    %v9732 = vpack.c.b16 %v9620, %v9618
    %v9733 = vpack.c.b16 %v9623, %v9621
    %v9734 = vpack.c.b16 %v9624, %v9622
    %v9735 = vpack.c.b16 %v9627, %v9625
    %v9736 = vpack.c.b16 %v9628, %v9626
    %v9737 = vpack.c.b16 %v9631, %v9629
    %v9738 = vpack.c.b16 %v9632, %v9630
    %v9739 = vpack.c.b16 %v9635, %v9633
    %v9740 = vpack.c.b16 %v9636, %v9634
    %v9741 = vpack.c.b16 %v9639, %v9637
    %v9742 = vpack.c.b16 %v9640, %v9638
    %v9743 = vpack.c.b16 %v9643, %v9641
    %v9744 = vpack.c.b16 %v9644, %v9642
    %v9745 = vpack.c.b16 %v9647, %v9645
    %v9746 = vpack.c.b16 %v9648, %v9646
    %v9747 = vpack.c.b16 %v9651, %v9649
    %v9748 = vpack.c.b16 %v9652, %v9650
    %9845 = vmatprep.subr.bf16.mxu0 %v9668
    %9846 = vmatpush1.bf16.msra.mxu0 %v9667
    %9847 = vmatprep.subr.bf16.mxu0 %v9666
    %9848 = vmatpush1.bf16.msra.mxu0 %v9665
    %9849 = vmatprep.subr.bf16.mxu0 %v9664
    %9850 = vmatpush1.bf16.msra.mxu0 %v9663
    %9851 = vmatprep.subr.bf16.mxu0 %v9662
    %9852 = vmatpush1.bf16.msra.mxu0 %v9661
    %9853 = vmatprep.subr.bf16.mxu0 %v9660
    %9854 = vmatpush1.bf16.msra.mxu0 %v9659
    %9855 = vmatprep.subr.bf16.mxu0 %v9658
    %9856 = vmatpush1.bf16.msra.mxu0 %v9657
    %9857 = vmatprep.subr.bf16.mxu0 %v9656
    %9858 = vmatpush1.bf16.msra.mxu0 %v9655
    %9859 = vmatprep.subr.bf16.mxu0 %v9654
    %9860 = vmatpush1.bf16.msra.mxu0 %v9653
    %9861 = vmatprep.subr.bf16.mxu0 %v9684
    %9862 = vmatpush2.bf16.msra.mxu0 %v9683
    %9863 = vmatprep.subr.bf16.mxu0 %v9682
    %9864 = vmatpush2.bf16.msra.mxu0 %v9681
    %9865 = vmatprep.subr.bf16.mxu0 %v9680
    %9866 = vmatpush2.bf16.msra.mxu0 %v9679
    %9867 = vmatprep.subr.bf16.mxu0 %v9678
    %9868 = vmatpush2.bf16.msra.mxu0 %v9677
    %9869 = vmatprep.subr.bf16.mxu0 %v9676
    %9870 = vmatpush2.bf16.msra.mxu0 %v9675
    %9871 = vmatprep.subr.bf16.mxu0 %v9674
    %9872 = vmatpush2.bf16.msra.mxu0 %v9673
    %9873 = vmatprep.subr.bf16.mxu0 %v9672
    %9874 = vmatpush2.bf16.msra.mxu0 %v9671
    %9875 = vmatprep.subr.bf16.mxu0 %v9670
    %9876 = vmatpush2.bf16.msra.mxu0 %v9669
    %9877 = vmatprep.mubr.bf16.mxu0 0
    %9878 = vmatmul.mubr.bf16.gmra.mxu0 0
    %v9879 = vpop.f32.mrf.mxu0
    %v9880 = vadd.f32 %v9358, %v9879
    %v9881 = vpop.f32.mrf.mxu0
    %v9882 = vadd.f32 %v9362, %v9881
    %v9883 = vpop.f32.mrf.mxu0
    %v9884 = vadd.f32 %v9358, %v9883
    %v9885 = vpop.f32.mrf.mxu0
    %v9886 = vadd.f32 %v9362, %v9885
    %9887 = vmatprep.mubr.bf16.mxu0 0
    %9888 = vmatmul.mubr.bf16.gmra.mxu0 0
    %v9889 = vpop.f32.mrf.mxu0
    %v9890 = vadd.f32 %v9358, %v9889
    %v9891 = vpop.f32.mrf.mxu0
    %v9892 = vadd.f32 %v9362, %v9891
    %v9893 = vpop.f32.mrf.mxu0
    %v9894 = vadd.f32 %v9358, %v9893
    %v9895 = vpop.f32.mrf.mxu0
    %v9896 = vadd.f32 %v9362, %v9895
    %9897 = vmatprep.mubr.bf16.mxu0 %v9241
    %9898 = vmatmul.mubr.bf16.gmra.mxu0 %v9240
    %v9899 = vpop.f32.mrf.mxu0
    %v9900 = vadd.f32 %v9358, %v9899
    %v9901 = vpop.f32.mrf.mxu0
    %v9902 = vadd.f32 %v9362, %v9901
    %v9903 = vpop.f32.mrf.mxu0
    %v9904 = vadd.f32 %v9358, %v9903
    %v9905 = vpop.f32.mrf.mxu0
    %v9906 = vadd.f32 %v9362, %v9905
    %9907 = vmatprep.mubr.bf16.mxu0 %v9243
    %9908 = vmatmul.mubr.bf16.gmra.mxu0 %v9242
    %v9909 = vpop.f32.mrf.mxu0
    %v9910 = vadd.f32 %v9358, %v9909
    %v9911 = vpop.f32.mrf.mxu0
    %v9912 = vadd.f32 %v9362, %v9911
    %v9913 = vpop.f32.mrf.mxu0
    %v9914 = vadd.f32 %v9358, %v9913
    %v9915 = vpop.f32.mrf.mxu0
    %v9916 = vadd.f32 %v9362, %v9915
    %9917 = vmatprep.mubr.bf16.mxu0 %v9245
    %9918 = vmatmul.mubr.bf16.gmra.mxu0 %v9244
    %v9919 = vpop.f32.mrf.mxu0
    %v9920 = vadd.f32 %v9358, %v9919
    %v9921 = vpop.f32.mrf.mxu0
    %v9922 = vadd.f32 %v9362, %v9921
    %v9923 = vpop.f32.mrf.mxu0
    %v9924 = vadd.f32 %v9358, %v9923
    %v9925 = vpop.f32.mrf.mxu0
    %v9926 = vadd.f32 %v9362, %v9925
    %9927 = vmatprep.mubr.bf16.mxu0 %v9247
    %9928 = vmatmul.mubr.bf16.gmra.mxu0 %v9246
    %v9929 = vpop.f32.mrf.mxu0
    %v9930 = vadd.f32 %v9358, %v9929
    %v9931 = vpop.f32.mrf.mxu0
    %v9932 = vadd.f32 %v9362, %v9931
    %v9933 = vpop.f32.mrf.mxu0
    %v9934 = vadd.f32 %v9358, %v9933
    %v9935 = vpop.f32.mrf.mxu0
    %v9936 = vadd.f32 %v9362, %v9935
    %9937 = vmatprep.mubr.bf16.mxu0 %v9249
    %9938 = vmatmul.mubr.bf16.gmra.mxu0 %v9248
    %v9939 = vpop.f32.mrf.mxu0
    %v9940 = vadd.f32 %v9358, %v9939
    %v9941 = vpop.f32.mrf.mxu0
    %v9942 = vadd.f32 %v9362, %v9941
    %v9943 = vpop.f32.mrf.mxu0
    %v9944 = vadd.f32 %v9358, %v9943
    %v9945 = vpop.f32.mrf.mxu0
    %v9946 = vadd.f32 %v9362, %v9945
    %9947 = vmatprep.mubr.bf16.mxu0 %v9251
    %9948 = vmatmul.mubr.bf16.gmra.mxu0 %v9250
    %v9949 = vpop.f32.mrf.mxu0
    %v9950 = vadd.f32 %v9358, %v9949
    %v9951 = vpop.f32.mrf.mxu0
    %v9952 = vadd.f32 %v9362, %v9951
    %v9953 = vpop.f32.mrf.mxu0
    %v9954 = vadd.f32 %v9358, %v9953
    %v9955 = vpop.f32.mrf.mxu0
    %v9956 = vadd.f32 %v9362, %v9955
    %9957 = vdwg.mxu0
    %9958 = vmatprep.subr.bf16.mxu0 %v9700
    %9959 = vmatpush1.bf16.msra.mxu0 %v9699
    %9960 = vmatprep.subr.bf16.mxu0 %v9698
    %9961 = vmatpush1.bf16.msra.mxu0 %v9697
    %9962 = vmatprep.subr.bf16.mxu0 %v9696
    %9963 = vmatpush1.bf16.msra.mxu0 %v9695
    %9964 = vmatprep.subr.bf16.mxu0 %v9694
    %9965 = vmatpush1.bf16.msra.mxu0 %v9693
    %9966 = vmatprep.subr.bf16.mxu0 %v9692
    %9967 = vmatpush1.bf16.msra.mxu0 %v9691
    %9968 = vmatprep.subr.bf16.mxu0 %v9690
    %9969 = vmatpush1.bf16.msra.mxu0 %v9689
    %9970 = vmatprep.subr.bf16.mxu0 %v9688
    %9971 = vmatpush1.bf16.msra.mxu0 %v9687
    %9972 = vmatprep.subr.bf16.mxu0 %v9686
    %9973 = vmatpush1.bf16.msra.mxu0 %v9685
    %9974 = vmatprep.subr.bf16.mxu0 %v9716
    %9975 = vmatpush2.bf16.msra.mxu0 %v9715
    %9976 = vmatprep.subr.bf16.mxu0 %v9714
    %9977 = vmatpush2.bf16.msra.mxu0 %v9713
    %9978 = vmatprep.subr.bf16.mxu0 %v9712
    %9979 = vmatpush2.bf16.msra.mxu0 %v9711
    %9980 = vmatprep.subr.bf16.mxu0 %v9710
    %9981 = vmatpush2.bf16.msra.mxu0 %v9709
    %9982 = vmatprep.subr.bf16.mxu0 %v9708
    %9983 = vmatpush2.bf16.msra.mxu0 %v9707
    %9984 = vmatprep.subr.bf16.mxu0 %v9706
    %9985 = vmatpush2.bf16.msra.mxu0 %v9705
    %9986 = vmatprep.subr.bf16.mxu0 %v9704
    %9987 = vmatpush2.bf16.msra.mxu0 %v9703
    %9988 = vmatprep.subr.bf16.mxu0 %v9702
    %9989 = vmatpush2.bf16.msra.mxu0 %v9701
    %9990 = vmatprep.mubr.bf16.mxu0 %v9241
    %9991 = vmatmul.mubr.bf16.gmra.mxu0 %v9240
    %v9992 = vpop.f32.mrf.mxu0
    %v9993 = vadd.f32 %v9880, %v9992
    %v9994 = vpop.f32.mrf.mxu0
    %v9995 = vadd.f32 %v9882, %v9994
    %v9996 = vpop.f32.mrf.mxu0
    %v9997 = vadd.f32 %v9884, %v9996
    %v9998 = vpop.f32.mrf.mxu0
    %v9999 = vadd.f32 %v9886, %v9998
    %10000 = vmatprep.mubr.bf16.mxu0 %v9243
    %10001 = vmatmul.mubr.bf16.gmra.mxu0 %v9242
    %v10002 = vpop.f32.mrf.mxu0
    %v10003 = vadd.f32 %v9890, %v10002
    %v10004 = vpop.f32.mrf.mxu0
    %v10005 = vadd.f32 %v9892, %v10004
    %v10006 = vpop.f32.mrf.mxu0
    %v10007 = vadd.f32 %v9894, %v10006
    %v10008 = vpop.f32.mrf.mxu0
    %v10009 = vadd.f32 %v9896, %v10008
    %10010 = vmatprep.mubr.bf16.mxu0 %v9245
    %10011 = vmatmul.mubr.bf16.gmra.mxu0 %v9244
    %v10012 = vpop.f32.mrf.mxu0
    %v10013 = vadd.f32 %v9900, %v10012
    %v10014 = vpop.f32.mrf.mxu0
    %v10015 = vadd.f32 %v9902, %v10014
    %v10016 = vpop.f32.mrf.mxu0
    %v10017 = vadd.f32 %v9904, %v10016
    %v10018 = vpop.f32.mrf.mxu0
    %v10019 = vadd.f32 %v9906, %v10018
    %10020 = vmatprep.mubr.bf16.mxu0 %v9247
    %10021 = vmatmul.mubr.bf16.gmra.mxu0 %v9246
    %v10022 = vpop.f32.mrf.mxu0
    %v10023 = vadd.f32 %v9910, %v10022
    %v10024 = vpop.f32.mrf.mxu0
    %v10025 = vadd.f32 %v9912, %v10024
    %v10026 = vpop.f32.mrf.mxu0
    %v10027 = vadd.f32 %v9914, %v10026
    %v10028 = vpop.f32.mrf.mxu0
    %v10029 = vadd.f32 %v9916, %v10028
    %10030 = vmatprep.mubr.bf16.mxu0 %v9249
    %10031 = vmatmul.mubr.bf16.gmra.mxu0 %v9248
    %v10032 = vpop.f32.mrf.mxu0
    %v10033 = vadd.f32 %v9920, %v10032
    %v10034 = vpop.f32.mrf.mxu0
    %v10035 = vadd.f32 %v9922, %v10034
    %v10036 = vpop.f32.mrf.mxu0
    %v10037 = vadd.f32 %v9924, %v10036
    %v10038 = vpop.f32.mrf.mxu0
    %v10039 = vadd.f32 %v9926, %v10038
    %10040 = vmatprep.mubr.bf16.mxu0 %v9251
    %10041 = vmatmul.mubr.bf16.gmra.mxu0 %v9250
    %v10042 = vpop.f32.mrf.mxu0
    %v10043 = vadd.f32 %v9930, %v10042
    %v10044 = vpop.f32.mrf.mxu0
    %v10045 = vadd.f32 %v9932, %v10044
    %v10046 = vpop.f32.mrf.mxu0
    %v10047 = vadd.f32 %v9934, %v10046
    %v10048 = vpop.f32.mrf.mxu0
    %v10049 = vadd.f32 %v9936, %v10048
    %10050 = vmatprep.mubr.bf16.mxu0 %v9253
    %10051 = vmatmul.mubr.bf16.gmra.mxu0 %v9252
    %v10052 = vpop.f32.mrf.mxu0
    %v10053 = vadd.f32 %v9940, %v10052
    %v10054 = vpop.f32.mrf.mxu0
    %v10055 = vadd.f32 %v9942, %v10054
    %v10056 = vpop.f32.mrf.mxu0
    %v10057 = vadd.f32 %v9944, %v10056
    %v10058 = vpop.f32.mrf.mxu0
    %v10059 = vadd.f32 %v9946, %v10058
    %10060 = vmatprep.mubr.bf16.mxu0 %v9255
    %10061 = vmatmul.mubr.bf16.gmra.mxu0 %v9254
    %v10062 = vpop.f32.mrf.mxu0
    %v10063 = vadd.f32 %v9950, %v10062
    %v10064 = vpop.f32.mrf.mxu0
    %v10065 = vadd.f32 %v9952, %v10064
    %v10066 = vpop.f32.mrf.mxu0
    %v10067 = vadd.f32 %v9954, %v10066
    %v10068 = vpop.f32.mrf.mxu0
    %v10069 = vadd.f32 %v9956, %v10068
    %10070 = vdwg.mxu0
    %10071 = vmatprep.subr.bf16.mxu0 %v9732
    %10072 = vmatpush1.bf16.msra.mxu0 %v9731
    %10073 = vmatprep.subr.bf16.mxu0 %v9730
    %10074 = vmatpush1.bf16.msra.mxu0 %v9729
    %10075 = vmatprep.subr.bf16.mxu0 %v9728
    %10076 = vmatpush1.bf16.msra.mxu0 %v9727
    %10077 = vmatprep.subr.bf16.mxu0 %v9726
    %10078 = vmatpush1.bf16.msra.mxu0 %v9725
    %10079 = vmatprep.subr.bf16.mxu0 %v9724
    %10080 = vmatpush1.bf16.msra.mxu0 %v9723
    %10081 = vmatprep.subr.bf16.mxu0 %v9722
    %10082 = vmatpush1.bf16.msra.mxu0 %v9721
    %10083 = vmatprep.subr.bf16.mxu0 %v9720
    %10084 = vmatpush1.bf16.msra.mxu0 %v9719
    %10085 = vmatprep.subr.bf16.mxu0 %v9718
    %10086 = vmatpush1.bf16.msra.mxu0 %v9717
    %10087 = vmatprep.subr.bf16.mxu0 %v9748
    %10088 = vmatpush2.bf16.msra.mxu0 %v9747
    %10089 = vmatprep.subr.bf16.mxu0 %v9746
    %10090 = vmatpush2.bf16.msra.mxu0 %v9745
    %10091 = vmatprep.subr.bf16.mxu0 %v9744
    %10092 = vmatpush2.bf16.msra.mxu0 %v9743
    %10093 = vmatprep.subr.bf16.mxu0 %v9742
    %10094 = vmatpush2.bf16.msra.mxu0 %v9741
    %10095 = vmatprep.subr.bf16.mxu0 %v9740
    %10096 = vmatpush2.bf16.msra.mxu0 %v9739
    %10097 = vmatprep.subr.bf16.mxu0 %v9738
    %10098 = vmatpush2.bf16.msra.mxu0 %v9737
    %10099 = vmatprep.subr.bf16.mxu0 %v9736
    %10100 = vmatpush2.bf16.msra.mxu0 %v9735
    %10101 = vmatprep.subr.bf16.mxu0 %v9734
    %10102 = vmatpush2.bf16.msra.mxu0 %v9733
    %10103 = vmatprep.mubr.bf16.mxu0 %v9245
    %10104 = vmatmul.mubr.bf16.gmra.mxu0 %v9244
    %v10105 = vpop.f32.mrf.mxu0
    %v10106 = vadd.f32 %v9993, %v10105
    %v10107 = vpop.f32.mrf.mxu0
    %v10108 = vadd.f32 %v9995, %v10107
    %v10109 = vpop.f32.mrf.mxu0
    %v10110 = vadd.f32 %v9997, %v10109
    %v10111 = vpop.f32.mrf.mxu0
    %v10112 = vadd.f32 %v9999, %v10111
    %10113 = vmatprep.mubr.bf16.mxu0 %v9247
    %10114 = vmatmul.mubr.bf16.gmra.mxu0 %v9246
    %v10115 = vpop.f32.mrf.mxu0
    %v10116 = vadd.f32 %v10003, %v10115
    %v10117 = vpop.f32.mrf.mxu0
    %v10118 = vadd.f32 %v10005, %v10117
    %v10119 = vpop.f32.mrf.mxu0
    %v10120 = vadd.f32 %v10007, %v10119
    %v10121 = vpop.f32.mrf.mxu0
    %v10122 = vadd.f32 %v10009, %v10121
    %10123 = vmatprep.mubr.bf16.mxu0 %v9249
    %10124 = vmatmul.mubr.bf16.gmra.mxu0 %v9248
    %v10125 = vpop.f32.mrf.mxu0
    %v10126 = vadd.f32 %v10013, %v10125
    %v10127 = vpop.f32.mrf.mxu0
    %v10128 = vadd.f32 %v10015, %v10127
    %v10129 = vpop.f32.mrf.mxu0
    %v10130 = vadd.f32 %v10017, %v10129
    %v10131 = vpop.f32.mrf.mxu0
    %v10132 = vadd.f32 %v10019, %v10131
    %10133 = vmatprep.mubr.bf16.mxu0 %v9251
    %10134 = vmatmul.mubr.bf16.gmra.mxu0 %v9250
    %v10135 = vpop.f32.mrf.mxu0
    %v10136 = vadd.f32 %v10023, %v10135
    %v10137 = vpop.f32.mrf.mxu0
    %v10138 = vadd.f32 %v10025, %v10137
    %v10139 = vpop.f32.mrf.mxu0
    %v10140 = vadd.f32 %v10027, %v10139
    %v10141 = vpop.f32.mrf.mxu0
    %v10142 = vadd.f32 %v10029, %v10141
    %10143 = vmatprep.mubr.bf16.mxu0 %v9253
    %10144 = vmatmul.mubr.bf16.gmra.mxu0 %v9252
    %v10145 = vpop.f32.mrf.mxu0
    %v10146 = vadd.f32 %v10033, %v10145
    %v10147 = vpop.f32.mrf.mxu0
    %v10148 = vadd.f32 %v10035, %v10147
    %v10149 = vpop.f32.mrf.mxu0
    %v10150 = vadd.f32 %v10037, %v10149
    %v10151 = vpop.f32.mrf.mxu0
    %v10152 = vadd.f32 %v10039, %v10151
    %10153 = vmatprep.mubr.bf16.mxu0 %v9255
    %10154 = vmatmul.mubr.bf16.gmra.mxu0 %v9254
    %v10155 = vpop.f32.mrf.mxu0
    %v10156 = vadd.f32 %v10043, %v10155
    %v10157 = vpop.f32.mrf.mxu0
    %v10158 = vadd.f32 %v10045, %v10157
    %v10159 = vpop.f32.mrf.mxu0
    %v10160 = vadd.f32 %v10047, %v10159
    %v10161 = vpop.f32.mrf.mxu0
    %v10162 = vadd.f32 %v10049, %v10161
    %10163 = vmatprep.mubr.bf16.mxu0 0
    %10164 = vmatmul.mubr.bf16.gmra.mxu0 0
    %v10165 = vpop.f32.mrf.mxu0
    %v10166 = vadd.f32 %v10053, %v10165
    %v10167 = vpop.f32.mrf.mxu0
    %v10168 = vadd.f32 %v10055, %v10167
    %v10169 = vpop.f32.mrf.mxu0
    %v10170 = vadd.f32 %v10057, %v10169
    %v10171 = vpop.f32.mrf.mxu0
    %v10172 = vadd.f32 %v10059, %v10171
    %10173 = vmatprep.mubr.bf16.mxu0 0
    %10174 = vmatmul.mubr.bf16.gmra.mxu0 0
    %v10175 = vpop.f32.mrf.mxu0
    %v10176 = vadd.f32 %v10063, %v10175
    %v10177 = vpop.f32.mrf.mxu0
    %v10178 = vadd.f32 %v10065, %v10177
    %v10179 = vpop.f32.mrf.mxu0
    %v10180 = vadd.f32 %v10067, %v10179
    %v10181 = vpop.f32.mrf.mxu0
    %v10182 = vadd.f32 %v10069, %v10181
    %10183 = vdwg.mxu0
    %v10184 = vld [vmem:[#allocation2 + $0x1480] sm:$0xff]
    %v10185 = vld [vmem:[#allocation2 + $0x1488] sm:$0xff]
    %v10186 = vld [vmem:[#allocation2 + $0x1490] sm:$0xff]
    %v10187 = vld [vmem:[#allocation2 + $0x1498] sm:$0xff]
    %v10188 = vld [vmem:[#allocation2 + $0x14a0] sm:$0xff]
    %v10189 = vld [vmem:[#allocation2 + $0x14a8] sm:$0xff]
    %v10190 = vld [vmem:[#allocation2 + $0x14b0] sm:$0xff]
    %v10191 = vld [vmem:[#allocation2 + $0x14b8] sm:$0xff]
    %v10192 = vld [vmem:[#allocation2 + $0x14c0] sm:$0xff]
    %v10193 = vld [vmem:[#allocation2 + $0x14c8] sm:$0xff]
    %v10194 = vld [vmem:[#allocation2 + $0x14d0] sm:$0xff]
    %v10195 = vld [vmem:[#allocation2 + $0x14d8] sm:$0xff]
    %v10196 = vld [vmem:[#allocation2 + $0x14e0] sm:$0xff]
    %v10197 = vld [vmem:[#allocation2 + $0x14e8] sm:$0xff]
    %v10198 = vld [vmem:[#allocation2 + $0x14f0] sm:$0xff]
    %v10199 = vld [vmem:[#allocation2 + $0x14f8] sm:$0xff]
    %v10200 = vld [vmem:[#allocation2 + $0x1500] sm:$0xff]
    %v10201 = vld [vmem:[#allocation2 + $0x1508] sm:$0xff]
    %v10202 = vld [vmem:[#allocation2 + $0x1510] sm:$0xff]
    %v10203 = vld [vmem:[#allocation2 + $0x1518] sm:$0xff]
    %v10204 = vld [vmem:[#allocation2 + $0x1520] sm:$0xff]
    %v10205 = vld [vmem:[#allocation2 + $0x1528] sm:$0xff]
    %v10206 = vld [vmem:[#allocation2 + $0x1530] sm:$0xff]
    %v10207 = vld [vmem:[#allocation2 + $0x1538] sm:$0xff]
    %v10208 = vld [vmem:[#allocation2 + $0x1540] sm:$0xff]
    %v10209 = vld [vmem:[#allocation2 + $0x1548] sm:$0xff]
    %v10210 = vld [vmem:[#allocation2 + $0x1550] sm:$0xff]
    %v10211 = vld [vmem:[#allocation2 + $0x1558] sm:$0xff]
    %v10212 = vld [vmem:[#allocation2 + $0x1560] sm:$0xff]
    %v10213 = vld [vmem:[#allocation2 + $0x1568] sm:$0xff]
    %v10214 = vld [vmem:[#allocation2 + $0x1570] sm:$0xff]
    %v10215 = vld [vmem:[#allocation2 + $0x1578] sm:$0xff]
    %v10248 = vunpack.c.l.b16 %v10184
    %v10249 = vunpack.c.h.b16 %v10184
    %v10250 = vunpack.c.l.b16 %v10185
    %v10251 = vunpack.c.h.b16 %v10185
    %v10252 = vunpack.c.l.b16 %v10186
    %v10253 = vunpack.c.h.b16 %v10186
    %v10254 = vunpack.c.l.b16 %v10187
    %v10255 = vunpack.c.h.b16 %v10187
    %v10256 = vunpack.c.l.b16 %v10188
    %v10257 = vunpack.c.h.b16 %v10188
    %v10258 = vunpack.c.l.b16 %v10189
    %v10259 = vunpack.c.h.b16 %v10189
    %v10260 = vunpack.c.l.b16 %v10190
    %v10261 = vunpack.c.h.b16 %v10190
    %v10262 = vunpack.c.l.b16 %v10191
    %v10263 = vunpack.c.h.b16 %v10191
    %v10264 = vunpack.c.l.b16 %v10192
    %v10265 = vunpack.c.h.b16 %v10192
    %v10266 = vunpack.c.l.b16 %v10193
    %v10267 = vunpack.c.h.b16 %v10193
    %v10268 = vunpack.c.l.b16 %v10194
    %v10269 = vunpack.c.h.b16 %v10194
    %v10270 = vunpack.c.l.b16 %v10195
    %v10271 = vunpack.c.h.b16 %v10195
    %v10272 = vunpack.c.l.b16 %v10196
    %v10273 = vunpack.c.h.b16 %v10196
    %v10274 = vunpack.c.l.b16 %v10197
    %v10275 = vunpack.c.h.b16 %v10197
    %v10276 = vunpack.c.l.b16 %v10198
    %v10277 = vunpack.c.h.b16 %v10198
    %v10278 = vunpack.c.l.b16 %v10199
    %v10279 = vunpack.c.h.b16 %v10199
    %v10280 = vunpack.c.l.b16 %v10200
    %v10281 = vunpack.c.h.b16 %v10200
    %v10282 = vunpack.c.l.b16 %v10201
    %v10283 = vunpack.c.h.b16 %v10201
    %v10284 = vunpack.c.l.b16 %v10202
    %v10285 = vunpack.c.h.b16 %v10202
    %v10286 = vunpack.c.l.b16 %v10203
    %v10287 = vunpack.c.h.b16 %v10203
    %v10288 = vunpack.c.l.b16 %v10204
    %v10289 = vunpack.c.h.b16 %v10204
    %v10290 = vunpack.c.l.b16 %v10205
    %v10291 = vunpack.c.h.b16 %v10205
    %v10292 = vunpack.c.l.b16 %v10206
    %v10293 = vunpack.c.h.b16 %v10206
    %v10294 = vunpack.c.l.b16 %v10207
    %v10295 = vunpack.c.h.b16 %v10207
    %v10296 = vunpack.c.l.b16 %v10208
    %v10297 = vunpack.c.h.b16 %v10208
    %v10298 = vunpack.c.l.b16 %v10209
    %v10299 = vunpack.c.h.b16 %v10209
    %v10300 = vunpack.c.l.b16 %v10210
    %v10301 = vunpack.c.h.b16 %v10210
    %v10302 = vunpack.c.l.b16 %v10211
    %v10303 = vunpack.c.h.b16 %v10211
    %v10304 = vunpack.c.l.b16 %v10212
    %v10305 = vunpack.c.h.b16 %v10212
    %v10306 = vunpack.c.l.b16 %v10213
    %v10307 = vunpack.c.h.b16 %v10213
    %v10308 = vunpack.c.l.b16 %v10214
    %v10309 = vunpack.c.h.b16 %v10214
    %v10310 = vunpack.c.l.b16 %v10215
    %v10311 = vunpack.c.h.b16 %v10215
    %v10312 = vpack.c.b16 %v10250, %v10248
    %v10313 = vpack.c.b16 %v10251, %v10249
    %v10314 = vpack.c.b16 %v10254, %v10252
    %v10315 = vpack.c.b16 %v10255, %v10253
    %v10316 = vpack.c.b16 %v10258, %v10256
    %v10317 = vpack.c.b16 %v10259, %v10257
    %v10318 = vpack.c.b16 %v10262, %v10260
    %v10319 = vpack.c.b16 %v10263, %v10261
    %v10320 = vpack.c.b16 %v10266, %v10264
    %v10321 = vpack.c.b16 %v10267, %v10265
    %v10322 = vpack.c.b16 %v10270, %v10268
    %v10323 = vpack.c.b16 %v10271, %v10269
    %v10324 = vpack.c.b16 %v10274, %v10272
    %v10325 = vpack.c.b16 %v10275, %v10273
    %v10326 = vpack.c.b16 %v10278, %v10276
    %v10327 = vpack.c.b16 %v10279, %v10277
    %v10328 = vpack.c.b16 %v10282, %v10280
    %v10329 = vpack.c.b16 %v10283, %v10281
    %v10330 = vpack.c.b16 %v10286, %v10284
    %v10331 = vpack.c.b16 %v10287, %v10285
    %v10332 = vpack.c.b16 %v10290, %v10288
    %v10333 = vpack.c.b16 %v10291, %v10289
    %v10334 = vpack.c.b16 %v10294, %v10292
    %v10335 = vpack.c.b16 %v10295, %v10293
    %v10336 = vpack.c.b16 %v10298, %v10296
    %v10337 = vpack.c.b16 %v10299, %v10297
    %v10338 = vpack.c.b16 %v10302, %v10300
    %v10339 = vpack.c.b16 %v10303, %v10301
    %v10340 = vpack.c.b16 %v10306, %v10304
    %v10341 = vpack.c.b16 %v10307, %v10305
    %v10342 = vpack.c.b16 %v10310, %v10308
    %v10343 = vpack.c.b16 %v10311, %v10309
    %10376 = vmatprep.subr.bf16.mxu0 %v10327
    %10377 = vmatpush1.bf16.msra.mxu0 %v10326
    %10378 = vmatprep.subr.bf16.mxu0 %v10325
    %10379 = vmatpush1.bf16.msra.mxu0 %v10324
    %10380 = vmatprep.subr.bf16.mxu0 %v10323
    %10381 = vmatpush1.bf16.msra.mxu0 %v10322
    %10382 = vmatprep.subr.bf16.mxu0 %v10321
    %10383 = vmatpush1.bf16.msra.mxu0 %v10320
    %10384 = vmatprep.subr.bf16.mxu0 %v10319
    %10385 = vmatpush1.bf16.msra.mxu0 %v10318
    %10386 = vmatprep.subr.bf16.mxu0 %v10317
    %10387 = vmatpush1.bf16.msra.mxu0 %v10316
    %10388 = vmatprep.subr.bf16.mxu0 %v10315
    %10389 = vmatpush1.bf16.msra.mxu0 %v10314
    %10390 = vmatprep.subr.bf16.mxu0 %v10313
    %10391 = vmatpush1.bf16.msra.mxu0 %v10312
    %10392 = vmatprep.subr.bf16.mxu0 %v10343
    %10393 = vmatpush2.bf16.msra.mxu0 %v10342
    %10394 = vmatprep.subr.bf16.mxu0 %v10341
    %10395 = vmatpush2.bf16.msra.mxu0 %v10340
    %10396 = vmatprep.subr.bf16.mxu0 %v10339
    %10397 = vmatpush2.bf16.msra.mxu0 %v10338
    %10398 = vmatprep.subr.bf16.mxu0 %v10337
    %10399 = vmatpush2.bf16.msra.mxu0 %v10336
    %10400 = vmatprep.subr.bf16.mxu0 %v10335
    %10401 = vmatpush2.bf16.msra.mxu0 %v10334
    %10402 = vmatprep.subr.bf16.mxu0 %v10333
    %10403 = vmatpush2.bf16.msra.mxu0 %v10332
    %10404 = vmatprep.subr.bf16.mxu0 %v10331
    %10405 = vmatpush2.bf16.msra.mxu0 %v10330
    %10406 = vmatprep.subr.bf16.mxu0 %v10329
    %10407 = vmatpush2.bf16.msra.mxu0 %v10328
    %10408 = vmatprep.mubr.bf16.mxu0 %v8249
    %10409 = vmatmul.mubr.bf16.gmra.mxu0 %v8248
    %v10410 = vpop.f32.mrf.mxu0
    %v10411 = vadd.f32 0.0, %v10410
    %v10412 = vpop.f32.mrf.mxu0
    %v10413 = vadd.f32 0.0, %v10412
    %v10414 = vpop.f32.mrf.mxu0
    %v10415 = vadd.f32 0.0, %v10414
    %v10416 = vpop.f32.mrf.mxu0
    %v10417 = vadd.f32 0.0, %v10416
    %10418 = vmatprep.mubr.bf16.mxu0 %v8251
    %10419 = vmatmul.mubr.bf16.gmra.mxu0 %v8250
    %v10420 = vpop.f32.mrf.mxu0
    %v10421 = vadd.f32 0.0, %v10420
    %v10422 = vpop.f32.mrf.mxu0
    %v10423 = vadd.f32 0.0, %v10422
    %v10424 = vpop.f32.mrf.mxu0
    %v10425 = vadd.f32 0.0, %v10424
    %v10426 = vpop.f32.mrf.mxu0
    %v10427 = vadd.f32 0.0, %v10426
    %10428 = vmatprep.mubr.bf16.mxu0 %v8257
    %10429 = vmatmul.mubr.bf16.gmra.mxu0 %v8256
    %v10430 = vpop.f32.mrf.mxu0
    %v10431 = vadd.f32 0.0, %v10430
    %v10432 = vpop.f32.mrf.mxu0
    %v10433 = vadd.f32 0.0, %v10432
    %v10434 = vpop.f32.mrf.mxu0
    %v10435 = vadd.f32 0.0, %v10434
    %v10436 = vpop.f32.mrf.mxu0
    %v10437 = vadd.f32 0.0, %v10436
    %10438 = vmatprep.mubr.bf16.mxu0 %v8259
    %10439 = vmatmul.mubr.bf16.gmra.mxu0 %v8258
    %v10440 = vpop.f32.mrf.mxu0
    %v10441 = vadd.f32 0.0, %v10440
    %v10442 = vpop.f32.mrf.mxu0
    %v10443 = vadd.f32 0.0, %v10442
    %v10444 = vpop.f32.mrf.mxu0
    %v10445 = vadd.f32 0.0, %v10444
    %v10446 = vpop.f32.mrf.mxu0
    %v10447 = vadd.f32 0.0, %v10446
    %10448 = vmatprep.mubr.bf16.mxu0 %v8265
    %10449 = vmatmul.mubr.bf16.gmra.mxu0 %v8264
    %v10450 = vpop.f32.mrf.mxu0
    %v10451 = vadd.f32 0.0, %v10450
    %v10452 = vpop.f32.mrf.mxu0
    %v10453 = vadd.f32 0.0, %v10452
    %v10454 = vpop.f32.mrf.mxu0
    %v10455 = vadd.f32 0.0, %v10454
    %v10456 = vpop.f32.mrf.mxu0
    %v10457 = vadd.f32 0.0, %v10456
    %10458 = vmatprep.mubr.bf16.mxu0 %v8267
    %10459 = vmatmul.mubr.bf16.gmra.mxu0 %v8266
    %v10460 = vpop.f32.mrf.mxu0
    %v10461 = vadd.f32 0.0, %v10460
    %v10462 = vpop.f32.mrf.mxu0
    %v10463 = vadd.f32 0.0, %v10462
    %v10464 = vpop.f32.mrf.mxu0
    %v10465 = vadd.f32 0.0, %v10464
    %v10466 = vpop.f32.mrf.mxu0
    %v10467 = vadd.f32 0.0, %v10466
    %10468 = vmatprep.mubr.bf16.mxu0 %v8273
    %10469 = vmatmul.mubr.bf16.gmra.mxu0 %v8272
    %v10470 = vpop.f32.mrf.mxu0
    %v10471 = vadd.f32 0.0, %v10470
    %v10472 = vpop.f32.mrf.mxu0
    %v10473 = vadd.f32 0.0, %v10472
    %v10474 = vpop.f32.mrf.mxu0
    %v10475 = vadd.f32 0.0, %v10474
    %v10476 = vpop.f32.mrf.mxu0
    %v10477 = vadd.f32 0.0, %v10476
    %10478 = vmatprep.mubr.bf16.mxu0 %v8275
    %10479 = vmatmul.mubr.bf16.gmra.mxu0 %v8274
    %v10480 = vpop.f32.mrf.mxu0
    %v10481 = vadd.f32 0.0, %v10480
    %v10482 = vpop.f32.mrf.mxu0
    %v10483 = vadd.f32 0.0, %v10482
    %v10484 = vpop.f32.mrf.mxu0
    %v10485 = vadd.f32 0.0, %v10484
    %v10486 = vpop.f32.mrf.mxu0
    %v10487 = vadd.f32 0.0, %v10486
    %10488 = vdwg.mxu0
    %v10489 = vadd.f32 %v10106, %v10411
    %v10490 = vadd.f32 %v10108, %v10413
    %v10491 = vadd.f32 %v10110, %v10415
    %v10492 = vadd.f32 %v10112, %v10417
    %v10493 = vadd.f32 %v10116, %v10421
    %v10494 = vadd.f32 %v10118, %v10423
    %v10495 = vadd.f32 %v10120, %v10425
    %v10496 = vadd.f32 %v10122, %v10427
    %v10497 = vadd.f32 %v10126, %v10431
    %v10498 = vadd.f32 %v10128, %v10433
    %v10499 = vadd.f32 %v10130, %v10435
    %v10500 = vadd.f32 %v10132, %v10437
    %v10501 = vadd.f32 %v10136, %v10441
    %v10502 = vadd.f32 %v10138, %v10443
    %v10503 = vadd.f32 %v10140, %v10445
    %v10504 = vadd.f32 %v10142, %v10447
    %v10505 = vadd.f32 %v10146, %v10451
    %v10506 = vadd.f32 %v10148, %v10453
    %v10507 = vadd.f32 %v10150, %v10455
    %v10508 = vadd.f32 %v10152, %v10457
    %v10509 = vadd.f32 %v10156, %v10461
    %v10510 = vadd.f32 %v10158, %v10463
    %v10511 = vadd.f32 %v10160, %v10465
    %v10512 = vadd.f32 %v10162, %v10467
    %v10513 = vadd.f32 %v10166, %v10471
    %v10514 = vadd.f32 %v10168, %v10473
    %v10515 = vadd.f32 %v10170, %v10475
    %v10516 = vadd.f32 %v10172, %v10477
    %v10517 = vadd.f32 %v10176, %v10481
    %v10518 = vadd.f32 %v10178, %v10483
    %v10519 = vadd.f32 %v10180, %v10485
    %v10520 = vadd.f32 %v10182, %v10487
    %v10521 = vmax.f32 %v10489, 0.0
    %v10522 = vmax.f32 %v10490, 0.0
    %v10523 = vmax.f32 %v10491, 0.0
    %v10524 = vmax.f32 %v10492, 0.0
    %v10525 = vmax.f32 %v10493, 0.0
    %v10526 = vmax.f32 %v10494, 0.0
    %v10527 = vmax.f32 %v10495, 0.0
    %v10528 = vmax.f32 %v10496, 0.0
    %v10529 = vmax.f32 %v10497, 0.0
    %v10530 = vmax.f32 %v10498, 0.0
    %v10531 = vmax.f32 %v10499, 0.0
    %v10532 = vmax.f32 %v10500, 0.0
    %v10533 = vmax.f32 %v10501, 0.0
    %v10534 = vmax.f32 %v10502, 0.0
    %v10535 = vmax.f32 %v10503, 0.0
    %v10536 = vmax.f32 %v10504, 0.0
    %v10537 = vmax.f32 %v10505, 0.0
    %v10538 = vmax.f32 %v10506, 0.0
    %v10539 = vmax.f32 %v10507, 0.0
    %v10540 = vmax.f32 %v10508, 0.0
    %v10541 = vmax.f32 %v10509, 0.0
    %v10542 = vmax.f32 %v10510, 0.0
    %v10543 = vmax.f32 %v10511, 0.0
    %v10544 = vmax.f32 %v10512, 0.0
    %v10545 = vmax.f32 %v10513, 0.0
    %v10546 = vmax.f32 %v10514, 0.0
    %v10547 = vmax.f32 %v10515, 0.0
    %v10548 = vmax.f32 %v10516, 0.0
    %v10549 = vmax.f32 %v10517, 0.0
    %v10550 = vmax.f32 %v10518, 0.0
    %v10551 = vmax.f32 %v10519, 0.0
    %v10552 = vmax.f32 %v10520, 0.0
    %v10553 = vld [vmem:[#allocation2 + $0x1580] sm:$0xff]
    %v10554 = vld [vmem:[#allocation2 + $0x1588] sm:$0xff]
    %v10555 = vld [vmem:[#allocation2 + $0x1590] sm:$0xff]
    %v10556 = vld [vmem:[#allocation2 + $0x1598] sm:$0xff]
    %v10557 = vld [vmem:[#allocation2 + $0x15a0] sm:$0xff]
    %v10558 = vld [vmem:[#allocation2 + $0x15a8] sm:$0xff]
    %v10559 = vld [vmem:[#allocation2 + $0x15b0] sm:$0xff]
    %v10560 = vld [vmem:[#allocation2 + $0x15b8] sm:$0xff]
    %v10561 = vld [vmem:[#allocation2 + $0x15c0] sm:$0xff]
    %v10562 = vld [vmem:[#allocation2 + $0x15c8] sm:$0xff]
    %v10563 = vld [vmem:[#allocation2 + $0x15d0] sm:$0xff]
    %v10564 = vld [vmem:[#allocation2 + $0x15d8] sm:$0xff]
    %v10565 = vld [vmem:[#allocation2 + $0x15e0] sm:$0xff]
    %v10566 = vld [vmem:[#allocation2 + $0x15e8] sm:$0xff]
    %v10567 = vld [vmem:[#allocation2 + $0x15f0] sm:$0xff]
    %v10568 = vld [vmem:[#allocation2 + $0x15f8] sm:$0xff]
    %v10569 = vld [vmem:[#allocation2 + $0x1600] sm:$0xff]
    %v10570 = vld [vmem:[#allocation2 + $0x1608] sm:$0xff]
    %v10571 = vld [vmem:[#allocation2 + $0x1610] sm:$0xff]
    %v10572 = vld [vmem:[#allocation2 + $0x1618] sm:$0xff]
    %v10573 = vld [vmem:[#allocation2 + $0x1620] sm:$0xff]
    %v10574 = vld [vmem:[#allocation2 + $0x1628] sm:$0xff]
    %v10575 = vld [vmem:[#allocation2 + $0x1630] sm:$0xff]
    %v10576 = vld [vmem:[#allocation2 + $0x1638] sm:$0xff]
    %v10577 = vld [vmem:[#allocation2 + $0x1640] sm:$0xff]
    %v10578 = vld [vmem:[#allocation2 + $0x1648] sm:$0xff]
    %v10579 = vld [vmem:[#allocation2 + $0x1650] sm:$0xff]
    %v10580 = vld [vmem:[#allocation2 + $0x1658] sm:$0xff]
    %v10581 = vld [vmem:[#allocation2 + $0x1660] sm:$0xff]
    %v10582 = vld [vmem:[#allocation2 + $0x1668] sm:$0xff]
    %v10583 = vld [vmem:[#allocation2 + $0x1670] sm:$0xff]
    %v10584 = vld [vmem:[#allocation2 + $0x1678] sm:$0xff]
    %v10585 = vpack.c.bf16 %v10523, %v10521
    %v10586 = vpack.c.bf16 %v10524, %v10522
    %v10587 = vpack.c.bf16 %v10527, %v10525
    %v10588 = vpack.c.bf16 %v10528, %v10526
    %v10589 = vpack.c.bf16 %v10531, %v10529
    %v10590 = vpack.c.bf16 %v10532, %v10530
    %v10591 = vpack.c.bf16 %v10535, %v10533
    %v10592 = vpack.c.bf16 %v10536, %v10534
    %v10593 = vpack.c.bf16 %v10539, %v10537
    %v10594 = vpack.c.bf16 %v10540, %v10538
    %v10595 = vpack.c.bf16 %v10543, %v10541
    %v10596 = vpack.c.bf16 %v10544, %v10542
    %v10597 = vpack.c.bf16 %v10547, %v10545
    %v10598 = vpack.c.bf16 %v10548, %v10546
    %v10599 = vpack.c.bf16 %v10551, %v10549
    %v10600 = vpack.c.bf16 %v10552, %v10550
    %v10633 = vunpack.c.l.b16 %v10553
    %v10634 = vunpack.c.h.b16 %v10553
    %v10635 = vunpack.c.l.b16 %v10554
    %v10636 = vunpack.c.h.b16 %v10554
    %v10637 = vunpack.c.l.b16 %v10555
    %v10638 = vunpack.c.h.b16 %v10555
    %v10639 = vunpack.c.l.b16 %v10556
    %v10640 = vunpack.c.h.b16 %v10556
    %v10641 = vunpack.c.l.b16 %v10557
    %v10642 = vunpack.c.h.b16 %v10557
    %v10643 = vunpack.c.l.b16 %v10558
    %v10644 = vunpack.c.h.b16 %v10558
    %v10645 = vunpack.c.l.b16 %v10559
    %v10646 = vunpack.c.h.b16 %v10559
    %v10647 = vunpack.c.l.b16 %v10560
    %v10648 = vunpack.c.h.b16 %v10560
    %v10649 = vunpack.c.l.b16 %v10561
    %v10650 = vunpack.c.h.b16 %v10561
    %v10651 = vunpack.c.l.b16 %v10562
    %v10652 = vunpack.c.h.b16 %v10562
    %v10653 = vunpack.c.l.b16 %v10563
    %v10654 = vunpack.c.h.b16 %v10563
    %v10655 = vunpack.c.l.b16 %v10564
    %v10656 = vunpack.c.h.b16 %v10564
    %v10657 = vunpack.c.l.b16 %v10565
    %v10658 = vunpack.c.h.b16 %v10565
    %v10659 = vunpack.c.l.b16 %v10566
    %v10660 = vunpack.c.h.b16 %v10566
    %v10661 = vunpack.c.l.b16 %v10567
    %v10662 = vunpack.c.h.b16 %v10567
    %v10663 = vunpack.c.l.b16 %v10568
    %v10664 = vunpack.c.h.b16 %v10568
    %v10665 = vunpack.c.l.b16 %v10569
    %v10666 = vunpack.c.h.b16 %v10569
    %v10667 = vunpack.c.l.b16 %v10570
    %v10668 = vunpack.c.h.b16 %v10570
    %v10669 = vunpack.c.l.b16 %v10571
    %v10670 = vunpack.c.h.b16 %v10571
    %v10671 = vunpack.c.l.b16 %v10572
    %v10672 = vunpack.c.h.b16 %v10572
    %v10673 = vunpack.c.l.b16 %v10573
    %v10674 = vunpack.c.h.b16 %v10573
    %v10675 = vunpack.c.l.b16 %v10574
    %v10676 = vunpack.c.h.b16 %v10574
    %v10677 = vunpack.c.l.b16 %v10575
    %v10678 = vunpack.c.h.b16 %v10575
    %v10679 = vunpack.c.l.b16 %v10576
    %v10680 = vunpack.c.h.b16 %v10576
    %v10681 = vunpack.c.l.b16 %v10577
    %v10682 = vunpack.c.h.b16 %v10577
    %v10683 = vunpack.c.l.b16 %v10578
    %v10684 = vunpack.c.h.b16 %v10578
    %v10685 = vunpack.c.l.b16 %v10579
    %v10686 = vunpack.c.h.b16 %v10579
    %v10687 = vunpack.c.l.b16 %v10580
    %v10688 = vunpack.c.h.b16 %v10580
    %v10689 = vunpack.c.l.b16 %v10581
    %v10690 = vunpack.c.h.b16 %v10581
    %v10691 = vunpack.c.l.b16 %v10582
    %v10692 = vunpack.c.h.b16 %v10582
    %v10693 = vunpack.c.l.b16 %v10583
    %v10694 = vunpack.c.h.b16 %v10583
    %v10695 = vunpack.c.l.b16 %v10584
    %v10696 = vunpack.c.h.b16 %v10584
    %v10697 = vpack.c.b16 %v10635, %v10633
    %v10698 = vpack.c.b16 %v10636, %v10634
    %v10699 = vpack.c.b16 %v10639, %v10637
    %v10700 = vpack.c.b16 %v10640, %v10638
    %v10701 = vpack.c.b16 %v10643, %v10641
    %v10702 = vpack.c.b16 %v10644, %v10642
    %v10703 = vpack.c.b16 %v10647, %v10645
    %v10704 = vpack.c.b16 %v10648, %v10646
    %v10705 = vpack.c.b16 %v10651, %v10649
    %v10706 = vpack.c.b16 %v10652, %v10650
    %v10707 = vpack.c.b16 %v10655, %v10653
    %v10708 = vpack.c.b16 %v10656, %v10654
    %v10709 = vpack.c.b16 %v10659, %v10657
    %v10710 = vpack.c.b16 %v10660, %v10658
    %v10711 = vpack.c.b16 %v10663, %v10661
    %v10712 = vpack.c.b16 %v10664, %v10662
    %v10713 = vpack.c.b16 %v10667, %v10665
    %v10714 = vpack.c.b16 %v10668, %v10666
    %v10715 = vpack.c.b16 %v10671, %v10669
    %v10716 = vpack.c.b16 %v10672, %v10670
    %v10717 = vpack.c.b16 %v10675, %v10673
    %v10718 = vpack.c.b16 %v10676, %v10674
    %v10719 = vpack.c.b16 %v10679, %v10677
    %v10720 = vpack.c.b16 %v10680, %v10678
    %v10721 = vpack.c.b16 %v10683, %v10681
    %v10722 = vpack.c.b16 %v10684, %v10682
    %v10723 = vpack.c.b16 %v10687, %v10685
    %v10724 = vpack.c.b16 %v10688, %v10686
    %v10725 = vpack.c.b16 %v10691, %v10689
    %v10726 = vpack.c.b16 %v10692, %v10690
    %v10727 = vpack.c.b16 %v10695, %v10693
    %v10728 = vpack.c.b16 %v10696, %v10694
    %10761 = vmatprep.subr.bf16.mxu0 %v10712
    %10762 = vmatpush1.bf16.msra.mxu0 %v10711
    %10763 = vmatprep.subr.bf16.mxu0 %v10710
    %10764 = vmatpush1.bf16.msra.mxu0 %v10709
    %10765 = vmatprep.subr.bf16.mxu0 %v10708
    %10766 = vmatpush1.bf16.msra.mxu0 %v10707
    %10767 = vmatprep.subr.bf16.mxu0 %v10706
    %10768 = vmatpush1.bf16.msra.mxu0 %v10705
    %10769 = vmatprep.subr.bf16.mxu0 %v10704
    %10770 = vmatpush1.bf16.msra.mxu0 %v10703
    %10771 = vmatprep.subr.bf16.mxu0 %v10702
    %10772 = vmatpush1.bf16.msra.mxu0 %v10701
    %10773 = vmatprep.subr.bf16.mxu0 %v10700
    %10774 = vmatpush1.bf16.msra.mxu0 %v10699
    %10775 = vmatprep.subr.bf16.mxu0 %v10698
    %10776 = vmatpush1.bf16.msra.mxu0 %v10697
    %10777 = vmatprep.subr.bf16.mxu0 %v10728
    %10778 = vmatpush2.bf16.msra.mxu0 %v10727
    %10779 = vmatprep.subr.bf16.mxu0 %v10726
    %10780 = vmatpush2.bf16.msra.mxu0 %v10725
    %10781 = vmatprep.subr.bf16.mxu0 %v10724
    %10782 = vmatpush2.bf16.msra.mxu0 %v10723
    %10783 = vmatprep.subr.bf16.mxu0 %v10722
    %10784 = vmatpush2.bf16.msra.mxu0 %v10721
    %10785 = vmatprep.subr.bf16.mxu0 %v10720
    %10786 = vmatpush2.bf16.msra.mxu0 %v10719
    %10787 = vmatprep.subr.bf16.mxu0 %v10718
    %10788 = vmatpush2.bf16.msra.mxu0 %v10717
    %10789 = vmatprep.subr.bf16.mxu0 %v10716
    %10790 = vmatpush2.bf16.msra.mxu0 %v10715
    %10791 = vmatprep.subr.bf16.mxu0 %v10714
    %10792 = vmatpush2.bf16.msra.mxu0 %v10713
    %10793 = vmatprep.mubr.bf16.mxu0 %v10586
    %10794 = vmatmul.mubr.bf16.gmra.mxu0 %v10585
    %v10795 = vpop.f32.mrf.mxu0
    %v10796 = vadd.f32 0.0, %v10795
    %v10797 = vpop.f32.mrf.mxu0
    %v10798 = vadd.f32 0.0, %v10797
    %v10799 = vpop.f32.mrf.mxu0
    %v10800 = vadd.f32 0.0, %v10799
    %v10801 = vpop.f32.mrf.mxu0
    %v10802 = vadd.f32 0.0, %v10801
    %10803 = vmatprep.mubr.bf16.mxu0 %v10588
    %10804 = vmatmul.mubr.bf16.gmra.mxu0 %v10587
    %v10805 = vpop.f32.mrf.mxu0
    %v10806 = vadd.f32 0.0, %v10805
    %v10807 = vpop.f32.mrf.mxu0
    %v10808 = vadd.f32 0.0, %v10807
    %v10809 = vpop.f32.mrf.mxu0
    %v10810 = vadd.f32 0.0, %v10809
    %v10811 = vpop.f32.mrf.mxu0
    %v10812 = vadd.f32 0.0, %v10811
    %10813 = vmatprep.mubr.bf16.mxu0 %v10590
    %10814 = vmatmul.mubr.bf16.gmra.mxu0 %v10589
    %v10815 = vpop.f32.mrf.mxu0
    %v10816 = vadd.f32 0.0, %v10815
    %v10817 = vpop.f32.mrf.mxu0
    %v10818 = vadd.f32 0.0, %v10817
    %v10819 = vpop.f32.mrf.mxu0
    %v10820 = vadd.f32 0.0, %v10819
    %v10821 = vpop.f32.mrf.mxu0
    %v10822 = vadd.f32 0.0, %v10821
    %10823 = vmatprep.mubr.bf16.mxu0 %v10592
    %10824 = vmatmul.mubr.bf16.gmra.mxu0 %v10591
    %v10825 = vpop.f32.mrf.mxu0
    %v10826 = vadd.f32 0.0, %v10825
    %v10827 = vpop.f32.mrf.mxu0
    %v10828 = vadd.f32 0.0, %v10827
    %v10829 = vpop.f32.mrf.mxu0
    %v10830 = vadd.f32 0.0, %v10829
    %v10831 = vpop.f32.mrf.mxu0
    %v10832 = vadd.f32 0.0, %v10831
    %10833 = vmatprep.mubr.bf16.mxu0 %v10594
    %10834 = vmatmul.mubr.bf16.gmra.mxu0 %v10593
    %v10835 = vpop.f32.mrf.mxu0
    %v10836 = vadd.f32 0.0, %v10835
    %v10837 = vpop.f32.mrf.mxu0
    %v10838 = vadd.f32 0.0, %v10837
    %v10839 = vpop.f32.mrf.mxu0
    %v10840 = vadd.f32 0.0, %v10839
    %v10841 = vpop.f32.mrf.mxu0
    %v10842 = vadd.f32 0.0, %v10841
    %10843 = vmatprep.mubr.bf16.mxu0 %v10596
    %10844 = vmatmul.mubr.bf16.gmra.mxu0 %v10595
    %v10845 = vpop.f32.mrf.mxu0
    %v10846 = vadd.f32 0.0, %v10845
    %v10847 = vpop.f32.mrf.mxu0
    %v10848 = vadd.f32 0.0, %v10847
    %v10849 = vpop.f32.mrf.mxu0
    %v10850 = vadd.f32 0.0, %v10849
    %v10851 = vpop.f32.mrf.mxu0
    %v10852 = vadd.f32 0.0, %v10851
    %10853 = vmatprep.mubr.bf16.mxu0 %v10598
    %10854 = vmatmul.mubr.bf16.gmra.mxu0 %v10597
    %v10855 = vpop.f32.mrf.mxu0
    %v10856 = vadd.f32 0.0, %v10855
    %v10857 = vpop.f32.mrf.mxu0
    %v10858 = vadd.f32 0.0, %v10857
    %v10859 = vpop.f32.mrf.mxu0
    %v10860 = vadd.f32 0.0, %v10859
    %v10861 = vpop.f32.mrf.mxu0
    %v10862 = vadd.f32 0.0, %v10861
    %10863 = vmatprep.mubr.bf16.mxu0 %v10600
    %10864 = vmatmul.mubr.bf16.gmra.mxu0 %v10599
    %v10865 = vpop.f32.mrf.mxu0
    %v10866 = vadd.f32 0.0, %v10865
    %v10867 = vpop.f32.mrf.mxu0
    %v10868 = vadd.f32 0.0, %v10867
    %v10869 = vpop.f32.mrf.mxu0
    %v10870 = vadd.f32 0.0, %v10869
    %v10871 = vpop.f32.mrf.mxu0
    %v10872 = vadd.f32 0.0, %v10871
    %10873 = vdwg.mxu0
    %v10874 = vadd.f32 %v10796, %v10816
    %v10875 = vadd.f32 %v10874, %v10836
    %v10876 = vadd.f32 %v10875, %v10856
    %v10877 = vadd.f32 %v10798, %v10818
    %v10878 = vadd.f32 %v10877, %v10838
    %v10879 = vadd.f32 %v10878, %v10858
    %v10880 = vadd.f32 %v10800, %v10820
    %v10881 = vadd.f32 %v10880, %v10840
    %v10882 = vadd.f32 %v10881, %v10860
    %v10883 = vadd.f32 %v10802, %v10822
    %v10884 = vadd.f32 %v10883, %v10842
    %v10885 = vadd.f32 %v10884, %v10862
    %v10886 = vadd.f32 %v10806, %v10826
    %v10887 = vadd.f32 %v10886, %v10846
    %v10888 = vadd.f32 %v10887, %v10866
    %v10889 = vadd.f32 %v10808, %v10828
    %v10890 = vadd.f32 %v10889, %v10848
    %v10891 = vadd.f32 %v10890, %v10868
    %v10892 = vadd.f32 %v10810, %v10830
    %v10893 = vadd.f32 %v10892, %v10850
    %v10894 = vadd.f32 %v10893, %v10870
    %v10895 = vadd.f32 %v10812, %v10832
    %v10896 = vadd.f32 %v10895, %v10852
    %v10897 = vadd.f32 %v10896, %v10872
    %s10898 = scalar_lea.vmem [#allocation4], 7
    %v10899 = vld [vmem:[%s10898] ss:$8 sm:$0x3]
    %v10901 = vlaneseq
    %v10902 = vshrl.u32 %v10901, 7
    %v10903 = vsub.s32 0, %v10902
    %v10904 = vrot.slane %v10899, %v10903
    %v10905 = vlaneseq
    %v10906 = vshrl.u32 %v10905, 7
    %v10907 = vsub.s32 1, %v10906
    %v10908 = vrot.slane %v10899, %v10907
    %v10911 = vadd.f32 %v10876, %v10904
    %v10912 = vadd.f32 %v10879, %v10908
    %v10913 = vadd.f32 %v10882, %v10904
    %v10914 = vadd.f32 %v10885, %v10908
    %v10915 = vadd.f32 %v10888, %v10904
    %v10916 = vadd.f32 %v10891, %v10908
    %v10917 = vadd.f32 %v10894, %v10904
    %v10918 = vadd.f32 %v10897, %v10908
    %10919 = vst [vmem:[%s3] sm:$0xff] %v10911
    %10920 = vst [vmem:[%s3 + $0x8] sm:$0xff] %v10912
    %10921 = vst [vmem:[%s3 + $0x10] sm:$0xff] %v10913
    %10922 = vst [vmem:[%s3 + $0x18] sm:$0xff] %v10914
    %10923 = vst [vmem:[%s3 + $0x20] sm:$0xff] %v10915
    %10924 = vst [vmem:[%s3 + $0x28] sm:$0xff] %v10916
    %10925 = vst [vmem:[%s3 + $0x30] sm:$0xff] %v10917
    %10926 = vst [vmem:[%s3 + $0x38] sm:$0xff] %v10918
    // Predicated region
    $region22: #{forward.1} parent=1 // pred_check
      _
    $region23: #{forward.1} parent=1 // pred_check_branch
      %10928 = sbr.rel (0) target = $region25
    $region24: #{forward.1} parent=1 // pred_region
      _
    $region25: #{forward.1} parent=1 // pred_fallthru
      _
    // Predicated region
    $region26: #{forward.1} parent=1 // pred_check
      _
    $region27: #{forward.1} parent=1 // pred_check_branch
      %10930 = sbr.rel (0) target = $region29
    $region28: #{forward.1} parent=1 // pred_region
      _
    $region29: #{forward.1} parent=1 // pred_fallthru
      _
    %10931 = vsyncpa [#allocation3], 1
    %10932 = vsyncpa [#allocation5], 1

</llo_original>
